<compile_context>
chip_gen: v7x
topology: tpu7x:2x2x1
jax: 0.10.0
libtpu: 0.0.40
codegen_flags: <defaults>
</compile_context>

<pallas_src>
import jax
import jax.numpy as jnp
from jax import lax
from jax.experimental import pallas as pl
from jax.experimental.pallas import tpu as pltpu

SOS_TOKEN = 1
LANE = 128


# ----------------------------------------------------------------------------- helpers
def _full_spec(shape):
    n = len(shape)
    return pl.BlockSpec(shape, lambda *args, _n=n: (0,) * _n)


def _gru_step(x, h, wih_ref, whh_ref, bih_ref, bhh_ref):
    """Fused PyTorch GRUCell step.

    x, h: (1, H). wih/whh packed (H, 3H) with [r | z | n] column blocks
    (== torch weight_ih_l0.T / weight_hh_l0.T); bih/bhh packed (1, 3H).
    Two MXU matmuls per step instead of six; gh_n stays separate for the r * gh_n term.
    """
    H = h.shape[-1]
    gi = jnp.dot(x, wih_ref[...], preferred_element_type=jnp.float32) + bih_ref[...]   # (1, 3H)
    gh = jnp.dot(h, whh_ref[...], preferred_element_type=jnp.float32) + bhh_ref[...]   # (1, 3H)
    s = gi + gh
    r = jax.nn.sigmoid(s[:, 0:H])
    z = jax.nn.sigmoid(s[:, H:2 * H])
    n = jnp.tanh(gi[:, 2 * H:3 * H] + r * gh[:, 2 * H:3 * H])
    return (1.0 - z) * n + z * h


# ----------------------------------------------------------------------------- fused kernel
def _build_fused_kernel(max_length):
    T = max_length

    def kernel(tok_sm,                                             # scalar-prefetch: (S,) int32 in SMEM
               emb_ref,
               wih_f_ref, whh_f_ref, bih_f_ref, bhh_f_ref,         # encoder forward GRU
               wih_b_ref, whh_b_ref, bih_b_ref, bhh_b_ref,         # encoder backward GRU
               dwih_ref, dwhh_ref, dbih_ref, dbhh_ref,             # decoder GRU
               wc1_ref, wc2_ref, bc_ref, wo_ref, bo_ref,           # attn-concat Linear + output Linear
               tok_out_ref, score_out_ref,                         # outputs (1, LANE)
               enc_scr, enc_bwd_scr):                              # VMEM scratch (S, H) x2
        S, H = enc_scr.shape
        V = emb_ref.shape[0]

        # ---------------- bidirectional encoder: both directions interleaved, fully unrolled
        h_f = jnp.zeros((1, H), jnp.float32)
        h_b = jnp.zeros((1, H), jnp.float32)
        for t in range(S):
            x_f = emb_ref[pl.ds(tok_sm[t], 1), :]                  # embedding lookup via SMEM token id
            x_b = emb_ref[pl.ds(tok_sm[S - 1 - t], 1), :]
            h_f = _gru_step(x_f, h_f, wih_f_ref, whh_f_ref, bih_f_ref, bhh_f_ref)
            h_b = _gru_step(x_b, h_b, wih_b_ref, whh_b_ref, bih_b_ref, bhh_b_ref)
            enc_scr[pl.ds(t, 1), :] = h_f
            enc_bwd_scr[pl.ds(S - 1 - t, 1), :] = h_b

        # bi-GRU outputs are summed (out[:, :H] + out[:, H:]) -> one vectorized add.
        # (S, H) is tiny here so we keep it as a live value across the decode loop.
        enc_out = enc_scr[...] + enc_bwd_scr[...]
        h = h_f          # encoder_hidden[:decoder.n_layers] == forward-direction final hidden

        # ---------------- greedy decoder, fully unrolled
        iota_v = lax.broadcasted_iota(jnp.int32, (1, V), 1)        # hoisted out of the loop
        lane_iota = lax.broadcasted_iota(jnp.int32, (1, LANE), 1)
        tok_acc = jnp.zeros((1, LANE), jnp.int32)
        sc_acc = jnp.zeros((1, LANE), jnp.float32)
        x = emb_ref[pl.ds(SOS_TOKEN, 1), :]                        # embedding of SOS token

        for t in range(T):
            h = _gru_step(x, h, dwih_ref, dwhh_ref, dbih_ref, dbhh_ref)      # (1, H)

            # Luong "dot" attention, lane-dense: energies (1, S) via MXU contraction on H.
            energies = lax.dot_general(h, enc_out, (((1,), (1,)), ((), ())),
                                       preferred_element_type=jnp.float32)   # (1, S)
            e = jnp.exp(energies - jnp.max(energies, axis=1, keepdims=True))
            attn = e * pl.reciprocal(jnp.sum(e, axis=1, keepdims=True), approx=True)  # (1, S)
            context = jnp.dot(attn, enc_out, preferred_element_type=jnp.float32)      # (1, H)

            # concat(rnn_output, context) -> Linear(2H, H) -> tanh, split into two matmuls
            # (wc1 == W_concat[:, :H].T, wc2 == W_concat[:, H:].T) to avoid a lane-concat.
            concat_out = jnp.tanh(
                jnp.dot(h, wc1_ref[...], preferred_element_type=jnp.float32)
                + jnp.dot(context, wc2_ref[...], preferred_element_type=jnp.float32)
                + bc_ref[...])                                               # (1, H)

            # Linear(H, V); softmax is skipped: argmax(softmax) == argmax(logits) and
            # max softmax prob == 1 / sum(exp(logit - max_logit)).
            logits = (jnp.dot(concat_out, wo_ref[...], preferred_element_type=jnp.float32)
                      + bo_ref[...])                                         # (1, V)
            max_l = jnp.max(logits, axis=1, keepdims=True)                   # (1, 1)
            denom = jnp.sum(jnp.exp(logits - max_l), axis=1, keepdims=True)  # (1, 1)
            score = pl.reciprocal(denom, approx=True)                        # max softmax prob
            idx = jnp.min(jnp.where(logits >= max_l, iota_v, V),
                          axis=1, keepdims=True)                             # (1, 1) first argmax

            # accumulate token / score into lane t of the lane-dense result rows (VPU select)
            tok_acc = jnp.where(lane_iota == t, jnp.broadcast_to(idx, (1, LANE)), tok_acc)
            sc_acc = jnp.where(lane_iota == t, jnp.broadcast_to(score, (1, LANE)), sc_acc)

            # next decoder input = embedding row of the argmax token (one-hot MXU gather;
            # tiny V so this is a single small matmul).
            # TODO(synk): at production vocab sizes, replace with a scalar-indexed dynamic
            # read of emb_ref (route idx through SMEM) and tile wo/emb over V.
            onehot = (iota_v == idx).astype(jnp.float32)                     # (1, V)
            x = jnp.dot(onehot, emb_ref[...], preferred_element_type=jnp.float32)  # (1, H)

        # single lane-dense store per output (instead of T masked row stores)
        tok_out_ref[...] = tok_acc
        score_out_ref[...] = sc_acc

    return kernel


# ----------------------------------------------------------------------------- GreedySearchDecoder.forward
def greedy_search_decoder(params, input_seq, input_length, max_length):
    # TODO(synk): pack_padded_sequence masking for input_length < seq_len not implemented;
    # this synthetic setup uses input_length == seq_len.
    assert max_length <= LANE, "this toy layout packs decode steps into one 128-lane row"
    tokens = input_seq[:, 0].astype(jnp.int32)                     # (S,)
    S = tokens.shape[0]
    H = params['embedding'].shape[1]

    ordered = (params['embedding'],
               params['enc_wih_f'], params['enc_whh_f'], params['enc_bih_f'], params['enc_bhh_f'],
               params['enc_wih_b'], params['enc_whh_b'], params['enc_bih_b'], params['enc_bhh_b'],
               params['dec_wih'], params['dec_whh'], params['dec_bih'], params['dec_bhh'],
               params['dec_wc1'], params['dec_wc2'], params['dec_bc'],
               params['dec_wo'], params['dec_bo'])

    grid_spec = pltpu.PrefetchScalarGridSpec(
        num_scalar_prefetch=1,                                     # token ids -> SMEM
        grid=(1,),
        in_specs=[_full_spec(a.shape) for a in ordered],
        out_specs=(_full_spec((1, LANE)), _full_spec((1, LANE))),
        scratch_shapes=[pltpu.VMEM((S, H), jnp.float32),           # encoder forward states
                        pltpu.VMEM((S, H), jnp.float32)],          # encoder backward states
    )

    tok, score = pl.pallas_call(
        _build_fused_kernel(max_length),
        grid_spec=grid_spec,
        out_shape=(jax.ShapeDtypeStruct((1, LANE), jnp.int32),
                   jax.ShapeDtypeStruct((1, LANE), jnp.float32)),
        compiler_params=pltpu.CompilerParams(dimension_semantics=("arbitrary",)),
    )(tokens, *ordered)
    return tok[0, :max_length], score[0, :max_length]


# ----------------------------------------------------------------------------- params
def init_params(key, vocab, hidden):
    """Weights stored pre-packed for the fused GRU gates:
    w*_ih / w*_hh : (H, 3H) with [r | z | n] column blocks (== torch weight_*_l0.T),
    b*_ih / b*_hh : (1, 3H). Concat Linear split: wc1 == W_concat[:, :H].T, wc2 == W_concat[:, H:].T.
    """
    ks = jax.random.split(key, 18)

    def w(k, shape):
        return (0.1 * jax.random.normal(k, shape)).astype(jnp.float32)

    return {
        'embedding': w(ks[0], (vocab, hidden)),
        # encoder: bidirectional GRU, 1 layer (forward / backward directions)
        'enc_wih_f': w(ks[1], (hidden, 3 * hidden)),
        'enc_whh_f': w(ks[2], (hidden, 3 * hidden)),
        'enc_bih_f': w(ks[3], (1, 3 * hidden)),
        'enc_bhh_f': w(ks[4], (1, 3 * hidden)),
        'enc_wih_b': w(ks[5], (hidden, 3 * hidden)),
        'enc_whh_b': w(ks[6], (hidden, 3 * hidden)),
        'enc_bih_b': w(ks[7], (1, 3 * hidden)),
        'enc_bhh_b': w(ks[8], (1, 3 * hidden)),
        # decoder: GRU (1 layer) + Luong dot attention + concat Linear(2H,H) + out Linear(H,V)
        'dec_wih': w(ks[9], (hidden, 3 * hidden)),
        'dec_whh': w(ks[10], (hidden, 3 * hidden)),
        'dec_bih': w(ks[11], (1, 3 * hidden)),
        'dec_bhh': w(ks[12], (1, 3 * hidden)),
        'dec_wc1': w(ks[13], (hidden, hidden)),
        'dec_wc2': w(ks[14], (hidden, hidden)),
        'dec_bc':  w(ks[15], (1, hidden)),
        'dec_wo':  w(ks[16], (hidden, vocab)),
        'dec_bo':  w(ks[17], (1, vocab)),
    }


if __name__ == "__main__":
    VOCAB, HIDDEN, SEQ, MAX_LEN = 64, 32, 8, 8
    key = jax.random.PRNGKey(0)
    kp, kseq = jax.random.split(key)
    params = init_params(kp, VOCAB, HIDDEN)

    input_seq = jax.random.randint(kseq, (SEQ, 1), 2, VOCAB, dtype=jnp.int32)  # (S, 1) tokens
    input_length = jnp.array([SEQ], jnp.int32)

    all_tokens, all_scores = greedy_search_decoder(params, input_seq, input_length, MAX_LEN)
    jax.block_until_ready((all_tokens, all_scores))

    assert all_tokens.shape == (MAX_LEN,) and all_tokens.dtype == jnp.int32
    assert all_scores.shape == (MAX_LEN,) and all_scores.dtype == jnp.float32
    assert bool(jnp.all(all_tokens >= 0)) and bool(jnp.all(all_tokens < VOCAB))
    assert bool(jnp.all(jnp.isfinite(all_scores)))
    assert bool(jnp.all(all_scores > 0.0)) and bool(jnp.all(all_scores <= 1.0))
    print("KERNEL_OK")
</pallas_src>

<mosaic_0001>
module attributes {stable_mosaic.version = 11 : i64} {
  func.func @kernel(%arg0: i32, %arg1: memref<8xi32, #tpu.memory_space<smem>>, %arg2: memref<64x32xf32, #tpu.memory_space<vmem>>, %arg3: memref<32x96xf32, #tpu.memory_space<vmem>>, %arg4: memref<32x96xf32, #tpu.memory_space<vmem>>, %arg5: memref<1x96xf32, #tpu.memory_space<vmem>>, %arg6: memref<1x96xf32, #tpu.memory_space<vmem>>, %arg7: memref<32x96xf32, #tpu.memory_space<vmem>>, %arg8: memref<32x96xf32, #tpu.memory_space<vmem>>, %arg9: memref<1x96xf32, #tpu.memory_space<vmem>>, %arg10: memref<1x96xf32, #tpu.memory_space<vmem>>, %arg11: memref<32x96xf32, #tpu.memory_space<vmem>>, %arg12: memref<32x96xf32, #tpu.memory_space<vmem>>, %arg13: memref<1x96xf32, #tpu.memory_space<vmem>>, %arg14: memref<1x96xf32, #tpu.memory_space<vmem>>, %arg15: memref<32x32xf32, #tpu.memory_space<vmem>>, %arg16: memref<32x32xf32, #tpu.memory_space<vmem>>, %arg17: memref<1x32xf32, #tpu.memory_space<vmem>>, %arg18: memref<32x64xf32, #tpu.memory_space<vmem>>, %arg19: memref<1x64xf32, #tpu.memory_space<vmem>>, %arg20: memref<1x128xi32, #tpu.memory_space<vmem>>, %arg21: memref<1x128xf32, #tpu.memory_space<vmem>>, %arg22: memref<8x32xf32, #tpu.memory_space<vmem>>, %arg23: memref<8x32xf32, #tpu.memory_space<vmem>>) attributes {dimension_semantics = [#tpu.dimension_semantics<arbitrary>], iteration_bounds = array<i64: 1>, scalar_prefetch = 1 : i64, scratch_operands = 2 : i64, tpu.core_type = #tpu.core_type<tc>, window_params = [{pipeline_mode = #tpu.pipeline_mode<synchronous>, transform_indices = @transform_0, window_bounds = array<i64: 64, 32>}, {pipeline_mode = #tpu.pipeline_mode<synchronous>, transform_indices = @transform_1, window_bounds = array<i64: 32, 96>}, {pipeline_mode = #tpu.pipeline_mode<synchronous>, transform_indices = @transform_2, window_bounds = array<i64: 32, 96>}, {pipeline_mode = #tpu.pipeline_mode<synchronous>, transform_indices = @transform_3, window_bounds = array<i64: 1, 96>}, {pipeline_mode = #tpu.pipeline_mode<synchronous>, transform_indices = @transform_4, window_bounds = array<i64: 1, 96>}, {pipeline_mode = #tpu.pipeline_mode<synchronous>, transform_indices = @transform_5, window_bounds = array<i64: 32, 96>}, {pipeline_mode = #tpu.pipeline_mode<synchronous>, transform_indices = @transform_6, window_bounds = array<i64: 32, 96>}, {pipeline_mode = #tpu.pipeline_mode<synchronous>, transform_indices = @transform_7, window_bounds = array<i64: 1, 96>}, {pipeline_mode = #tpu.pipeline_mode<synchronous>, transform_indices = @transform_8, window_bounds = array<i64: 1, 96>}, {pipeline_mode = #tpu.pipeline_mode<synchronous>, transform_indices = @transform_9, window_bounds = array<i64: 32, 96>}, {pipeline_mode = #tpu.pipeline_mode<synchronous>, transform_indices = @transform_10, window_bounds = array<i64: 32, 96>}, {pipeline_mode = #tpu.pipeline_mode<synchronous>, transform_indices = @transform_11, window_bounds = array<i64: 1, 96>}, {pipeline_mode = #tpu.pipeline_mode<synchronous>, transform_indices = @transform_12, window_bounds = array<i64: 1, 96>}, {pipeline_mode = #tpu.pipeline_mode<synchronous>, transform_indices = @transform_13, window_bounds = array<i64: 32, 32>}, {pipeline_mode = #tpu.pipeline_mode<synchronous>, transform_indices = @transform_14, window_bounds = array<i64: 32, 32>}, {pipeline_mode = #tpu.pipeline_mode<synchronous>, transform_indices = @transform_15, window_bounds = array<i64: 1, 32>}, {pipeline_mode = #tpu.pipeline_mode<synchronous>, transform_indices = @transform_16, window_bounds = array<i64: 32, 64>}, {pipeline_mode = #tpu.pipeline_mode<synchronous>, transform_indices = @transform_17, window_bounds = array<i64: 1, 64>}, {pipeline_mode = #tpu.pipeline_mode<synchronous>, transform_indices = @transform_18, window_bounds = array<i64: 1, 128>}, {pipeline_mode = #tpu.pipeline_mode<synchronous>, transform_indices = @transform_19, window_bounds = array<i64: 1, 128>}]} {
    %cst = arith.constant 0.000000e+00 : f32
    %0 = vector.broadcast %cst : f32 to vector<1x32xf32>
    %cst_0 = arith.constant 0.000000e+00 : f32
    %1 = vector.broadcast %cst_0 : f32 to vector<1x32xf32>
    %c0 = arith.constant 0 : index
    %2 = memref.load %arg1[%c0] : memref<8xi32, #tpu.memory_space<smem>>
    %3 = arith.index_cast %2 : i32 to index
    %c0_1 = arith.constant 0 : index
    %4 = vector.load %arg2[%3, %c0_1] : memref<64x32xf32, #tpu.memory_space<vmem>>, vector<1x32xf32>
    %c7 = arith.constant 7 : index
    %5 = memref.load %arg1[%c7] : memref<8xi32, #tpu.memory_space<smem>>
    %6 = arith.index_cast %5 : i32 to index
    %c0_2 = arith.constant 0 : index
    %7 = vector.load %arg2[%6, %c0_2] : memref<64x32xf32, #tpu.memory_space<vmem>>, vector<1x32xf32>
    %c0_3 = arith.constant 0 : index
    %c0_4 = arith.constant 0 : index
    %8 = vector.load %arg3[%c0_3, %c0_4] : memref<32x96xf32, #tpu.memory_space<vmem>>, vector<32x96xf32>
    %cst_5 = arith.constant dense<0.000000e+00> : vector<1x96xf32>
    %9 = tpu.matmul %4, %8, %cst_5 {dimension_numbers = #tpu.dot_dimension_numbers<[1], [0], [0], [1], [0, 0, 1, 1], [], []>} : vector<1x32xf32>, vector<32x96xf32>, vector<1x96xf32> -> vector<1x96xf32>
    %c0_6 = arith.constant 0 : index
    %c0_7 = arith.constant 0 : index
    %10 = vector.load %arg5[%c0_6, %c0_7] : memref<1x96xf32, #tpu.memory_space<vmem>>, vector<1x96xf32>
    %11 = arith.addf %9, %10 : vector<1x96xf32>
    %c0_8 = arith.constant 0 : index
    %c0_9 = arith.constant 0 : index
    %12 = vector.load %arg4[%c0_8, %c0_9] : memref<32x96xf32, #tpu.memory_space<vmem>>, vector<32x96xf32>
    %cst_10 = arith.constant dense<0.000000e+00> : vector<1x96xf32>
    %13 = tpu.matmul %0, %12, %cst_10 {dimension_numbers = #tpu.dot_dimension_numbers<[1], [0], [0], [1], [0, 0, 1, 1], [], []>} : vector<1x32xf32>, vector<32x96xf32>, vector<1x96xf32> -> vector<1x96xf32>
    %c0_11 = arith.constant 0 : index
    %c0_12 = arith.constant 0 : index
    %14 = vector.load %arg6[%c0_11, %c0_12] : memref<1x96xf32, #tpu.memory_space<vmem>>, vector<1x96xf32>
    %15 = arith.addf %13, %14 : vector<1x96xf32>
    %16 = arith.addf %11, %15 : vector<1x96xf32>
    %17 = vector.extract_strided_slice %16 {offsets = [0, 0], sizes = [1, 32], strides = [1, 1]} : vector<1x96xf32> to vector<1x32xf32>
    %18 = arith.negf %17 : vector<1x32xf32>
    %19 = math.exp %18 : vector<1x32xf32>
    %cst_13 = arith.constant 1.000000e+00 : f32
    %20 = vector.broadcast %cst_13 : f32 to vector<1x32xf32>
    %21 = arith.addf %20, %19 : vector<1x32xf32>
    %22 = arith.divf %20, %21 : vector<1x32xf32>
    %23 = vector.extract_strided_slice %16 {offsets = [0, 32], sizes = [1, 32], strides = [1, 1]} : vector<1x96xf32> to vector<1x32xf32>
    %24 = arith.negf %23 : vector<1x32xf32>
    %25 = math.exp %24 : vector<1x32xf32>
    %cst_14 = arith.constant 1.000000e+00 : f32
    %26 = vector.broadcast %cst_14 : f32 to vector<1x32xf32>
    %27 = arith.addf %26, %25 : vector<1x32xf32>
    %28 = arith.divf %26, %27 : vector<1x32xf32>
    %29 = vector.extract_strided_slice %11 {offsets = [0, 64], sizes = [1, 32], strides = [1, 1]} : vector<1x96xf32> to vector<1x32xf32>
    %30 = vector.extract_strided_slice %15 {offsets = [0, 64], sizes = [1, 32], strides = [1, 1]} : vector<1x96xf32> to vector<1x32xf32>
    %31 = arith.mulf %22, %30 : vector<1x32xf32>
    %32 = arith.addf %29, %31 : vector<1x32xf32>
    %33 = math.tanh %32 : vector<1x32xf32>
    %cst_15 = arith.constant 1.000000e+00 : f32
    %34 = vector.broadcast %cst_15 : f32 to vector<1x32xf32>
    %35 = arith.subf %34, %28 : vector<1x32xf32>
    %36 = arith.mulf %35, %33 : vector<1x32xf32>
    %37 = arith.mulf %28, %0 : vector<1x32xf32>
    %38 = arith.addf %36, %37 : vector<1x32xf32>
    %c0_16 = arith.constant 0 : index
    %c0_17 = arith.constant 0 : index
    %39 = vector.load %arg7[%c0_16, %c0_17] : memref<32x96xf32, #tpu.memory_space<vmem>>, vector<32x96xf32>
    %cst_18 = arith.constant dense<0.000000e+00> : vector<1x96xf32>
    %40 = tpu.matmul %7, %39, %cst_18 {dimension_numbers = #tpu.dot_dimension_numbers<[1], [0], [0], [1], [0, 0, 1, 1], [], []>} : vector<1x32xf32>, vector<32x96xf32>, vector<1x96xf32> -> vector<1x96xf32>
    %c0_19 = arith.constant 0 : index
    %c0_20 = arith.constant 0 : index
    %41 = vector.load %arg9[%c0_19, %c0_20] : memref<1x96xf32, #tpu.memory_space<vmem>>, vector<1x96xf32>
    %42 = arith.addf %40, %41 : vector<1x96xf32>
    %c0_21 = arith.constant 0 : index
    %c0_22 = arith.constant 0 : index
    %43 = vector.load %arg8[%c0_21, %c0_22] : memref<32x96xf32, #tpu.memory_space<vmem>>, vector<32x96xf32>
    %cst_23 = arith.constant dense<0.000000e+00> : vector<1x96xf32>
    %44 = tpu.matmul %1, %43, %cst_23 {dimension_numbers = #tpu.dot_dimension_numbers<[1], [0], [0], [1], [0, 0, 1, 1], [], []>} : vector<1x32xf32>, vector<32x96xf32>, vector<1x96xf32> -> vector<1x96xf32>
    %c0_24 = arith.constant 0 : index
    %c0_25 = arith.constant 0 : index
    %45 = vector.load %arg10[%c0_24, %c0_25] : memref<1x96xf32, #tpu.memory_space<vmem>>, vector<1x96xf32>
    %46 = arith.addf %44, %45 : vector<1x96xf32>
    %47 = arith.addf %42, %46 : vector<1x96xf32>
    %48 = vector.extract_strided_slice %47 {offsets = [0, 0], sizes = [1, 32], strides = [1, 1]} : vector<1x96xf32> to vector<1x32xf32>
    %49 = arith.negf %48 : vector<1x32xf32>
    %50 = math.exp %49 : vector<1x32xf32>
    %cst_26 = arith.constant 1.000000e+00 : f32
    %51 = vector.broadcast %cst_26 : f32 to vector<1x32xf32>
    %52 = arith.addf %51, %50 : vector<1x32xf32>
    %53 = arith.divf %51, %52 : vector<1x32xf32>
    %54 = vector.extract_strided_slice %47 {offsets = [0, 32], sizes = [1, 32], strides = [1, 1]} : vector<1x96xf32> to vector<1x32xf32>
    %55 = arith.negf %54 : vector<1x32xf32>
    %56 = math.exp %55 : vector<1x32xf32>
    %cst_27 = arith.constant 1.000000e+00 : f32
    %57 = vector.broadcast %cst_27 : f32 to vector<1x32xf32>
    %58 = arith.addf %57, %56 : vector<1x32xf32>
    %59 = arith.divf %57, %58 : vector<1x32xf32>
    %60 = vector.extract_strided_slice %42 {offsets = [0, 64], sizes = [1, 32], strides = [1, 1]} : vector<1x96xf32> to vector<1x32xf32>
    %61 = vector.extract_strided_slice %46 {offsets = [0, 64], sizes = [1, 32], strides = [1, 1]} : vector<1x96xf32> to vector<1x32xf32>
    %62 = arith.mulf %53, %61 : vector<1x32xf32>
    %63 = arith.addf %60, %62 : vector<1x32xf32>
    %64 = math.tanh %63 : vector<1x32xf32>
    %cst_28 = arith.constant 1.000000e+00 : f32
    %65 = vector.broadcast %cst_28 : f32 to vector<1x32xf32>
    %66 = arith.subf %65, %59 : vector<1x32xf32>
    %67 = arith.mulf %66, %64 : vector<1x32xf32>
    %68 = arith.mulf %59, %1 : vector<1x32xf32>
    %69 = arith.addf %67, %68 : vector<1x32xf32>
    %c0_29 = arith.constant 0 : index
    %c0_30 = arith.constant 0 : index
    %70 = vector.load %arg22[%c0_29, %c0_30] : memref<8x32xf32, #tpu.memory_space<vmem>>, vector<1x32xf32>
    tpu.vector_store %arg22[%c0_29, %c0_30], %38 {strides = array<i32>} : memref<8x32xf32, #tpu.memory_space<vmem>>, vector<1x32xf32>,
    %c7_31 = arith.constant 7 : index
    %c0_32 = arith.constant 0 : index
    %71 = vector.load %arg23[%c7_31, %c0_32] : memref<8x32xf32, #tpu.memory_space<vmem>>, vector<1x32xf32>
    tpu.vector_store %arg23[%c7_31, %c0_32], %69 {strides = array<i32>} : memref<8x32xf32, #tpu.memory_space<vmem>>, vector<1x32xf32>,
    %c1 = arith.constant 1 : index
    %72 = memref.load %arg1[%c1] : memref<8xi32, #tpu.memory_space<smem>>
    %73 = arith.index_cast %72 : i32 to index
    %c0_33 = arith.constant 0 : index
    %74 = vector.load %arg2[%73, %c0_33] : memref<64x32xf32, #tpu.memory_space<vmem>>, vector<1x32xf32>
    %c6 = arith.constant 6 : index
    %75 = memref.load %arg1[%c6] : memref<8xi32, #tpu.memory_space<smem>>
    %76 = arith.index_cast %75 : i32 to index
    %c0_34 = arith.constant 0 : index
    %77 = vector.load %arg2[%76, %c0_34] : memref<64x32xf32, #tpu.memory_space<vmem>>, vector<1x32xf32>
    %c0_35 = arith.constant 0 : index
    %c0_36 = arith.constant 0 : index
    %78 = vector.load %arg3[%c0_35, %c0_36] : memref<32x96xf32, #tpu.memory_space<vmem>>, vector<32x96xf32>
    %cst_37 = arith.constant dense<0.000000e+00> : vector<1x96xf32>
    %79 = tpu.matmul %74, %78, %cst_37 {dimension_numbers = #tpu.dot_dimension_numbers<[1], [0], [0], [1], [0, 0, 1, 1], [], []>} : vector<1x32xf32>, vector<32x96xf32>, vector<1x96xf32> -> vector<1x96xf32>
    %c0_38 = arith.constant 0 : index
    %c0_39 = arith.constant 0 : index
    %80 = vector.load %arg5[%c0_38, %c0_39] : memref<1x96xf32, #tpu.memory_space<vmem>>, vector<1x96xf32>
    %81 = arith.addf %79, %80 : vector<1x96xf32>
    %c0_40 = arith.constant 0 : index
    %c0_41 = arith.constant 0 : index
    %82 = vector.load %arg4[%c0_40, %c0_41] : memref<32x96xf32, #tpu.memory_space<vmem>>, vector<32x96xf32>
    %cst_42 = arith.constant dense<0.000000e+00> : vector<1x96xf32>
    %83 = tpu.matmul %38, %82, %cst_42 {dimension_numbers = #tpu.dot_dimension_numbers<[1], [0], [0], [1], [0, 0, 1, 1], [], []>} : vector<1x32xf32>, vector<32x96xf32>, vector<1x96xf32> -> vector<1x96xf32>
    %c0_43 = arith.constant 0 : index
    %c0_44 = arith.constant 0 : index
    %84 = vector.load %arg6[%c0_43, %c0_44] : memref<1x96xf32, #tpu.memory_space<vmem>>, vector<1x96xf32>
    %85 = arith.addf %83, %84 : vector<1x96xf32>
    %86 = arith.addf %81, %85 : vector<1x96xf32>
    %87 = vector.extract_strided_slice %86 {offsets = [0, 0], sizes = [1, 32], strides = [1, 1]} : vector<1x96xf32> to vector<1x32xf32>
    %88 = arith.negf %87 : vector<1x32xf32>
    %89 = math.exp %88 : vector<1x32xf32>
    %cst_45 = arith.constant 1.000000e+00 : f32
    %90 = vector.broadcast %cst_45 : f32 to vector<1x32xf32>
    %91 = arith.addf %90, %89 : vector<1x32xf32>
    %92 = arith.divf %90, %91 : vector<1x32xf32>
    %93 = vector.extract_strided_slice %86 {offsets = [0, 32], sizes = [1, 32], strides = [1, 1]} : vector<1x96xf32> to vector<1x32xf32>
    %94 = arith.negf %93 : vector<1x32xf32>
    %95 = math.exp %94 : vector<1x32xf32>
    %cst_46 = arith.constant 1.000000e+00 : f32
    %96 = vector.broadcast %cst_46 : f32 to vector<1x32xf32>
    %97 = arith.addf %96, %95 : vector<1x32xf32>
    %98 = arith.divf %96, %97 : vector<1x32xf32>
    %99 = vector.extract_strided_slice %81 {offsets = [0, 64], sizes = [1, 32], strides = [1, 1]} : vector<1x96xf32> to vector<1x32xf32>
    %100 = vector.extract_strided_slice %85 {offsets = [0, 64], sizes = [1, 32], strides = [1, 1]} : vector<1x96xf32> to vector<1x32xf32>
    %101 = arith.mulf %92, %100 : vector<1x32xf32>
    %102 = arith.addf %99, %101 : vector<1x32xf32>
    %103 = math.tanh %102 : vector<1x32xf32>
    %cst_47 = arith.constant 1.000000e+00 : f32
    %104 = vector.broadcast %cst_47 : f32 to vector<1x32xf32>
    %105 = arith.subf %104, %98 : vector<1x32xf32>
    %106 = arith.mulf %105, %103 : vector<1x32xf32>
    %107 = arith.mulf %98, %38 : vector<1x32xf32>
    %108 = arith.addf %106, %107 : vector<1x32xf32>
    %c0_48 = arith.constant 0 : index
    %c0_49 = arith.constant 0 : index
    %109 = vector.load %arg7[%c0_48, %c0_49] : memref<32x96xf32, #tpu.memory_space<vmem>>, vector<32x96xf32>
    %cst_50 = arith.constant dense<0.000000e+00> : vector<1x96xf32>
    %110 = tpu.matmul %77, %109, %cst_50 {dimension_numbers = #tpu.dot_dimension_numbers<[1], [0], [0], [1], [0, 0, 1, 1], [], []>} : vector<1x32xf32>, vector<32x96xf32>, vector<1x96xf32> -> vector<1x96xf32>
    %c0_51 = arith.constant 0 : index
    %c0_52 = arith.constant 0 : index
    %111 = vector.load %arg9[%c0_51, %c0_52] : memref<1x96xf32, #tpu.memory_space<vmem>>, vector<1x96xf32>
    %112 = arith.addf %110, %111 : vector<1x96xf32>
    %c0_53 = arith.constant 0 : index
    %c0_54 = arith.constant 0 : index
    %113 = vector.load %arg8[%c0_53, %c0_54] : memref<32x96xf32, #tpu.memory_space<vmem>>, vector<32x96xf32>
    %cst_55 = arith.constant dense<0.000000e+00> : vector<1x96xf32>
    %114 = tpu.matmul %69, %113, %cst_55 {dimension_numbers = #tpu.dot_dimension_numbers<[1], [0], [0], [1], [0, 0, 1, 1], [], []>} : vector<1x32xf32>, vector<32x96xf32>, vector<1x96xf32> -> vector<1x96xf32>
    %c0_56 = arith.constant 0 : index
    %c0_57 = arith.constant 0 : index
    %115 = vector.load %arg10[%c0_56, %c0_57] : memref<1x96xf32, #tpu.memory_space<vmem>>, vector<1x96xf32>
    %116 = arith.addf %114, %115 : vector<1x96xf32>
    %117 = arith.addf %112, %116 : vector<1x96xf32>
    %118 = vector.extract_strided_slice %117 {offsets = [0, 0], sizes = [1, 32], strides = [1, 1]} : vector<1x96xf32> to vector<1x32xf32>
    %119 = arith.negf %118 : vector<1x32xf32>
    %120 = math.exp %119 : vector<1x32xf32>
    %cst_58 = arith.constant 1.000000e+00 : f32
    %121 = vector.broadcast %cst_58 : f32 to vector<1x32xf32>
    %122 = arith.addf %121, %120 : vector<1x32xf32>
    %123 = arith.divf %121, %122 : vector<1x32xf32>
    %124 = vector.extract_strided_slice %117 {offsets = [0, 32], sizes = [1, 32], strides = [1, 1]} : vector<1x96xf32> to vector<1x32xf32>
    %125 = arith.negf %124 : vector<1x32xf32>
    %126 = math.exp %125 : vector<1x32xf32>
    %cst_59 = arith.constant 1.000000e+00 : f32
    %127 = vector.broadcast %cst_59 : f32 to vector<1x32xf32>
    %128 = arith.addf %127, %126 : vector<1x32xf32>
    %129 = arith.divf %127, %128 : vector<1x32xf32>
    %130 = vector.extract_strided_slice %112 {offsets = [0, 64], sizes = [1, 32], strides = [1, 1]} : vector<1x96xf32> to vector<1x32xf32>
    %131 = vector.extract_strided_slice %116 {offsets = [0, 64], sizes = [1, 32], strides = [1, 1]} : vector<1x96xf32> to vector<1x32xf32>
    %132 = arith.mulf %123, %131 : vector<1x32xf32>
    %133 = arith.addf %130, %132 : vector<1x32xf32>
    %134 = math.tanh %133 : vector<1x32xf32>
    %cst_60 = arith.constant 1.000000e+00 : f32
    %135 = vector.broadcast %cst_60 : f32 to vector<1x32xf32>
    %136 = arith.subf %135, %129 : vector<1x32xf32>
    %137 = arith.mulf %136, %134 : vector<1x32xf32>
    %138 = arith.mulf %129, %69 : vector<1x32xf32>
    %139 = arith.addf %137, %138 : vector<1x32xf32>
    %c1_61 = arith.constant 1 : index
    %c0_62 = arith.constant 0 : index
    %140 = vector.load %arg22[%c1_61, %c0_62] : memref<8x32xf32, #tpu.memory_space<vmem>>, vector<1x32xf32>
    tpu.vector_store %arg22[%c1_61, %c0_62], %108 {strides = array<i32>} : memref<8x32xf32, #tpu.memory_space<vmem>>, vector<1x32xf32>,
    %c6_63 = arith.constant 6 : index
    %c0_64 = arith.constant 0 : index
    %141 = vector.load %arg23[%c6_63, %c0_64] : memref<8x32xf32, #tpu.memory_space<vmem>>, vector<1x32xf32>
    tpu.vector_store %arg23[%c6_63, %c0_64], %139 {strides = array<i32>} : memref<8x32xf32, #tpu.memory_space<vmem>>, vector<1x32xf32>,
    %c2 = arith.constant 2 : index
    %142 = memref.load %arg1[%c2] : memref<8xi32, #tpu.memory_space<smem>>
    %143 = arith.index_cast %142 : i32 to index
    %c0_65 = arith.constant 0 : index
    %144 = vector.load %arg2[%143, %c0_65] : memref<64x32xf32, #tpu.memory_space<vmem>>, vector<1x32xf32>
    %c5 = arith.constant 5 : index
    %145 = memref.load %arg1[%c5] : memref<8xi32, #tpu.memory_space<smem>>
    %146 = arith.index_cast %145 : i32 to index
    %c0_66 = arith.constant 0 : index
    %147 = vector.load %arg2[%146, %c0_66] : memref<64x32xf32, #tpu.memory_space<vmem>>, vector<1x32xf32>
    %c0_67 = arith.constant 0 : index
    %c0_68 = arith.constant 0 : index
    %148 = vector.load %arg3[%c0_67, %c0_68] : memref<32x96xf32, #tpu.memory_space<vmem>>, vector<32x96xf32>
    %cst_69 = arith.constant dense<0.000000e+00> : vector<1x96xf32>
    %149 = tpu.matmul %144, %148, %cst_69 {dimension_numbers = #tpu.dot_dimension_numbers<[1], [0], [0], [1], [0, 0, 1, 1], [], []>} : vector<1x32xf32>, vector<32x96xf32>, vector<1x96xf32> -> vector<1x96xf32>
    %c0_70 = arith.constant 0 : index
    %c0_71 = arith.constant 0 : index
    %150 = vector.load %arg5[%c0_70, %c0_71] : memref<1x96xf32, #tpu.memory_space<vmem>>, vector<1x96xf32>
    %151 = arith.addf %149, %150 : vector<1x96xf32>
    %c0_72 = arith.constant 0 : index
    %c0_73 = arith.constant 0 : index
    %152 = vector.load %arg4[%c0_72, %c0_73] : memref<32x96xf32, #tpu.memory_space<vmem>>, vector<32x96xf32>
    %cst_74 = arith.constant dense<0.000000e+00> : vector<1x96xf32>
    %153 = tpu.matmul %108, %152, %cst_74 {dimension_numbers = #tpu.dot_dimension_numbers<[1], [0], [0], [1], [0, 0, 1, 1], [], []>} : vector<1x32xf32>, vector<32x96xf32>, vector<1x96xf32> -> vector<1x96xf32>
    %c0_75 = arith.constant 0 : index
    %c0_76 = arith.constant 0 : index
    %154 = vector.load %arg6[%c0_75, %c0_76] : memref<1x96xf32, #tpu.memory_space<vmem>>, vector<1x96xf32>
    %155 = arith.addf %153, %154 : vector<1x96xf32>
    %156 = arith.addf %151, %155 : vector<1x96xf32>
    %157 = vector.extract_strided_slice %156 {offsets = [0, 0], sizes = [1, 32], strides = [1, 1]} : vector<1x96xf32> to vector<1x32xf32>
    %158 = arith.negf %157 : vector<1x32xf32>
    %159 = math.exp %158 : vector<1x32xf32>
    %cst_77 = arith.constant 1.000000e+00 : f32
    %160 = vector.broadcast %cst_77 : f32 to vector<1x32xf32>
    %161 = arith.addf %160, %159 : vector<1x32xf32>
    %162 = arith.divf %160, %161 : vector<1x32xf32>
    %163 = vector.extract_strided_slice %156 {offsets = [0, 32], sizes = [1, 32], strides = [1, 1]} : vector<1x96xf32> to vector<1x32xf32>
    %164 = arith.negf %163 : vector<1x32xf32>
    %165 = math.exp %164 : vector<1x32xf32>
    %cst_78 = arith.constant 1.000000e+00 : f32
    %166 = vector.broadcast %cst_78 : f32 to vector<1x32xf32>
    %167 = arith.addf %166, %165 : vector<1x32xf32>
    %168 = arith.divf %166, %167 : vector<1x32xf32>
    %169 = vector.extract_strided_slice %151 {offsets = [0, 64], sizes = [1, 32], strides = [1, 1]} : vector<1x96xf32> to vector<1x32xf32>
    %170 = vector.extract_strided_slice %155 {offsets = [0, 64], sizes = [1, 32], strides = [1, 1]} : vector<1x96xf32> to vector<1x32xf32>
    %171 = arith.mulf %162, %170 : vector<1x32xf32>
    %172 = arith.addf %169, %171 : vector<1x32xf32>
    %173 = math.tanh %172 : vector<1x32xf32>
    %cst_79 = arith.constant 1.000000e+00 : f32
    %174 = vector.broadcast %cst_79 : f32 to vector<1x32xf32>
    %175 = arith.subf %174, %168 : vector<1x32xf32>
    %176 = arith.mulf %175, %173 : vector<1x32xf32>
    %177 = arith.mulf %168, %108 : vector<1x32xf32>
    %178 = arith.addf %176, %177 : vector<1x32xf32>
    %c0_80 = arith.constant 0 : index
    %c0_81 = arith.constant 0 : index
    %179 = vector.load %arg7[%c0_80, %c0_81] : memref<32x96xf32, #tpu.memory_space<vmem>>, vector<32x96xf32>
    %cst_82 = arith.constant dense<0.000000e+00> : vector<1x96xf32>
    %180 = tpu.matmul %147, %179, %cst_82 {dimension_numbers = #tpu.dot_dimension_numbers<[1], [0], [0], [1], [0, 0, 1, 1], [], []>} : vector<1x32xf32>, vector<32x96xf32>, vector<1x96xf32> -> vector<1x96xf32>
    %c0_83 = arith.constant 0 : index
    %c0_84 = arith.constant 0 : index
    %181 = vector.load %arg9[%c0_83, %c0_84] : memref<1x96xf32, #tpu.memory_space<vmem>>, vector<1x96xf32>
    %182 = arith.addf %180, %181 : vector<1x96xf32>
    %c0_85 = arith.constant 0 : index
    %c0_86 = arith.constant 0 : index
    %183 = vector.load %arg8[%c0_85, %c0_86] : memref<32x96xf32, #tpu.memory_space<vmem>>, vector<32x96xf32>
    %cst_87 = arith.constant dense<0.000000e+00> : vector<1x96xf32>
    %184 = tpu.matmul %139, %183, %cst_87 {dimension_numbers = #tpu.dot_dimension_numbers<[1], [0], [0], [1], [0, 0, 1, 1], [], []>} : vector<1x32xf32>, vector<32x96xf32>, vector<1x96xf32> -> vector<1x96xf32>
    %c0_88 = arith.constant 0 : index
    %c0_89 = arith.constant 0 : index
    %185 = vector.load %arg10[%c0_88, %c0_89] : memref<1x96xf32, #tpu.memory_space<vmem>>, vector<1x96xf32>
    %186 = arith.addf %184, %185 : vector<1x96xf32>
    %187 = arith.addf %182, %186 : vector<1x96xf32>
    %188 = vector.extract_strided_slice %187 {offsets = [0, 0], sizes = [1, 32], strides = [1, 1]} : vector<1x96xf32> to vector<1x32xf32>
    %189 = arith.negf %188 : vector<1x32xf32>
    %190 = math.exp %189 : vector<1x32xf32>
    %cst_90 = arith.constant 1.000000e+00 : f32
    %191 = vector.broadcast %cst_90 : f32 to vector<1x32xf32>
    %192 = arith.addf %191, %190 : vector<1x32xf32>
    %193 = arith.divf %191, %192 : vector<1x32xf32>
    %194 = vector.extract_strided_slice %187 {offsets = [0, 32], sizes = [1, 32], strides = [1, 1]} : vector<1x96xf32> to vector<1x32xf32>
    %195 = arith.negf %194 : vector<1x32xf32>
    %196 = math.exp %195 : vector<1x32xf32>
    %cst_91 = arith.constant 1.000000e+00 : f32
    %197 = vector.broadcast %cst_91 : f32 to vector<1x32xf32>
    %198 = arith.addf %197, %196 : vector<1x32xf32>
    %199 = arith.divf %197, %198 : vector<1x32xf32>
    %200 = vector.extract_strided_slice %182 {offsets = [0, 64], sizes = [1, 32], strides = [1, 1]} : vector<1x96xf32> to vector<1x32xf32>
    %201 = vector.extract_strided_slice %186 {offsets = [0, 64], sizes = [1, 32], strides = [1, 1]} : vector<1x96xf32> to vector<1x32xf32>
    %202 = arith.mulf %193, %201 : vector<1x32xf32>
    %203 = arith.addf %200, %202 : vector<1x32xf32>
    %204 = math.tanh %203 : vector<1x32xf32>
    %cst_92 = arith.constant 1.000000e+00 : f32
    %205 = vector.broadcast %cst_92 : f32 to vector<1x32xf32>
    %206 = arith.subf %205, %199 : vector<1x32xf32>
    %207 = arith.mulf %206, %204 : vector<1x32xf32>
    %208 = arith.mulf %199, %139 : vector<1x32xf32>
    %209 = arith.addf %207, %208 : vector<1x32xf32>
    %c2_93 = arith.constant 2 : index
    %c0_94 = arith.constant 0 : index
    %210 = vector.load %arg22[%c2_93, %c0_94] : memref<8x32xf32, #tpu.memory_space<vmem>>, vector<1x32xf32>
    tpu.vector_store %arg22[%c2_93, %c0_94], %178 {strides = array<i32>} : memref<8x32xf32, #tpu.memory_space<vmem>>, vector<1x32xf32>,
    %c5_95 = arith.constant 5 : index
    %c0_96 = arith.constant 0 : index
    %211 = vector.load %arg23[%c5_95, %c0_96] : memref<8x32xf32, #tpu.memory_space<vmem>>, vector<1x32xf32>
    tpu.vector_store %arg23[%c5_95, %c0_96], %209 {strides = array<i32>} : memref<8x32xf32, #tpu.memory_space<vmem>>, vector<1x32xf32>,
    %c3 = arith.constant 3 : index
    %212 = memref.load %arg1[%c3] : memref<8xi32, #tpu.memory_space<smem>>
    %213 = arith.index_cast %212 : i32 to index
    %c0_97 = arith.constant 0 : index
    %214 = vector.load %arg2[%213, %c0_97] : memref<64x32xf32, #tpu.memory_space<vmem>>, vector<1x32xf32>
    %c4 = arith.constant 4 : index
    %215 = memref.load %arg1[%c4] : memref<8xi32, #tpu.memory_space<smem>>
    %216 = arith.index_cast %215 : i32 to index
    %c0_98 = arith.constant 0 : index
    %217 = vector.load %arg2[%216, %c0_98] : memref<64x32xf32, #tpu.memory_space<vmem>>, vector<1x32xf32>
    %c0_99 = arith.constant 0 : index
    %c0_100 = arith.constant 0 : index
    %218 = vector.load %arg3[%c0_99, %c0_100] : memref<32x96xf32, #tpu.memory_space<vmem>>, vector<32x96xf32>
    %cst_101 = arith.constant dense<0.000000e+00> : vector<1x96xf32>
    %219 = tpu.matmul %214, %218, %cst_101 {dimension_numbers = #tpu.dot_dimension_numbers<[1], [0], [0], [1], [0, 0, 1, 1], [], []>} : vector<1x32xf32>, vector<32x96xf32>, vector<1x96xf32> -> vector<1x96xf32>
    %c0_102 = arith.constant 0 : index
    %c0_103 = arith.constant 0 : index
    %220 = vector.load %arg5[%c0_102, %c0_103] : memref<1x96xf32, #tpu.memory_space<vmem>>, vector<1x96xf32>
    %221 = arith.addf %219, %220 : vector<1x96xf32>
    %c0_104 = arith.constant 0 : index
    %c0_105 = arith.constant 0 : index
    %222 = vector.load %arg4[%c0_104, %c0_105] : memref<32x96xf32, #tpu.memory_space<vmem>>, vector<32x96xf32>
    %cst_106 = arith.constant dense<0.000000e+00> : vector<1x96xf32>
    %223 = tpu.matmul %178, %222, %cst_106 {dimension_numbers = #tpu.dot_dimension_numbers<[1], [0], [0], [1], [0, 0, 1, 1], [], []>} : vector<1x32xf32>, vector<32x96xf32>, vector<1x96xf32> -> vector<1x96xf32>
    %c0_107 = arith.constant 0 : index
    %c0_108 = arith.constant 0 : index
    %224 = vector.load %arg6[%c0_107, %c0_108] : memref<1x96xf32, #tpu.memory_space<vmem>>, vector<1x96xf32>
    %225 = arith.addf %223, %224 : vector<1x96xf32>
    %226 = arith.addf %221, %225 : vector<1x96xf32>
    %227 = vector.extract_strided_slice %226 {offsets = [0, 0], sizes = [1, 32], strides = [1, 1]} : vector<1x96xf32> to vector<1x32xf32>
    %228 = arith.negf %227 : vector<1x32xf32>
    %229 = math.exp %228 : vector<1x32xf32>
    %cst_109 = arith.constant 1.000000e+00 : f32
    %230 = vector.broadcast %cst_109 : f32 to vector<1x32xf32>
    %231 = arith.addf %230, %229 : vector<1x32xf32>
    %232 = arith.divf %230, %231 : vector<1x32xf32>
    %233 = vector.extract_strided_slice %226 {offsets = [0, 32], sizes = [1, 32], strides = [1, 1]} : vector<1x96xf32> to vector<1x32xf32>
    %234 = arith.negf %233 : vector<1x32xf32>
    %235 = math.exp %234 : vector<1x32xf32>
    %cst_110 = arith.constant 1.000000e+00 : f32
    %236 = vector.broadcast %cst_110 : f32 to vector<1x32xf32>
    %237 = arith.addf %236, %235 : vector<1x32xf32>
    %238 = arith.divf %236, %237 : vector<1x32xf32>
    %239 = vector.extract_strided_slice %221 {offsets = [0, 64], sizes = [1, 32], strides = [1, 1]} : vector<1x96xf32> to vector<1x32xf32>
    %240 = vector.extract_strided_slice %225 {offsets = [0, 64], sizes = [1, 32], strides = [1, 1]} : vector<1x96xf32> to vector<1x32xf32>
    %241 = arith.mulf %232, %240 : vector<1x32xf32>
    %242 = arith.addf %239, %241 : vector<1x32xf32>
    %243 = math.tanh %242 : vector<1x32xf32>
    %cst_111 = arith.constant 1.000000e+00 : f32
    %244 = vector.broadcast %cst_111 : f32 to vector<1x32xf32>
    %245 = arith.subf %244, %238 : vector<1x32xf32>
    %246 = arith.mulf %245, %243 : vector<1x32xf32>
    %247 = arith.mulf %238, %178 : vector<1x32xf32>
    %248 = arith.addf %246, %247 : vector<1x32xf32>
    %c0_112 = arith.constant 0 : index
    %c0_113 = arith.constant 0 : index
    %249 = vector.load %arg7[%c0_112, %c0_113] : memref<32x96xf32, #tpu.memory_space<vmem>>, vector<32x96xf32>
    %cst_114 = arith.constant dense<0.000000e+00> : vector<1x96xf32>
    %250 = tpu.matmul %217, %249, %cst_114 {dimension_numbers = #tpu.dot_dimension_numbers<[1], [0], [0], [1], [0, 0, 1, 1], [], []>} : vector<1x32xf32>, vector<32x96xf32>, vector<1x96xf32> -> vector<1x96xf32>
    %c0_115 = arith.constant 0 : index
    %c0_116 = arith.constant 0 : index
    %251 = vector.load %arg9[%c0_115, %c0_116] : memref<1x96xf32, #tpu.memory_space<vmem>>, vector<1x96xf32>
    %252 = arith.addf %250, %251 : vector<1x96xf32>
    %c0_117 = arith.constant 0 : index
    %c0_118 = arith.constant 0 : index
    %253 = vector.load %arg8[%c0_117, %c0_118] : memref<32x96xf32, #tpu.memory_space<vmem>>, vector<32x96xf32>
    %cst_119 = arith.constant dense<0.000000e+00> : vector<1x96xf32>
    %254 = tpu.matmul %209, %253, %cst_119 {dimension_numbers = #tpu.dot_dimension_numbers<[1], [0], [0], [1], [0, 0, 1, 1], [], []>} : vector<1x32xf32>, vector<32x96xf32>, vector<1x96xf32> -> vector<1x96xf32>
    %c0_120 = arith.constant 0 : index
    %c0_121 = arith.constant 0 : index
    %255 = vector.load %arg10[%c0_120, %c0_121] : memref<1x96xf32, #tpu.memory_space<vmem>>, vector<1x96xf32>
    %256 = arith.addf %254, %255 : vector<1x96xf32>
    %257 = arith.addf %252, %256 : vector<1x96xf32>
    %258 = vector.extract_strided_slice %257 {offsets = [0, 0], sizes = [1, 32], strides = [1, 1]} : vector<1x96xf32> to vector<1x32xf32>
    %259 = arith.negf %258 : vector<1x32xf32>
    %260 = math.exp %259 : vector<1x32xf32>
    %cst_122 = arith.constant 1.000000e+00 : f32
    %261 = vector.broadcast %cst_122 : f32 to vector<1x32xf32>
    %262 = arith.addf %261, %260 : vector<1x32xf32>
    %263 = arith.divf %261, %262 : vector<1x32xf32>
    %264 = vector.extract_strided_slice %257 {offsets = [0, 32], sizes = [1, 32], strides = [1, 1]} : vector<1x96xf32> to vector<1x32xf32>
    %265 = arith.negf %264 : vector<1x32xf32>
    %266 = math.exp %265 : vector<1x32xf32>
    %cst_123 = arith.constant 1.000000e+00 : f32
    %267 = vector.broadcast %cst_123 : f32 to vector<1x32xf32>
    %268 = arith.addf %267, %266 : vector<1x32xf32>
    %269 = arith.divf %267, %268 : vector<1x32xf32>
    %270 = vector.extract_strided_slice %252 {offsets = [0, 64], sizes = [1, 32], strides = [1, 1]} : vector<1x96xf32> to vector<1x32xf32>
    %271 = vector.extract_strided_slice %256 {offsets = [0, 64], sizes = [1, 32], strides = [1, 1]} : vector<1x96xf32> to vector<1x32xf32>
    %272 = arith.mulf %263, %271 : vector<1x32xf32>
    %273 = arith.addf %270, %272 : vector<1x32xf32>
    %274 = math.tanh %273 : vector<1x32xf32>
    %cst_124 = arith.constant 1.000000e+00 : f32
    %275 = vector.broadcast %cst_124 : f32 to vector<1x32xf32>
    %276 = arith.subf %275, %269 : vector<1x32xf32>
    %277 = arith.mulf %276, %274 : vector<1x32xf32>
    %278 = arith.mulf %269, %209 : vector<1x32xf32>
    %279 = arith.addf %277, %278 : vector<1x32xf32>
    %c3_125 = arith.constant 3 : index
    %c0_126 = arith.constant 0 : index
    %280 = vector.load %arg22[%c3_125, %c0_126] : memref<8x32xf32, #tpu.memory_space<vmem>>, vector<1x32xf32>
    tpu.vector_store %arg22[%c3_125, %c0_126], %248 {strides = array<i32>} : memref<8x32xf32, #tpu.memory_space<vmem>>, vector<1x32xf32>,
    %c4_127 = arith.constant 4 : index
    %c0_128 = arith.constant 0 : index
    %281 = vector.load %arg23[%c4_127, %c0_128] : memref<8x32xf32, #tpu.memory_space<vmem>>, vector<1x32xf32>
    tpu.vector_store %arg23[%c4_127, %c0_128], %279 {strides = array<i32>} : memref<8x32xf32, #tpu.memory_space<vmem>>, vector<1x32xf32>,
    %c4_129 = arith.constant 4 : index
    %282 = memref.load %arg1[%c4_129] : memref<8xi32, #tpu.memory_space<smem>>
    %283 = arith.index_cast %282 : i32 to index
    %c0_130 = arith.constant 0 : index
    %284 = vector.load %arg2[%283, %c0_130] : memref<64x32xf32, #tpu.memory_space<vmem>>, vector<1x32xf32>
    %c3_131 = arith.constant 3 : index
    %285 = memref.load %arg1[%c3_131] : memref<8xi32, #tpu.memory_space<smem>>
    %286 = arith.index_cast %285 : i32 to index
    %c0_132 = arith.constant 0 : index
    %287 = vector.load %arg2[%286, %c0_132] : memref<64x32xf32, #tpu.memory_space<vmem>>, vector<1x32xf32>
    %c0_133 = arith.constant 0 : index
    %c0_134 = arith.constant 0 : index
    %288 = vector.load %arg3[%c0_133, %c0_134] : memref<32x96xf32, #tpu.memory_space<vmem>>, vector<32x96xf32>
    %cst_135 = arith.constant dense<0.000000e+00> : vector<1x96xf32>
    %289 = tpu.matmul %284, %288, %cst_135 {dimension_numbers = #tpu.dot_dimension_numbers<[1], [0], [0], [1], [0, 0, 1, 1], [], []>} : vector<1x32xf32>, vector<32x96xf32>, vector<1x96xf32> -> vector<1x96xf32>
    %c0_136 = arith.constant 0 : index
    %c0_137 = arith.constant 0 : index
    %290 = vector.load %arg5[%c0_136, %c0_137] : memref<1x96xf32, #tpu.memory_space<vmem>>, vector<1x96xf32>
    %291 = arith.addf %289, %290 : vector<1x96xf32>
    %c0_138 = arith.constant 0 : index
    %c0_139 = arith.constant 0 : index
    %292 = vector.load %arg4[%c0_138, %c0_139] : memref<32x96xf32, #tpu.memory_space<vmem>>, vector<32x96xf32>
    %cst_140 = arith.constant dense<0.000000e+00> : vector<1x96xf32>
    %293 = tpu.matmul %248, %292, %cst_140 {dimension_numbers = #tpu.dot_dimension_numbers<[1], [0], [0], [1], [0, 0, 1, 1], [], []>} : vector<1x32xf32>, vector<32x96xf32>, vector<1x96xf32> -> vector<1x96xf32>
    %c0_141 = arith.constant 0 : index
    %c0_142 = arith.constant 0 : index
    %294 = vector.load %arg6[%c0_141, %c0_142] : memref<1x96xf32, #tpu.memory_space<vmem>>, vector<1x96xf32>
    %295 = arith.addf %293, %294 : vector<1x96xf32>
    %296 = arith.addf %291, %295 : vector<1x96xf32>
    %297 = vector.extract_strided_slice %296 {offsets = [0, 0], sizes = [1, 32], strides = [1, 1]} : vector<1x96xf32> to vector<1x32xf32>
    %298 = arith.negf %297 : vector<1x32xf32>
    %299 = math.exp %298 : vector<1x32xf32>
    %cst_143 = arith.constant 1.000000e+00 : f32
    %300 = vector.broadcast %cst_143 : f32 to vector<1x32xf32>
    %301 = arith.addf %300, %299 : vector<1x32xf32>
    %302 = arith.divf %300, %301 : vector<1x32xf32>
    %303 = vector.extract_strided_slice %296 {offsets = [0, 32], sizes = [1, 32], strides = [1, 1]} : vector<1x96xf32> to vector<1x32xf32>
    %304 = arith.negf %303 : vector<1x32xf32>
    %305 = math.exp %304 : vector<1x32xf32>
    %cst_144 = arith.constant 1.000000e+00 : f32
    %306 = vector.broadcast %cst_144 : f32 to vector<1x32xf32>
    %307 = arith.addf %306, %305 : vector<1x32xf32>
    %308 = arith.divf %306, %307 : vector<1x32xf32>
    %309 = vector.extract_strided_slice %291 {offsets = [0, 64], sizes = [1, 32], strides = [1, 1]} : vector<1x96xf32> to vector<1x32xf32>
    %310 = vector.extract_strided_slice %295 {offsets = [0, 64], sizes = [1, 32], strides = [1, 1]} : vector<1x96xf32> to vector<1x32xf32>
    %311 = arith.mulf %302, %310 : vector<1x32xf32>
    %312 = arith.addf %309, %311 : vector<1x32xf32>
    %313 = math.tanh %312 : vector<1x32xf32>
    %cst_145 = arith.constant 1.000000e+00 : f32
    %314 = vector.broadcast %cst_145 : f32 to vector<1x32xf32>
    %315 = arith.subf %314, %308 : vector<1x32xf32>
    %316 = arith.mulf %315, %313 : vector<1x32xf32>
    %317 = arith.mulf %308, %248 : vector<1x32xf32>
    %318 = arith.addf %316, %317 : vector<1x32xf32>
    %c0_146 = arith.constant 0 : index
    %c0_147 = arith.constant 0 : index
    %319 = vector.load %arg7[%c0_146, %c0_147] : memref<32x96xf32, #tpu.memory_space<vmem>>, vector<32x96xf32>
    %cst_148 = arith.constant dense<0.000000e+00> : vector<1x96xf32>
    %320 = tpu.matmul %287, %319, %cst_148 {dimension_numbers = #tpu.dot_dimension_numbers<[1], [0], [0], [1], [0, 0, 1, 1], [], []>} : vector<1x32xf32>, vector<32x96xf32>, vector<1x96xf32> -> vector<1x96xf32>
    %c0_149 = arith.constant 0 : index
    %c0_150 = arith.constant 0 : index
    %321 = vector.load %arg9[%c0_149, %c0_150] : memref<1x96xf32, #tpu.memory_space<vmem>>, vector<1x96xf32>
    %322 = arith.addf %320, %321 : vector<1x96xf32>
    %c0_151 = arith.constant 0 : index
    %c0_152 = arith.constant 0 : index
    %323 = vector.load %arg8[%c0_151, %c0_152] : memref<32x96xf32, #tpu.memory_space<vmem>>, vector<32x96xf32>
    %cst_153 = arith.constant dense<0.000000e+00> : vector<1x96xf32>
    %324 = tpu.matmul %279, %323, %cst_153 {dimension_numbers = #tpu.dot_dimension_numbers<[1], [0], [0], [1], [0, 0, 1, 1], [], []>} : vector<1x32xf32>, vector<32x96xf32>, vector<1x96xf32> -> vector<1x96xf32>
    %c0_154 = arith.constant 0 : index
    %c0_155 = arith.constant 0 : index
    %325 = vector.load %arg10[%c0_154, %c0_155] : memref<1x96xf32, #tpu.memory_space<vmem>>, vector<1x96xf32>
    %326 = arith.addf %324, %325 : vector<1x96xf32>
    %327 = arith.addf %322, %326 : vector<1x96xf32>
    %328 = vector.extract_strided_slice %327 {offsets = [0, 0], sizes = [1, 32], strides = [1, 1]} : vector<1x96xf32> to vector<1x32xf32>
    %329 = arith.negf %328 : vector<1x32xf32>
    %330 = math.exp %329 : vector<1x32xf32>
    %cst_156 = arith.constant 1.000000e+00 : f32
    %331 = vector.broadcast %cst_156 : f32 to vector<1x32xf32>
    %332 = arith.addf %331, %330 : vector<1x32xf32>
    %333 = arith.divf %331, %332 : vector<1x32xf32>
    %334 = vector.extract_strided_slice %327 {offsets = [0, 32], sizes = [1, 32], strides = [1, 1]} : vector<1x96xf32> to vector<1x32xf32>
    %335 = arith.negf %334 : vector<1x32xf32>
    %336 = math.exp %335 : vector<1x32xf32>
    %cst_157 = arith.constant 1.000000e+00 : f32
    %337 = vector.broadcast %cst_157 : f32 to vector<1x32xf32>
    %338 = arith.addf %337, %336 : vector<1x32xf32>
    %339 = arith.divf %337, %338 : vector<1x32xf32>
    %340 = vector.extract_strided_slice %322 {offsets = [0, 64], sizes = [1, 32], strides = [1, 1]} : vector<1x96xf32> to vector<1x32xf32>
    %341 = vector.extract_strided_slice %326 {offsets = [0, 64], sizes = [1, 32], strides = [1, 1]} : vector<1x96xf32> to vector<1x32xf32>
    %342 = arith.mulf %333, %341 : vector<1x32xf32>
    %343 = arith.addf %340, %342 : vector<1x32xf32>
    %344 = math.tanh %343 : vector<1x32xf32>
    %cst_158 = arith.constant 1.000000e+00 : f32
    %345 = vector.broadcast %cst_158 : f32 to vector<1x32xf32>
    %346 = arith.subf %345, %339 : vector<1x32xf32>
    %347 = arith.mulf %346, %344 : vector<1x32xf32>
    %348 = arith.mulf %339, %279 : vector<1x32xf32>
    %349 = arith.addf %347, %348 : vector<1x32xf32>
    %c4_159 = arith.constant 4 : index
    %c0_160 = arith.constant 0 : index
    %350 = vector.load %arg22[%c4_159, %c0_160] : memref<8x32xf32, #tpu.memory_space<vmem>>, vector<1x32xf32>
    tpu.vector_store %arg22[%c4_159, %c0_160], %318 {strides = array<i32>} : memref<8x32xf32, #tpu.memory_space<vmem>>, vector<1x32xf32>,
    %c3_161 = arith.constant 3 : index
    %c0_162 = arith.constant 0 : index
    %351 = vector.load %arg23[%c3_161, %c0_162] : memref<8x32xf32, #tpu.memory_space<vmem>>, vector<1x32xf32>
    tpu.vector_store %arg23[%c3_161, %c0_162], %349 {strides = array<i32>} : memref<8x32xf32, #tpu.memory_space<vmem>>, vector<1x32xf32>,
    %c5_163 = arith.constant 5 : index
    %352 = memref.load %arg1[%c5_163] : memref<8xi32, #tpu.memory_space<smem>>
    %353 = arith.index_cast %352 : i32 to index
    %c0_164 = arith.constant 0 : index
    %354 = vector.load %arg2[%353, %c0_164] : memref<64x32xf32, #tpu.memory_space<vmem>>, vector<1x32xf32>
    %c2_165 = arith.constant 2 : index
    %355 = memref.load %arg1[%c2_165] : memref<8xi32, #tpu.memory_space<smem>>
    %356 = arith.index_cast %355 : i32 to index
    %c0_166 = arith.constant 0 : index
    %357 = vector.load %arg2[%356, %c0_166] : memref<64x32xf32, #tpu.memory_space<vmem>>, vector<1x32xf32>
    %c0_167 = arith.constant 0 : index
    %c0_168 = arith.constant 0 : index
    %358 = vector.load %arg3[%c0_167, %c0_168] : memref<32x96xf32, #tpu.memory_space<vmem>>, vector<32x96xf32>
    %cst_169 = arith.constant dense<0.000000e+00> : vector<1x96xf32>
    %359 = tpu.matmul %354, %358, %cst_169 {dimension_numbers = #tpu.dot_dimension_numbers<[1], [0], [0], [1], [0, 0, 1, 1], [], []>} : vector<1x32xf32>, vector<32x96xf32>, vector<1x96xf32> -> vector<1x96xf32>
    %c0_170 = arith.constant 0 : index
    %c0_171 = arith.constant 0 : index
    %360 = vector.load %arg5[%c0_170, %c0_171] : memref<1x96xf32, #tpu.memory_space<vmem>>, vector<1x96xf32>
    %361 = arith.addf %359, %360 : vector<1x96xf32>
    %c0_172 = arith.constant 0 : index
    %c0_173 = arith.constant 0 : index
    %362 = vector.load %arg4[%c0_172, %c0_173] : memref<32x96xf32, #tpu.memory_space<vmem>>, vector<32x96xf32>
    %cst_174 = arith.constant dense<0.000000e+00> : vector<1x96xf32>
    %363 = tpu.matmul %318, %362, %cst_174 {dimension_numbers = #tpu.dot_dimension_numbers<[1], [0], [0], [1], [0, 0, 1, 1], [], []>} : vector<1x32xf32>, vector<32x96xf32>, vector<1x96xf32> -> vector<1x96xf32>
    %c0_175 = arith.constant 0 : index
    %c0_176 = arith.constant 0 : index
    %364 = vector.load %arg6[%c0_175, %c0_176] : memref<1x96xf32, #tpu.memory_space<vmem>>, vector<1x96xf32>
    %365 = arith.addf %363, %364 : vector<1x96xf32>
    %366 = arith.addf %361, %365 : vector<1x96xf32>
    %367 = vector.extract_strided_slice %366 {offsets = [0, 0], sizes = [1, 32], strides = [1, 1]} : vector<1x96xf32> to vector<1x32xf32>
    %368 = arith.negf %367 : vector<1x32xf32>
    %369 = math.exp %368 : vector<1x32xf32>
    %cst_177 = arith.constant 1.000000e+00 : f32
    %370 = vector.broadcast %cst_177 : f32 to vector<1x32xf32>
    %371 = arith.addf %370, %369 : vector<1x32xf32>
    %372 = arith.divf %370, %371 : vector<1x32xf32>
    %373 = vector.extract_strided_slice %366 {offsets = [0, 32], sizes = [1, 32], strides = [1, 1]} : vector<1x96xf32> to vector<1x32xf32>
    %374 = arith.negf %373 : vector<1x32xf32>
    %375 = math.exp %374 : vector<1x32xf32>
    %cst_178 = arith.constant 1.000000e+00 : f32
    %376 = vector.broadcast %cst_178 : f32 to vector<1x32xf32>
    %377 = arith.addf %376, %375 : vector<1x32xf32>
    %378 = arith.divf %376, %377 : vector<1x32xf32>
    %379 = vector.extract_strided_slice %361 {offsets = [0, 64], sizes = [1, 32], strides = [1, 1]} : vector<1x96xf32> to vector<1x32xf32>
    %380 = vector.extract_strided_slice %365 {offsets = [0, 64], sizes = [1, 32], strides = [1, 1]} : vector<1x96xf32> to vector<1x32xf32>
    %381 = arith.mulf %372, %380 : vector<1x32xf32>
    %382 = arith.addf %379, %381 : vector<1x32xf32>
    %383 = math.tanh %382 : vector<1x32xf32>
    %cst_179 = arith.constant 1.000000e+00 : f32
    %384 = vector.broadcast %cst_179 : f32 to vector<1x32xf32>
    %385 = arith.subf %384, %378 : vector<1x32xf32>
    %386 = arith.mulf %385, %383 : vector<1x32xf32>
    %387 = arith.mulf %378, %318 : vector<1x32xf32>
    %388 = arith.addf %386, %387 : vector<1x32xf32>
    %c0_180 = arith.constant 0 : index
    %c0_181 = arith.constant 0 : index
    %389 = vector.load %arg7[%c0_180, %c0_181] : memref<32x96xf32, #tpu.memory_space<vmem>>, vector<32x96xf32>
    %cst_182 = arith.constant dense<0.000000e+00> : vector<1x96xf32>
    %390 = tpu.matmul %357, %389, %cst_182 {dimension_numbers = #tpu.dot_dimension_numbers<[1], [0], [0], [1], [0, 0, 1, 1], [], []>} : vector<1x32xf32>, vector<32x96xf32>, vector<1x96xf32> -> vector<1x96xf32>
    %c0_183 = arith.constant 0 : index
    %c0_184 = arith.constant 0 : index
    %391 = vector.load %arg9[%c0_183, %c0_184] : memref<1x96xf32, #tpu.memory_space<vmem>>, vector<1x96xf32>
    %392 = arith.addf %390, %391 : vector<1x96xf32>
    %c0_185 = arith.constant 0 : index
    %c0_186 = arith.constant 0 : index
    %393 = vector.load %arg8[%c0_185, %c0_186] : memref<32x96xf32, #tpu.memory_space<vmem>>, vector<32x96xf32>
    %cst_187 = arith.constant dense<0.000000e+00> : vector<1x96xf32>
    %394 = tpu.matmul %349, %393, %cst_187 {dimension_numbers = #tpu.dot_dimension_numbers<[1], [0], [0], [1], [0, 0, 1, 1], [], []>} : vector<1x32xf32>, vector<32x96xf32>, vector<1x96xf32> -> vector<1x96xf32>
    %c0_188 = arith.constant 0 : index
    %c0_189 = arith.constant 0 : index
    %395 = vector.load %arg10[%c0_188, %c0_189] : memref<1x96xf32, #tpu.memory_space<vmem>>, vector<1x96xf32>
    %396 = arith.addf %394, %395 : vector<1x96xf32>
    %397 = arith.addf %392, %396 : vector<1x96xf32>
    %398 = vector.extract_strided_slice %397 {offsets = [0, 0], sizes = [1, 32], strides = [1, 1]} : vector<1x96xf32> to vector<1x32xf32>
    %399 = arith.negf %398 : vector<1x32xf32>
    %400 = math.exp %399 : vector<1x32xf32>
    %cst_190 = arith.constant 1.000000e+00 : f32
    %401 = vector.broadcast %cst_190 : f32 to vector<1x32xf32>
    %402 = arith.addf %401, %400 : vector<1x32xf32>
    %403 = arith.divf %401, %402 : vector<1x32xf32>
    %404 = vector.extract_strided_slice %397 {offsets = [0, 32], sizes = [1, 32], strides = [1, 1]} : vector<1x96xf32> to vector<1x32xf32>
    %405 = arith.negf %404 : vector<1x32xf32>
    %406 = math.exp %405 : vector<1x32xf32>
    %cst_191 = arith.constant 1.000000e+00 : f32
    %407 = vector.broadcast %cst_191 : f32 to vector<1x32xf32>
    %408 = arith.addf %407, %406 : vector<1x32xf32>
    %409 = arith.divf %407, %408 : vector<1x32xf32>
    %410 = vector.extract_strided_slice %392 {offsets = [0, 64], sizes = [1, 32], strides = [1, 1]} : vector<1x96xf32> to vector<1x32xf32>
    %411 = vector.extract_strided_slice %396 {offsets = [0, 64], sizes = [1, 32], strides = [1, 1]} : vector<1x96xf32> to vector<1x32xf32>
    %412 = arith.mulf %403, %411 : vector<1x32xf32>
    %413 = arith.addf %410, %412 : vector<1x32xf32>
    %414 = math.tanh %413 : vector<1x32xf32>
    %cst_192 = arith.constant 1.000000e+00 : f32
    %415 = vector.broadcast %cst_192 : f32 to vector<1x32xf32>
    %416 = arith.subf %415, %409 : vector<1x32xf32>
    %417 = arith.mulf %416, %414 : vector<1x32xf32>
    %418 = arith.mulf %409, %349 : vector<1x32xf32>
    %419 = arith.addf %417, %418 : vector<1x32xf32>
    %c5_193 = arith.constant 5 : index
    %c0_194 = arith.constant 0 : index
    %420 = vector.load %arg22[%c5_193, %c0_194] : memref<8x32xf32, #tpu.memory_space<vmem>>, vector<1x32xf32>
    tpu.vector_store %arg22[%c5_193, %c0_194], %388 {strides = array<i32>} : memref<8x32xf32, #tpu.memory_space<vmem>>, vector<1x32xf32>,
    %c2_195 = arith.constant 2 : index
    %c0_196 = arith.constant 0 : index
    %421 = vector.load %arg23[%c2_195, %c0_196] : memref<8x32xf32, #tpu.memory_space<vmem>>, vector<1x32xf32>
    tpu.vector_store %arg23[%c2_195, %c0_196], %419 {strides = array<i32>} : memref<8x32xf32, #tpu.memory_space<vmem>>, vector<1x32xf32>,
    %c6_197 = arith.constant 6 : index
    %422 = memref.load %arg1[%c6_197] : memref<8xi32, #tpu.memory_space<smem>>
    %423 = arith.index_cast %422 : i32 to index
    %c0_198 = arith.constant 0 : index
    %424 = vector.load %arg2[%423, %c0_198] : memref<64x32xf32, #tpu.memory_space<vmem>>, vector<1x32xf32>
    %c1_199 = arith.constant 1 : index
    %425 = memref.load %arg1[%c1_199] : memref<8xi32, #tpu.memory_space<smem>>
    %426 = arith.index_cast %425 : i32 to index
    %c0_200 = arith.constant 0 : index
    %427 = vector.load %arg2[%426, %c0_200] : memref<64x32xf32, #tpu.memory_space<vmem>>, vector<1x32xf32>
    %c0_201 = arith.constant 0 : index
    %c0_202 = arith.constant 0 : index
    %428 = vector.load %arg3[%c0_201, %c0_202] : memref<32x96xf32, #tpu.memory_space<vmem>>, vector<32x96xf32>
    %cst_203 = arith.constant dense<0.000000e+00> : vector<1x96xf32>
    %429 = tpu.matmul %424, %428, %cst_203 {dimension_numbers = #tpu.dot_dimension_numbers<[1], [0], [0], [1], [0, 0, 1, 1], [], []>} : vector<1x32xf32>, vector<32x96xf32>, vector<1x96xf32> -> vector<1x96xf32>
    %c0_204 = arith.constant 0 : index
    %c0_205 = arith.constant 0 : index
    %430 = vector.load %arg5[%c0_204, %c0_205] : memref<1x96xf32, #tpu.memory_space<vmem>>, vector<1x96xf32>
    %431 = arith.addf %429, %430 : vector<1x96xf32>
    %c0_206 = arith.constant 0 : index
    %c0_207 = arith.constant 0 : index
    %432 = vector.load %arg4[%c0_206, %c0_207] : memref<32x96xf32, #tpu.memory_space<vmem>>, vector<32x96xf32>
    %cst_208 = arith.constant dense<0.000000e+00> : vector<1x96xf32>
    %433 = tpu.matmul %388, %432, %cst_208 {dimension_numbers = #tpu.dot_dimension_numbers<[1], [0], [0], [1], [0, 0, 1, 1], [], []>} : vector<1x32xf32>, vector<32x96xf32>, vector<1x96xf32> -> vector<1x96xf32>
    %c0_209 = arith.constant 0 : index
    %c0_210 = arith.constant 0 : index
    %434 = vector.load %arg6[%c0_209, %c0_210] : memref<1x96xf32, #tpu.memory_space<vmem>>, vector<1x96xf32>
    %435 = arith.addf %433, %434 : vector<1x96xf32>
    %436 = arith.addf %431, %435 : vector<1x96xf32>
    %437 = vector.extract_strided_slice %436 {offsets = [0, 0], sizes = [1, 32], strides = [1, 1]} : vector<1x96xf32> to vector<1x32xf32>
    %438 = arith.negf %437 : vector<1x32xf32>
    %439 = math.exp %438 : vector<1x32xf32>
    %cst_211 = arith.constant 1.000000e+00 : f32
    %440 = vector.broadcast %cst_211 : f32 to vector<1x32xf32>
    %441 = arith.addf %440, %439 : vector<1x32xf32>
    %442 = arith.divf %440, %441 : vector<1x32xf32>
    %443 = vector.extract_strided_slice %436 {offsets = [0, 32], sizes = [1, 32], strides = [1, 1]} : vector<1x96xf32> to vector<1x32xf32>
    %444 = arith.negf %443 : vector<1x32xf32>
    %445 = math.exp %444 : vector<1x32xf32>
    %cst_212 = arith.constant 1.000000e+00 : f32
    %446 = vector.broadcast %cst_212 : f32 to vector<1x32xf32>
    %447 = arith.addf %446, %445 : vector<1x32xf32>
    %448 = arith.divf %446, %447 : vector<1x32xf32>
    %449 = vector.extract_strided_slice %431 {offsets = [0, 64], sizes = [1, 32], strides = [1, 1]} : vector<1x96xf32> to vector<1x32xf32>
    %450 = vector.extract_strided_slice %435 {offsets = [0, 64], sizes = [1, 32], strides = [1, 1]} : vector<1x96xf32> to vector<1x32xf32>
    %451 = arith.mulf %442, %450 : vector<1x32xf32>
    %452 = arith.addf %449, %451 : vector<1x32xf32>
    %453 = math.tanh %452 : vector<1x32xf32>
    %cst_213 = arith.constant 1.000000e+00 : f32
    %454 = vector.broadcast %cst_213 : f32 to vector<1x32xf32>
    %455 = arith.subf %454, %448 : vector<1x32xf32>
    %456 = arith.mulf %455, %453 : vector<1x32xf32>
    %457 = arith.mulf %448, %388 : vector<1x32xf32>
    %458 = arith.addf %456, %457 : vector<1x32xf32>
    %c0_214 = arith.constant 0 : index
    %c0_215 = arith.constant 0 : index
    %459 = vector.load %arg7[%c0_214, %c0_215] : memref<32x96xf32, #tpu.memory_space<vmem>>, vector<32x96xf32>
    %cst_216 = arith.constant dense<0.000000e+00> : vector<1x96xf32>
    %460 = tpu.matmul %427, %459, %cst_216 {dimension_numbers = #tpu.dot_dimension_numbers<[1], [0], [0], [1], [0, 0, 1, 1], [], []>} : vector<1x32xf32>, vector<32x96xf32>, vector<1x96xf32> -> vector<1x96xf32>
    %c0_217 = arith.constant 0 : index
    %c0_218 = arith.constant 0 : index
    %461 = vector.load %arg9[%c0_217, %c0_218] : memref<1x96xf32, #tpu.memory_space<vmem>>, vector<1x96xf32>
    %462 = arith.addf %460, %461 : vector<1x96xf32>
    %c0_219 = arith.constant 0 : index
    %c0_220 = arith.constant 0 : index
    %463 = vector.load %arg8[%c0_219, %c0_220] : memref<32x96xf32, #tpu.memory_space<vmem>>, vector<32x96xf32>
    %cst_221 = arith.constant dense<0.000000e+00> : vector<1x96xf32>
    %464 = tpu.matmul %419, %463, %cst_221 {dimension_numbers = #tpu.dot_dimension_numbers<[1], [0], [0], [1], [0, 0, 1, 1], [], []>} : vector<1x32xf32>, vector<32x96xf32>, vector<1x96xf32> -> vector<1x96xf32>
    %c0_222 = arith.constant 0 : index
    %c0_223 = arith.constant 0 : index
    %465 = vector.load %arg10[%c0_222, %c0_223] : memref<1x96xf32, #tpu.memory_space<vmem>>, vector<1x96xf32>
    %466 = arith.addf %464, %465 : vector<1x96xf32>
    %467 = arith.addf %462, %466 : vector<1x96xf32>
    %468 = vector.extract_strided_slice %467 {offsets = [0, 0], sizes = [1, 32], strides = [1, 1]} : vector<1x96xf32> to vector<1x32xf32>
    %469 = arith.negf %468 : vector<1x32xf32>
    %470 = math.exp %469 : vector<1x32xf32>
    %cst_224 = arith.constant 1.000000e+00 : f32
    %471 = vector.broadcast %cst_224 : f32 to vector<1x32xf32>
    %472 = arith.addf %471, %470 : vector<1x32xf32>
    %473 = arith.divf %471, %472 : vector<1x32xf32>
    %474 = vector.extract_strided_slice %467 {offsets = [0, 32], sizes = [1, 32], strides = [1, 1]} : vector<1x96xf32> to vector<1x32xf32>
    %475 = arith.negf %474 : vector<1x32xf32>
    %476 = math.exp %475 : vector<1x32xf32>
    %cst_225 = arith.constant 1.000000e+00 : f32
    %477 = vector.broadcast %cst_225 : f32 to vector<1x32xf32>
    %478 = arith.addf %477, %476 : vector<1x32xf32>
    %479 = arith.divf %477, %478 : vector<1x32xf32>
    %480 = vector.extract_strided_slice %462 {offsets = [0, 64], sizes = [1, 32], strides = [1, 1]} : vector<1x96xf32> to vector<1x32xf32>
    %481 = vector.extract_strided_slice %466 {offsets = [0, 64], sizes = [1, 32], strides = [1, 1]} : vector<1x96xf32> to vector<1x32xf32>
    %482 = arith.mulf %473, %481 : vector<1x32xf32>
    %483 = arith.addf %480, %482 : vector<1x32xf32>
    %484 = math.tanh %483 : vector<1x32xf32>
    %cst_226 = arith.constant 1.000000e+00 : f32
    %485 = vector.broadcast %cst_226 : f32 to vector<1x32xf32>
    %486 = arith.subf %485, %479 : vector<1x32xf32>
    %487 = arith.mulf %486, %484 : vector<1x32xf32>
    %488 = arith.mulf %479, %419 : vector<1x32xf32>
    %489 = arith.addf %487, %488 : vector<1x32xf32>
    %c6_227 = arith.constant 6 : index
    %c0_228 = arith.constant 0 : index
    %490 = vector.load %arg22[%c6_227, %c0_228] : memref<8x32xf32, #tpu.memory_space<vmem>>, vector<1x32xf32>
    tpu.vector_store %arg22[%c6_227, %c0_228], %458 {strides = array<i32>} : memref<8x32xf32, #tpu.memory_space<vmem>>, vector<1x32xf32>,
    %c1_229 = arith.constant 1 : index
    %c0_230 = arith.constant 0 : index
    %491 = vector.load %arg23[%c1_229, %c0_230] : memref<8x32xf32, #tpu.memory_space<vmem>>, vector<1x32xf32>
    tpu.vector_store %arg23[%c1_229, %c0_230], %489 {strides = array<i32>} : memref<8x32xf32, #tpu.memory_space<vmem>>, vector<1x32xf32>,
    %c7_231 = arith.constant 7 : index
    %492 = memref.load %arg1[%c7_231] : memref<8xi32, #tpu.memory_space<smem>>
    %493 = arith.index_cast %492 : i32 to index
    %c0_232 = arith.constant 0 : index
    %494 = vector.load %arg2[%493, %c0_232] : memref<64x32xf32, #tpu.memory_space<vmem>>, vector<1x32xf32>
    %c0_233 = arith.constant 0 : index
    %495 = memref.load %arg1[%c0_233] : memref<8xi32, #tpu.memory_space<smem>>
    %496 = arith.index_cast %495 : i32 to index
    %c0_234 = arith.constant 0 : index
    %497 = vector.load %arg2[%496, %c0_234] : memref<64x32xf32, #tpu.memory_space<vmem>>, vector<1x32xf32>
    %c0_235 = arith.constant 0 : index
    %c0_236 = arith.constant 0 : index
    %498 = vector.load %arg3[%c0_235, %c0_236] : memref<32x96xf32, #tpu.memory_space<vmem>>, vector<32x96xf32>
    %cst_237 = arith.constant dense<0.000000e+00> : vector<1x96xf32>
    %499 = tpu.matmul %494, %498, %cst_237 {dimension_numbers = #tpu.dot_dimension_numbers<[1], [0], [0], [1], [0, 0, 1, 1], [], []>} : vector<1x32xf32>, vector<32x96xf32>, vector<1x96xf32> -> vector<1x96xf32>
    %c0_238 = arith.constant 0 : index
    %c0_239 = arith.constant 0 : index
    %500 = vector.load %arg5[%c0_238, %c0_239] : memref<1x96xf32, #tpu.memory_space<vmem>>, vector<1x96xf32>
    %501 = arith.addf %499, %500 : vector<1x96xf32>
    %c0_240 = arith.constant 0 : index
    %c0_241 = arith.constant 0 : index
    %502 = vector.load %arg4[%c0_240, %c0_241] : memref<32x96xf32, #tpu.memory_space<vmem>>, vector<32x96xf32>
    %cst_242 = arith.constant dense<0.000000e+00> : vector<1x96xf32>
    %503 = tpu.matmul %458, %502, %cst_242 {dimension_numbers = #tpu.dot_dimension_numbers<[1], [0], [0], [1], [0, 0, 1, 1], [], []>} : vector<1x32xf32>, vector<32x96xf32>, vector<1x96xf32> -> vector<1x96xf32>
    %c0_243 = arith.constant 0 : index
    %c0_244 = arith.constant 0 : index
    %504 = vector.load %arg6[%c0_243, %c0_244] : memref<1x96xf32, #tpu.memory_space<vmem>>, vector<1x96xf32>
    %505 = arith.addf %503, %504 : vector<1x96xf32>
    %506 = arith.addf %501, %505 : vector<1x96xf32>
    %507 = vector.extract_strided_slice %506 {offsets = [0, 0], sizes = [1, 32], strides = [1, 1]} : vector<1x96xf32> to vector<1x32xf32>
    %508 = arith.negf %507 : vector<1x32xf32>
    %509 = math.exp %508 : vector<1x32xf32>
    %cst_245 = arith.constant 1.000000e+00 : f32
    %510 = vector.broadcast %cst_245 : f32 to vector<1x32xf32>
    %511 = arith.addf %510, %509 : vector<1x32xf32>
    %512 = arith.divf %510, %511 : vector<1x32xf32>
    %513 = vector.extract_strided_slice %506 {offsets = [0, 32], sizes = [1, 32], strides = [1, 1]} : vector<1x96xf32> to vector<1x32xf32>
    %514 = arith.negf %513 : vector<1x32xf32>
    %515 = math.exp %514 : vector<1x32xf32>
    %cst_246 = arith.constant 1.000000e+00 : f32
    %516 = vector.broadcast %cst_246 : f32 to vector<1x32xf32>
    %517 = arith.addf %516, %515 : vector<1x32xf32>
    %518 = arith.divf %516, %517 : vector<1x32xf32>
    %519 = vector.extract_strided_slice %501 {offsets = [0, 64], sizes = [1, 32], strides = [1, 1]} : vector<1x96xf32> to vector<1x32xf32>
    %520 = vector.extract_strided_slice %505 {offsets = [0, 64], sizes = [1, 32], strides = [1, 1]} : vector<1x96xf32> to vector<1x32xf32>
    %521 = arith.mulf %512, %520 : vector<1x32xf32>
    %522 = arith.addf %519, %521 : vector<1x32xf32>
    %523 = math.tanh %522 : vector<1x32xf32>
    %cst_247 = arith.constant 1.000000e+00 : f32
    %524 = vector.broadcast %cst_247 : f32 to vector<1x32xf32>
    %525 = arith.subf %524, %518 : vector<1x32xf32>
    %526 = arith.mulf %525, %523 : vector<1x32xf32>
    %527 = arith.mulf %518, %458 : vector<1x32xf32>
    %528 = arith.addf %526, %527 : vector<1x32xf32>
    %c0_248 = arith.constant 0 : index
    %c0_249 = arith.constant 0 : index
    %529 = vector.load %arg7[%c0_248, %c0_249] : memref<32x96xf32, #tpu.memory_space<vmem>>, vector<32x96xf32>
    %cst_250 = arith.constant dense<0.000000e+00> : vector<1x96xf32>
    %530 = tpu.matmul %497, %529, %cst_250 {dimension_numbers = #tpu.dot_dimension_numbers<[1], [0], [0], [1], [0, 0, 1, 1], [], []>} : vector<1x32xf32>, vector<32x96xf32>, vector<1x96xf32> -> vector<1x96xf32>
    %c0_251 = arith.constant 0 : index
    %c0_252 = arith.constant 0 : index
    %531 = vector.load %arg9[%c0_251, %c0_252] : memref<1x96xf32, #tpu.memory_space<vmem>>, vector<1x96xf32>
    %532 = arith.addf %530, %531 : vector<1x96xf32>
    %c0_253 = arith.constant 0 : index
    %c0_254 = arith.constant 0 : index
    %533 = vector.load %arg8[%c0_253, %c0_254] : memref<32x96xf32, #tpu.memory_space<vmem>>, vector<32x96xf32>
    %cst_255 = arith.constant dense<0.000000e+00> : vector<1x96xf32>
    %534 = tpu.matmul %489, %533, %cst_255 {dimension_numbers = #tpu.dot_dimension_numbers<[1], [0], [0], [1], [0, 0, 1, 1], [], []>} : vector<1x32xf32>, vector<32x96xf32>, vector<1x96xf32> -> vector<1x96xf32>
    %c0_256 = arith.constant 0 : index
    %c0_257 = arith.constant 0 : index
    %535 = vector.load %arg10[%c0_256, %c0_257] : memref<1x96xf32, #tpu.memory_space<vmem>>, vector<1x96xf32>
    %536 = arith.addf %534, %535 : vector<1x96xf32>
    %537 = arith.addf %532, %536 : vector<1x96xf32>
    %538 = vector.extract_strided_slice %537 {offsets = [0, 0], sizes = [1, 32], strides = [1, 1]} : vector<1x96xf32> to vector<1x32xf32>
    %539 = arith.negf %538 : vector<1x32xf32>
    %540 = math.exp %539 : vector<1x32xf32>
    %cst_258 = arith.constant 1.000000e+00 : f32
    %541 = vector.broadcast %cst_258 : f32 to vector<1x32xf32>
    %542 = arith.addf %541, %540 : vector<1x32xf32>
    %543 = arith.divf %541, %542 : vector<1x32xf32>
    %544 = vector.extract_strided_slice %537 {offsets = [0, 32], sizes = [1, 32], strides = [1, 1]} : vector<1x96xf32> to vector<1x32xf32>
    %545 = arith.negf %544 : vector<1x32xf32>
    %546 = math.exp %545 : vector<1x32xf32>
    %cst_259 = arith.constant 1.000000e+00 : f32
    %547 = vector.broadcast %cst_259 : f32 to vector<1x32xf32>
    %548 = arith.addf %547, %546 : vector<1x32xf32>
    %549 = arith.divf %547, %548 : vector<1x32xf32>
    %550 = vector.extract_strided_slice %532 {offsets = [0, 64], sizes = [1, 32], strides = [1, 1]} : vector<1x96xf32> to vector<1x32xf32>
    %551 = vector.extract_strided_slice %536 {offsets = [0, 64], sizes = [1, 32], strides = [1, 1]} : vector<1x96xf32> to vector<1x32xf32>
    %552 = arith.mulf %543, %551 : vector<1x32xf32>
    %553 = arith.addf %550, %552 : vector<1x32xf32>
    %554 = math.tanh %553 : vector<1x32xf32>
    %cst_260 = arith.constant 1.000000e+00 : f32
    %555 = vector.broadcast %cst_260 : f32 to vector<1x32xf32>
    %556 = arith.subf %555, %549 : vector<1x32xf32>
    %557 = arith.mulf %556, %554 : vector<1x32xf32>
    %558 = arith.mulf %549, %489 : vector<1x32xf32>
    %559 = arith.addf %557, %558 : vector<1x32xf32>
    %c7_261 = arith.constant 7 : index
    %c0_262 = arith.constant 0 : index
    %560 = vector.load %arg22[%c7_261, %c0_262] : memref<8x32xf32, #tpu.memory_space<vmem>>, vector<1x32xf32>
    tpu.vector_store %arg22[%c7_261, %c0_262], %528 {strides = array<i32>} : memref<8x32xf32, #tpu.memory_space<vmem>>, vector<1x32xf32>,
    %c0_263 = arith.constant 0 : index
    %c0_264 = arith.constant 0 : index
    %561 = vector.load %arg23[%c0_263, %c0_264] : memref<8x32xf32, #tpu.memory_space<vmem>>, vector<1x32xf32>
    tpu.vector_store %arg23[%c0_263, %c0_264], %559 {strides = array<i32>} : memref<8x32xf32, #tpu.memory_space<vmem>>, vector<1x32xf32>,
    %c0_265 = arith.constant 0 : index
    %c0_266 = arith.constant 0 : index
    %562 = vector.load %arg22[%c0_265, %c0_266] : memref<8x32xf32, #tpu.memory_space<vmem>>, vector<8x32xf32>
    %c0_267 = arith.constant 0 : index
    %c0_268 = arith.constant 0 : index
    %563 = vector.load %arg23[%c0_267, %c0_268] : memref<8x32xf32, #tpu.memory_space<vmem>>, vector<8x32xf32>
    %564 = arith.addf %562, %563 : vector<8x32xf32>
    %565 = tpu.iota {dimensions = array<i32: 1>} : vector<1x64xi32>
    %566 = tpu.iota {dimensions = array<i32: 1>} : vector<1x128xi32>
    %c0_i32 = arith.constant 0 : i32
    %567 = vector.broadcast %c0_i32 : i32 to vector<1x128xi32>
    %cst_269 = arith.constant 0.000000e+00 : f32
    %568 = vector.broadcast %cst_269 : f32 to vector<1x128xf32>
    %c1_270 = arith.constant 1 : index
    %c0_271 = arith.constant 0 : index
    %569 = vector.load %arg2[%c1_270, %c0_271] : memref<64x32xf32, #tpu.memory_space<vmem>>, vector<1x32xf32>
    %c0_272 = arith.constant 0 : index
    %c0_273 = arith.constant 0 : index
    %570 = vector.load %arg11[%c0_272, %c0_273] : memref<32x96xf32, #tpu.memory_space<vmem>>, vector<32x96xf32>
    %cst_274 = arith.constant dense<0.000000e+00> : vector<1x96xf32>
    %571 = tpu.matmul %569, %570, %cst_274 {dimension_numbers = #tpu.dot_dimension_numbers<[1], [0], [0], [1], [0, 0, 1, 1], [], []>} : vector<1x32xf32>, vector<32x96xf32>, vector<1x96xf32> -> vector<1x96xf32>
    %c0_275 = arith.constant 0 : index
    %c0_276 = arith.constant 0 : index
    %572 = vector.load %arg13[%c0_275, %c0_276] : memref<1x96xf32, #tpu.memory_space<vmem>>, vector<1x96xf32>
    %573 = arith.addf %571, %572 : vector<1x96xf32>
    %c0_277 = arith.constant 0 : index
    %c0_278 = arith.constant 0 : index
    %574 = vector.load %arg12[%c0_277, %c0_278] : memref<32x96xf32, #tpu.memory_space<vmem>>, vector<32x96xf32>
    %cst_279 = arith.constant dense<0.000000e+00> : vector<1x96xf32>
    %575 = tpu.matmul %528, %574, %cst_279 {dimension_numbers = #tpu.dot_dimension_numbers<[1], [0], [0], [1], [0, 0, 1, 1], [], []>} : vector<1x32xf32>, vector<32x96xf32>, vector<1x96xf32> -> vector<1x96xf32>
    %c0_280 = arith.constant 0 : index
    %c0_281 = arith.constant 0 : index
    %576 = vector.load %arg14[%c0_280, %c0_281] : memref<1x96xf32, #tpu.memory_space<vmem>>, vector<1x96xf32>
    %577 = arith.addf %575, %576 : vector<1x96xf32>
    %578 = arith.addf %573, %577 : vector<1x96xf32>
    %579 = vector.extract_strided_slice %578 {offsets = [0, 0], sizes = [1, 32], strides = [1, 1]} : vector<1x96xf32> to vector<1x32xf32>
    %580 = arith.negf %579 : vector<1x32xf32>
    %581 = math.exp %580 : vector<1x32xf32>
    %cst_282 = arith.constant 1.000000e+00 : f32
    %582 = vector.broadcast %cst_282 : f32 to vector<1x32xf32>
    %583 = arith.addf %582, %581 : vector<1x32xf32>
    %584 = arith.divf %582, %583 : vector<1x32xf32>
    %585 = vector.extract_strided_slice %578 {offsets = [0, 32], sizes = [1, 32], strides = [1, 1]} : vector<1x96xf32> to vector<1x32xf32>
    %586 = arith.negf %585 : vector<1x32xf32>
    %587 = math.exp %586 : vector<1x32xf32>
    %cst_283 = arith.constant 1.000000e+00 : f32
    %588 = vector.broadcast %cst_283 : f32 to vector<1x32xf32>
    %589 = arith.addf %588, %587 : vector<1x32xf32>
    %590 = arith.divf %588, %589 : vector<1x32xf32>
    %591 = vector.extract_strided_slice %573 {offsets = [0, 64], sizes = [1, 32], strides = [1, 1]} : vector<1x96xf32> to vector<1x32xf32>
    %592 = vector.extract_strided_slice %577 {offsets = [0, 64], sizes = [1, 32], strides = [1, 1]} : vector<1x96xf32> to vector<1x32xf32>
    %593 = arith.mulf %584, %592 : vector<1x32xf32>
    %594 = arith.addf %591, %593 : vector<1x32xf32>
    %595 = math.tanh %594 : vector<1x32xf32>
    %cst_284 = arith.constant 1.000000e+00 : f32
    %596 = vector.broadcast %cst_284 : f32 to vector<1x32xf32>
    %597 = arith.subf %596, %590 : vector<1x32xf32>
    %598 = arith.mulf %597, %595 : vector<1x32xf32>
    %599 = arith.mulf %590, %528 : vector<1x32xf32>
    %600 = arith.addf %598, %599 : vector<1x32xf32>
    %cst_285 = arith.constant dense<0.000000e+00> : vector<1x8xf32>
    %601 = tpu.matmul %600, %564, %cst_285 {dimension_numbers = #tpu.dot_dimension_numbers<[1], [1], [0], [0], [0, 0, 1, 0], [], []>} : vector<1x32xf32>, vector<8x32xf32>, vector<1x8xf32> -> vector<1x8xf32>
    %cst_286 = arith.constant dense<0xFF800000> : vector<1xf32>
    %602 = vector.multi_reduction <maximumf>, %601, %cst_286 [1] : vector<1x8xf32> to vector<1xf32>
    %603 = vector.shape_cast %602 : vector<1xf32> to vector<1x1xf32>
    %604 = vector.broadcast %603 : vector<1x1xf32> to vector<1x8xf32>
    %605 = arith.subf %601, %604 : vector<1x8xf32>
    %606 = math.exp %605 : vector<1x8xf32>
    %cst_287 = arith.constant dense<0.000000e+00> : vector<1xf32>
    %607 = vector.multi_reduction <add>, %606, %cst_287 [1] : vector<1x8xf32> to vector<1xf32>
    %608 = vector.shape_cast %607 : vector<1xf32> to vector<1x1xf32>
    %609 = tpu.reciprocal %608 {approx = true} : vector<1x1xf32> -> vector<1x1xf32>
    %610 = vector.broadcast %609 : vector<1x1xf32> to vector<1x8xf32>
    %611 = arith.mulf %606, %610 : vector<1x8xf32>
    %cst_288 = arith.constant dense<0.000000e+00> : vector<1x32xf32>
    %612 = tpu.matmul %611, %564, %cst_288 {dimension_numbers = #tpu.dot_dimension_numbers<[1], [0], [0], [1], [0, 0, 1, 1], [], []>} : vector<1x8xf32>, vector<8x32xf32>, vector<1x32xf32> -> vector<1x32xf32>
    %c0_289 = arith.constant 0 : index
    %c0_290 = arith.constant 0 : index
    %613 = vector.load %arg15[%c0_289, %c0_290] : memref<32x32xf32, #tpu.memory_space<vmem>>, vector<32x32xf32>
    %cst_291 = arith.constant dense<0.000000e+00> : vector<1x32xf32>
    %614 = tpu.matmul %600, %613, %cst_291 {dimension_numbers = #tpu.dot_dimension_numbers<[1], [0], [0], [1], [0, 0, 1, 1], [], []>} : vector<1x32xf32>, vector<32x32xf32>, vector<1x32xf32> -> vector<1x32xf32>
    %c0_292 = arith.constant 0 : index
    %c0_293 = arith.constant 0 : index
    %615 = vector.load %arg16[%c0_292, %c0_293] : memref<32x32xf32, #tpu.memory_space<vmem>>, vector<32x32xf32>
    %cst_294 = arith.constant dense<0.000000e+00> : vector<1x32xf32>
    %616 = tpu.matmul %612, %615, %cst_294 {dimension_numbers = #tpu.dot_dimension_numbers<[1], [0], [0], [1], [0, 0, 1, 1], [], []>} : vector<1x32xf32>, vector<32x32xf32>, vector<1x32xf32> -> vector<1x32xf32>
    %617 = arith.addf %614, %616 : vector<1x32xf32>
    %c0_295 = arith.constant 0 : index
    %c0_296 = arith.constant 0 : index
    %618 = vector.load %arg17[%c0_295, %c0_296] : memref<1x32xf32, #tpu.memory_space<vmem>>, vector<1x32xf32>
    %619 = arith.addf %617, %618 : vector<1x32xf32>
    %620 = math.tanh %619 : vector<1x32xf32>
    %c0_297 = arith.constant 0 : index
    %c0_298 = arith.constant 0 : index
    %621 = vector.load %arg18[%c0_297, %c0_298] : memref<32x64xf32, #tpu.memory_space<vmem>>, vector<32x64xf32>
    %cst_299 = arith.constant dense<0.000000e+00> : vector<1x64xf32>
    %622 = tpu.matmul %620, %621, %cst_299 {dimension_numbers = #tpu.dot_dimension_numbers<[1], [0], [0], [1], [0, 0, 1, 1], [], []>} : vector<1x32xf32>, vector<32x64xf32>, vector<1x64xf32> -> vector<1x64xf32>
    %c0_300 = arith.constant 0 : index
    %c0_301 = arith.constant 0 : index
    %623 = vector.load %arg19[%c0_300, %c0_301] : memref<1x64xf32, #tpu.memory_space<vmem>>, vector<1x64xf32>
    %624 = arith.addf %622, %623 : vector<1x64xf32>
    %cst_302 = arith.constant dense<0xFF800000> : vector<1xf32>
    %625 = vector.multi_reduction <maximumf>, %624, %cst_302 [1] : vector<1x64xf32> to vector<1xf32>
    %626 = vector.shape_cast %625 : vector<1xf32> to vector<1x1xf32>
    %627 = vector.broadcast %626 : vector<1x1xf32> to vector<1x64xf32>
    %628 = arith.subf %624, %627 : vector<1x64xf32>
    %629 = math.exp %628 : vector<1x64xf32>
    %cst_303 = arith.constant dense<0.000000e+00> : vector<1xf32>
    %630 = vector.multi_reduction <add>, %629, %cst_303 [1] : vector<1x64xf32> to vector<1xf32>
    %631 = vector.shape_cast %630 : vector<1xf32> to vector<1x1xf32>
    %632 = tpu.reciprocal %631 {approx = true} : vector<1x1xf32> -> vector<1x1xf32>
    %633 = vector.broadcast %626 : vector<1x1xf32> to vector<1x64xf32>
    %634 = arith.cmpf oge, %624, %633 : vector<1x64xf32>
    %c64_i32 = arith.constant 64 : i32
    %635 = vector.broadcast %c64_i32 : i32 to vector<1x64xi32>
    %636 = arith.select %634, %565, %635 : vector<1x64xi1>, vector<1x64xi32>
    %cst_304 = arith.constant dense<2147483647> : vector<1xi32>
    %637 = vector.multi_reduction <minsi>, %636, %cst_304 [1] : vector<1x64xi32> to vector<1xi32>
    %638 = vector.shape_cast %637 : vector<1xi32> to vector<1x1xi32>
    %c0_i32_305 = arith.constant 0 : i32
    %639 = vector.broadcast %c0_i32_305 : i32 to vector<1x128xi32>
    %640 = arith.cmpi eq, %566, %639 : vector<1x128xi32>
    %641 = vector.shape_cast %638 : vector<1x1xi32> to vector<1x1xi32>
    %642 = vector.broadcast %641 : vector<1x1xi32> to vector<1x128xi32>
    %643 = arith.select %640, %642, %567 : vector<1x128xi1>, vector<1x128xi32>
    %c0_i32_306 = arith.constant 0 : i32
    %644 = vector.broadcast %c0_i32_306 : i32 to vector<1x128xi32>
    %645 = arith.cmpi eq, %566, %644 : vector<1x128xi32>
    %646 = vector.shape_cast %632 : vector<1x1xf32> to vector<1x1xf32>
    %647 = vector.broadcast %646 : vector<1x1xf32> to vector<1x128xf32>
    %648 = arith.select %645, %647, %568 : vector<1x128xi1>, vector<1x128xf32>
    %649 = vector.broadcast %638 : vector<1x1xi32> to vector<1x64xi32>
    %650 = arith.cmpi eq, %565, %649 : vector<1x64xi32>
    %651 = arith.extui %650 : vector<1x64xi1> to vector<1x64xi32>
    %652 = arith.sitofp %651 : vector<1x64xi32> to vector<1x64xf32>
    %c0_307 = arith.constant 0 : index
    %c0_308 = arith.constant 0 : index
    %653 = vector.load %arg2[%c0_307, %c0_308] : memref<64x32xf32, #tpu.memory_space<vmem>>, vector<64x32xf32>
    %cst_309 = arith.constant dense<0.000000e+00> : vector<1x32xf32>
    %654 = tpu.matmul %652, %653, %cst_309 {dimension_numbers = #tpu.dot_dimension_numbers<[1], [0], [0], [1], [0, 0, 1, 1], [], []>} : vector<1x64xf32>, vector<64x32xf32>, vector<1x32xf32> -> vector<1x32xf32>
    %c0_310 = arith.constant 0 : index
    %c0_311 = arith.constant 0 : index
    %655 = vector.load %arg11[%c0_310, %c0_311] : memref<32x96xf32, #tpu.memory_space<vmem>>, vector<32x96xf32>
    %cst_312 = arith.constant dense<0.000000e+00> : vector<1x96xf32>
    %656 = tpu.matmul %654, %655, %cst_312 {dimension_numbers = #tpu.dot_dimension_numbers<[1], [0], [0], [1], [0, 0, 1, 1], [], []>} : vector<1x32xf32>, vector<32x96xf32>, vector<1x96xf32> -> vector<1x96xf32>
    %c0_313 = arith.constant 0 : index
    %c0_314 = arith.constant 0 : index
    %657 = vector.load %arg13[%c0_313, %c0_314] : memref<1x96xf32, #tpu.memory_space<vmem>>, vector<1x96xf32>
    %658 = arith.addf %656, %657 : vector<1x96xf32>
    %c0_315 = arith.constant 0 : index
    %c0_316 = arith.constant 0 : index
    %659 = vector.load %arg12[%c0_315, %c0_316] : memref<32x96xf32, #tpu.memory_space<vmem>>, vector<32x96xf32>
    %cst_317 = arith.constant dense<0.000000e+00> : vector<1x96xf32>
    %660 = tpu.matmul %600, %659, %cst_317 {dimension_numbers = #tpu.dot_dimension_numbers<[1], [0], [0], [1], [0, 0, 1, 1], [], []>} : vector<1x32xf32>, vector<32x96xf32>, vector<1x96xf32> -> vector<1x96xf32>
    %c0_318 = arith.constant 0 : index
    %c0_319 = arith.constant 0 : index
    %661 = vector.load %arg14[%c0_318, %c0_319] : memref<1x96xf32, #tpu.memory_space<vmem>>, vector<1x96xf32>
    %662 = arith.addf %660, %661 : vector<1x96xf32>
    %663 = arith.addf %658, %662 : vector<1x96xf32>
    %664 = vector.extract_strided_slice %663 {offsets = [0, 0], sizes = [1, 32], strides = [1, 1]} : vector<1x96xf32> to vector<1x32xf32>
    %665 = arith.negf %664 : vector<1x32xf32>
    %666 = math.exp %665 : vector<1x32xf32>
    %cst_320 = arith.constant 1.000000e+00 : f32
    %667 = vector.broadcast %cst_320 : f32 to vector<1x32xf32>
    %668 = arith.addf %667, %666 : vector<1x32xf32>
    %669 = arith.divf %667, %668 : vector<1x32xf32>
    %670 = vector.extract_strided_slice %663 {offsets = [0, 32], sizes = [1, 32], strides = [1, 1]} : vector<1x96xf32> to vector<1x32xf32>
    %671 = arith.negf %670 : vector<1x32xf32>
    %672 = math.exp %671 : vector<1x32xf32>
    %cst_321 = arith.constant 1.000000e+00 : f32
    %673 = vector.broadcast %cst_321 : f32 to vector<1x32xf32>
    %674 = arith.addf %673, %672 : vector<1x32xf32>
    %675 = arith.divf %673, %674 : vector<1x32xf32>
    %676 = vector.extract_strided_slice %658 {offsets = [0, 64], sizes = [1, 32], strides = [1, 1]} : vector<1x96xf32> to vector<1x32xf32>
    %677 = vector.extract_strided_slice %662 {offsets = [0, 64], sizes = [1, 32], strides = [1, 1]} : vector<1x96xf32> to vector<1x32xf32>
    %678 = arith.mulf %669, %677 : vector<1x32xf32>
    %679 = arith.addf %676, %678 : vector<1x32xf32>
    %680 = math.tanh %679 : vector<1x32xf32>
    %cst_322 = arith.constant 1.000000e+00 : f32
    %681 = vector.broadcast %cst_322 : f32 to vector<1x32xf32>
    %682 = arith.subf %681, %675 : vector<1x32xf32>
    %683 = arith.mulf %682, %680 : vector<1x32xf32>
    %684 = arith.mulf %675, %600 : vector<1x32xf32>
    %685 = arith.addf %683, %684 : vector<1x32xf32>
    %cst_323 = arith.constant dense<0.000000e+00> : vector<1x8xf32>
    %686 = tpu.matmul %685, %564, %cst_323 {dimension_numbers = #tpu.dot_dimension_numbers<[1], [1], [0], [0], [0, 0, 1, 0], [], []>} : vector<1x32xf32>, vector<8x32xf32>, vector<1x8xf32> -> vector<1x8xf32>
    %cst_324 = arith.constant dense<0xFF800000> : vector<1xf32>
    %687 = vector.multi_reduction <maximumf>, %686, %cst_324 [1] : vector<1x8xf32> to vector<1xf32>
    %688 = vector.shape_cast %687 : vector<1xf32> to vector<1x1xf32>
    %689 = vector.broadcast %688 : vector<1x1xf32> to vector<1x8xf32>
    %690 = arith.subf %686, %689 : vector<1x8xf32>
    %691 = math.exp %690 : vector<1x8xf32>
    %cst_325 = arith.constant dense<0.000000e+00> : vector<1xf32>
    %692 = vector.multi_reduction <add>, %691, %cst_325 [1] : vector<1x8xf32> to vector<1xf32>
    %693 = vector.shape_cast %692 : vector<1xf32> to vector<1x1xf32>
    %694 = tpu.reciprocal %693 {approx = true} : vector<1x1xf32> -> vector<1x1xf32>
    %695 = vector.broadcast %694 : vector<1x1xf32> to vector<1x8xf32>
    %696 = arith.mulf %691, %695 : vector<1x8xf32>
    %cst_326 = arith.constant dense<0.000000e+00> : vector<1x32xf32>
    %697 = tpu.matmul %696, %564, %cst_326 {dimension_numbers = #tpu.dot_dimension_numbers<[1], [0], [0], [1], [0, 0, 1, 1], [], []>} : vector<1x8xf32>, vector<8x32xf32>, vector<1x32xf32> -> vector<1x32xf32>
    %c0_327 = arith.constant 0 : index
    %c0_328 = arith.constant 0 : index
    %698 = vector.load %arg15[%c0_327, %c0_328] : memref<32x32xf32, #tpu.memory_space<vmem>>, vector<32x32xf32>
    %cst_329 = arith.constant dense<0.000000e+00> : vector<1x32xf32>
    %699 = tpu.matmul %685, %698, %cst_329 {dimension_numbers = #tpu.dot_dimension_numbers<[1], [0], [0], [1], [0, 0, 1, 1], [], []>} : vector<1x32xf32>, vector<32x32xf32>, vector<1x32xf32> -> vector<1x32xf32>
    %c0_330 = arith.constant 0 : index
    %c0_331 = arith.constant 0 : index
    %700 = vector.load %arg16[%c0_330, %c0_331] : memref<32x32xf32, #tpu.memory_space<vmem>>, vector<32x32xf32>
    %cst_332 = arith.constant dense<0.000000e+00> : vector<1x32xf32>
    %701 = tpu.matmul %697, %700, %cst_332 {dimension_numbers = #tpu.dot_dimension_numbers<[1], [0], [0], [1], [0, 0, 1, 1], [], []>} : vector<1x32xf32>, vector<32x32xf32>, vector<1x32xf32> -> vector<1x32xf32>
    %702 = arith.addf %699, %701 : vector<1x32xf32>
    %c0_333 = arith.constant 0 : index
    %c0_334 = arith.constant 0 : index
    %703 = vector.load %arg17[%c0_333, %c0_334] : memref<1x32xf32, #tpu.memory_space<vmem>>, vector<1x32xf32>
    %704 = arith.addf %702, %703 : vector<1x32xf32>
    %705 = math.tanh %704 : vector<1x32xf32>
    %c0_335 = arith.constant 0 : index
    %c0_336 = arith.constant 0 : index
    %706 = vector.load %arg18[%c0_335, %c0_336] : memref<32x64xf32, #tpu.memory_space<vmem>>, vector<32x64xf32>
    %cst_337 = arith.constant dense<0.000000e+00> : vector<1x64xf32>
    %707 = tpu.matmul %705, %706, %cst_337 {dimension_numbers = #tpu.dot_dimension_numbers<[1], [0], [0], [1], [0, 0, 1, 1], [], []>} : vector<1x32xf32>, vector<32x64xf32>, vector<1x64xf32> -> vector<1x64xf32>
    %c0_338 = arith.constant 0 : index
    %c0_339 = arith.constant 0 : index
    %708 = vector.load %arg19[%c0_338, %c0_339] : memref<1x64xf32, #tpu.memory_space<vmem>>, vector<1x64xf32>
    %709 = arith.addf %707, %708 : vector<1x64xf32>
    %cst_340 = arith.constant dense<0xFF800000> : vector<1xf32>
    %710 = vector.multi_reduction <maximumf>, %709, %cst_340 [1] : vector<1x64xf32> to vector<1xf32>
    %711 = vector.shape_cast %710 : vector<1xf32> to vector<1x1xf32>
    %712 = vector.broadcast %711 : vector<1x1xf32> to vector<1x64xf32>
    %713 = arith.subf %709, %712 : vector<1x64xf32>
    %714 = math.exp %713 : vector<1x64xf32>
    %cst_341 = arith.constant dense<0.000000e+00> : vector<1xf32>
    %715 = vector.multi_reduction <add>, %714, %cst_341 [1] : vector<1x64xf32> to vector<1xf32>
    %716 = vector.shape_cast %715 : vector<1xf32> to vector<1x1xf32>
    %717 = tpu.reciprocal %716 {approx = true} : vector<1x1xf32> -> vector<1x1xf32>
    %718 = vector.broadcast %711 : vector<1x1xf32> to vector<1x64xf32>
    %719 = arith.cmpf oge, %709, %718 : vector<1x64xf32>
    %c64_i32_342 = arith.constant 64 : i32
    %720 = vector.broadcast %c64_i32_342 : i32 to vector<1x64xi32>
    %721 = arith.select %719, %565, %720 : vector<1x64xi1>, vector<1x64xi32>
    %cst_343 = arith.constant dense<2147483647> : vector<1xi32>
    %722 = vector.multi_reduction <minsi>, %721, %cst_343 [1] : vector<1x64xi32> to vector<1xi32>
    %723 = vector.shape_cast %722 : vector<1xi32> to vector<1x1xi32>
    %c1_i32 = arith.constant 1 : i32
    %724 = vector.broadcast %c1_i32 : i32 to vector<1x128xi32>
    %725 = arith.cmpi eq, %566, %724 : vector<1x128xi32>
    %726 = vector.shape_cast %723 : vector<1x1xi32> to vector<1x1xi32>
    %727 = vector.broadcast %726 : vector<1x1xi32> to vector<1x128xi32>
    %728 = arith.select %725, %727, %643 : vector<1x128xi1>, vector<1x128xi32>
    %c1_i32_344 = arith.constant 1 : i32
    %729 = vector.broadcast %c1_i32_344 : i32 to vector<1x128xi32>
    %730 = arith.cmpi eq, %566, %729 : vector<1x128xi32>
    %731 = vector.shape_cast %717 : vector<1x1xf32> to vector<1x1xf32>
    %732 = vector.broadcast %731 : vector<1x1xf32> to vector<1x128xf32>
    %733 = arith.select %730, %732, %648 : vector<1x128xi1>, vector<1x128xf32>
    %734 = vector.broadcast %723 : vector<1x1xi32> to vector<1x64xi32>
    %735 = arith.cmpi eq, %565, %734 : vector<1x64xi32>
    %736 = arith.extui %735 : vector<1x64xi1> to vector<1x64xi32>
    %737 = arith.sitofp %736 : vector<1x64xi32> to vector<1x64xf32>
    %c0_345 = arith.constant 0 : index
    %c0_346 = arith.constant 0 : index
    %738 = vector.load %arg2[%c0_345, %c0_346] : memref<64x32xf32, #tpu.memory_space<vmem>>, vector<64x32xf32>
    %cst_347 = arith.constant dense<0.000000e+00> : vector<1x32xf32>
    %739 = tpu.matmul %737, %738, %cst_347 {dimension_numbers = #tpu.dot_dimension_numbers<[1], [0], [0], [1], [0, 0, 1, 1], [], []>} : vector<1x64xf32>, vector<64x32xf32>, vector<1x32xf32> -> vector<1x32xf32>
    %c0_348 = arith.constant 0 : index
    %c0_349 = arith.constant 0 : index
    %740 = vector.load %arg11[%c0_348, %c0_349] : memref<32x96xf32, #tpu.memory_space<vmem>>, vector<32x96xf32>
    %cst_350 = arith.constant dense<0.000000e+00> : vector<1x96xf32>
    %741 = tpu.matmul %739, %740, %cst_350 {dimension_numbers = #tpu.dot_dimension_numbers<[1], [0], [0], [1], [0, 0, 1, 1], [], []>} : vector<1x32xf32>, vector<32x96xf32>, vector<1x96xf32> -> vector<1x96xf32>
    %c0_351 = arith.constant 0 : index
    %c0_352 = arith.constant 0 : index
    %742 = vector.load %arg13[%c0_351, %c0_352] : memref<1x96xf32, #tpu.memory_space<vmem>>, vector<1x96xf32>
    %743 = arith.addf %741, %742 : vector<1x96xf32>
    %c0_353 = arith.constant 0 : index
    %c0_354 = arith.constant 0 : index
    %744 = vector.load %arg12[%c0_353, %c0_354] : memref<32x96xf32, #tpu.memory_space<vmem>>, vector<32x96xf32>
    %cst_355 = arith.constant dense<0.000000e+00> : vector<1x96xf32>
    %745 = tpu.matmul %685, %744, %cst_355 {dimension_numbers = #tpu.dot_dimension_numbers<[1], [0], [0], [1], [0, 0, 1, 1], [], []>} : vector<1x32xf32>, vector<32x96xf32>, vector<1x96xf32> -> vector<1x96xf32>
    %c0_356 = arith.constant 0 : index
    %c0_357 = arith.constant 0 : index
    %746 = vector.load %arg14[%c0_356, %c0_357] : memref<1x96xf32, #tpu.memory_space<vmem>>, vector<1x96xf32>
    %747 = arith.addf %745, %746 : vector<1x96xf32>
    %748 = arith.addf %743, %747 : vector<1x96xf32>
    %749 = vector.extract_strided_slice %748 {offsets = [0, 0], sizes = [1, 32], strides = [1, 1]} : vector<1x96xf32> to vector<1x32xf32>
    %750 = arith.negf %749 : vector<1x32xf32>
    %751 = math.exp %750 : vector<1x32xf32>
    %cst_358 = arith.constant 1.000000e+00 : f32
    %752 = vector.broadcast %cst_358 : f32 to vector<1x32xf32>
    %753 = arith.addf %752, %751 : vector<1x32xf32>
    %754 = arith.divf %752, %753 : vector<1x32xf32>
    %755 = vector.extract_strided_slice %748 {offsets = [0, 32], sizes = [1, 32], strides = [1, 1]} : vector<1x96xf32> to vector<1x32xf32>
    %756 = arith.negf %755 : vector<1x32xf32>
    %757 = math.exp %756 : vector<1x32xf32>
    %cst_359 = arith.constant 1.000000e+00 : f32
    %758 = vector.broadcast %cst_359 : f32 to vector<1x32xf32>
    %759 = arith.addf %758, %757 : vector<1x32xf32>
    %760 = arith.divf %758, %759 : vector<1x32xf32>
    %761 = vector.extract_strided_slice %743 {offsets = [0, 64], sizes = [1, 32], strides = [1, 1]} : vector<1x96xf32> to vector<1x32xf32>
    %762 = vector.extract_strided_slice %747 {offsets = [0, 64], sizes = [1, 32], strides = [1, 1]} : vector<1x96xf32> to vector<1x32xf32>
    %763 = arith.mulf %754, %762 : vector<1x32xf32>
    %764 = arith.addf %761, %763 : vector<1x32xf32>
    %765 = math.tanh %764 : vector<1x32xf32>
    %cst_360 = arith.constant 1.000000e+00 : f32
    %766 = vector.broadcast %cst_360 : f32 to vector<1x32xf32>
    %767 = arith.subf %766, %760 : vector<1x32xf32>
    %768 = arith.mulf %767, %765 : vector<1x32xf32>
    %769 = arith.mulf %760, %685 : vector<1x32xf32>
    %770 = arith.addf %768, %769 : vector<1x32xf32>
    %cst_361 = arith.constant dense<0.000000e+00> : vector<1x8xf32>
    %771 = tpu.matmul %770, %564, %cst_361 {dimension_numbers = #tpu.dot_dimension_numbers<[1], [1], [0], [0], [0, 0, 1, 0], [], []>} : vector<1x32xf32>, vector<8x32xf32>, vector<1x8xf32> -> vector<1x8xf32>
    %cst_362 = arith.constant dense<0xFF800000> : vector<1xf32>
    %772 = vector.multi_reduction <maximumf>, %771, %cst_362 [1] : vector<1x8xf32> to vector<1xf32>
    %773 = vector.shape_cast %772 : vector<1xf32> to vector<1x1xf32>
    %774 = vector.broadcast %773 : vector<1x1xf32> to vector<1x8xf32>
    %775 = arith.subf %771, %774 : vector<1x8xf32>
    %776 = math.exp %775 : vector<1x8xf32>
    %cst_363 = arith.constant dense<0.000000e+00> : vector<1xf32>
    %777 = vector.multi_reduction <add>, %776, %cst_363 [1] : vector<1x8xf32> to vector<1xf32>
    %778 = vector.shape_cast %777 : vector<1xf32> to vector<1x1xf32>
    %779 = tpu.reciprocal %778 {approx = true} : vector<1x1xf32> -> vector<1x1xf32>
    %780 = vector.broadcast %779 : vector<1x1xf32> to vector<1x8xf32>
    %781 = arith.mulf %776, %780 : vector<1x8xf32>
    %cst_364 = arith.constant dense<0.000000e+00> : vector<1x32xf32>
    %782 = tpu.matmul %781, %564, %cst_364 {dimension_numbers = #tpu.dot_dimension_numbers<[1], [0], [0], [1], [0, 0, 1, 1], [], []>} : vector<1x8xf32>, vector<8x32xf32>, vector<1x32xf32> -> vector<1x32xf32>
    %c0_365 = arith.constant 0 : index
    %c0_366 = arith.constant 0 : index
    %783 = vector.load %arg15[%c0_365, %c0_366] : memref<32x32xf32, #tpu.memory_space<vmem>>, vector<32x32xf32>
    %cst_367 = arith.constant dense<0.000000e+00> : vector<1x32xf32>
    %784 = tpu.matmul %770, %783, %cst_367 {dimension_numbers = #tpu.dot_dimension_numbers<[1], [0], [0], [1], [0, 0, 1, 1], [], []>} : vector<1x32xf32>, vector<32x32xf32>, vector<1x32xf32> -> vector<1x32xf32>
    %c0_368 = arith.constant 0 : index
    %c0_369 = arith.constant 0 : index
    %785 = vector.load %arg16[%c0_368, %c0_369] : memref<32x32xf32, #tpu.memory_space<vmem>>, vector<32x32xf32>
    %cst_370 = arith.constant dense<0.000000e+00> : vector<1x32xf32>
    %786 = tpu.matmul %782, %785, %cst_370 {dimension_numbers = #tpu.dot_dimension_numbers<[1], [0], [0], [1], [0, 0, 1, 1], [], []>} : vector<1x32xf32>, vector<32x32xf32>, vector<1x32xf32> -> vector<1x32xf32>
    %787 = arith.addf %784, %786 : vector<1x32xf32>
    %c0_371 = arith.constant 0 : index
    %c0_372 = arith.constant 0 : index
    %788 = vector.load %arg17[%c0_371, %c0_372] : memref<1x32xf32, #tpu.memory_space<vmem>>, vector<1x32xf32>
    %789 = arith.addf %787, %788 : vector<1x32xf32>
    %790 = math.tanh %789 : vector<1x32xf32>
    %c0_373 = arith.constant 0 : index
    %c0_374 = arith.constant 0 : index
    %791 = vector.load %arg18[%c0_373, %c0_374] : memref<32x64xf32, #tpu.memory_space<vmem>>, vector<32x64xf32>
    %cst_375 = arith.constant dense<0.000000e+00> : vector<1x64xf32>
    %792 = tpu.matmul %790, %791, %cst_375 {dimension_numbers = #tpu.dot_dimension_numbers<[1], [0], [0], [1], [0, 0, 1, 1], [], []>} : vector<1x32xf32>, vector<32x64xf32>, vector<1x64xf32> -> vector<1x64xf32>
    %c0_376 = arith.constant 0 : index
    %c0_377 = arith.constant 0 : index
    %793 = vector.load %arg19[%c0_376, %c0_377] : memref<1x64xf32, #tpu.memory_space<vmem>>, vector<1x64xf32>
    %794 = arith.addf %792, %793 : vector<1x64xf32>
    %cst_378 = arith.constant dense<0xFF800000> : vector<1xf32>
    %795 = vector.multi_reduction <maximumf>, %794, %cst_378 [1] : vector<1x64xf32> to vector<1xf32>
    %796 = vector.shape_cast %795 : vector<1xf32> to vector<1x1xf32>
    %797 = vector.broadcast %796 : vector<1x1xf32> to vector<1x64xf32>
    %798 = arith.subf %794, %797 : vector<1x64xf32>
    %799 = math.exp %798 : vector<1x64xf32>
    %cst_379 = arith.constant dense<0.000000e+00> : vector<1xf32>
    %800 = vector.multi_reduction <add>, %799, %cst_379 [1] : vector<1x64xf32> to vector<1xf32>
    %801 = vector.shape_cast %800 : vector<1xf32> to vector<1x1xf32>
    %802 = tpu.reciprocal %801 {approx = true} : vector<1x1xf32> -> vector<1x1xf32>
    %803 = vector.broadcast %796 : vector<1x1xf32> to vector<1x64xf32>
    %804 = arith.cmpf oge, %794, %803 : vector<1x64xf32>
    %c64_i32_380 = arith.constant 64 : i32
    %805 = vector.broadcast %c64_i32_380 : i32 to vector<1x64xi32>
    %806 = arith.select %804, %565, %805 : vector<1x64xi1>, vector<1x64xi32>
    %cst_381 = arith.constant dense<2147483647> : vector<1xi32>
    %807 = vector.multi_reduction <minsi>, %806, %cst_381 [1] : vector<1x64xi32> to vector<1xi32>
    %808 = vector.shape_cast %807 : vector<1xi32> to vector<1x1xi32>
    %c2_i32 = arith.constant 2 : i32
    %809 = vector.broadcast %c2_i32 : i32 to vector<1x128xi32>
    %810 = arith.cmpi eq, %566, %809 : vector<1x128xi32>
    %811 = vector.shape_cast %808 : vector<1x1xi32> to vector<1x1xi32>
    %812 = vector.broadcast %811 : vector<1x1xi32> to vector<1x128xi32>
    %813 = arith.select %810, %812, %728 : vector<1x128xi1>, vector<1x128xi32>
    %c2_i32_382 = arith.constant 2 : i32
    %814 = vector.broadcast %c2_i32_382 : i32 to vector<1x128xi32>
    %815 = arith.cmpi eq, %566, %814 : vector<1x128xi32>
    %816 = vector.shape_cast %802 : vector<1x1xf32> to vector<1x1xf32>
    %817 = vector.broadcast %816 : vector<1x1xf32> to vector<1x128xf32>
    %818 = arith.select %815, %817, %733 : vector<1x128xi1>, vector<1x128xf32>
    %819 = vector.broadcast %808 : vector<1x1xi32> to vector<1x64xi32>
    %820 = arith.cmpi eq, %565, %819 : vector<1x64xi32>
    %821 = arith.extui %820 : vector<1x64xi1> to vector<1x64xi32>
    %822 = arith.sitofp %821 : vector<1x64xi32> to vector<1x64xf32>
    %c0_383 = arith.constant 0 : index
    %c0_384 = arith.constant 0 : index
    %823 = vector.load %arg2[%c0_383, %c0_384] : memref<64x32xf32, #tpu.memory_space<vmem>>, vector<64x32xf32>
    %cst_385 = arith.constant dense<0.000000e+00> : vector<1x32xf32>
    %824 = tpu.matmul %822, %823, %cst_385 {dimension_numbers = #tpu.dot_dimension_numbers<[1], [0], [0], [1], [0, 0, 1, 1], [], []>} : vector<1x64xf32>, vector<64x32xf32>, vector<1x32xf32> -> vector<1x32xf32>
    %c0_386 = arith.constant 0 : index
    %c0_387 = arith.constant 0 : index
    %825 = vector.load %arg11[%c0_386, %c0_387] : memref<32x96xf32, #tpu.memory_space<vmem>>, vector<32x96xf32>
    %cst_388 = arith.constant dense<0.000000e+00> : vector<1x96xf32>
    %826 = tpu.matmul %824, %825, %cst_388 {dimension_numbers = #tpu.dot_dimension_numbers<[1], [0], [0], [1], [0, 0, 1, 1], [], []>} : vector<1x32xf32>, vector<32x96xf32>, vector<1x96xf32> -> vector<1x96xf32>
    %c0_389 = arith.constant 0 : index
    %c0_390 = arith.constant 0 : index
    %827 = vector.load %arg13[%c0_389, %c0_390] : memref<1x96xf32, #tpu.memory_space<vmem>>, vector<1x96xf32>
    %828 = arith.addf %826, %827 : vector<1x96xf32>
    %c0_391 = arith.constant 0 : index
    %c0_392 = arith.constant 0 : index
    %829 = vector.load %arg12[%c0_391, %c0_392] : memref<32x96xf32, #tpu.memory_space<vmem>>, vector<32x96xf32>
    %cst_393 = arith.constant dense<0.000000e+00> : vector<1x96xf32>
    %830 = tpu.matmul %770, %829, %cst_393 {dimension_numbers = #tpu.dot_dimension_numbers<[1], [0], [0], [1], [0, 0, 1, 1], [], []>} : vector<1x32xf32>, vector<32x96xf32>, vector<1x96xf32> -> vector<1x96xf32>
    %c0_394 = arith.constant 0 : index
    %c0_395 = arith.constant 0 : index
    %831 = vector.load %arg14[%c0_394, %c0_395] : memref<1x96xf32, #tpu.memory_space<vmem>>, vector<1x96xf32>
    %832 = arith.addf %830, %831 : vector<1x96xf32>
    %833 = arith.addf %828, %832 : vector<1x96xf32>
    %834 = vector.extract_strided_slice %833 {offsets = [0, 0], sizes = [1, 32], strides = [1, 1]} : vector<1x96xf32> to vector<1x32xf32>
    %835 = arith.negf %834 : vector<1x32xf32>
    %836 = math.exp %835 : vector<1x32xf32>
    %cst_396 = arith.constant 1.000000e+00 : f32
    %837 = vector.broadcast %cst_396 : f32 to vector<1x32xf32>
    %838 = arith.addf %837, %836 : vector<1x32xf32>
    %839 = arith.divf %837, %838 : vector<1x32xf32>
    %840 = vector.extract_strided_slice %833 {offsets = [0, 32], sizes = [1, 32], strides = [1, 1]} : vector<1x96xf32> to vector<1x32xf32>
    %841 = arith.negf %840 : vector<1x32xf32>
    %842 = math.exp %841 : vector<1x32xf32>
    %cst_397 = arith.constant 1.000000e+00 : f32
    %843 = vector.broadcast %cst_397 : f32 to vector<1x32xf32>
    %844 = arith.addf %843, %842 : vector<1x32xf32>
    %845 = arith.divf %843, %844 : vector<1x32xf32>
    %846 = vector.extract_strided_slice %828 {offsets = [0, 64], sizes = [1, 32], strides = [1, 1]} : vector<1x96xf32> to vector<1x32xf32>
    %847 = vector.extract_strided_slice %832 {offsets = [0, 64], sizes = [1, 32], strides = [1, 1]} : vector<1x96xf32> to vector<1x32xf32>
    %848 = arith.mulf %839, %847 : vector<1x32xf32>
    %849 = arith.addf %846, %848 : vector<1x32xf32>
    %850 = math.tanh %849 : vector<1x32xf32>
    %cst_398 = arith.constant 1.000000e+00 : f32
    %851 = vector.broadcast %cst_398 : f32 to vector<1x32xf32>
    %852 = arith.subf %851, %845 : vector<1x32xf32>
    %853 = arith.mulf %852, %850 : vector<1x32xf32>
    %854 = arith.mulf %845, %770 : vector<1x32xf32>
    %855 = arith.addf %853, %854 : vector<1x32xf32>
    %cst_399 = arith.constant dense<0.000000e+00> : vector<1x8xf32>
    %856 = tpu.matmul %855, %564, %cst_399 {dimension_numbers = #tpu.dot_dimension_numbers<[1], [1], [0], [0], [0, 0, 1, 0], [], []>} : vector<1x32xf32>, vector<8x32xf32>, vector<1x8xf32> -> vector<1x8xf32>
    %cst_400 = arith.constant dense<0xFF800000> : vector<1xf32>
    %857 = vector.multi_reduction <maximumf>, %856, %cst_400 [1] : vector<1x8xf32> to vector<1xf32>
    %858 = vector.shape_cast %857 : vector<1xf32> to vector<1x1xf32>
    %859 = vector.broadcast %858 : vector<1x1xf32> to vector<1x8xf32>
    %860 = arith.subf %856, %859 : vector<1x8xf32>
    %861 = math.exp %860 : vector<1x8xf32>
    %cst_401 = arith.constant dense<0.000000e+00> : vector<1xf32>
    %862 = vector.multi_reduction <add>, %861, %cst_401 [1] : vector<1x8xf32> to vector<1xf32>
    %863 = vector.shape_cast %862 : vector<1xf32> to vector<1x1xf32>
    %864 = tpu.reciprocal %863 {approx = true} : vector<1x1xf32> -> vector<1x1xf32>
    %865 = vector.broadcast %864 : vector<1x1xf32> to vector<1x8xf32>
    %866 = arith.mulf %861, %865 : vector<1x8xf32>
    %cst_402 = arith.constant dense<0.000000e+00> : vector<1x32xf32>
    %867 = tpu.matmul %866, %564, %cst_402 {dimension_numbers = #tpu.dot_dimension_numbers<[1], [0], [0], [1], [0, 0, 1, 1], [], []>} : vector<1x8xf32>, vector<8x32xf32>, vector<1x32xf32> -> vector<1x32xf32>
    %c0_403 = arith.constant 0 : index
    %c0_404 = arith.constant 0 : index
    %868 = vector.load %arg15[%c0_403, %c0_404] : memref<32x32xf32, #tpu.memory_space<vmem>>, vector<32x32xf32>
    %cst_405 = arith.constant dense<0.000000e+00> : vector<1x32xf32>
    %869 = tpu.matmul %855, %868, %cst_405 {dimension_numbers = #tpu.dot_dimension_numbers<[1], [0], [0], [1], [0, 0, 1, 1], [], []>} : vector<1x32xf32>, vector<32x32xf32>, vector<1x32xf32> -> vector<1x32xf32>
    %c0_406 = arith.constant 0 : index
    %c0_407 = arith.constant 0 : index
    %870 = vector.load %arg16[%c0_406, %c0_407] : memref<32x32xf32, #tpu.memory_space<vmem>>, vector<32x32xf32>
    %cst_408 = arith.constant dense<0.000000e+00> : vector<1x32xf32>
    %871 = tpu.matmul %867, %870, %cst_408 {dimension_numbers = #tpu.dot_dimension_numbers<[1], [0], [0], [1], [0, 0, 1, 1], [], []>} : vector<1x32xf32>, vector<32x32xf32>, vector<1x32xf32> -> vector<1x32xf32>
    %872 = arith.addf %869, %871 : vector<1x32xf32>
    %c0_409 = arith.constant 0 : index
    %c0_410 = arith.constant 0 : index
    %873 = vector.load %arg17[%c0_409, %c0_410] : memref<1x32xf32, #tpu.memory_space<vmem>>, vector<1x32xf32>
    %874 = arith.addf %872, %873 : vector<1x32xf32>
    %875 = math.tanh %874 : vector<1x32xf32>
    %c0_411 = arith.constant 0 : index
    %c0_412 = arith.constant 0 : index
    %876 = vector.load %arg18[%c0_411, %c0_412] : memref<32x64xf32, #tpu.memory_space<vmem>>, vector<32x64xf32>
    %cst_413 = arith.constant dense<0.000000e+00> : vector<1x64xf32>
    %877 = tpu.matmul %875, %876, %cst_413 {dimension_numbers = #tpu.dot_dimension_numbers<[1], [0], [0], [1], [0, 0, 1, 1], [], []>} : vector<1x32xf32>, vector<32x64xf32>, vector<1x64xf32> -> vector<1x64xf32>
    %c0_414 = arith.constant 0 : index
    %c0_415 = arith.constant 0 : index
    %878 = vector.load %arg19[%c0_414, %c0_415] : memref<1x64xf32, #tpu.memory_space<vmem>>, vector<1x64xf32>
    %879 = arith.addf %877, %878 : vector<1x64xf32>
    %cst_416 = arith.constant dense<0xFF800000> : vector<1xf32>
    %880 = vector.multi_reduction <maximumf>, %879, %cst_416 [1] : vector<1x64xf32> to vector<1xf32>
    %881 = vector.shape_cast %880 : vector<1xf32> to vector<1x1xf32>
    %882 = vector.broadcast %881 : vector<1x1xf32> to vector<1x64xf32>
    %883 = arith.subf %879, %882 : vector<1x64xf32>
    %884 = math.exp %883 : vector<1x64xf32>
    %cst_417 = arith.constant dense<0.000000e+00> : vector<1xf32>
    %885 = vector.multi_reduction <add>, %884, %cst_417 [1] : vector<1x64xf32> to vector<1xf32>
    %886 = vector.shape_cast %885 : vector<1xf32> to vector<1x1xf32>
    %887 = tpu.reciprocal %886 {approx = true} : vector<1x1xf32> -> vector<1x1xf32>
    %888 = vector.broadcast %881 : vector<1x1xf32> to vector<1x64xf32>
    %889 = arith.cmpf oge, %879, %888 : vector<1x64xf32>
    %c64_i32_418 = arith.constant 64 : i32
    %890 = vector.broadcast %c64_i32_418 : i32 to vector<1x64xi32>
    %891 = arith.select %889, %565, %890 : vector<1x64xi1>, vector<1x64xi32>
    %cst_419 = arith.constant dense<2147483647> : vector<1xi32>
    %892 = vector.multi_reduction <minsi>, %891, %cst_419 [1] : vector<1x64xi32> to vector<1xi32>
    %893 = vector.shape_cast %892 : vector<1xi32> to vector<1x1xi32>
    %c3_i32 = arith.constant 3 : i32
    %894 = vector.broadcast %c3_i32 : i32 to vector<1x128xi32>
    %895 = arith.cmpi eq, %566, %894 : vector<1x128xi32>
    %896 = vector.shape_cast %893 : vector<1x1xi32> to vector<1x1xi32>
    %897 = vector.broadcast %896 : vector<1x1xi32> to vector<1x128xi32>
    %898 = arith.select %895, %897, %813 : vector<1x128xi1>, vector<1x128xi32>
    %c3_i32_420 = arith.constant 3 : i32
    %899 = vector.broadcast %c3_i32_420 : i32 to vector<1x128xi32>
    %900 = arith.cmpi eq, %566, %899 : vector<1x128xi32>
    %901 = vector.shape_cast %887 : vector<1x1xf32> to vector<1x1xf32>
    %902 = vector.broadcast %901 : vector<1x1xf32> to vector<1x128xf32>
    %903 = arith.select %900, %902, %818 : vector<1x128xi1>, vector<1x128xf32>
    %904 = vector.broadcast %893 : vector<1x1xi32> to vector<1x64xi32>
    %905 = arith.cmpi eq, %565, %904 : vector<1x64xi32>
    %906 = arith.extui %905 : vector<1x64xi1> to vector<1x64xi32>
    %907 = arith.sitofp %906 : vector<1x64xi32> to vector<1x64xf32>
    %c0_421 = arith.constant 0 : index
    %c0_422 = arith.constant 0 : index
    %908 = vector.load %arg2[%c0_421, %c0_422] : memref<64x32xf32, #tpu.memory_space<vmem>>, vector<64x32xf32>
    %cst_423 = arith.constant dense<0.000000e+00> : vector<1x32xf32>
    %909 = tpu.matmul %907, %908, %cst_423 {dimension_numbers = #tpu.dot_dimension_numbers<[1], [0], [0], [1], [0, 0, 1, 1], [], []>} : vector<1x64xf32>, vector<64x32xf32>, vector<1x32xf32> -> vector<1x32xf32>
    %c0_424 = arith.constant 0 : index
    %c0_425 = arith.constant 0 : index
    %910 = vector.load %arg11[%c0_424, %c0_425] : memref<32x96xf32, #tpu.memory_space<vmem>>, vector<32x96xf32>
    %cst_426 = arith.constant dense<0.000000e+00> : vector<1x96xf32>
    %911 = tpu.matmul %909, %910, %cst_426 {dimension_numbers = #tpu.dot_dimension_numbers<[1], [0], [0], [1], [0, 0, 1, 1], [], []>} : vector<1x32xf32>, vector<32x96xf32>, vector<1x96xf32> -> vector<1x96xf32>
    %c0_427 = arith.constant 0 : index
    %c0_428 = arith.constant 0 : index
    %912 = vector.load %arg13[%c0_427, %c0_428] : memref<1x96xf32, #tpu.memory_space<vmem>>, vector<1x96xf32>
    %913 = arith.addf %911, %912 : vector<1x96xf32>
    %c0_429 = arith.constant 0 : index
    %c0_430 = arith.constant 0 : index
    %914 = vector.load %arg12[%c0_429, %c0_430] : memref<32x96xf32, #tpu.memory_space<vmem>>, vector<32x96xf32>
    %cst_431 = arith.constant dense<0.000000e+00> : vector<1x96xf32>
    %915 = tpu.matmul %855, %914, %cst_431 {dimension_numbers = #tpu.dot_dimension_numbers<[1], [0], [0], [1], [0, 0, 1, 1], [], []>} : vector<1x32xf32>, vector<32x96xf32>, vector<1x96xf32> -> vector<1x96xf32>
    %c0_432 = arith.constant 0 : index
    %c0_433 = arith.constant 0 : index
    %916 = vector.load %arg14[%c0_432, %c0_433] : memref<1x96xf32, #tpu.memory_space<vmem>>, vector<1x96xf32>
    %917 = arith.addf %915, %916 : vector<1x96xf32>
    %918 = arith.addf %913, %917 : vector<1x96xf32>
    %919 = vector.extract_strided_slice %918 {offsets = [0, 0], sizes = [1, 32], strides = [1, 1]} : vector<1x96xf32> to vector<1x32xf32>
    %920 = arith.negf %919 : vector<1x32xf32>
    %921 = math.exp %920 : vector<1x32xf32>
    %cst_434 = arith.constant 1.000000e+00 : f32
    %922 = vector.broadcast %cst_434 : f32 to vector<1x32xf32>
    %923 = arith.addf %922, %921 : vector<1x32xf32>
    %924 = arith.divf %922, %923 : vector<1x32xf32>
    %925 = vector.extract_strided_slice %918 {offsets = [0, 32], sizes = [1, 32], strides = [1, 1]} : vector<1x96xf32> to vector<1x32xf32>
    %926 = arith.negf %925 : vector<1x32xf32>
    %927 = math.exp %926 : vector<1x32xf32>
    %cst_435 = arith.constant 1.000000e+00 : f32
    %928 = vector.broadcast %cst_435 : f32 to vector<1x32xf32>
    %929 = arith.addf %928, %927 : vector<1x32xf32>
    %930 = arith.divf %928, %929 : vector<1x32xf32>
    %931 = vector.extract_strided_slice %913 {offsets = [0, 64], sizes = [1, 32], strides = [1, 1]} : vector<1x96xf32> to vector<1x32xf32>
    %932 = vector.extract_strided_slice %917 {offsets = [0, 64], sizes = [1, 32], strides = [1, 1]} : vector<1x96xf32> to vector<1x32xf32>
    %933 = arith.mulf %924, %932 : vector<1x32xf32>
    %934 = arith.addf %931, %933 : vector<1x32xf32>
    %935 = math.tanh %934 : vector<1x32xf32>
    %cst_436 = arith.constant 1.000000e+00 : f32
    %936 = vector.broadcast %cst_436 : f32 to vector<1x32xf32>
    %937 = arith.subf %936, %930 : vector<1x32xf32>
    %938 = arith.mulf %937, %935 : vector<1x32xf32>
    %939 = arith.mulf %930, %855 : vector<1x32xf32>
    %940 = arith.addf %938, %939 : vector<1x32xf32>
    %cst_437 = arith.constant dense<0.000000e+00> : vector<1x8xf32>
    %941 = tpu.matmul %940, %564, %cst_437 {dimension_numbers = #tpu.dot_dimension_numbers<[1], [1], [0], [0], [0, 0, 1, 0], [], []>} : vector<1x32xf32>, vector<8x32xf32>, vector<1x8xf32> -> vector<1x8xf32>
    %cst_438 = arith.constant dense<0xFF800000> : vector<1xf32>
    %942 = vector.multi_reduction <maximumf>, %941, %cst_438 [1] : vector<1x8xf32> to vector<1xf32>
    %943 = vector.shape_cast %942 : vector<1xf32> to vector<1x1xf32>
    %944 = vector.broadcast %943 : vector<1x1xf32> to vector<1x8xf32>
    %945 = arith.subf %941, %944 : vector<1x8xf32>
    %946 = math.exp %945 : vector<1x8xf32>
    %cst_439 = arith.constant dense<0.000000e+00> : vector<1xf32>
    %947 = vector.multi_reduction <add>, %946, %cst_439 [1] : vector<1x8xf32> to vector<1xf32>
    %948 = vector.shape_cast %947 : vector<1xf32> to vector<1x1xf32>
    %949 = tpu.reciprocal %948 {approx = true} : vector<1x1xf32> -> vector<1x1xf32>
    %950 = vector.broadcast %949 : vector<1x1xf32> to vector<1x8xf32>
    %951 = arith.mulf %946, %950 : vector<1x8xf32>
    %cst_440 = arith.constant dense<0.000000e+00> : vector<1x32xf32>
    %952 = tpu.matmul %951, %564, %cst_440 {dimension_numbers = #tpu.dot_dimension_numbers<[1], [0], [0], [1], [0, 0, 1, 1], [], []>} : vector<1x8xf32>, vector<8x32xf32>, vector<1x32xf32> -> vector<1x32xf32>
    %c0_441 = arith.constant 0 : index
    %c0_442 = arith.constant 0 : index
    %953 = vector.load %arg15[%c0_441, %c0_442] : memref<32x32xf32, #tpu.memory_space<vmem>>, vector<32x32xf32>
    %cst_443 = arith.constant dense<0.000000e+00> : vector<1x32xf32>
    %954 = tpu.matmul %940, %953, %cst_443 {dimension_numbers = #tpu.dot_dimension_numbers<[1], [0], [0], [1], [0, 0, 1, 1], [], []>} : vector<1x32xf32>, vector<32x32xf32>, vector<1x32xf32> -> vector<1x32xf32>
    %c0_444 = arith.constant 0 : index
    %c0_445 = arith.constant 0 : index
    %955 = vector.load %arg16[%c0_444, %c0_445] : memref<32x32xf32, #tpu.memory_space<vmem>>, vector<32x32xf32>
    %cst_446 = arith.constant dense<0.000000e+00> : vector<1x32xf32>
    %956 = tpu.matmul %952, %955, %cst_446 {dimension_numbers = #tpu.dot_dimension_numbers<[1], [0], [0], [1], [0, 0, 1, 1], [], []>} : vector<1x32xf32>, vector<32x32xf32>, vector<1x32xf32> -> vector<1x32xf32>
    %957 = arith.addf %954, %956 : vector<1x32xf32>
    %c0_447 = arith.constant 0 : index
    %c0_448 = arith.constant 0 : index
    %958 = vector.load %arg17[%c0_447, %c0_448] : memref<1x32xf32, #tpu.memory_space<vmem>>, vector<1x32xf32>
    %959 = arith.addf %957, %958 : vector<1x32xf32>
    %960 = math.tanh %959 : vector<1x32xf32>
    %c0_449 = arith.constant 0 : index
    %c0_450 = arith.constant 0 : index
    %961 = vector.load %arg18[%c0_449, %c0_450] : memref<32x64xf32, #tpu.memory_space<vmem>>, vector<32x64xf32>
    %cst_451 = arith.constant dense<0.000000e+00> : vector<1x64xf32>
    %962 = tpu.matmul %960, %961, %cst_451 {dimension_numbers = #tpu.dot_dimension_numbers<[1], [0], [0], [1], [0, 0, 1, 1], [], []>} : vector<1x32xf32>, vector<32x64xf32>, vector<1x64xf32> -> vector<1x64xf32>
    %c0_452 = arith.constant 0 : index
    %c0_453 = arith.constant 0 : index
    %963 = vector.load %arg19[%c0_452, %c0_453] : memref<1x64xf32, #tpu.memory_space<vmem>>, vector<1x64xf32>
    %964 = arith.addf %962, %963 : vector<1x64xf32>
    %cst_454 = arith.constant dense<0xFF800000> : vector<1xf32>
    %965 = vector.multi_reduction <maximumf>, %964, %cst_454 [1] : vector<1x64xf32> to vector<1xf32>
    %966 = vector.shape_cast %965 : vector<1xf32> to vector<1x1xf32>
    %967 = vector.broadcast %966 : vector<1x1xf32> to vector<1x64xf32>
    %968 = arith.subf %964, %967 : vector<1x64xf32>
    %969 = math.exp %968 : vector<1x64xf32>
    %cst_455 = arith.constant dense<0.000000e+00> : vector<1xf32>
    %970 = vector.multi_reduction <add>, %969, %cst_455 [1] : vector<1x64xf32> to vector<1xf32>
    %971 = vector.shape_cast %970 : vector<1xf32> to vector<1x1xf32>
    %972 = tpu.reciprocal %971 {approx = true} : vector<1x1xf32> -> vector<1x1xf32>
    %973 = vector.broadcast %966 : vector<1x1xf32> to vector<1x64xf32>
    %974 = arith.cmpf oge, %964, %973 : vector<1x64xf32>
    %c64_i32_456 = arith.constant 64 : i32
    %975 = vector.broadcast %c64_i32_456 : i32 to vector<1x64xi32>
    %976 = arith.select %974, %565, %975 : vector<1x64xi1>, vector<1x64xi32>
    %cst_457 = arith.constant dense<2147483647> : vector<1xi32>
    %977 = vector.multi_reduction <minsi>, %976, %cst_457 [1] : vector<1x64xi32> to vector<1xi32>
    %978 = vector.shape_cast %977 : vector<1xi32> to vector<1x1xi32>
    %c4_i32 = arith.constant 4 : i32
    %979 = vector.broadcast %c4_i32 : i32 to vector<1x128xi32>
    %980 = arith.cmpi eq, %566, %979 : vector<1x128xi32>
    %981 = vector.shape_cast %978 : vector<1x1xi32> to vector<1x1xi32>
    %982 = vector.broadcast %981 : vector<1x1xi32> to vector<1x128xi32>
    %983 = arith.select %980, %982, %898 : vector<1x128xi1>, vector<1x128xi32>
    %c4_i32_458 = arith.constant 4 : i32
    %984 = vector.broadcast %c4_i32_458 : i32 to vector<1x128xi32>
    %985 = arith.cmpi eq, %566, %984 : vector<1x128xi32>
    %986 = vector.shape_cast %972 : vector<1x1xf32> to vector<1x1xf32>
    %987 = vector.broadcast %986 : vector<1x1xf32> to vector<1x128xf32>
    %988 = arith.select %985, %987, %903 : vector<1x128xi1>, vector<1x128xf32>
    %989 = vector.broadcast %978 : vector<1x1xi32> to vector<1x64xi32>
    %990 = arith.cmpi eq, %565, %989 : vector<1x64xi32>
    %991 = arith.extui %990 : vector<1x64xi1> to vector<1x64xi32>
    %992 = arith.sitofp %991 : vector<1x64xi32> to vector<1x64xf32>
    %c0_459 = arith.constant 0 : index
    %c0_460 = arith.constant 0 : index
    %993 = vector.load %arg2[%c0_459, %c0_460] : memref<64x32xf32, #tpu.memory_space<vmem>>, vector<64x32xf32>
    %cst_461 = arith.constant dense<0.000000e+00> : vector<1x32xf32>
    %994 = tpu.matmul %992, %993, %cst_461 {dimension_numbers = #tpu.dot_dimension_numbers<[1], [0], [0], [1], [0, 0, 1, 1], [], []>} : vector<1x64xf32>, vector<64x32xf32>, vector<1x32xf32> -> vector<1x32xf32>
    %c0_462 = arith.constant 0 : index
    %c0_463 = arith.constant 0 : index
    %995 = vector.load %arg11[%c0_462, %c0_463] : memref<32x96xf32, #tpu.memory_space<vmem>>, vector<32x96xf32>
    %cst_464 = arith.constant dense<0.000000e+00> : vector<1x96xf32>
    %996 = tpu.matmul %994, %995, %cst_464 {dimension_numbers = #tpu.dot_dimension_numbers<[1], [0], [0], [1], [0, 0, 1, 1], [], []>} : vector<1x32xf32>, vector<32x96xf32>, vector<1x96xf32> -> vector<1x96xf32>
    %c0_465 = arith.constant 0 : index
    %c0_466 = arith.constant 0 : index
    %997 = vector.load %arg13[%c0_465, %c0_466] : memref<1x96xf32, #tpu.memory_space<vmem>>, vector<1x96xf32>
    %998 = arith.addf %996, %997 : vector<1x96xf32>
    %c0_467 = arith.constant 0 : index
    %c0_468 = arith.constant 0 : index
    %999 = vector.load %arg12[%c0_467, %c0_468] : memref<32x96xf32, #tpu.memory_space<vmem>>, vector<32x96xf32>
    %cst_469 = arith.constant dense<0.000000e+00> : vector<1x96xf32>
    %1000 = tpu.matmul %940, %999, %cst_469 {dimension_numbers = #tpu.dot_dimension_numbers<[1], [0], [0], [1], [0, 0, 1, 1], [], []>} : vector<1x32xf32>, vector<32x96xf32>, vector<1x96xf32> -> vector<1x96xf32>
    %c0_470 = arith.constant 0 : index
    %c0_471 = arith.constant 0 : index
    %1001 = vector.load %arg14[%c0_470, %c0_471] : memref<1x96xf32, #tpu.memory_space<vmem>>, vector<1x96xf32>
    %1002 = arith.addf %1000, %1001 : vector<1x96xf32>
    %1003 = arith.addf %998, %1002 : vector<1x96xf32>
    %1004 = vector.extract_strided_slice %1003 {offsets = [0, 0], sizes = [1, 32], strides = [1, 1]} : vector<1x96xf32> to vector<1x32xf32>
    %1005 = arith.negf %1004 : vector<1x32xf32>
    %1006 = math.exp %1005 : vector<1x32xf32>
    %cst_472 = arith.constant 1.000000e+00 : f32
    %1007 = vector.broadcast %cst_472 : f32 to vector<1x32xf32>
    %1008 = arith.addf %1007, %1006 : vector<1x32xf32>
    %1009 = arith.divf %1007, %1008 : vector<1x32xf32>
    %1010 = vector.extract_strided_slice %1003 {offsets = [0, 32], sizes = [1, 32], strides = [1, 1]} : vector<1x96xf32> to vector<1x32xf32>
    %1011 = arith.negf %1010 : vector<1x32xf32>
    %1012 = math.exp %1011 : vector<1x32xf32>
    %cst_473 = arith.constant 1.000000e+00 : f32
    %1013 = vector.broadcast %cst_473 : f32 to vector<1x32xf32>
    %1014 = arith.addf %1013, %1012 : vector<1x32xf32>
    %1015 = arith.divf %1013, %1014 : vector<1x32xf32>
    %1016 = vector.extract_strided_slice %998 {offsets = [0, 64], sizes = [1, 32], strides = [1, 1]} : vector<1x96xf32> to vector<1x32xf32>
    %1017 = vector.extract_strided_slice %1002 {offsets = [0, 64], sizes = [1, 32], strides = [1, 1]} : vector<1x96xf32> to vector<1x32xf32>
    %1018 = arith.mulf %1009, %1017 : vector<1x32xf32>
    %1019 = arith.addf %1016, %1018 : vector<1x32xf32>
    %1020 = math.tanh %1019 : vector<1x32xf32>
    %cst_474 = arith.constant 1.000000e+00 : f32
    %1021 = vector.broadcast %cst_474 : f32 to vector<1x32xf32>
    %1022 = arith.subf %1021, %1015 : vector<1x32xf32>
    %1023 = arith.mulf %1022, %1020 : vector<1x32xf32>
    %1024 = arith.mulf %1015, %940 : vector<1x32xf32>
    %1025 = arith.addf %1023, %1024 : vector<1x32xf32>
    %cst_475 = arith.constant dense<0.000000e+00> : vector<1x8xf32>
    %1026 = tpu.matmul %1025, %564, %cst_475 {dimension_numbers = #tpu.dot_dimension_numbers<[1], [1], [0], [0], [0, 0, 1, 0], [], []>} : vector<1x32xf32>, vector<8x32xf32>, vector<1x8xf32> -> vector<1x8xf32>
    %cst_476 = arith.constant dense<0xFF800000> : vector<1xf32>
    %1027 = vector.multi_reduction <maximumf>, %1026, %cst_476 [1] : vector<1x8xf32> to vector<1xf32>
    %1028 = vector.shape_cast %1027 : vector<1xf32> to vector<1x1xf32>
    %1029 = vector.broadcast %1028 : vector<1x1xf32> to vector<1x8xf32>
    %1030 = arith.subf %1026, %1029 : vector<1x8xf32>
    %1031 = math.exp %1030 : vector<1x8xf32>
    %cst_477 = arith.constant dense<0.000000e+00> : vector<1xf32>
    %1032 = vector.multi_reduction <add>, %1031, %cst_477 [1] : vector<1x8xf32> to vector<1xf32>
    %1033 = vector.shape_cast %1032 : vector<1xf32> to vector<1x1xf32>
    %1034 = tpu.reciprocal %1033 {approx = true} : vector<1x1xf32> -> vector<1x1xf32>
    %1035 = vector.broadcast %1034 : vector<1x1xf32> to vector<1x8xf32>
    %1036 = arith.mulf %1031, %1035 : vector<1x8xf32>
    %cst_478 = arith.constant dense<0.000000e+00> : vector<1x32xf32>
    %1037 = tpu.matmul %1036, %564, %cst_478 {dimension_numbers = #tpu.dot_dimension_numbers<[1], [0], [0], [1], [0, 0, 1, 1], [], []>} : vector<1x8xf32>, vector<8x32xf32>, vector<1x32xf32> -> vector<1x32xf32>
    %c0_479 = arith.constant 0 : index
    %c0_480 = arith.constant 0 : index
    %1038 = vector.load %arg15[%c0_479, %c0_480] : memref<32x32xf32, #tpu.memory_space<vmem>>, vector<32x32xf32>
    %cst_481 = arith.constant dense<0.000000e+00> : vector<1x32xf32>
    %1039 = tpu.matmul %1025, %1038, %cst_481 {dimension_numbers = #tpu.dot_dimension_numbers<[1], [0], [0], [1], [0, 0, 1, 1], [], []>} : vector<1x32xf32>, vector<32x32xf32>, vector<1x32xf32> -> vector<1x32xf32>
    %c0_482 = arith.constant 0 : index
    %c0_483 = arith.constant 0 : index
    %1040 = vector.load %arg16[%c0_482, %c0_483] : memref<32x32xf32, #tpu.memory_space<vmem>>, vector<32x32xf32>
    %cst_484 = arith.constant dense<0.000000e+00> : vector<1x32xf32>
    %1041 = tpu.matmul %1037, %1040, %cst_484 {dimension_numbers = #tpu.dot_dimension_numbers<[1], [0], [0], [1], [0, 0, 1, 1], [], []>} : vector<1x32xf32>, vector<32x32xf32>, vector<1x32xf32> -> vector<1x32xf32>
    %1042 = arith.addf %1039, %1041 : vector<1x32xf32>
    %c0_485 = arith.constant 0 : index
    %c0_486 = arith.constant 0 : index
    %1043 = vector.load %arg17[%c0_485, %c0_486] : memref<1x32xf32, #tpu.memory_space<vmem>>, vector<1x32xf32>
    %1044 = arith.addf %1042, %1043 : vector<1x32xf32>
    %1045 = math.tanh %1044 : vector<1x32xf32>
    %c0_487 = arith.constant 0 : index
    %c0_488 = arith.constant 0 : index
    %1046 = vector.load %arg18[%c0_487, %c0_488] : memref<32x64xf32, #tpu.memory_space<vmem>>, vector<32x64xf32>
    %cst_489 = arith.constant dense<0.000000e+00> : vector<1x64xf32>
    %1047 = tpu.matmul %1045, %1046, %cst_489 {dimension_numbers = #tpu.dot_dimension_numbers<[1], [0], [0], [1], [0, 0, 1, 1], [], []>} : vector<1x32xf32>, vector<32x64xf32>, vector<1x64xf32> -> vector<1x64xf32>
    %c0_490 = arith.constant 0 : index
    %c0_491 = arith.constant 0 : index
    %1048 = vector.load %arg19[%c0_490, %c0_491] : memref<1x64xf32, #tpu.memory_space<vmem>>, vector<1x64xf32>
    %1049 = arith.addf %1047, %1048 : vector<1x64xf32>
    %cst_492 = arith.constant dense<0xFF800000> : vector<1xf32>
    %1050 = vector.multi_reduction <maximumf>, %1049, %cst_492 [1] : vector<1x64xf32> to vector<1xf32>
    %1051 = vector.shape_cast %1050 : vector<1xf32> to vector<1x1xf32>
    %1052 = vector.broadcast %1051 : vector<1x1xf32> to vector<1x64xf32>
    %1053 = arith.subf %1049, %1052 : vector<1x64xf32>
    %1054 = math.exp %1053 : vector<1x64xf32>
    %cst_493 = arith.constant dense<0.000000e+00> : vector<1xf32>
    %1055 = vector.multi_reduction <add>, %1054, %cst_493 [1] : vector<1x64xf32> to vector<1xf32>
    %1056 = vector.shape_cast %1055 : vector<1xf32> to vector<1x1xf32>
    %1057 = tpu.reciprocal %1056 {approx = true} : vector<1x1xf32> -> vector<1x1xf32>
    %1058 = vector.broadcast %1051 : vector<1x1xf32> to vector<1x64xf32>
    %1059 = arith.cmpf oge, %1049, %1058 : vector<1x64xf32>
    %c64_i32_494 = arith.constant 64 : i32
    %1060 = vector.broadcast %c64_i32_494 : i32 to vector<1x64xi32>
    %1061 = arith.select %1059, %565, %1060 : vector<1x64xi1>, vector<1x64xi32>
    %cst_495 = arith.constant dense<2147483647> : vector<1xi32>
    %1062 = vector.multi_reduction <minsi>, %1061, %cst_495 [1] : vector<1x64xi32> to vector<1xi32>
    %1063 = vector.shape_cast %1062 : vector<1xi32> to vector<1x1xi32>
    %c5_i32 = arith.constant 5 : i32
    %1064 = vector.broadcast %c5_i32 : i32 to vector<1x128xi32>
    %1065 = arith.cmpi eq, %566, %1064 : vector<1x128xi32>
    %1066 = vector.shape_cast %1063 : vector<1x1xi32> to vector<1x1xi32>
    %1067 = vector.broadcast %1066 : vector<1x1xi32> to vector<1x128xi32>
    %1068 = arith.select %1065, %1067, %983 : vector<1x128xi1>, vector<1x128xi32>
    %c5_i32_496 = arith.constant 5 : i32
    %1069 = vector.broadcast %c5_i32_496 : i32 to vector<1x128xi32>
    %1070 = arith.cmpi eq, %566, %1069 : vector<1x128xi32>
    %1071 = vector.shape_cast %1057 : vector<1x1xf32> to vector<1x1xf32>
    %1072 = vector.broadcast %1071 : vector<1x1xf32> to vector<1x128xf32>
    %1073 = arith.select %1070, %1072, %988 : vector<1x128xi1>, vector<1x128xf32>
    %1074 = vector.broadcast %1063 : vector<1x1xi32> to vector<1x64xi32>
    %1075 = arith.cmpi eq, %565, %1074 : vector<1x64xi32>
    %1076 = arith.extui %1075 : vector<1x64xi1> to vector<1x64xi32>
    %1077 = arith.sitofp %1076 : vector<1x64xi32> to vector<1x64xf32>
    %c0_497 = arith.constant 0 : index
    %c0_498 = arith.constant 0 : index
    %1078 = vector.load %arg2[%c0_497, %c0_498] : memref<64x32xf32, #tpu.memory_space<vmem>>, vector<64x32xf32>
    %cst_499 = arith.constant dense<0.000000e+00> : vector<1x32xf32>
    %1079 = tpu.matmul %1077, %1078, %cst_499 {dimension_numbers = #tpu.dot_dimension_numbers<[1], [0], [0], [1], [0, 0, 1, 1], [], []>} : vector<1x64xf32>, vector<64x32xf32>, vector<1x32xf32> -> vector<1x32xf32>
    %c0_500 = arith.constant 0 : index
    %c0_501 = arith.constant 0 : index
    %1080 = vector.load %arg11[%c0_500, %c0_501] : memref<32x96xf32, #tpu.memory_space<vmem>>, vector<32x96xf32>
    %cst_502 = arith.constant dense<0.000000e+00> : vector<1x96xf32>
    %1081 = tpu.matmul %1079, %1080, %cst_502 {dimension_numbers = #tpu.dot_dimension_numbers<[1], [0], [0], [1], [0, 0, 1, 1], [], []>} : vector<1x32xf32>, vector<32x96xf32>, vector<1x96xf32> -> vector<1x96xf32>
    %c0_503 = arith.constant 0 : index
    %c0_504 = arith.constant 0 : index
    %1082 = vector.load %arg13[%c0_503, %c0_504] : memref<1x96xf32, #tpu.memory_space<vmem>>, vector<1x96xf32>
    %1083 = arith.addf %1081, %1082 : vector<1x96xf32>
    %c0_505 = arith.constant 0 : index
    %c0_506 = arith.constant 0 : index
    %1084 = vector.load %arg12[%c0_505, %c0_506] : memref<32x96xf32, #tpu.memory_space<vmem>>, vector<32x96xf32>
    %cst_507 = arith.constant dense<0.000000e+00> : vector<1x96xf32>
    %1085 = tpu.matmul %1025, %1084, %cst_507 {dimension_numbers = #tpu.dot_dimension_numbers<[1], [0], [0], [1], [0, 0, 1, 1], [], []>} : vector<1x32xf32>, vector<32x96xf32>, vector<1x96xf32> -> vector<1x96xf32>
    %c0_508 = arith.constant 0 : index
    %c0_509 = arith.constant 0 : index
    %1086 = vector.load %arg14[%c0_508, %c0_509] : memref<1x96xf32, #tpu.memory_space<vmem>>, vector<1x96xf32>
    %1087 = arith.addf %1085, %1086 : vector<1x96xf32>
    %1088 = arith.addf %1083, %1087 : vector<1x96xf32>
    %1089 = vector.extract_strided_slice %1088 {offsets = [0, 0], sizes = [1, 32], strides = [1, 1]} : vector<1x96xf32> to vector<1x32xf32>
    %1090 = arith.negf %1089 : vector<1x32xf32>
    %1091 = math.exp %1090 : vector<1x32xf32>
    %cst_510 = arith.constant 1.000000e+00 : f32
    %1092 = vector.broadcast %cst_510 : f32 to vector<1x32xf32>
    %1093 = arith.addf %1092, %1091 : vector<1x32xf32>
    %1094 = arith.divf %1092, %1093 : vector<1x32xf32>
    %1095 = vector.extract_strided_slice %1088 {offsets = [0, 32], sizes = [1, 32], strides = [1, 1]} : vector<1x96xf32> to vector<1x32xf32>
    %1096 = arith.negf %1095 : vector<1x32xf32>
    %1097 = math.exp %1096 : vector<1x32xf32>
    %cst_511 = arith.constant 1.000000e+00 : f32
    %1098 = vector.broadcast %cst_511 : f32 to vector<1x32xf32>
    %1099 = arith.addf %1098, %1097 : vector<1x32xf32>
    %1100 = arith.divf %1098, %1099 : vector<1x32xf32>
    %1101 = vector.extract_strided_slice %1083 {offsets = [0, 64], sizes = [1, 32], strides = [1, 1]} : vector<1x96xf32> to vector<1x32xf32>
    %1102 = vector.extract_strided_slice %1087 {offsets = [0, 64], sizes = [1, 32], strides = [1, 1]} : vector<1x96xf32> to vector<1x32xf32>
    %1103 = arith.mulf %1094, %1102 : vector<1x32xf32>
    %1104 = arith.addf %1101, %1103 : vector<1x32xf32>
    %1105 = math.tanh %1104 : vector<1x32xf32>
    %cst_512 = arith.constant 1.000000e+00 : f32
    %1106 = vector.broadcast %cst_512 : f32 to vector<1x32xf32>
    %1107 = arith.subf %1106, %1100 : vector<1x32xf32>
    %1108 = arith.mulf %1107, %1105 : vector<1x32xf32>
    %1109 = arith.mulf %1100, %1025 : vector<1x32xf32>
    %1110 = arith.addf %1108, %1109 : vector<1x32xf32>
    %cst_513 = arith.constant dense<0.000000e+00> : vector<1x8xf32>
    %1111 = tpu.matmul %1110, %564, %cst_513 {dimension_numbers = #tpu.dot_dimension_numbers<[1], [1], [0], [0], [0, 0, 1, 0], [], []>} : vector<1x32xf32>, vector<8x32xf32>, vector<1x8xf32> -> vector<1x8xf32>
    %cst_514 = arith.constant dense<0xFF800000> : vector<1xf32>
    %1112 = vector.multi_reduction <maximumf>, %1111, %cst_514 [1] : vector<1x8xf32> to vector<1xf32>
    %1113 = vector.shape_cast %1112 : vector<1xf32> to vector<1x1xf32>
    %1114 = vector.broadcast %1113 : vector<1x1xf32> to vector<1x8xf32>
    %1115 = arith.subf %1111, %1114 : vector<1x8xf32>
    %1116 = math.exp %1115 : vector<1x8xf32>
    %cst_515 = arith.constant dense<0.000000e+00> : vector<1xf32>
    %1117 = vector.multi_reduction <add>, %1116, %cst_515 [1] : vector<1x8xf32> to vector<1xf32>
    %1118 = vector.shape_cast %1117 : vector<1xf32> to vector<1x1xf32>
    %1119 = tpu.reciprocal %1118 {approx = true} : vector<1x1xf32> -> vector<1x1xf32>
    %1120 = vector.broadcast %1119 : vector<1x1xf32> to vector<1x8xf32>
    %1121 = arith.mulf %1116, %1120 : vector<1x8xf32>
    %cst_516 = arith.constant dense<0.000000e+00> : vector<1x32xf32>
    %1122 = tpu.matmul %1121, %564, %cst_516 {dimension_numbers = #tpu.dot_dimension_numbers<[1], [0], [0], [1], [0, 0, 1, 1], [], []>} : vector<1x8xf32>, vector<8x32xf32>, vector<1x32xf32> -> vector<1x32xf32>
    %c0_517 = arith.constant 0 : index
    %c0_518 = arith.constant 0 : index
    %1123 = vector.load %arg15[%c0_517, %c0_518] : memref<32x32xf32, #tpu.memory_space<vmem>>, vector<32x32xf32>
    %cst_519 = arith.constant dense<0.000000e+00> : vector<1x32xf32>
    %1124 = tpu.matmul %1110, %1123, %cst_519 {dimension_numbers = #tpu.dot_dimension_numbers<[1], [0], [0], [1], [0, 0, 1, 1], [], []>} : vector<1x32xf32>, vector<32x32xf32>, vector<1x32xf32> -> vector<1x32xf32>
    %c0_520 = arith.constant 0 : index
    %c0_521 = arith.constant 0 : index
    %1125 = vector.load %arg16[%c0_520, %c0_521] : memref<32x32xf32, #tpu.memory_space<vmem>>, vector<32x32xf32>
    %cst_522 = arith.constant dense<0.000000e+00> : vector<1x32xf32>
    %1126 = tpu.matmul %1122, %1125, %cst_522 {dimension_numbers = #tpu.dot_dimension_numbers<[1], [0], [0], [1], [0, 0, 1, 1], [], []>} : vector<1x32xf32>, vector<32x32xf32>, vector<1x32xf32> -> vector<1x32xf32>
    %1127 = arith.addf %1124, %1126 : vector<1x32xf32>
    %c0_523 = arith.constant 0 : index
    %c0_524 = arith.constant 0 : index
    %1128 = vector.load %arg17[%c0_523, %c0_524] : memref<1x32xf32, #tpu.memory_space<vmem>>, vector<1x32xf32>
    %1129 = arith.addf %1127, %1128 : vector<1x32xf32>
    %1130 = math.tanh %1129 : vector<1x32xf32>
    %c0_525 = arith.constant 0 : index
    %c0_526 = arith.constant 0 : index
    %1131 = vector.load %arg18[%c0_525, %c0_526] : memref<32x64xf32, #tpu.memory_space<vmem>>, vector<32x64xf32>
    %cst_527 = arith.constant dense<0.000000e+00> : vector<1x64xf32>
    %1132 = tpu.matmul %1130, %1131, %cst_527 {dimension_numbers = #tpu.dot_dimension_numbers<[1], [0], [0], [1], [0, 0, 1, 1], [], []>} : vector<1x32xf32>, vector<32x64xf32>, vector<1x64xf32> -> vector<1x64xf32>
    %c0_528 = arith.constant 0 : index
    %c0_529 = arith.constant 0 : index
    %1133 = vector.load %arg19[%c0_528, %c0_529] : memref<1x64xf32, #tpu.memory_space<vmem>>, vector<1x64xf32>
    %1134 = arith.addf %1132, %1133 : vector<1x64xf32>
    %cst_530 = arith.constant dense<0xFF800000> : vector<1xf32>
    %1135 = vector.multi_reduction <maximumf>, %1134, %cst_530 [1] : vector<1x64xf32> to vector<1xf32>
    %1136 = vector.shape_cast %1135 : vector<1xf32> to vector<1x1xf32>
    %1137 = vector.broadcast %1136 : vector<1x1xf32> to vector<1x64xf32>
    %1138 = arith.subf %1134, %1137 : vector<1x64xf32>
    %1139 = math.exp %1138 : vector<1x64xf32>
    %cst_531 = arith.constant dense<0.000000e+00> : vector<1xf32>
    %1140 = vector.multi_reduction <add>, %1139, %cst_531 [1] : vector<1x64xf32> to vector<1xf32>
    %1141 = vector.shape_cast %1140 : vector<1xf32> to vector<1x1xf32>
    %1142 = tpu.reciprocal %1141 {approx = true} : vector<1x1xf32> -> vector<1x1xf32>
    %1143 = vector.broadcast %1136 : vector<1x1xf32> to vector<1x64xf32>
    %1144 = arith.cmpf oge, %1134, %1143 : vector<1x64xf32>
    %c64_i32_532 = arith.constant 64 : i32
    %1145 = vector.broadcast %c64_i32_532 : i32 to vector<1x64xi32>
    %1146 = arith.select %1144, %565, %1145 : vector<1x64xi1>, vector<1x64xi32>
    %cst_533 = arith.constant dense<2147483647> : vector<1xi32>
    %1147 = vector.multi_reduction <minsi>, %1146, %cst_533 [1] : vector<1x64xi32> to vector<1xi32>
    %1148 = vector.shape_cast %1147 : vector<1xi32> to vector<1x1xi32>
    %c6_i32 = arith.constant 6 : i32
    %1149 = vector.broadcast %c6_i32 : i32 to vector<1x128xi32>
    %1150 = arith.cmpi eq, %566, %1149 : vector<1x128xi32>
    %1151 = vector.shape_cast %1148 : vector<1x1xi32> to vector<1x1xi32>
    %1152 = vector.broadcast %1151 : vector<1x1xi32> to vector<1x128xi32>
    %1153 = arith.select %1150, %1152, %1068 : vector<1x128xi1>, vector<1x128xi32>
    %c6_i32_534 = arith.constant 6 : i32
    %1154 = vector.broadcast %c6_i32_534 : i32 to vector<1x128xi32>
    %1155 = arith.cmpi eq, %566, %1154 : vector<1x128xi32>
    %1156 = vector.shape_cast %1142 : vector<1x1xf32> to vector<1x1xf32>
    %1157 = vector.broadcast %1156 : vector<1x1xf32> to vector<1x128xf32>
    %1158 = arith.select %1155, %1157, %1073 : vector<1x128xi1>, vector<1x128xf32>
    %1159 = vector.broadcast %1148 : vector<1x1xi32> to vector<1x64xi32>
    %1160 = arith.cmpi eq, %565, %1159 : vector<1x64xi32>
    %1161 = arith.extui %1160 : vector<1x64xi1> to vector<1x64xi32>
    %1162 = arith.sitofp %1161 : vector<1x64xi32> to vector<1x64xf32>
    %c0_535 = arith.constant 0 : index
    %c0_536 = arith.constant 0 : index
    %1163 = vector.load %arg2[%c0_535, %c0_536] : memref<64x32xf32, #tpu.memory_space<vmem>>, vector<64x32xf32>
    %cst_537 = arith.constant dense<0.000000e+00> : vector<1x32xf32>
    %1164 = tpu.matmul %1162, %1163, %cst_537 {dimension_numbers = #tpu.dot_dimension_numbers<[1], [0], [0], [1], [0, 0, 1, 1], [], []>} : vector<1x64xf32>, vector<64x32xf32>, vector<1x32xf32> -> vector<1x32xf32>
    %c0_538 = arith.constant 0 : index
    %c0_539 = arith.constant 0 : index
    %1165 = vector.load %arg11[%c0_538, %c0_539] : memref<32x96xf32, #tpu.memory_space<vmem>>, vector<32x96xf32>
    %cst_540 = arith.constant dense<0.000000e+00> : vector<1x96xf32>
    %1166 = tpu.matmul %1164, %1165, %cst_540 {dimension_numbers = #tpu.dot_dimension_numbers<[1], [0], [0], [1], [0, 0, 1, 1], [], []>} : vector<1x32xf32>, vector<32x96xf32>, vector<1x96xf32> -> vector<1x96xf32>
    %c0_541 = arith.constant 0 : index
    %c0_542 = arith.constant 0 : index
    %1167 = vector.load %arg13[%c0_541, %c0_542] : memref<1x96xf32, #tpu.memory_space<vmem>>, vector<1x96xf32>
    %1168 = arith.addf %1166, %1167 : vector<1x96xf32>
    %c0_543 = arith.constant 0 : index
    %c0_544 = arith.constant 0 : index
    %1169 = vector.load %arg12[%c0_543, %c0_544] : memref<32x96xf32, #tpu.memory_space<vmem>>, vector<32x96xf32>
    %cst_545 = arith.constant dense<0.000000e+00> : vector<1x96xf32>
    %1170 = tpu.matmul %1110, %1169, %cst_545 {dimension_numbers = #tpu.dot_dimension_numbers<[1], [0], [0], [1], [0, 0, 1, 1], [], []>} : vector<1x32xf32>, vector<32x96xf32>, vector<1x96xf32> -> vector<1x96xf32>
    %c0_546 = arith.constant 0 : index
    %c0_547 = arith.constant 0 : index
    %1171 = vector.load %arg14[%c0_546, %c0_547] : memref<1x96xf32, #tpu.memory_space<vmem>>, vector<1x96xf32>
    %1172 = arith.addf %1170, %1171 : vector<1x96xf32>
    %1173 = arith.addf %1168, %1172 : vector<1x96xf32>
    %1174 = vector.extract_strided_slice %1173 {offsets = [0, 0], sizes = [1, 32], strides = [1, 1]} : vector<1x96xf32> to vector<1x32xf32>
    %1175 = arith.negf %1174 : vector<1x32xf32>
    %1176 = math.exp %1175 : vector<1x32xf32>
    %cst_548 = arith.constant 1.000000e+00 : f32
    %1177 = vector.broadcast %cst_548 : f32 to vector<1x32xf32>
    %1178 = arith.addf %1177, %1176 : vector<1x32xf32>
    %1179 = arith.divf %1177, %1178 : vector<1x32xf32>
    %1180 = vector.extract_strided_slice %1173 {offsets = [0, 32], sizes = [1, 32], strides = [1, 1]} : vector<1x96xf32> to vector<1x32xf32>
    %1181 = arith.negf %1180 : vector<1x32xf32>
    %1182 = math.exp %1181 : vector<1x32xf32>
    %cst_549 = arith.constant 1.000000e+00 : f32
    %1183 = vector.broadcast %cst_549 : f32 to vector<1x32xf32>
    %1184 = arith.addf %1183, %1182 : vector<1x32xf32>
    %1185 = arith.divf %1183, %1184 : vector<1x32xf32>
    %1186 = vector.extract_strided_slice %1168 {offsets = [0, 64], sizes = [1, 32], strides = [1, 1]} : vector<1x96xf32> to vector<1x32xf32>
    %1187 = vector.extract_strided_slice %1172 {offsets = [0, 64], sizes = [1, 32], strides = [1, 1]} : vector<1x96xf32> to vector<1x32xf32>
    %1188 = arith.mulf %1179, %1187 : vector<1x32xf32>
    %1189 = arith.addf %1186, %1188 : vector<1x32xf32>
    %1190 = math.tanh %1189 : vector<1x32xf32>
    %cst_550 = arith.constant 1.000000e+00 : f32
    %1191 = vector.broadcast %cst_550 : f32 to vector<1x32xf32>
    %1192 = arith.subf %1191, %1185 : vector<1x32xf32>
    %1193 = arith.mulf %1192, %1190 : vector<1x32xf32>
    %1194 = arith.mulf %1185, %1110 : vector<1x32xf32>
    %1195 = arith.addf %1193, %1194 : vector<1x32xf32>
    %cst_551 = arith.constant dense<0.000000e+00> : vector<1x8xf32>
    %1196 = tpu.matmul %1195, %564, %cst_551 {dimension_numbers = #tpu.dot_dimension_numbers<[1], [1], [0], [0], [0, 0, 1, 0], [], []>} : vector<1x32xf32>, vector<8x32xf32>, vector<1x8xf32> -> vector<1x8xf32>
    %cst_552 = arith.constant dense<0xFF800000> : vector<1xf32>
    %1197 = vector.multi_reduction <maximumf>, %1196, %cst_552 [1] : vector<1x8xf32> to vector<1xf32>
    %1198 = vector.shape_cast %1197 : vector<1xf32> to vector<1x1xf32>
    %1199 = vector.broadcast %1198 : vector<1x1xf32> to vector<1x8xf32>
    %1200 = arith.subf %1196, %1199 : vector<1x8xf32>
    %1201 = math.exp %1200 : vector<1x8xf32>
    %cst_553 = arith.constant dense<0.000000e+00> : vector<1xf32>
    %1202 = vector.multi_reduction <add>, %1201, %cst_553 [1] : vector<1x8xf32> to vector<1xf32>
    %1203 = vector.shape_cast %1202 : vector<1xf32> to vector<1x1xf32>
    %1204 = tpu.reciprocal %1203 {approx = true} : vector<1x1xf32> -> vector<1x1xf32>
    %1205 = vector.broadcast %1204 : vector<1x1xf32> to vector<1x8xf32>
    %1206 = arith.mulf %1201, %1205 : vector<1x8xf32>
    %cst_554 = arith.constant dense<0.000000e+00> : vector<1x32xf32>
    %1207 = tpu.matmul %1206, %564, %cst_554 {dimension_numbers = #tpu.dot_dimension_numbers<[1], [0], [0], [1], [0, 0, 1, 1], [], []>} : vector<1x8xf32>, vector<8x32xf32>, vector<1x32xf32> -> vector<1x32xf32>
    %c0_555 = arith.constant 0 : index
    %c0_556 = arith.constant 0 : index
    %1208 = vector.load %arg15[%c0_555, %c0_556] : memref<32x32xf32, #tpu.memory_space<vmem>>, vector<32x32xf32>
    %cst_557 = arith.constant dense<0.000000e+00> : vector<1x32xf32>
    %1209 = tpu.matmul %1195, %1208, %cst_557 {dimension_numbers = #tpu.dot_dimension_numbers<[1], [0], [0], [1], [0, 0, 1, 1], [], []>} : vector<1x32xf32>, vector<32x32xf32>, vector<1x32xf32> -> vector<1x32xf32>
    %c0_558 = arith.constant 0 : index
    %c0_559 = arith.constant 0 : index
    %1210 = vector.load %arg16[%c0_558, %c0_559] : memref<32x32xf32, #tpu.memory_space<vmem>>, vector<32x32xf32>
    %cst_560 = arith.constant dense<0.000000e+00> : vector<1x32xf32>
    %1211 = tpu.matmul %1207, %1210, %cst_560 {dimension_numbers = #tpu.dot_dimension_numbers<[1], [0], [0], [1], [0, 0, 1, 1], [], []>} : vector<1x32xf32>, vector<32x32xf32>, vector<1x32xf32> -> vector<1x32xf32>
    %1212 = arith.addf %1209, %1211 : vector<1x32xf32>
    %c0_561 = arith.constant 0 : index
    %c0_562 = arith.constant 0 : index
    %1213 = vector.load %arg17[%c0_561, %c0_562] : memref<1x32xf32, #tpu.memory_space<vmem>>, vector<1x32xf32>
    %1214 = arith.addf %1212, %1213 : vector<1x32xf32>
    %1215 = math.tanh %1214 : vector<1x32xf32>
    %c0_563 = arith.constant 0 : index
    %c0_564 = arith.constant 0 : index
    %1216 = vector.load %arg18[%c0_563, %c0_564] : memref<32x64xf32, #tpu.memory_space<vmem>>, vector<32x64xf32>
    %cst_565 = arith.constant dense<0.000000e+00> : vector<1x64xf32>
    %1217 = tpu.matmul %1215, %1216, %cst_565 {dimension_numbers = #tpu.dot_dimension_numbers<[1], [0], [0], [1], [0, 0, 1, 1], [], []>} : vector<1x32xf32>, vector<32x64xf32>, vector<1x64xf32> -> vector<1x64xf32>
    %c0_566 = arith.constant 0 : index
    %c0_567 = arith.constant 0 : index
    %1218 = vector.load %arg19[%c0_566, %c0_567] : memref<1x64xf32, #tpu.memory_space<vmem>>, vector<1x64xf32>
    %1219 = arith.addf %1217, %1218 : vector<1x64xf32>
    %cst_568 = arith.constant dense<0xFF800000> : vector<1xf32>
    %1220 = vector.multi_reduction <maximumf>, %1219, %cst_568 [1] : vector<1x64xf32> to vector<1xf32>
    %1221 = vector.shape_cast %1220 : vector<1xf32> to vector<1x1xf32>
    %1222 = vector.broadcast %1221 : vector<1x1xf32> to vector<1x64xf32>
    %1223 = arith.subf %1219, %1222 : vector<1x64xf32>
    %1224 = math.exp %1223 : vector<1x64xf32>
    %cst_569 = arith.constant dense<0.000000e+00> : vector<1xf32>
    %1225 = vector.multi_reduction <add>, %1224, %cst_569 [1] : vector<1x64xf32> to vector<1xf32>
    %1226 = vector.shape_cast %1225 : vector<1xf32> to vector<1x1xf32>
    %1227 = tpu.reciprocal %1226 {approx = true} : vector<1x1xf32> -> vector<1x1xf32>
    %1228 = vector.broadcast %1221 : vector<1x1xf32> to vector<1x64xf32>
    %1229 = arith.cmpf oge, %1219, %1228 : vector<1x64xf32>
    %c64_i32_570 = arith.constant 64 : i32
    %1230 = vector.broadcast %c64_i32_570 : i32 to vector<1x64xi32>
    %1231 = arith.select %1229, %565, %1230 : vector<1x64xi1>, vector<1x64xi32>
    %cst_571 = arith.constant dense<2147483647> : vector<1xi32>
    %1232 = vector.multi_reduction <minsi>, %1231, %cst_571 [1] : vector<1x64xi32> to vector<1xi32>
    %1233 = vector.shape_cast %1232 : vector<1xi32> to vector<1x1xi32>
    %c7_i32 = arith.constant 7 : i32
    %1234 = vector.broadcast %c7_i32 : i32 to vector<1x128xi32>
    %1235 = arith.cmpi eq, %566, %1234 : vector<1x128xi32>
    %1236 = vector.shape_cast %1233 : vector<1x1xi32> to vector<1x1xi32>
    %1237 = vector.broadcast %1236 : vector<1x1xi32> to vector<1x128xi32>
    %1238 = arith.select %1235, %1237, %1153 : vector<1x128xi1>, vector<1x128xi32>
    %c7_i32_572 = arith.constant 7 : i32
    %1239 = vector.broadcast %c7_i32_572 : i32 to vector<1x128xi32>
    %1240 = arith.cmpi eq, %566, %1239 : vector<1x128xi32>
    %1241 = vector.shape_cast %1227 : vector<1x1xf32> to vector<1x1xf32>
    %1242 = vector.broadcast %1241 : vector<1x1xf32> to vector<1x128xf32>
    %1243 = arith.select %1240, %1242, %1158 : vector<1x128xi1>, vector<1x128xf32>
    %c0_573 = arith.constant 0 : index
    %c0_574 = arith.constant 0 : index
    %1244 = vector.load %arg20[%c0_573, %c0_574] : memref<1x128xi32, #tpu.memory_space<vmem>>, vector<1x128xi32>
    tpu.vector_store %arg20[%c0_573, %c0_574], %1238 {strides = array<i32>} : memref<1x128xi32, #tpu.memory_space<vmem>>, vector<1x128xi32>,
    %c0_575 = arith.constant 0 : index
    %c0_576 = arith.constant 0 : index
    %1245 = vector.load %arg21[%c0_575, %c0_576] : memref<1x128xf32, #tpu.memory_space<vmem>>, vector<1x128xf32>
    tpu.vector_store %arg21[%c0_575, %c0_576], %1243 {strides = array<i32>} : memref<1x128xf32, #tpu.memory_space<vmem>>, vector<1x128xf32>,
    return
  }
  func.func @transform_0(%arg0: i32, %arg1: memref<8xi32, #tpu.memory_space<smem>>) -> (i32, i32) {
    %c0_i32 = arith.constant 0 : i32
    %c0_i32_0 = arith.constant 0 : i32
    %c0_i32_1 = arith.constant 0 : i32
    return %c0_i32, %c0_i32_0 : i32, i32
  }
  func.func @transform_1(%arg0: i32, %arg1: memref<8xi32, #tpu.memory_space<smem>>) -> (i32, i32) {
    %c0_i32 = arith.constant 0 : i32
    %c0_i32_0 = arith.constant 0 : i32
    %c0_i32_1 = arith.constant 0 : i32
    return %c0_i32, %c0_i32_0 : i32, i32
  }
  func.func @transform_2(%arg0: i32, %arg1: memref<8xi32, #tpu.memory_space<smem>>) -> (i32, i32) {
    %c0_i32 = arith.constant 0 : i32
    %c0_i32_0 = arith.constant 0 : i32
    %c0_i32_1 = arith.constant 0 : i32
    return %c0_i32, %c0_i32_0 : i32, i32
  }
  func.func @transform_3(%arg0: i32, %arg1: memref<8xi32, #tpu.memory_space<smem>>) -> (i32, i32) {
    %c0_i32 = arith.constant 0 : i32
    %c0_i32_0 = arith.constant 0 : i32
    %c0_i32_1 = arith.constant 0 : i32
    return %c0_i32, %c0_i32_0 : i32, i32
  }
  func.func @transform_4(%arg0: i32, %arg1: memref<8xi32, #tpu.memory_space<smem>>) -> (i32, i32) {
    %c0_i32 = arith.constant 0 : i32
    %c0_i32_0 = arith.constant 0 : i32
    %c0_i32_1 = arith.constant 0 : i32
    return %c0_i32, %c0_i32_0 : i32, i32
  }
  func.func @transform_5(%arg0: i32, %arg1: memref<8xi32, #tpu.memory_space<smem>>) -> (i32, i32) {
    %c0_i32 = arith.constant 0 : i32
    %c0_i32_0 = arith.constant 0 : i32
    %c0_i32_1 = arith.constant 0 : i32
    return %c0_i32, %c0_i32_0 : i32, i32
  }
  func.func @transform_6(%arg0: i32, %arg1: memref<8xi32, #tpu.memory_space<smem>>) -> (i32, i32) {
    %c0_i32 = arith.constant 0 : i32
    %c0_i32_0 = arith.constant 0 : i32
    %c0_i32_1 = arith.constant 0 : i32
    return %c0_i32, %c0_i32_0 : i32, i32
  }
  func.func @transform_7(%arg0: i32, %arg1: memref<8xi32, #tpu.memory_space<smem>>) -> (i32, i32) {
    %c0_i32 = arith.constant 0 : i32
    %c0_i32_0 = arith.constant 0 : i32
    %c0_i32_1 = arith.constant 0 : i32
    return %c0_i32, %c0_i32_0 : i32, i32
  }
  func.func @transform_8(%arg0: i32, %arg1: memref<8xi32, #tpu.memory_space<smem>>) -> (i32, i32) {
    %c0_i32 = arith.constant 0 : i32
    %c0_i32_0 = arith.constant 0 : i32
    %c0_i32_1 = arith.constant 0 : i32
    return %c0_i32, %c0_i32_0 : i32, i32
  }
  func.func @transform_9(%arg0: i32, %arg1: memref<8xi32, #tpu.memory_space<smem>>) -> (i32, i32) {
    %c0_i32 = arith.constant 0 : i32
    %c0_i32_0 = arith.constant 0 : i32
    %c0_i32_1 = arith.constant 0 : i32
    return %c0_i32, %c0_i32_0 : i32, i32
  }
  func.func @transform_10(%arg0: i32, %arg1: memref<8xi32, #tpu.memory_space<smem>>) -> (i32, i32) {
    %c0_i32 = arith.constant 0 : i32
    %c0_i32_0 = arith.constant 0 : i32
    %c0_i32_1 = arith.constant 0 : i32
    return %c0_i32, %c0_i32_0 : i32, i32
  }
  func.func @transform_11(%arg0: i32, %arg1: memref<8xi32, #tpu.memory_space<smem>>) -> (i32, i32) {
    %c0_i32 = arith.constant 0 : i32
    %c0_i32_0 = arith.constant 0 : i32
    %c0_i32_1 = arith.constant 0 : i32
    return %c0_i32, %c0_i32_0 : i32, i32
  }
  func.func @transform_12(%arg0: i32, %arg1: memref<8xi32, #tpu.memory_space<smem>>) -> (i32, i32) {
    %c0_i32 = arith.constant 0 : i32
    %c0_i32_0 = arith.constant 0 : i32
    %c0_i32_1 = arith.constant 0 : i32
    return %c0_i32, %c0_i32_0 : i32, i32
  }
  func.func @transform_13(%arg0: i32, %arg1: memref<8xi32, #tpu.memory_space<smem>>) -> (i32, i32) {
    %c0_i32 = arith.constant 0 : i32
    %c0_i32_0 = arith.constant 0 : i32
    %c0_i32_1 = arith.constant 0 : i32
    return %c0_i32, %c0_i32_0 : i32, i32
  }
  func.func @transform_14(%arg0: i32, %arg1: memref<8xi32, #tpu.memory_space<smem>>) -> (i32, i32) {
    %c0_i32 = arith.constant 0 : i32
    %c0_i32_0 = arith.constant 0 : i32
    %c0_i32_1 = arith.constant 0 : i32
    return %c0_i32, %c0_i32_0 : i32, i32
  }
  func.func @transform_15(%arg0: i32, %arg1: memref<8xi32, #tpu.memory_space<smem>>) -> (i32, i32) {
    %c0_i32 = arith.constant 0 : i32
    %c0_i32_0 = arith.constant 0 : i32
    %c0_i32_1 = arith.constant 0 : i32
    return %c0_i32, %c0_i32_0 : i32, i32
  }
  func.func @transform_16(%arg0: i32, %arg1: memref<8xi32, #tpu.memory_space<smem>>) -> (i32, i32) {
    %c0_i32 = arith.constant 0 : i32
    %c0_i32_0 = arith.constant 0 : i32
    %c0_i32_1 = arith.constant 0 : i32
    return %c0_i32, %c0_i32_0 : i32, i32
  }
  func.func @transform_17(%arg0: i32, %arg1: memref<8xi32, #tpu.memory_space<smem>>) -> (i32, i32) {
    %c0_i32 = arith.constant 0 : i32
    %c0_i32_0 = arith.constant 0 : i32
    %c0_i32_1 = arith.constant 0 : i32
    return %c0_i32, %c0_i32_0 : i32, i32
  }
  func.func @transform_18(%arg0: i32, %arg1: memref<8xi32, #tpu.memory_space<smem>>) -> (i32, i32) {
    %c0_i32 = arith.constant 0 : i32
    %c0_i32_0 = arith.constant 0 : i32
    %c0_i32_1 = arith.constant 0 : i32
    return %c0_i32, %c0_i32_0 : i32, i32
  }
  func.func @transform_19(%arg0: i32, %arg1: memref<8xi32, #tpu.memory_space<smem>>) -> (i32, i32) {
    %c0_i32 = arith.constant 0 : i32
    %c0_i32_0 = arith.constant 0 : i32
    %c0_i32_1 = arith.constant 0 : i32
    return %c0_i32, %c0_i32_0 : i32, i32
  }
}

</mosaic_0001>

<llo_original>
// kernel: tpu_custom_call.1
$region0: #{tpu_custom_call.1}
  #allocation0 [shape = 'u32[]', space=smem, size = 0x4, offset = 0x4, fixed_abs, tag = 'smem constant byte address 0x4 - core index']
  #allocation1 [shape = 'u32[144,128]{1,0:T(1,128)}', space=vmem, size = 0x12000, scoped, tag = 'internal scratch']
  #allocation2 [shape = 'f32[8,32]{1,0:T(8,128)}', space=vmem, size = 0x1000, scoped, tag = 'scratch operand']
  #allocation3 [shape = 'f32[8,32]{1,0:T(8,128)}', space=vmem, size = 0x1000, scoped, tag = 'scratch operand']
  #allocation4 [shape = 's32[1]{0}', space=sflag, size = 0x4, scoped, tag = 'scoped memory for tpu_custom_call.1']
  #allocation5 [shape = 'u8[512]{0}', space=smem, size = 0x200, scoped, tag = 'prefetched SMEM operand 0']
  %s0 = inlined_call_operand.hbm [shape: s32[8], index: 0, kind: input, shape index: {}]
  %s1 = inlined_call_operand.vmem [shape: f32[64,32], index: 1, kind: input, shape index: {}]
  %s2 = inlined_call_operand.vmem [shape: f32[32,96], index: 2, kind: input, shape index: {}]
  %s3 = inlined_call_operand.vmem [shape: f32[32,96], index: 3, kind: input, shape index: {}]
  %s4 = inlined_call_operand.hbm [shape: f32[1,96], index: 4, kind: input, shape index: {}]
  %s5 = inlined_call_operand.hbm [shape: f32[1,96], index: 5, kind: input, shape index: {}]
  %s6 = inlined_call_operand.vmem [shape: f32[32,96], index: 6, kind: input, shape index: {}]
  %s7 = inlined_call_operand.hbm [shape: f32[32,96], index: 7, kind: input, shape index: {}]
  %s8 = inlined_call_operand.hbm [shape: f32[1,96], index: 8, kind: input, shape index: {}]
  %s9 = inlined_call_operand.hbm [shape: f32[1,96], index: 9, kind: input, shape index: {}]
  %s10 = inlined_call_operand.vmem [shape: f32[32,96], index: 10, kind: input, shape index: {}]
  %s11 = inlined_call_operand.hbm [shape: f32[32,96], index: 11, kind: input, shape index: {}]
  %s12 = inlined_call_operand.hbm [shape: f32[1,96], index: 12, kind: input, shape index: {}]
  %s13 = inlined_call_operand.hbm [shape: f32[1,96], index: 13, kind: input, shape index: {}]
  %s14 = inlined_call_operand.hbm [shape: f32[32,32], index: 14, kind: input, shape index: {}]
  %s15 = inlined_call_operand.hbm [shape: f32[32,32], index: 15, kind: input, shape index: {}]
  %s16 = inlined_call_operand.hbm [shape: f32[1,32], index: 16, kind: input, shape index: {}]
  %s17 = inlined_call_operand.vmem [shape: f32[32,64], index: 17, kind: input, shape index: {}]
  %s18 = inlined_call_operand.vmem [shape: f32[1,64], index: 18, kind: input, shape index: {}]
  %s19 = inlined_call_operand.hbm [shape: s32[1,128], index: 19, kind: output, shape index: {0}]
  %s20 = inlined_call_operand.hbm [shape: f32[1,128], index: 20, kind: output, shape index: {1}]
  %21 = xla_tuple %s19, %s20
  %s22 = sld [smem:[#allocation0]]
  $region134: #{tpu_custom_call.1} parent=0
    _
  %s24 = ssub.s32 1, %s22
  %s25 = scalar_select 0, %s24, %s22
  %27 = dma.hbm_to_smem %s0, 16, [#allocation5], [#allocation4]
  %28 = dma.done [#allocation4], 16
  %29 = sfence
  $region1: #{tpu_custom_call.1} parent=0
    #allocation6 [shape = 'u8[512]{0}', space=vmem, size = 0x400, scoped, tag = 'input window, operand 4, single buffered']
    #allocation7 [shape = 's32[1]{0}', space=sflag, size = 0x4, scoped, tag = 'scoped memory for tpu_custom_call.1']
    #allocation8 [shape = 's32[1]{0}', space=sflag, size = 0x4, scoped, tag = 'scoped memory for tpu_custom_call.1']
    #allocation9 [shape = 'u8[512]{0}', space=vmem, size = 0x400, scoped, tag = 'input window, operand 5, single buffered']
    #allocation10 [shape = 's32[1]{0}', space=sflag, size = 0x4, scoped, tag = 'scoped memory for tpu_custom_call.1']
    #allocation11 [shape = 'u8[16384]{0}', space=vmem, size = 0x4000, scoped, tag = 'input window, operand 7, single buffered']
    #allocation12 [shape = 'u8[512]{0}', space=vmem, size = 0x400, scoped, tag = 'input window, operand 8, single buffered']
    #allocation13 [shape = 's32[1]{0}', space=sflag, size = 0x4, scoped, tag = 'scoped memory for tpu_custom_call.1']
    #allocation14 [shape = 'u8[512]{0}', space=vmem, size = 0x400, scoped, tag = 'input window, operand 9, single buffered']
    #allocation15 [shape = 'u8[16384]{0}', space=vmem, size = 0x4000, scoped, tag = 'input window, operand 11, single buffered']
    #allocation16 [shape = 's32[1]{0}', space=sflag, size = 0x4, scoped, tag = 'scoped memory for tpu_custom_call.1']
    #allocation17 [shape = 'u8[512]{0}', space=vmem, size = 0x400, scoped, tag = 'input window, operand 12, single buffered']
    #allocation18 [shape = 'u8[512]{0}', space=vmem, size = 0x400, scoped, tag = 'input window, operand 13, single buffered']
    #allocation19 [shape = 's32[1]{0}', space=sflag, size = 0x4, scoped, tag = 'scoped memory for tpu_custom_call.1']
    #allocation20 [shape = 'u8[16384]{0}', space=vmem, size = 0x4000, scoped, tag = 'input window, operand 14, single buffered']
    #allocation21 [shape = 'u8[16384]{0}', space=vmem, size = 0x4000, scoped, tag = 'input window, operand 15, single buffered']
    #allocation22 [shape = 's32[1]{0}', space=sflag, size = 0x4, scoped, tag = 'scoped memory for tpu_custom_call.1']
    #allocation23 [shape = 'u8[512]{0}', space=vmem, size = 0x400, scoped, tag = 'input window, operand 16, single buffered']
    #allocation24 [shape = 'u8[512]{0}', space=vmem, size = 0x400, scoped, tag = 'output window, operand 0, single buffered']
    #allocation25 [shape = 'u8[512]{0}', space=vmem, size = 0x400, scoped, tag = 'output window, operand 1, single buffered']
    #allocation26 [shape = 's32[1]{0}', space=sflag, size = 0x4, scoped, tag = 'scoped memory for tpu_custom_call.1']
    %30 = vsyncpa [#allocation7], 0
    %31 = vsyncpa [#allocation10], 0
    %32 = vsyncpa [#allocation13], 0
    %33 = vsyncpa [#allocation16], 0
    %34 = vsyncpa [#allocation19], 0
    %35 = vsyncpa [#allocation22], 0
    %36 = vsyncpa [#allocation8], 0
    %37 = vsyncpa [#allocation26], 0
    // Predicated region
    $region2: #{tpu_custom_call.1} parent=1 // pred_check
      _
    $region3: #{tpu_custom_call.1} parent=1 // pred_check_branch
      %39 = sbr.rel (0) target = $region5
    $region4: #{tpu_custom_call.1} parent=1 // pred_region
      _
    $region5: #{tpu_custom_call.1} parent=1 // pred_fallthru
      _
    // Predicated region
    $region6: #{tpu_custom_call.1} parent=1 // pred_check
      _
    $region7: #{tpu_custom_call.1} parent=1 // pred_check_branch
      %41 = sbr.rel (0) target = $region9
    $region8: #{tpu_custom_call.1} parent=1 // pred_region
      _
    $region9: #{tpu_custom_call.1} parent=1 // pred_fallthru
      _
    // Predicated region
    $region10: #{tpu_custom_call.1} parent=1 // pred_check
      _
    $region11: #{tpu_custom_call.1} parent=1 // pred_check_branch
      %43 = sbr.rel (0) target = $region13
    $region12: #{tpu_custom_call.1} parent=1 // pred_region
      _
    $region13: #{tpu_custom_call.1} parent=1 // pred_fallthru
      _
    // Predicated region
    $region14: #{tpu_custom_call.1} parent=1 // pred_check
      _
    $region15: #{tpu_custom_call.1} parent=1 // pred_check_branch
      %45 = sbr.rel (0) target = $region17
    $region16: #{tpu_custom_call.1} parent=1 // pred_region
      %s47 = ssub.s32 16, 16
      %48 = vsyncadd [#allocation7], %s47
      %s50 = sshll.u32 [#allocation6], 4
      %s51 = int_to_ptr.vmem [resolvable:$true] %s50
      %53 = dma.hbm_to_vmem [thread:$0]  %s4, 16, %s51, [#allocation7]
    $region17: #{tpu_custom_call.1} parent=1 // pred_fallthru
      _
    // Predicated region
    $region18: #{tpu_custom_call.1} parent=1 // pred_check
      _
    $region19: #{tpu_custom_call.1} parent=1 // pred_check_branch
      %55 = sbr.rel (0) target = $region21
    $region20: #{tpu_custom_call.1} parent=1 // pred_region
      %s57 = ssub.s32 16, 16
      %58 = vsyncadd [#allocation10], %s57
      %s60 = sshll.u32 [#allocation9], 4
      %s61 = int_to_ptr.vmem [resolvable:$true] %s60
      %63 = dma.hbm_to_vmem [thread:$0]  %s5, 16, %s61, [#allocation10]
    $region21: #{tpu_custom_call.1} parent=1 // pred_fallthru
      _
    // Predicated region
    $region22: #{tpu_custom_call.1} parent=1 // pred_check
      _
    $region23: #{tpu_custom_call.1} parent=1 // pred_check_branch
      %65 = sbr.rel (0) target = $region25
    $region24: #{tpu_custom_call.1} parent=1 // pred_region
      _
    $region25: #{tpu_custom_call.1} parent=1 // pred_fallthru
      _
    // Predicated region
    $region26: #{tpu_custom_call.1} parent=1 // pred_check
      _
    $region27: #{tpu_custom_call.1} parent=1 // pred_check_branch
      %67 = sbr.rel (0) target = $region29
    $region28: #{tpu_custom_call.1} parent=1 // pred_region
      %s69 = ssub.s32 512, 512
      %70 = vsyncadd [#allocation10], %s69
      %s71 = sshll.u32 [#allocation11], 4
      %s72 = int_to_ptr.vmem [resolvable:$true] %s71
      %77 = dma.hbm_to_vmem [thread:$0]  %s7, 512, %s72, [#allocation10], 128, 128, 8
    $region29: #{tpu_custom_call.1} parent=1 // pred_fallthru
      _
    // Predicated region
    $region30: #{tpu_custom_call.1} parent=1 // pred_check
      _
    $region31: #{tpu_custom_call.1} parent=1 // pred_check_branch
      %79 = sbr.rel (0) target = $region33
    $region32: #{tpu_custom_call.1} parent=1 // pred_region
      %s81 = ssub.s32 16, 16
      %82 = vsyncadd [#allocation13], %s81
      %s84 = sshll.u32 [#allocation12], 4
      %s85 = int_to_ptr.vmem [resolvable:$true] %s84
      %87 = dma.hbm_to_vmem [thread:$0]  %s8, 16, %s85, [#allocation13]
    $region33: #{tpu_custom_call.1} parent=1 // pred_fallthru
      _
    // Predicated region
    $region34: #{tpu_custom_call.1} parent=1 // pred_check
      _
    $region35: #{tpu_custom_call.1} parent=1 // pred_check_branch
      %89 = sbr.rel (0) target = $region37
    $region36: #{tpu_custom_call.1} parent=1 // pred_region
      %s91 = ssub.s32 16, 16
      %92 = vsyncadd [#allocation13], %s91
      %s94 = sshll.u32 [#allocation14], 4
      %s95 = int_to_ptr.vmem [resolvable:$true] %s94
      %97 = dma.hbm_to_vmem [thread:$0]  %s9, 16, %s95, [#allocation13]
    $region37: #{tpu_custom_call.1} parent=1 // pred_fallthru
      _
    // Predicated region
    $region38: #{tpu_custom_call.1} parent=1 // pred_check
      _
    $region39: #{tpu_custom_call.1} parent=1 // pred_check_branch
      %99 = sbr.rel (0) target = $region41
    $region40: #{tpu_custom_call.1} parent=1 // pred_region
      _
    $region41: #{tpu_custom_call.1} parent=1 // pred_fallthru
      _
    // Predicated region
    $region42: #{tpu_custom_call.1} parent=1 // pred_check
      _
    $region43: #{tpu_custom_call.1} parent=1 // pred_check_branch
      %101 = sbr.rel (0) target = $region45
    $region44: #{tpu_custom_call.1} parent=1 // pred_region
      %s103 = ssub.s32 512, 512
      %104 = vsyncadd [#allocation16], %s103
      %s105 = sshll.u32 [#allocation15], 4
      %s106 = int_to_ptr.vmem [resolvable:$true] %s105
      %111 = dma.hbm_to_vmem [thread:$0]  %s11, 512, %s106, [#allocation16], 128, 128, 8
    $region45: #{tpu_custom_call.1} parent=1 // pred_fallthru
      _
    // Predicated region
    $region46: #{tpu_custom_call.1} parent=1 // pred_check
      _
    $region47: #{tpu_custom_call.1} parent=1 // pred_check_branch
      %113 = sbr.rel (0) target = $region49
    $region48: #{tpu_custom_call.1} parent=1 // pred_region
      %s115 = ssub.s32 16, 16
      %116 = vsyncadd [#allocation16], %s115
      %s118 = sshll.u32 [#allocation17], 4
      %s119 = int_to_ptr.vmem [resolvable:$true] %s118
      %121 = dma.hbm_to_vmem [thread:$0]  %s12, 16, %s119, [#allocation16]
    $region49: #{tpu_custom_call.1} parent=1 // pred_fallthru
      _
    // Predicated region
    $region50: #{tpu_custom_call.1} parent=1 // pred_check
      _
    $region51: #{tpu_custom_call.1} parent=1 // pred_check_branch
      %123 = sbr.rel (0) target = $region53
    $region52: #{tpu_custom_call.1} parent=1 // pred_region
      %s125 = ssub.s32 16, 16
      %126 = vsyncadd [#allocation19], %s125
      %s128 = sshll.u32 [#allocation18], 4
      %s129 = int_to_ptr.vmem [resolvable:$true] %s128
      %131 = dma.hbm_to_vmem [thread:$0]  %s13, 16, %s129, [#allocation19]
    $region53: #{tpu_custom_call.1} parent=1 // pred_fallthru
      _
    // Predicated region
    $region54: #{tpu_custom_call.1} parent=1 // pred_check
      _
    $region55: #{tpu_custom_call.1} parent=1 // pred_check_branch
      %133 = sbr.rel (0) target = $region57
    $region56: #{tpu_custom_call.1} parent=1 // pred_region
      %s135 = ssub.s32 512, 512
      %136 = vsyncadd [#allocation19], %s135
      %s137 = sshll.u32 [#allocation20], 4
      %s138 = int_to_ptr.vmem [resolvable:$true] %s137
      %143 = dma.hbm_to_vmem [thread:$0]  %s14, 512, %s138, [#allocation19], 128, 128, 8
    $region57: #{tpu_custom_call.1} parent=1 // pred_fallthru
      _
    // Predicated region
    $region58: #{tpu_custom_call.1} parent=1 // pred_check
      _
    $region59: #{tpu_custom_call.1} parent=1 // pred_check_branch
      %145 = sbr.rel (0) target = $region61
    $region60: #{tpu_custom_call.1} parent=1 // pred_region
      %s147 = ssub.s32 512, 512
      %148 = vsyncadd [#allocation22], %s147
      %s149 = sshll.u32 [#allocation21], 4
      %s150 = int_to_ptr.vmem [resolvable:$true] %s149
      %155 = dma.hbm_to_vmem [thread:$0]  %s15, 512, %s150, [#allocation22], 128, 128, 8
    $region61: #{tpu_custom_call.1} parent=1 // pred_fallthru
      _
    // Predicated region
    $region62: #{tpu_custom_call.1} parent=1 // pred_check
      _
    $region63: #{tpu_custom_call.1} parent=1 // pred_check_branch
      %157 = sbr.rel (0) target = $region65
    $region64: #{tpu_custom_call.1} parent=1 // pred_region
      %s159 = ssub.s32 16, 16
      %160 = vsyncadd [#allocation22], %s159
      %s162 = sshll.u32 [#allocation23], 4
      %s163 = int_to_ptr.vmem [resolvable:$true] %s162
      %165 = dma.hbm_to_vmem [thread:$0]  %s16, 16, %s163, [#allocation22]
    $region65: #{tpu_custom_call.1} parent=1 // pred_fallthru
      _
    // Predicated region
    $region66: #{tpu_custom_call.1} parent=1 // pred_check
      _
    $region67: #{tpu_custom_call.1} parent=1 // pred_check_branch
      %167 = sbr.rel (0) target = $region69
    $region68: #{tpu_custom_call.1} parent=1 // pred_region
      _
    $region69: #{tpu_custom_call.1} parent=1 // pred_fallthru
      _
    // Predicated region
    $region70: #{tpu_custom_call.1} parent=1 // pred_check
      _
    $region71: #{tpu_custom_call.1} parent=1 // pred_check_branch
      %169 = sbr.rel (0) target = $region73
    $region72: #{tpu_custom_call.1} parent=1 // pred_region
      _
    $region73: #{tpu_custom_call.1} parent=1 // pred_fallthru
      _
    // Predicated region
    $region74: #{tpu_custom_call.1} parent=1 // pred_check
      _
    $region75: #{tpu_custom_call.1} parent=1 // pred_check_branch
      %171 = sbr.rel (0) target = $region77
    $region76: #{tpu_custom_call.1} parent=1 // pred_region
      %172 = dma.done [#allocation7], 16
    $region77: #{tpu_custom_call.1} parent=1 // pred_fallthru
      _
    // Predicated region
    $region78: #{tpu_custom_call.1} parent=1 // pred_check
      _
    $region79: #{tpu_custom_call.1} parent=1 // pred_check_branch
      %174 = sbr.rel (0) target = $region81
    $region80: #{tpu_custom_call.1} parent=1 // pred_region
      %175 = dma.done [#allocation10], 16
    $region81: #{tpu_custom_call.1} parent=1 // pred_fallthru
      _
    // Predicated region
    $region82: #{tpu_custom_call.1} parent=1 // pred_check
      _
    $region83: #{tpu_custom_call.1} parent=1 // pred_check_branch
      %177 = sbr.rel (0) target = $region85
    $region84: #{tpu_custom_call.1} parent=1 // pred_region
      %178 = dma.done [#allocation10], 512
    $region85: #{tpu_custom_call.1} parent=1 // pred_fallthru
      _
    // Predicated region
    $region86: #{tpu_custom_call.1} parent=1 // pred_check
      _
    $region87: #{tpu_custom_call.1} parent=1 // pred_check_branch
      %180 = sbr.rel (0) target = $region89
    $region88: #{tpu_custom_call.1} parent=1 // pred_region
      %181 = dma.done [#allocation13], 16
    $region89: #{tpu_custom_call.1} parent=1 // pred_fallthru
      _
    // Predicated region
    $region90: #{tpu_custom_call.1} parent=1 // pred_check
      _
    $region91: #{tpu_custom_call.1} parent=1 // pred_check_branch
      %183 = sbr.rel (0) target = $region93
    $region92: #{tpu_custom_call.1} parent=1 // pred_region
      %184 = dma.done [#allocation13], 16
    $region93: #{tpu_custom_call.1} parent=1 // pred_fallthru
      _
    // Predicated region
    $region94: #{tpu_custom_call.1} parent=1 // pred_check
      _
    $region95: #{tpu_custom_call.1} parent=1 // pred_check_branch
      %186 = sbr.rel (0) target = $region97
    $region96: #{tpu_custom_call.1} parent=1 // pred_region
      %187 = dma.done [#allocation16], 512
    $region97: #{tpu_custom_call.1} parent=1 // pred_fallthru
      _
    // Predicated region
    $region98: #{tpu_custom_call.1} parent=1 // pred_check
      _
    $region99: #{tpu_custom_call.1} parent=1 // pred_check_branch
      %189 = sbr.rel (0) target = $region101
    $region100: #{tpu_custom_call.1} parent=1 // pred_region
      %190 = dma.done [#allocation16], 16
    $region101: #{tpu_custom_call.1} parent=1 // pred_fallthru
      _
    // Predicated region
    $region102: #{tpu_custom_call.1} parent=1 // pred_check
      _
    $region103: #{tpu_custom_call.1} parent=1 // pred_check_branch
      %192 = sbr.rel (0) target = $region105
    $region104: #{tpu_custom_call.1} parent=1 // pred_region
      %193 = dma.done [#allocation19], 16
    $region105: #{tpu_custom_call.1} parent=1 // pred_fallthru
      _
    // Predicated region
    $region106: #{tpu_custom_call.1} parent=1 // pred_check
      _
    $region107: #{tpu_custom_call.1} parent=1 // pred_check_branch
      %195 = sbr.rel (0) target = $region109
    $region108: #{tpu_custom_call.1} parent=1 // pred_region
      %196 = dma.done [#allocation19], 512
    $region109: #{tpu_custom_call.1} parent=1 // pred_fallthru
      _
    // Predicated region
    $region110: #{tpu_custom_call.1} parent=1 // pred_check
      _
    $region111: #{tpu_custom_call.1} parent=1 // pred_check_branch
      %198 = sbr.rel (0) target = $region113
    $region112: #{tpu_custom_call.1} parent=1 // pred_region
      %199 = dma.done [#allocation22], 512
    $region113: #{tpu_custom_call.1} parent=1 // pred_fallthru
      _
    // Predicated region
    $region114: #{tpu_custom_call.1} parent=1 // pred_check
      _
    $region115: #{tpu_custom_call.1} parent=1 // pred_check_branch
      %201 = sbr.rel (0) target = $region117
    $region116: #{tpu_custom_call.1} parent=1 // pred_region
      %202 = dma.done [#allocation22], 16
    $region117: #{tpu_custom_call.1} parent=1 // pred_fallthru
      _
    %s203 = sld [smem:[#allocation5]]
    %s204 = scalar_lea.vmem %s1, %s203
    %v205 = vld [vmem:[%s204] sm:$0x1]
    %s206 = sld [smem:[#allocation5 + $0x7]]
    %s207 = scalar_lea.vmem %s1, %s206
    %v208 = vld [vmem:[%s207] sm:$0x1]
    %v209 = vld [vmem:[%s2] sm:$0xff]
    %v210 = vld [vmem:[%s2 + $0x8] sm:$0xff]
    %v211 = vld [vmem:[%s2 + $0x10] sm:$0xff]
    %v212 = vld [vmem:[%s2 + $0x18] sm:$0xff]
    %v213 = vld [vmem:[#allocation6] sm:$0x1]
    %vm214 = vcmask 261120
    %v216 = vsel %vm214, %v205, 0
    %218 = vmatprep.subr.mxu0 0.0
    %219 = vmatpush1.msra.mxu0 %v209
    %220 = vmatprep.subr.mxu0 0.0
    %221 = vmatpush1.msra.mxu0 %v210
    %222 = vmatprep.subr.mxu0 0.0
    %223 = vmatpush1.msra.mxu0 %v211
    %224 = vmatprep.subr.mxu0 0.0
    %225 = vmatpush1.msra.mxu0 %v212
    %226 = vmatprep.subr.mxu0 0.0
    %227 = vmatpush1.msra.mxu0 0.0
    %228 = vmatprep.subr.mxu0 0.0
    %229 = vmatpush1.msra.mxu0 0.0
    %230 = vmatprep.subr.mxu0 0.0
    %231 = vmatpush1.msra.mxu0 0.0
    %232 = vmatprep.subr.mxu0 0.0
    %233 = vmatpush1.msra.mxu0 0.0
    %234 = vmatprep.subr.mxu0 0.0
    %235 = vmatpush1.msra.mxu0 0.0
    %236 = vmatprep.subr.mxu0 0.0
    %237 = vmatpush1.msra.mxu0 0.0
    %238 = vmatprep.subr.mxu0 0.0
    %239 = vmatpush1.msra.mxu0 0.0
    %240 = vmatprep.subr.mxu0 0.0
    %241 = vmatpush1.msra.mxu0 0.0
    %242 = vmatprep.subr.mxu0 0.0
    %243 = vmatpush1.msra.mxu0 0.0
    %244 = vmatprep.subr.mxu0 0.0
    %245 = vmatpush1.msra.mxu0 0.0
    %246 = vmatprep.subr.mxu0 0.0
    %247 = vmatpush1.msra.mxu0 0.0
    %248 = vmatprep.subr.mxu0 0.0
    %249 = vmatpush1.msra.mxu0 0.0
    %250 = vmatprep.subr.mxu0 0.0
    %251 = vmatpush1.msra.mxu0 0.0
    %252 = vmatprep.subr.mxu0 0.0
    %253 = vmatpush1.msra.mxu0 0.0
    %254 = vmatprep.subr.mxu0 0.0
    %255 = vmatpush1.msra.mxu0 0.0
    %256 = vmatprep.subr.mxu0 0.0
    %257 = vmatpush1.msra.mxu0 0.0
    %258 = vmatprep.subr.mxu0 0.0
    %259 = vmatpush1.msra.mxu0 0.0
    %260 = vmatprep.subr.mxu0 0.0
    %261 = vmatpush1.msra.mxu0 0.0
    %262 = vmatprep.subr.mxu0 0.0
    %263 = vmatpush1.msra.mxu0 0.0
    %264 = vmatprep.subr.mxu0 0.0
    %265 = vmatpush1.msra.mxu0 0.0
    %266 = vmatprep.subr.mxu0 0.0
    %267 = vmatpush1.msra.mxu0 0.0
    %268 = vmatprep.subr.mxu0 0.0
    %269 = vmatpush1.msra.mxu0 0.0
    %270 = vmatprep.subr.mxu0 0.0
    %271 = vmatpush1.msra.mxu0 0.0
    %272 = vmatprep.subr.mxu0 0.0
    %273 = vmatpush1.msra.mxu0 0.0
    %274 = vmatprep.subr.mxu0 0.0
    %275 = vmatpush1.msra.mxu0 0.0
    %276 = vmatprep.subr.mxu0 0.0
    %277 = vmatpush1.msra.mxu0 0.0
    %278 = vmatprep.subr.mxu0 0.0
    %279 = vmatpush1.msra.mxu0 0.0
    %280 = vmatprep.subr.mxu0 0.0
    %281 = vmatpush1.msra.mxu0 0.0
    %282 = vmatprep.mubr.f32.mxu0 0.0
    %283 = vmatmul.mubr.f32.gmra.mrb[0].mxu0 %v216
    %v284 = vpop.f32.mrb[0].mxu0
    %v285 = vadd.f32 %v213, %v284
    %v286 = vpop.f32.mrb[0].mxu0
    %287 = vdwg.mxu0
    %v288 = vld [vmem:[%s3] sm:$0xff]
    %v289 = vld [vmem:[%s3 + $0x8] sm:$0xff]
    %v290 = vld [vmem:[%s3 + $0x10] sm:$0xff]
    %v291 = vld [vmem:[%s3 + $0x18] sm:$0xff]
    %v292 = vld [vmem:[#allocation9] sm:$0x1]
    %v294 = vsel %vm214, 0.0, 0
    %296 = vmatprep.subr.mxu0 0.0
    %297 = vmatpush1.msra.mxu0 %v288
    %298 = vmatprep.subr.mxu0 0.0
    %299 = vmatpush1.msra.mxu0 %v289
    %300 = vmatprep.subr.mxu0 0.0
    %301 = vmatpush1.msra.mxu0 %v290
    %302 = vmatprep.subr.mxu0 0.0
    %303 = vmatpush1.msra.mxu0 %v291
    %304 = vmatprep.subr.mxu0 0.0
    %305 = vmatpush1.msra.mxu0 0.0
    %306 = vmatprep.subr.mxu0 0.0
    %307 = vmatpush1.msra.mxu0 0.0
    %308 = vmatprep.subr.mxu0 0.0
    %309 = vmatpush1.msra.mxu0 0.0
    %310 = vmatprep.subr.mxu0 0.0
    %311 = vmatpush1.msra.mxu0 0.0
    %312 = vmatprep.subr.mxu0 0.0
    %313 = vmatpush1.msra.mxu0 0.0
    %314 = vmatprep.subr.mxu0 0.0
    %315 = vmatpush1.msra.mxu0 0.0
    %316 = vmatprep.subr.mxu0 0.0
    %317 = vmatpush1.msra.mxu0 0.0
    %318 = vmatprep.subr.mxu0 0.0
    %319 = vmatpush1.msra.mxu0 0.0
    %320 = vmatprep.subr.mxu0 0.0
    %321 = vmatpush1.msra.mxu0 0.0
    %322 = vmatprep.subr.mxu0 0.0
    %323 = vmatpush1.msra.mxu0 0.0
    %324 = vmatprep.subr.mxu0 0.0
    %325 = vmatpush1.msra.mxu0 0.0
    %326 = vmatprep.subr.mxu0 0.0
    %327 = vmatpush1.msra.mxu0 0.0
    %328 = vmatprep.subr.mxu0 0.0
    %329 = vmatpush1.msra.mxu0 0.0
    %330 = vmatprep.subr.mxu0 0.0
    %331 = vmatpush1.msra.mxu0 0.0
    %332 = vmatprep.subr.mxu0 0.0
    %333 = vmatpush1.msra.mxu0 0.0
    %334 = vmatprep.subr.mxu0 0.0
    %335 = vmatpush1.msra.mxu0 0.0
    %336 = vmatprep.subr.mxu0 0.0
    %337 = vmatpush1.msra.mxu0 0.0
    %338 = vmatprep.subr.mxu0 0.0
    %339 = vmatpush1.msra.mxu0 0.0
    %340 = vmatprep.subr.mxu0 0.0
    %341 = vmatpush1.msra.mxu0 0.0
    %342 = vmatprep.subr.mxu0 0.0
    %343 = vmatpush1.msra.mxu0 0.0
    %344 = vmatprep.subr.mxu0 0.0
    %345 = vmatpush1.msra.mxu0 0.0
    %346 = vmatprep.subr.mxu0 0.0
    %347 = vmatpush1.msra.mxu0 0.0
    %348 = vmatprep.subr.mxu0 0.0
    %349 = vmatpush1.msra.mxu0 0.0
    %350 = vmatprep.subr.mxu0 0.0
    %351 = vmatpush1.msra.mxu0 0.0
    %352 = vmatprep.subr.mxu0 0.0
    %353 = vmatpush1.msra.mxu0 0.0
    %354 = vmatprep.subr.mxu0 0.0
    %355 = vmatpush1.msra.mxu0 0.0
    %356 = vmatprep.subr.mxu0 0.0
    %357 = vmatpush1.msra.mxu0 0.0
    %358 = vmatprep.subr.mxu0 0.0
    %359 = vmatpush1.msra.mxu0 0.0
    %360 = vmatprep.mubr.f32.mxu0 0.0
    %361 = vmatmul.mubr.f32.gmra.mrb[0].mxu0 %v294
    %v362 = vpop.f32.mrb[0].mxu0
    %v363 = vadd.f32 %v292, %v362
    %v364 = vpop.f32.mrb[0].mxu0
    %365 = vdwg.mxu0
    %v366 = vadd.f32 %v285, %v363
    %v367 = vxor.u32 %v366, 2147483648
    %v368 = vmul.f32 %v367, 1.442695
    %v369 = vpow.pop %v368
    %v370 = vadd.f32 %v369, 1.0
    %v371 = vrcp.pop %v370
    %v372 = vmul.f32 1.0, %v371
    %374 = vrot.lane.b32.xlu0 %v363, 64
    %v375 = vpop.permute.xlu0 %374
    %v377 = vmul.f32 %v372, %v375
    %379 = vrot.lane.b32.xlu0 %v377, 64
    %v380 = vpop.permute.xlu0 %379
    %v382 = vadd.f32 %v285, %v380
    %v383 = vtanh.pop %v382
    %v384 = vsub.f32 1.0, %v372
    %386 = vrot.lane.b32.xlu0 %v383, 96
    %v387 = vpop.permute.xlu0 %386
    %v389 = vmul.f32 %v384, %v387
    %v390 = vmul.f32 %v372, 0.0
    %v391 = vadd.f32 %v389, %v390
    %v392 = vld [vmem:[%s6] sm:$0xff]
    %v393 = vld [vmem:[%s6 + $0x8] sm:$0xff]
    %v394 = vld [vmem:[%s6 + $0x10] sm:$0xff]
    %v395 = vld [vmem:[%s6 + $0x18] sm:$0xff]
    %v396 = vld [vmem:[#allocation12] sm:$0x1]
    %v398 = vsel %vm214, %v208, 0
    %400 = vmatprep.subr.mxu0 0.0
    %401 = vmatpush1.msra.mxu0 %v392
    %402 = vmatprep.subr.mxu0 0.0
    %403 = vmatpush1.msra.mxu0 %v393
    %404 = vmatprep.subr.mxu0 0.0
    %405 = vmatpush1.msra.mxu0 %v394
    %406 = vmatprep.subr.mxu0 0.0
    %407 = vmatpush1.msra.mxu0 %v395
    %408 = vmatprep.subr.mxu0 0.0
    %409 = vmatpush1.msra.mxu0 0.0
    %410 = vmatprep.subr.mxu0 0.0
    %411 = vmatpush1.msra.mxu0 0.0
    %412 = vmatprep.subr.mxu0 0.0
    %413 = vmatpush1.msra.mxu0 0.0
    %414 = vmatprep.subr.mxu0 0.0
    %415 = vmatpush1.msra.mxu0 0.0
    %416 = vmatprep.subr.mxu0 0.0
    %417 = vmatpush1.msra.mxu0 0.0
    %418 = vmatprep.subr.mxu0 0.0
    %419 = vmatpush1.msra.mxu0 0.0
    %420 = vmatprep.subr.mxu0 0.0
    %421 = vmatpush1.msra.mxu0 0.0
    %422 = vmatprep.subr.mxu0 0.0
    %423 = vmatpush1.msra.mxu0 0.0
    %424 = vmatprep.subr.mxu0 0.0
    %425 = vmatpush1.msra.mxu0 0.0
    %426 = vmatprep.subr.mxu0 0.0
    %427 = vmatpush1.msra.mxu0 0.0
    %428 = vmatprep.subr.mxu0 0.0
    %429 = vmatpush1.msra.mxu0 0.0
    %430 = vmatprep.subr.mxu0 0.0
    %431 = vmatpush1.msra.mxu0 0.0
    %432 = vmatprep.subr.mxu0 0.0
    %433 = vmatpush1.msra.mxu0 0.0
    %434 = vmatprep.subr.mxu0 0.0
    %435 = vmatpush1.msra.mxu0 0.0
    %436 = vmatprep.subr.mxu0 0.0
    %437 = vmatpush1.msra.mxu0 0.0
    %438 = vmatprep.subr.mxu0 0.0
    %439 = vmatpush1.msra.mxu0 0.0
    %440 = vmatprep.subr.mxu0 0.0
    %441 = vmatpush1.msra.mxu0 0.0
    %442 = vmatprep.subr.mxu0 0.0
    %443 = vmatpush1.msra.mxu0 0.0
    %444 = vmatprep.subr.mxu0 0.0
    %445 = vmatpush1.msra.mxu0 0.0
    %446 = vmatprep.subr.mxu0 0.0
    %447 = vmatpush1.msra.mxu0 0.0
    %448 = vmatprep.subr.mxu0 0.0
    %449 = vmatpush1.msra.mxu0 0.0
    %450 = vmatprep.subr.mxu0 0.0
    %451 = vmatpush1.msra.mxu0 0.0
    %452 = vmatprep.subr.mxu0 0.0
    %453 = vmatpush1.msra.mxu0 0.0
    %454 = vmatprep.subr.mxu0 0.0
    %455 = vmatpush1.msra.mxu0 0.0
    %456 = vmatprep.subr.mxu0 0.0
    %457 = vmatpush1.msra.mxu0 0.0
    %458 = vmatprep.subr.mxu0 0.0
    %459 = vmatpush1.msra.mxu0 0.0
    %460 = vmatprep.subr.mxu0 0.0
    %461 = vmatpush1.msra.mxu0 0.0
    %462 = vmatprep.subr.mxu0 0.0
    %463 = vmatpush1.msra.mxu0 0.0
    %464 = vmatprep.mubr.f32.mxu0 0.0
    %465 = vmatmul.mubr.f32.gmra.mrb[0].mxu0 %v398
    %v466 = vpop.f32.mrb[0].mxu0
    %v467 = vadd.f32 %v396, %v466
    %v468 = vpop.f32.mrb[0].mxu0
    %469 = vdwg.mxu0
    %v470 = vld [vmem:[#allocation11] sm:$0xff]
    %v471 = vld [vmem:[#allocation11 + $0x8] sm:$0xff]
    %v472 = vld [vmem:[#allocation11 + $0x10] sm:$0xff]
    %v473 = vld [vmem:[#allocation11 + $0x18] sm:$0xff]
    %v474 = vld [vmem:[#allocation14] sm:$0x1]
    %475 = vmatprep.subr.mxu0 0.0
    %476 = vmatpush1.msra.mxu0 %v470
    %477 = vmatprep.subr.mxu0 0.0
    %478 = vmatpush1.msra.mxu0 %v471
    %479 = vmatprep.subr.mxu0 0.0
    %480 = vmatpush1.msra.mxu0 %v472
    %481 = vmatprep.subr.mxu0 0.0
    %482 = vmatpush1.msra.mxu0 %v473
    %483 = vmatprep.subr.mxu0 0.0
    %484 = vmatpush1.msra.mxu0 0.0
    %485 = vmatprep.subr.mxu0 0.0
    %486 = vmatpush1.msra.mxu0 0.0
    %487 = vmatprep.subr.mxu0 0.0
    %488 = vmatpush1.msra.mxu0 0.0
    %489 = vmatprep.subr.mxu0 0.0
    %490 = vmatpush1.msra.mxu0 0.0
    %491 = vmatprep.subr.mxu0 0.0
    %492 = vmatpush1.msra.mxu0 0.0
    %493 = vmatprep.subr.mxu0 0.0
    %494 = vmatpush1.msra.mxu0 0.0
    %495 = vmatprep.subr.mxu0 0.0
    %496 = vmatpush1.msra.mxu0 0.0
    %497 = vmatprep.subr.mxu0 0.0
    %498 = vmatpush1.msra.mxu0 0.0
    %499 = vmatprep.subr.mxu0 0.0
    %500 = vmatpush1.msra.mxu0 0.0
    %501 = vmatprep.subr.mxu0 0.0
    %502 = vmatpush1.msra.mxu0 0.0
    %503 = vmatprep.subr.mxu0 0.0
    %504 = vmatpush1.msra.mxu0 0.0
    %505 = vmatprep.subr.mxu0 0.0
    %506 = vmatpush1.msra.mxu0 0.0
    %507 = vmatprep.subr.mxu0 0.0
    %508 = vmatpush1.msra.mxu0 0.0
    %509 = vmatprep.subr.mxu0 0.0
    %510 = vmatpush1.msra.mxu0 0.0
    %511 = vmatprep.subr.mxu0 0.0
    %512 = vmatpush1.msra.mxu0 0.0
    %513 = vmatprep.subr.mxu0 0.0
    %514 = vmatpush1.msra.mxu0 0.0
    %515 = vmatprep.subr.mxu0 0.0
    %516 = vmatpush1.msra.mxu0 0.0
    %517 = vmatprep.subr.mxu0 0.0
    %518 = vmatpush1.msra.mxu0 0.0
    %519 = vmatprep.subr.mxu0 0.0
    %520 = vmatpush1.msra.mxu0 0.0
    %521 = vmatprep.subr.mxu0 0.0
    %522 = vmatpush1.msra.mxu0 0.0
    %523 = vmatprep.subr.mxu0 0.0
    %524 = vmatpush1.msra.mxu0 0.0
    %525 = vmatprep.subr.mxu0 0.0
    %526 = vmatpush1.msra.mxu0 0.0
    %527 = vmatprep.subr.mxu0 0.0
    %528 = vmatpush1.msra.mxu0 0.0
    %529 = vmatprep.subr.mxu0 0.0
    %530 = vmatpush1.msra.mxu0 0.0
    %531 = vmatprep.subr.mxu0 0.0
    %532 = vmatpush1.msra.mxu0 0.0
    %533 = vmatprep.subr.mxu0 0.0
    %534 = vmatpush1.msra.mxu0 0.0
    %535 = vmatprep.subr.mxu0 0.0
    %536 = vmatpush1.msra.mxu0 0.0
    %537 = vmatprep.subr.mxu0 0.0
    %538 = vmatpush1.msra.mxu0 0.0
    %539 = vmatprep.mubr.f32.mxu0 0.0
    %540 = vmatmul.mubr.f32.gmra.mrb[0].mxu0 %v294
    %v541 = vpop.f32.mrb[0].mxu0
    %v542 = vadd.f32 %v474, %v541
    %v543 = vpop.f32.mrb[0].mxu0
    %544 = vdwg.mxu0
    %v545 = vadd.f32 %v467, %v542
    %v546 = vxor.u32 %v545, 2147483648
    %v547 = vmul.f32 %v546, 1.442695
    %v548 = vpow.pop %v547
    %v549 = vadd.f32 %v548, 1.0
    %v550 = vrcp.pop %v549
    %v551 = vmul.f32 1.0, %v550
    %553 = vrot.lane.b32.xlu0 %v542, 64
    %v554 = vpop.permute.xlu0 %553
    %v556 = vmul.f32 %v551, %v554
    %558 = vrot.lane.b32.xlu0 %v556, 64
    %v559 = vpop.permute.xlu0 %558
    %v561 = vadd.f32 %v467, %v559
    %v562 = vtanh.pop %v561
    %v563 = vsub.f32 1.0, %v551
    %565 = vrot.lane.b32.xlu0 %v562, 96
    %v566 = vpop.permute.xlu0 %565
    %v568 = vmul.f32 %v563, %v566
    %v569 = vmul.f32 %v551, 0.0
    %v570 = vadd.f32 %v568, %v569
    %572 = vrot.lane.b32.xlu0 %v391, 96
    %v573 = vpop.permute.xlu0 %572
    %vm575 = vcmask 253952
    %576 = vst.msk [vmem:[#allocation2] sm:$0x1] %vm575, %v573
    %578 = vrot.lane.b32.xlu0 %v570, 96
    %v579 = vpop.permute.xlu0 %578
    %581 = vst.msk [vmem:[#allocation3 + $0x7] sm:$0x1] %vm575, %v579
    %s582 = sld [smem:[#allocation5 + $0x1]]
    %s583 = scalar_lea.vmem %s1, %s582
    %v584 = vld [vmem:[%s583] sm:$0x1]
    %s585 = sld [smem:[#allocation5 + $0x6]]
    %s586 = scalar_lea.vmem %s1, %s585
    %v587 = vld [vmem:[%s586] sm:$0x1]
    %v588 = vld [vmem:[%s2] sm:$0xff]
    %v589 = vld [vmem:[%s2 + $0x8] sm:$0xff]
    %v590 = vld [vmem:[%s2 + $0x10] sm:$0xff]
    %v591 = vld [vmem:[%s2 + $0x18] sm:$0xff]
    %v592 = vld [vmem:[#allocation6] sm:$0x1]
    %v594 = vsel %vm214, %v584, 0
    %596 = vmatprep.subr.mxu0 0.0
    %597 = vmatpush1.msra.mxu0 %v588
    %598 = vmatprep.subr.mxu0 0.0
    %599 = vmatpush1.msra.mxu0 %v589
    %600 = vmatprep.subr.mxu0 0.0
    %601 = vmatpush1.msra.mxu0 %v590
    %602 = vmatprep.subr.mxu0 0.0
    %603 = vmatpush1.msra.mxu0 %v591
    %604 = vmatprep.subr.mxu0 0.0
    %605 = vmatpush1.msra.mxu0 0.0
    %606 = vmatprep.subr.mxu0 0.0
    %607 = vmatpush1.msra.mxu0 0.0
    %608 = vmatprep.subr.mxu0 0.0
    %609 = vmatpush1.msra.mxu0 0.0
    %610 = vmatprep.subr.mxu0 0.0
    %611 = vmatpush1.msra.mxu0 0.0
    %612 = vmatprep.subr.mxu0 0.0
    %613 = vmatpush1.msra.mxu0 0.0
    %614 = vmatprep.subr.mxu0 0.0
    %615 = vmatpush1.msra.mxu0 0.0
    %616 = vmatprep.subr.mxu0 0.0
    %617 = vmatpush1.msra.mxu0 0.0
    %618 = vmatprep.subr.mxu0 0.0
    %619 = vmatpush1.msra.mxu0 0.0
    %620 = vmatprep.subr.mxu0 0.0
    %621 = vmatpush1.msra.mxu0 0.0
    %622 = vmatprep.subr.mxu0 0.0
    %623 = vmatpush1.msra.mxu0 0.0
    %624 = vmatprep.subr.mxu0 0.0
    %625 = vmatpush1.msra.mxu0 0.0
    %626 = vmatprep.subr.mxu0 0.0
    %627 = vmatpush1.msra.mxu0 0.0
    %628 = vmatprep.subr.mxu0 0.0
    %629 = vmatpush1.msra.mxu0 0.0
    %630 = vmatprep.subr.mxu0 0.0
    %631 = vmatpush1.msra.mxu0 0.0
    %632 = vmatprep.subr.mxu0 0.0
    %633 = vmatpush1.msra.mxu0 0.0
    %634 = vmatprep.subr.mxu0 0.0
    %635 = vmatpush1.msra.mxu0 0.0
    %636 = vmatprep.subr.mxu0 0.0
    %637 = vmatpush1.msra.mxu0 0.0
    %638 = vmatprep.subr.mxu0 0.0
    %639 = vmatpush1.msra.mxu0 0.0
    %640 = vmatprep.subr.mxu0 0.0
    %641 = vmatpush1.msra.mxu0 0.0
    %642 = vmatprep.subr.mxu0 0.0
    %643 = vmatpush1.msra.mxu0 0.0
    %644 = vmatprep.subr.mxu0 0.0
    %645 = vmatpush1.msra.mxu0 0.0
    %646 = vmatprep.subr.mxu0 0.0
    %647 = vmatpush1.msra.mxu0 0.0
    %648 = vmatprep.subr.mxu0 0.0
    %649 = vmatpush1.msra.mxu0 0.0
    %650 = vmatprep.subr.mxu0 0.0
    %651 = vmatpush1.msra.mxu0 0.0
    %652 = vmatprep.subr.mxu0 0.0
    %653 = vmatpush1.msra.mxu0 0.0
    %654 = vmatprep.subr.mxu0 0.0
    %655 = vmatpush1.msra.mxu0 0.0
    %656 = vmatprep.subr.mxu0 0.0
    %657 = vmatpush1.msra.mxu0 0.0
    %658 = vmatprep.subr.mxu0 0.0
    %659 = vmatpush1.msra.mxu0 0.0
    %660 = vmatprep.mubr.f32.mxu0 0.0
    %661 = vmatmul.mubr.f32.gmra.mrb[0].mxu0 %v594
    %v662 = vpop.f32.mrb[0].mxu0
    %v663 = vadd.f32 %v592, %v662
    %v664 = vpop.f32.mrb[0].mxu0
    %665 = vdwg.mxu0
    %v666 = vld [vmem:[%s3] sm:$0xff]
    %v667 = vld [vmem:[%s3 + $0x8] sm:$0xff]
    %v668 = vld [vmem:[%s3 + $0x10] sm:$0xff]
    %v669 = vld [vmem:[%s3 + $0x18] sm:$0xff]
    %v670 = vld [vmem:[#allocation9] sm:$0x1]
    %v671 = vsel %vm214, %v573, 0
    %673 = vmatprep.subr.mxu0 0.0
    %674 = vmatpush1.msra.mxu0 %v666
    %675 = vmatprep.subr.mxu0 0.0
    %676 = vmatpush1.msra.mxu0 %v667
    %677 = vmatprep.subr.mxu0 0.0
    %678 = vmatpush1.msra.mxu0 %v668
    %679 = vmatprep.subr.mxu0 0.0
    %680 = vmatpush1.msra.mxu0 %v669
    %681 = vmatprep.subr.mxu0 0.0
    %682 = vmatpush1.msra.mxu0 0.0
    %683 = vmatprep.subr.mxu0 0.0
    %684 = vmatpush1.msra.mxu0 0.0
    %685 = vmatprep.subr.mxu0 0.0
    %686 = vmatpush1.msra.mxu0 0.0
    %687 = vmatprep.subr.mxu0 0.0
    %688 = vmatpush1.msra.mxu0 0.0
    %689 = vmatprep.subr.mxu0 0.0
    %690 = vmatpush1.msra.mxu0 0.0
    %691 = vmatprep.subr.mxu0 0.0
    %692 = vmatpush1.msra.mxu0 0.0
    %693 = vmatprep.subr.mxu0 0.0
    %694 = vmatpush1.msra.mxu0 0.0
    %695 = vmatprep.subr.mxu0 0.0
    %696 = vmatpush1.msra.mxu0 0.0
    %697 = vmatprep.subr.mxu0 0.0
    %698 = vmatpush1.msra.mxu0 0.0
    %699 = vmatprep.subr.mxu0 0.0
    %700 = vmatpush1.msra.mxu0 0.0
    %701 = vmatprep.subr.mxu0 0.0
    %702 = vmatpush1.msra.mxu0 0.0
    %703 = vmatprep.subr.mxu0 0.0
    %704 = vmatpush1.msra.mxu0 0.0
    %705 = vmatprep.subr.mxu0 0.0
    %706 = vmatpush1.msra.mxu0 0.0
    %707 = vmatprep.subr.mxu0 0.0
    %708 = vmatpush1.msra.mxu0 0.0
    %709 = vmatprep.subr.mxu0 0.0
    %710 = vmatpush1.msra.mxu0 0.0
    %711 = vmatprep.subr.mxu0 0.0
    %712 = vmatpush1.msra.mxu0 0.0
    %713 = vmatprep.subr.mxu0 0.0
    %714 = vmatpush1.msra.mxu0 0.0
    %715 = vmatprep.subr.mxu0 0.0
    %716 = vmatpush1.msra.mxu0 0.0
    %717 = vmatprep.subr.mxu0 0.0
    %718 = vmatpush1.msra.mxu0 0.0
    %719 = vmatprep.subr.mxu0 0.0
    %720 = vmatpush1.msra.mxu0 0.0
    %721 = vmatprep.subr.mxu0 0.0
    %722 = vmatpush1.msra.mxu0 0.0
    %723 = vmatprep.subr.mxu0 0.0
    %724 = vmatpush1.msra.mxu0 0.0
    %725 = vmatprep.subr.mxu0 0.0
    %726 = vmatpush1.msra.mxu0 0.0
    %727 = vmatprep.subr.mxu0 0.0
    %728 = vmatpush1.msra.mxu0 0.0
    %729 = vmatprep.subr.mxu0 0.0
    %730 = vmatpush1.msra.mxu0 0.0
    %731 = vmatprep.subr.mxu0 0.0
    %732 = vmatpush1.msra.mxu0 0.0
    %733 = vmatprep.subr.mxu0 0.0
    %734 = vmatpush1.msra.mxu0 0.0
    %735 = vmatprep.subr.mxu0 0.0
    %736 = vmatpush1.msra.mxu0 0.0
    %737 = vmatprep.mubr.f32.mxu0 0.0
    %738 = vmatmul.mubr.f32.gmra.mrb[0].mxu0 %v671
    %v739 = vpop.f32.mrb[0].mxu0
    %v740 = vadd.f32 %v670, %v739
    %v741 = vpop.f32.mrb[0].mxu0
    %742 = vdwg.mxu0
    %v743 = vadd.f32 %v663, %v740
    %v744 = vxor.u32 %v743, 2147483648
    %v745 = vmul.f32 %v744, 1.442695
    %v746 = vpow.pop %v745
    %v747 = vadd.f32 %v746, 1.0
    %v748 = vrcp.pop %v747
    %v749 = vmul.f32 1.0, %v748
    %751 = vrot.lane.b32.xlu0 %v740, 64
    %v752 = vpop.permute.xlu0 %751
    %v754 = vmul.f32 %v749, %v752
    %756 = vrot.lane.b32.xlu0 %v754, 64
    %v757 = vpop.permute.xlu0 %756
    %v759 = vadd.f32 %v663, %v757
    %v760 = vtanh.pop %v759
    %v761 = vsub.f32 1.0, %v749
    %763 = vrot.lane.b32.xlu0 %v760, 96
    %v764 = vpop.permute.xlu0 %763
    %v766 = vmul.f32 %v761, %v764
    %v767 = vmul.f32 %v749, %v391
    %v768 = vadd.f32 %v766, %v767
    %v769 = vld [vmem:[%s6] sm:$0xff]
    %v770 = vld [vmem:[%s6 + $0x8] sm:$0xff]
    %v771 = vld [vmem:[%s6 + $0x10] sm:$0xff]
    %v772 = vld [vmem:[%s6 + $0x18] sm:$0xff]
    %v773 = vld [vmem:[#allocation12] sm:$0x1]
    %v775 = vsel %vm214, %v587, 0
    %777 = vmatprep.subr.mxu0 0.0
    %778 = vmatpush1.msra.mxu0 %v769
    %779 = vmatprep.subr.mxu0 0.0
    %780 = vmatpush1.msra.mxu0 %v770
    %781 = vmatprep.subr.mxu0 0.0
    %782 = vmatpush1.msra.mxu0 %v771
    %783 = vmatprep.subr.mxu0 0.0
    %784 = vmatpush1.msra.mxu0 %v772
    %785 = vmatprep.subr.mxu0 0.0
    %786 = vmatpush1.msra.mxu0 0.0
    %787 = vmatprep.subr.mxu0 0.0
    %788 = vmatpush1.msra.mxu0 0.0
    %789 = vmatprep.subr.mxu0 0.0
    %790 = vmatpush1.msra.mxu0 0.0
    %791 = vmatprep.subr.mxu0 0.0
    %792 = vmatpush1.msra.mxu0 0.0
    %793 = vmatprep.subr.mxu0 0.0
    %794 = vmatpush1.msra.mxu0 0.0
    %795 = vmatprep.subr.mxu0 0.0
    %796 = vmatpush1.msra.mxu0 0.0
    %797 = vmatprep.subr.mxu0 0.0
    %798 = vmatpush1.msra.mxu0 0.0
    %799 = vmatprep.subr.mxu0 0.0
    %800 = vmatpush1.msra.mxu0 0.0
    %801 = vmatprep.subr.mxu0 0.0
    %802 = vmatpush1.msra.mxu0 0.0
    %803 = vmatprep.subr.mxu0 0.0
    %804 = vmatpush1.msra.mxu0 0.0
    %805 = vmatprep.subr.mxu0 0.0
    %806 = vmatpush1.msra.mxu0 0.0
    %807 = vmatprep.subr.mxu0 0.0
    %808 = vmatpush1.msra.mxu0 0.0
    %809 = vmatprep.subr.mxu0 0.0
    %810 = vmatpush1.msra.mxu0 0.0
    %811 = vmatprep.subr.mxu0 0.0
    %812 = vmatpush1.msra.mxu0 0.0
    %813 = vmatprep.subr.mxu0 0.0
    %814 = vmatpush1.msra.mxu0 0.0
    %815 = vmatprep.subr.mxu0 0.0
    %816 = vmatpush1.msra.mxu0 0.0
    %817 = vmatprep.subr.mxu0 0.0
    %818 = vmatpush1.msra.mxu0 0.0
    %819 = vmatprep.subr.mxu0 0.0
    %820 = vmatpush1.msra.mxu0 0.0
    %821 = vmatprep.subr.mxu0 0.0
    %822 = vmatpush1.msra.mxu0 0.0
    %823 = vmatprep.subr.mxu0 0.0
    %824 = vmatpush1.msra.mxu0 0.0
    %825 = vmatprep.subr.mxu0 0.0
    %826 = vmatpush1.msra.mxu0 0.0
    %827 = vmatprep.subr.mxu0 0.0
    %828 = vmatpush1.msra.mxu0 0.0
    %829 = vmatprep.subr.mxu0 0.0
    %830 = vmatpush1.msra.mxu0 0.0
    %831 = vmatprep.subr.mxu0 0.0
    %832 = vmatpush1.msra.mxu0 0.0
    %833 = vmatprep.subr.mxu0 0.0
    %834 = vmatpush1.msra.mxu0 0.0
    %835 = vmatprep.subr.mxu0 0.0
    %836 = vmatpush1.msra.mxu0 0.0
    %837 = vmatprep.subr.mxu0 0.0
    %838 = vmatpush1.msra.mxu0 0.0
    %839 = vmatprep.subr.mxu0 0.0
    %840 = vmatpush1.msra.mxu0 0.0
    %841 = vmatprep.mubr.f32.mxu0 0.0
    %842 = vmatmul.mubr.f32.gmra.mrb[0].mxu0 %v775
    %v843 = vpop.f32.mrb[0].mxu0
    %v844 = vadd.f32 %v773, %v843
    %v845 = vpop.f32.mrb[0].mxu0
    %846 = vdwg.mxu0
    %v847 = vld [vmem:[#allocation11] sm:$0xff]
    %v848 = vld [vmem:[#allocation11 + $0x8] sm:$0xff]
    %v849 = vld [vmem:[#allocation11 + $0x10] sm:$0xff]
    %v850 = vld [vmem:[#allocation11 + $0x18] sm:$0xff]
    %v851 = vld [vmem:[#allocation14] sm:$0x1]
    %v852 = vsel %vm214, %v579, 0
    %854 = vmatprep.subr.mxu0 0.0
    %855 = vmatpush1.msra.mxu0 %v847
    %856 = vmatprep.subr.mxu0 0.0
    %857 = vmatpush1.msra.mxu0 %v848
    %858 = vmatprep.subr.mxu0 0.0
    %859 = vmatpush1.msra.mxu0 %v849
    %860 = vmatprep.subr.mxu0 0.0
    %861 = vmatpush1.msra.mxu0 %v850
    %862 = vmatprep.subr.mxu0 0.0
    %863 = vmatpush1.msra.mxu0 0.0
    %864 = vmatprep.subr.mxu0 0.0
    %865 = vmatpush1.msra.mxu0 0.0
    %866 = vmatprep.subr.mxu0 0.0
    %867 = vmatpush1.msra.mxu0 0.0
    %868 = vmatprep.subr.mxu0 0.0
    %869 = vmatpush1.msra.mxu0 0.0
    %870 = vmatprep.subr.mxu0 0.0
    %871 = vmatpush1.msra.mxu0 0.0
    %872 = vmatprep.subr.mxu0 0.0
    %873 = vmatpush1.msra.mxu0 0.0
    %874 = vmatprep.subr.mxu0 0.0
    %875 = vmatpush1.msra.mxu0 0.0
    %876 = vmatprep.subr.mxu0 0.0
    %877 = vmatpush1.msra.mxu0 0.0
    %878 = vmatprep.subr.mxu0 0.0
    %879 = vmatpush1.msra.mxu0 0.0
    %880 = vmatprep.subr.mxu0 0.0
    %881 = vmatpush1.msra.mxu0 0.0
    %882 = vmatprep.subr.mxu0 0.0
    %883 = vmatpush1.msra.mxu0 0.0
    %884 = vmatprep.subr.mxu0 0.0
    %885 = vmatpush1.msra.mxu0 0.0
    %886 = vmatprep.subr.mxu0 0.0
    %887 = vmatpush1.msra.mxu0 0.0
    %888 = vmatprep.subr.mxu0 0.0
    %889 = vmatpush1.msra.mxu0 0.0
    %890 = vmatprep.subr.mxu0 0.0
    %891 = vmatpush1.msra.mxu0 0.0
    %892 = vmatprep.subr.mxu0 0.0
    %893 = vmatpush1.msra.mxu0 0.0
    %894 = vmatprep.subr.mxu0 0.0
    %895 = vmatpush1.msra.mxu0 0.0
    %896 = vmatprep.subr.mxu0 0.0
    %897 = vmatpush1.msra.mxu0 0.0
    %898 = vmatprep.subr.mxu0 0.0
    %899 = vmatpush1.msra.mxu0 0.0
    %900 = vmatprep.subr.mxu0 0.0
    %901 = vmatpush1.msra.mxu0 0.0
    %902 = vmatprep.subr.mxu0 0.0
    %903 = vmatpush1.msra.mxu0 0.0
    %904 = vmatprep.subr.mxu0 0.0
    %905 = vmatpush1.msra.mxu0 0.0
    %906 = vmatprep.subr.mxu0 0.0
    %907 = vmatpush1.msra.mxu0 0.0
    %908 = vmatprep.subr.mxu0 0.0
    %909 = vmatpush1.msra.mxu0 0.0
    %910 = vmatprep.subr.mxu0 0.0
    %911 = vmatpush1.msra.mxu0 0.0
    %912 = vmatprep.subr.mxu0 0.0
    %913 = vmatpush1.msra.mxu0 0.0
    %914 = vmatprep.subr.mxu0 0.0
    %915 = vmatpush1.msra.mxu0 0.0
    %916 = vmatprep.subr.mxu0 0.0
    %917 = vmatpush1.msra.mxu0 0.0
    %918 = vmatprep.mubr.f32.mxu0 0.0
    %919 = vmatmul.mubr.f32.gmra.mrb[0].mxu0 %v852
    %v920 = vpop.f32.mrb[0].mxu0
    %v921 = vadd.f32 %v851, %v920
    %v922 = vpop.f32.mrb[0].mxu0
    %923 = vdwg.mxu0
    %v924 = vadd.f32 %v844, %v921
    %v925 = vxor.u32 %v924, 2147483648
    %v926 = vmul.f32 %v925, 1.442695
    %v927 = vpow.pop %v926
    %v928 = vadd.f32 %v927, 1.0
    %v929 = vrcp.pop %v928
    %v930 = vmul.f32 1.0, %v929
    %932 = vrot.lane.b32.xlu0 %v921, 64
    %v933 = vpop.permute.xlu0 %932
    %v935 = vmul.f32 %v930, %v933
    %937 = vrot.lane.b32.xlu0 %v935, 64
    %v938 = vpop.permute.xlu0 %937
    %v940 = vadd.f32 %v844, %v938
    %v941 = vtanh.pop %v940
    %v942 = vsub.f32 1.0, %v930
    %944 = vrot.lane.b32.xlu0 %v941, 96
    %v945 = vpop.permute.xlu0 %944
    %v947 = vmul.f32 %v942, %v945
    %v948 = vmul.f32 %v930, %v570
    %v949 = vadd.f32 %v947, %v948
    %951 = vrot.lane.b32.xlu0 %v768, 96
    %v952 = vpop.permute.xlu0 %951
    %954 = vst.msk [vmem:[#allocation2 + $0x1] sm:$0x1] %vm575, %v952
    %956 = vrot.lane.b32.xlu0 %v949, 96
    %v957 = vpop.permute.xlu0 %956
    %959 = vst.msk [vmem:[#allocation3 + $0x6] sm:$0x1] %vm575, %v957
    %s960 = sld [smem:[#allocation5 + $0x2]]
    %s961 = scalar_lea.vmem %s1, %s960
    %v962 = vld [vmem:[%s961] sm:$0x1]
    %s963 = sld [smem:[#allocation5 + $0x5]]
    %s964 = scalar_lea.vmem %s1, %s963
    %v965 = vld [vmem:[%s964] sm:$0x1]
    %v966 = vld [vmem:[%s2] sm:$0xff]
    %v967 = vld [vmem:[%s2 + $0x8] sm:$0xff]
    %v968 = vld [vmem:[%s2 + $0x10] sm:$0xff]
    %v969 = vld [vmem:[%s2 + $0x18] sm:$0xff]
    %v970 = vld [vmem:[#allocation6] sm:$0x1]
    %v972 = vsel %vm214, %v962, 0
    %974 = vmatprep.subr.mxu0 0.0
    %975 = vmatpush1.msra.mxu0 %v966
    %976 = vmatprep.subr.mxu0 0.0
    %977 = vmatpush1.msra.mxu0 %v967
    %978 = vmatprep.subr.mxu0 0.0
    %979 = vmatpush1.msra.mxu0 %v968
    %980 = vmatprep.subr.mxu0 0.0
    %981 = vmatpush1.msra.mxu0 %v969
    %982 = vmatprep.subr.mxu0 0.0
    %983 = vmatpush1.msra.mxu0 0.0
    %984 = vmatprep.subr.mxu0 0.0
    %985 = vmatpush1.msra.mxu0 0.0
    %986 = vmatprep.subr.mxu0 0.0
    %987 = vmatpush1.msra.mxu0 0.0
    %988 = vmatprep.subr.mxu0 0.0
    %989 = vmatpush1.msra.mxu0 0.0
    %990 = vmatprep.subr.mxu0 0.0
    %991 = vmatpush1.msra.mxu0 0.0
    %992 = vmatprep.subr.mxu0 0.0
    %993 = vmatpush1.msra.mxu0 0.0
    %994 = vmatprep.subr.mxu0 0.0
    %995 = vmatpush1.msra.mxu0 0.0
    %996 = vmatprep.subr.mxu0 0.0
    %997 = vmatpush1.msra.mxu0 0.0
    %998 = vmatprep.subr.mxu0 0.0
    %999 = vmatpush1.msra.mxu0 0.0
    %1000 = vmatprep.subr.mxu0 0.0
    %1001 = vmatpush1.msra.mxu0 0.0
    %1002 = vmatprep.subr.mxu0 0.0
    %1003 = vmatpush1.msra.mxu0 0.0
    %1004 = vmatprep.subr.mxu0 0.0
    %1005 = vmatpush1.msra.mxu0 0.0
    %1006 = vmatprep.subr.mxu0 0.0
    %1007 = vmatpush1.msra.mxu0 0.0
    %1008 = vmatprep.subr.mxu0 0.0
    %1009 = vmatpush1.msra.mxu0 0.0
    %1010 = vmatprep.subr.mxu0 0.0
    %1011 = vmatpush1.msra.mxu0 0.0
    %1012 = vmatprep.subr.mxu0 0.0
    %1013 = vmatpush1.msra.mxu0 0.0
    %1014 = vmatprep.subr.mxu0 0.0
    %1015 = vmatpush1.msra.mxu0 0.0
    %1016 = vmatprep.subr.mxu0 0.0
    %1017 = vmatpush1.msra.mxu0 0.0
    %1018 = vmatprep.subr.mxu0 0.0
    %1019 = vmatpush1.msra.mxu0 0.0
    %1020 = vmatprep.subr.mxu0 0.0
    %1021 = vmatpush1.msra.mxu0 0.0
    %1022 = vmatprep.subr.mxu0 0.0
    %1023 = vmatpush1.msra.mxu0 0.0
    %1024 = vmatprep.subr.mxu0 0.0
    %1025 = vmatpush1.msra.mxu0 0.0
    %1026 = vmatprep.subr.mxu0 0.0
    %1027 = vmatpush1.msra.mxu0 0.0
    %1028 = vmatprep.subr.mxu0 0.0
    %1029 = vmatpush1.msra.mxu0 0.0
    %1030 = vmatprep.subr.mxu0 0.0
    %1031 = vmatpush1.msra.mxu0 0.0
    %1032 = vmatprep.subr.mxu0 0.0
    %1033 = vmatpush1.msra.mxu0 0.0
    %1034 = vmatprep.subr.mxu0 0.0
    %1035 = vmatpush1.msra.mxu0 0.0
    %1036 = vmatprep.subr.mxu0 0.0
    %1037 = vmatpush1.msra.mxu0 0.0
    %1038 = vmatprep.mubr.f32.mxu0 0.0
    %1039 = vmatmul.mubr.f32.gmra.mrb[0].mxu0 %v972
    %v1040 = vpop.f32.mrb[0].mxu0
    %v1041 = vadd.f32 %v970, %v1040
    %v1042 = vpop.f32.mrb[0].mxu0
    %1043 = vdwg.mxu0
    %v1044 = vld [vmem:[%s3] sm:$0xff]
    %v1045 = vld [vmem:[%s3 + $0x8] sm:$0xff]
    %v1046 = vld [vmem:[%s3 + $0x10] sm:$0xff]
    %v1047 = vld [vmem:[%s3 + $0x18] sm:$0xff]
    %v1048 = vld [vmem:[#allocation9] sm:$0x1]
    %v1049 = vsel %vm214, %v952, 0
    %1051 = vmatprep.subr.mxu0 0.0
    %1052 = vmatpush1.msra.mxu0 %v1044
    %1053 = vmatprep.subr.mxu0 0.0
    %1054 = vmatpush1.msra.mxu0 %v1045
    %1055 = vmatprep.subr.mxu0 0.0
    %1056 = vmatpush1.msra.mxu0 %v1046
    %1057 = vmatprep.subr.mxu0 0.0
    %1058 = vmatpush1.msra.mxu0 %v1047
    %1059 = vmatprep.subr.mxu0 0.0
    %1060 = vmatpush1.msra.mxu0 0.0
    %1061 = vmatprep.subr.mxu0 0.0
    %1062 = vmatpush1.msra.mxu0 0.0
    %1063 = vmatprep.subr.mxu0 0.0
    %1064 = vmatpush1.msra.mxu0 0.0
    %1065 = vmatprep.subr.mxu0 0.0
    %1066 = vmatpush1.msra.mxu0 0.0
    %1067 = vmatprep.subr.mxu0 0.0
    %1068 = vmatpush1.msra.mxu0 0.0
    %1069 = vmatprep.subr.mxu0 0.0
    %1070 = vmatpush1.msra.mxu0 0.0
    %1071 = vmatprep.subr.mxu0 0.0
    %1072 = vmatpush1.msra.mxu0 0.0
    %1073 = vmatprep.subr.mxu0 0.0
    %1074 = vmatpush1.msra.mxu0 0.0
    %1075 = vmatprep.subr.mxu0 0.0
    %1076 = vmatpush1.msra.mxu0 0.0
    %1077 = vmatprep.subr.mxu0 0.0
    %1078 = vmatpush1.msra.mxu0 0.0
    %1079 = vmatprep.subr.mxu0 0.0
    %1080 = vmatpush1.msra.mxu0 0.0
    %1081 = vmatprep.subr.mxu0 0.0
    %1082 = vmatpush1.msra.mxu0 0.0
    %1083 = vmatprep.subr.mxu0 0.0
    %1084 = vmatpush1.msra.mxu0 0.0
    %1085 = vmatprep.subr.mxu0 0.0
    %1086 = vmatpush1.msra.mxu0 0.0
    %1087 = vmatprep.subr.mxu0 0.0
    %1088 = vmatpush1.msra.mxu0 0.0
    %1089 = vmatprep.subr.mxu0 0.0
    %1090 = vmatpush1.msra.mxu0 0.0
    %1091 = vmatprep.subr.mxu0 0.0
    %1092 = vmatpush1.msra.mxu0 0.0
    %1093 = vmatprep.subr.mxu0 0.0
    %1094 = vmatpush1.msra.mxu0 0.0
    %1095 = vmatprep.subr.mxu0 0.0
    %1096 = vmatpush1.msra.mxu0 0.0
    %1097 = vmatprep.subr.mxu0 0.0
    %1098 = vmatpush1.msra.mxu0 0.0
    %1099 = vmatprep.subr.mxu0 0.0
    %1100 = vmatpush1.msra.mxu0 0.0
    %1101 = vmatprep.subr.mxu0 0.0
    %1102 = vmatpush1.msra.mxu0 0.0
    %1103 = vmatprep.subr.mxu0 0.0
    %1104 = vmatpush1.msra.mxu0 0.0
    %1105 = vmatprep.subr.mxu0 0.0
    %1106 = vmatpush1.msra.mxu0 0.0
    %1107 = vmatprep.subr.mxu0 0.0
    %1108 = vmatpush1.msra.mxu0 0.0
    %1109 = vmatprep.subr.mxu0 0.0
    %1110 = vmatpush1.msra.mxu0 0.0
    %1111 = vmatprep.subr.mxu0 0.0
    %1112 = vmatpush1.msra.mxu0 0.0
    %1113 = vmatprep.subr.mxu0 0.0
    %1114 = vmatpush1.msra.mxu0 0.0
    %1115 = vmatprep.mubr.f32.mxu0 0.0
    %1116 = vmatmul.mubr.f32.gmra.mrb[0].mxu0 %v1049
    %v1117 = vpop.f32.mrb[0].mxu0
    %v1118 = vadd.f32 %v1048, %v1117
    %v1119 = vpop.f32.mrb[0].mxu0
    %1120 = vdwg.mxu0
    %v1121 = vadd.f32 %v1041, %v1118
    %v1122 = vxor.u32 %v1121, 2147483648
    %v1123 = vmul.f32 %v1122, 1.442695
    %v1124 = vpow.pop %v1123
    %v1125 = vadd.f32 %v1124, 1.0
    %v1126 = vrcp.pop %v1125
    %v1127 = vmul.f32 1.0, %v1126
    %1129 = vrot.lane.b32.xlu0 %v1118, 64
    %v1130 = vpop.permute.xlu0 %1129
    %v1132 = vmul.f32 %v1127, %v1130
    %1134 = vrot.lane.b32.xlu0 %v1132, 64
    %v1135 = vpop.permute.xlu0 %1134
    %v1137 = vadd.f32 %v1041, %v1135
    %v1138 = vtanh.pop %v1137
    %v1139 = vsub.f32 1.0, %v1127
    %1141 = vrot.lane.b32.xlu0 %v1138, 96
    %v1142 = vpop.permute.xlu0 %1141
    %v1144 = vmul.f32 %v1139, %v1142
    %v1145 = vmul.f32 %v1127, %v768
    %v1146 = vadd.f32 %v1144, %v1145
    %v1147 = vld [vmem:[%s6] sm:$0xff]
    %v1148 = vld [vmem:[%s6 + $0x8] sm:$0xff]
    %v1149 = vld [vmem:[%s6 + $0x10] sm:$0xff]
    %v1150 = vld [vmem:[%s6 + $0x18] sm:$0xff]
    %v1151 = vld [vmem:[#allocation12] sm:$0x1]
    %v1153 = vsel %vm214, %v965, 0
    %1155 = vmatprep.subr.mxu0 0.0
    %1156 = vmatpush1.msra.mxu0 %v1147
    %1157 = vmatprep.subr.mxu0 0.0
    %1158 = vmatpush1.msra.mxu0 %v1148
    %1159 = vmatprep.subr.mxu0 0.0
    %1160 = vmatpush1.msra.mxu0 %v1149
    %1161 = vmatprep.subr.mxu0 0.0
    %1162 = vmatpush1.msra.mxu0 %v1150
    %1163 = vmatprep.subr.mxu0 0.0
    %1164 = vmatpush1.msra.mxu0 0.0
    %1165 = vmatprep.subr.mxu0 0.0
    %1166 = vmatpush1.msra.mxu0 0.0
    %1167 = vmatprep.subr.mxu0 0.0
    %1168 = vmatpush1.msra.mxu0 0.0
    %1169 = vmatprep.subr.mxu0 0.0
    %1170 = vmatpush1.msra.mxu0 0.0
    %1171 = vmatprep.subr.mxu0 0.0
    %1172 = vmatpush1.msra.mxu0 0.0
    %1173 = vmatprep.subr.mxu0 0.0
    %1174 = vmatpush1.msra.mxu0 0.0
    %1175 = vmatprep.subr.mxu0 0.0
    %1176 = vmatpush1.msra.mxu0 0.0
    %1177 = vmatprep.subr.mxu0 0.0
    %1178 = vmatpush1.msra.mxu0 0.0
    %1179 = vmatprep.subr.mxu0 0.0
    %1180 = vmatpush1.msra.mxu0 0.0
    %1181 = vmatprep.subr.mxu0 0.0
    %1182 = vmatpush1.msra.mxu0 0.0
    %1183 = vmatprep.subr.mxu0 0.0
    %1184 = vmatpush1.msra.mxu0 0.0
    %1185 = vmatprep.subr.mxu0 0.0
    %1186 = vmatpush1.msra.mxu0 0.0
    %1187 = vmatprep.subr.mxu0 0.0
    %1188 = vmatpush1.msra.mxu0 0.0
    %1189 = vmatprep.subr.mxu0 0.0
    %1190 = vmatpush1.msra.mxu0 0.0
    %1191 = vmatprep.subr.mxu0 0.0
    %1192 = vmatpush1.msra.mxu0 0.0
    %1193 = vmatprep.subr.mxu0 0.0
    %1194 = vmatpush1.msra.mxu0 0.0
    %1195 = vmatprep.subr.mxu0 0.0
    %1196 = vmatpush1.msra.mxu0 0.0
    %1197 = vmatprep.subr.mxu0 0.0
    %1198 = vmatpush1.msra.mxu0 0.0
    %1199 = vmatprep.subr.mxu0 0.0
    %1200 = vmatpush1.msra.mxu0 0.0
    %1201 = vmatprep.subr.mxu0 0.0
    %1202 = vmatpush1.msra.mxu0 0.0
    %1203 = vmatprep.subr.mxu0 0.0
    %1204 = vmatpush1.msra.mxu0 0.0
    %1205 = vmatprep.subr.mxu0 0.0
    %1206 = vmatpush1.msra.mxu0 0.0
    %1207 = vmatprep.subr.mxu0 0.0
    %1208 = vmatpush1.msra.mxu0 0.0
    %1209 = vmatprep.subr.mxu0 0.0
    %1210 = vmatpush1.msra.mxu0 0.0
    %1211 = vmatprep.subr.mxu0 0.0
    %1212 = vmatpush1.msra.mxu0 0.0
    %1213 = vmatprep.subr.mxu0 0.0
    %1214 = vmatpush1.msra.mxu0 0.0
    %1215 = vmatprep.subr.mxu0 0.0
    %1216 = vmatpush1.msra.mxu0 0.0
    %1217 = vmatprep.subr.mxu0 0.0
    %1218 = vmatpush1.msra.mxu0 0.0
    %1219 = vmatprep.mubr.f32.mxu0 0.0
    %1220 = vmatmul.mubr.f32.gmra.mrb[0].mxu0 %v1153
    %v1221 = vpop.f32.mrb[0].mxu0
    %v1222 = vadd.f32 %v1151, %v1221
    %v1223 = vpop.f32.mrb[0].mxu0
    %1224 = vdwg.mxu0
    %v1225 = vld [vmem:[#allocation11] sm:$0xff]
    %v1226 = vld [vmem:[#allocation11 + $0x8] sm:$0xff]
    %v1227 = vld [vmem:[#allocation11 + $0x10] sm:$0xff]
    %v1228 = vld [vmem:[#allocation11 + $0x18] sm:$0xff]
    %v1229 = vld [vmem:[#allocation14] sm:$0x1]
    %v1230 = vsel %vm214, %v957, 0
    %1232 = vmatprep.subr.mxu0 0.0
    %1233 = vmatpush1.msra.mxu0 %v1225
    %1234 = vmatprep.subr.mxu0 0.0
    %1235 = vmatpush1.msra.mxu0 %v1226
    %1236 = vmatprep.subr.mxu0 0.0
    %1237 = vmatpush1.msra.mxu0 %v1227
    %1238 = vmatprep.subr.mxu0 0.0
    %1239 = vmatpush1.msra.mxu0 %v1228
    %1240 = vmatprep.subr.mxu0 0.0
    %1241 = vmatpush1.msra.mxu0 0.0
    %1242 = vmatprep.subr.mxu0 0.0
    %1243 = vmatpush1.msra.mxu0 0.0
    %1244 = vmatprep.subr.mxu0 0.0
    %1245 = vmatpush1.msra.mxu0 0.0
    %1246 = vmatprep.subr.mxu0 0.0
    %1247 = vmatpush1.msra.mxu0 0.0
    %1248 = vmatprep.subr.mxu0 0.0
    %1249 = vmatpush1.msra.mxu0 0.0
    %1250 = vmatprep.subr.mxu0 0.0
    %1251 = vmatpush1.msra.mxu0 0.0
    %1252 = vmatprep.subr.mxu0 0.0
    %1253 = vmatpush1.msra.mxu0 0.0
    %1254 = vmatprep.subr.mxu0 0.0
    %1255 = vmatpush1.msra.mxu0 0.0
    %1256 = vmatprep.subr.mxu0 0.0
    %1257 = vmatpush1.msra.mxu0 0.0
    %1258 = vmatprep.subr.mxu0 0.0
    %1259 = vmatpush1.msra.mxu0 0.0
    %1260 = vmatprep.subr.mxu0 0.0
    %1261 = vmatpush1.msra.mxu0 0.0
    %1262 = vmatprep.subr.mxu0 0.0
    %1263 = vmatpush1.msra.mxu0 0.0
    %1264 = vmatprep.subr.mxu0 0.0
    %1265 = vmatpush1.msra.mxu0 0.0
    %1266 = vmatprep.subr.mxu0 0.0
    %1267 = vmatpush1.msra.mxu0 0.0
    %1268 = vmatprep.subr.mxu0 0.0
    %1269 = vmatpush1.msra.mxu0 0.0
    %1270 = vmatprep.subr.mxu0 0.0
    %1271 = vmatpush1.msra.mxu0 0.0
    %1272 = vmatprep.subr.mxu0 0.0
    %1273 = vmatpush1.msra.mxu0 0.0
    %1274 = vmatprep.subr.mxu0 0.0
    %1275 = vmatpush1.msra.mxu0 0.0
    %1276 = vmatprep.subr.mxu0 0.0
    %1277 = vmatpush1.msra.mxu0 0.0
    %1278 = vmatprep.subr.mxu0 0.0
    %1279 = vmatpush1.msra.mxu0 0.0
    %1280 = vmatprep.subr.mxu0 0.0
    %1281 = vmatpush1.msra.mxu0 0.0
    %1282 = vmatprep.subr.mxu0 0.0
    %1283 = vmatpush1.msra.mxu0 0.0
    %1284 = vmatprep.subr.mxu0 0.0
    %1285 = vmatpush1.msra.mxu0 0.0
    %1286 = vmatprep.subr.mxu0 0.0
    %1287 = vmatpush1.msra.mxu0 0.0
    %1288 = vmatprep.subr.mxu0 0.0
    %1289 = vmatpush1.msra.mxu0 0.0
    %1290 = vmatprep.subr.mxu0 0.0
    %1291 = vmatpush1.msra.mxu0 0.0
    %1292 = vmatprep.subr.mxu0 0.0
    %1293 = vmatpush1.msra.mxu0 0.0
    %1294 = vmatprep.subr.mxu0 0.0
    %1295 = vmatpush1.msra.mxu0 0.0
    %1296 = vmatprep.mubr.f32.mxu0 0.0
    %1297 = vmatmul.mubr.f32.gmra.mrb[0].mxu0 %v1230
    %v1298 = vpop.f32.mrb[0].mxu0
    %v1299 = vadd.f32 %v1229, %v1298
    %v1300 = vpop.f32.mrb[0].mxu0
    %1301 = vdwg.mxu0
    %v1302 = vadd.f32 %v1222, %v1299
    %v1303 = vxor.u32 %v1302, 2147483648
    %v1304 = vmul.f32 %v1303, 1.442695
    %v1305 = vpow.pop %v1304
    %v1306 = vadd.f32 %v1305, 1.0
    %v1307 = vrcp.pop %v1306
    %v1308 = vmul.f32 1.0, %v1307
    %1310 = vrot.lane.b32.xlu0 %v1299, 64
    %v1311 = vpop.permute.xlu0 %1310
    %v1313 = vmul.f32 %v1308, %v1311
    %1315 = vrot.lane.b32.xlu0 %v1313, 64
    %v1316 = vpop.permute.xlu0 %1315
    %v1318 = vadd.f32 %v1222, %v1316
    %v1319 = vtanh.pop %v1318
    %v1320 = vsub.f32 1.0, %v1308
    %1322 = vrot.lane.b32.xlu0 %v1319, 96
    %v1323 = vpop.permute.xlu0 %1322
    %v1325 = vmul.f32 %v1320, %v1323
    %v1326 = vmul.f32 %v1308, %v949
    %v1327 = vadd.f32 %v1325, %v1326
    %1329 = vrot.lane.b32.xlu0 %v1146, 96
    %v1330 = vpop.permute.xlu0 %1329
    %1332 = vst.msk [vmem:[#allocation2 + $0x2] sm:$0x1] %vm575, %v1330
    %1334 = vrot.lane.b32.xlu0 %v1327, 96
    %v1335 = vpop.permute.xlu0 %1334
    %1337 = vst.msk [vmem:[#allocation3 + $0x5] sm:$0x1] %vm575, %v1335
    %s1338 = sld [smem:[#allocation5 + $0x3]]
    %s1339 = scalar_lea.vmem %s1, %s1338
    %v1340 = vld [vmem:[%s1339] sm:$0x1]
    %s1341 = sld [smem:[#allocation5 + $0x4]]
    %s1342 = scalar_lea.vmem %s1, %s1341
    %v1343 = vld [vmem:[%s1342] sm:$0x1]
    %v1344 = vld [vmem:[%s2] sm:$0xff]
    %v1345 = vld [vmem:[%s2 + $0x8] sm:$0xff]
    %v1346 = vld [vmem:[%s2 + $0x10] sm:$0xff]
    %v1347 = vld [vmem:[%s2 + $0x18] sm:$0xff]
    %v1348 = vld [vmem:[#allocation6] sm:$0x1]
    %v1350 = vsel %vm214, %v1340, 0
    %1352 = vmatprep.subr.mxu0 0.0
    %1353 = vmatpush1.msra.mxu0 %v1344
    %1354 = vmatprep.subr.mxu0 0.0
    %1355 = vmatpush1.msra.mxu0 %v1345
    %1356 = vmatprep.subr.mxu0 0.0
    %1357 = vmatpush1.msra.mxu0 %v1346
    %1358 = vmatprep.subr.mxu0 0.0
    %1359 = vmatpush1.msra.mxu0 %v1347
    %1360 = vmatprep.subr.mxu0 0.0
    %1361 = vmatpush1.msra.mxu0 0.0
    %1362 = vmatprep.subr.mxu0 0.0
    %1363 = vmatpush1.msra.mxu0 0.0
    %1364 = vmatprep.subr.mxu0 0.0
    %1365 = vmatpush1.msra.mxu0 0.0
    %1366 = vmatprep.subr.mxu0 0.0
    %1367 = vmatpush1.msra.mxu0 0.0
    %1368 = vmatprep.subr.mxu0 0.0
    %1369 = vmatpush1.msra.mxu0 0.0
    %1370 = vmatprep.subr.mxu0 0.0
    %1371 = vmatpush1.msra.mxu0 0.0
    %1372 = vmatprep.subr.mxu0 0.0
    %1373 = vmatpush1.msra.mxu0 0.0
    %1374 = vmatprep.subr.mxu0 0.0
    %1375 = vmatpush1.msra.mxu0 0.0
    %1376 = vmatprep.subr.mxu0 0.0
    %1377 = vmatpush1.msra.mxu0 0.0
    %1378 = vmatprep.subr.mxu0 0.0
    %1379 = vmatpush1.msra.mxu0 0.0
    %1380 = vmatprep.subr.mxu0 0.0
    %1381 = vmatpush1.msra.mxu0 0.0
    %1382 = vmatprep.subr.mxu0 0.0
    %1383 = vmatpush1.msra.mxu0 0.0
    %1384 = vmatprep.subr.mxu0 0.0
    %1385 = vmatpush1.msra.mxu0 0.0
    %1386 = vmatprep.subr.mxu0 0.0
    %1387 = vmatpush1.msra.mxu0 0.0
    %1388 = vmatprep.subr.mxu0 0.0
    %1389 = vmatpush1.msra.mxu0 0.0
    %1390 = vmatprep.subr.mxu0 0.0
    %1391 = vmatpush1.msra.mxu0 0.0
    %1392 = vmatprep.subr.mxu0 0.0
    %1393 = vmatpush1.msra.mxu0 0.0
    %1394 = vmatprep.subr.mxu0 0.0
    %1395 = vmatpush1.msra.mxu0 0.0
    %1396 = vmatprep.subr.mxu0 0.0
    %1397 = vmatpush1.msra.mxu0 0.0
    %1398 = vmatprep.subr.mxu0 0.0
    %1399 = vmatpush1.msra.mxu0 0.0
    %1400 = vmatprep.subr.mxu0 0.0
    %1401 = vmatpush1.msra.mxu0 0.0
    %1402 = vmatprep.subr.mxu0 0.0
    %1403 = vmatpush1.msra.mxu0 0.0
    %1404 = vmatprep.subr.mxu0 0.0
    %1405 = vmatpush1.msra.mxu0 0.0
    %1406 = vmatprep.subr.mxu0 0.0
    %1407 = vmatpush1.msra.mxu0 0.0
    %1408 = vmatprep.subr.mxu0 0.0
    %1409 = vmatpush1.msra.mxu0 0.0
    %1410 = vmatprep.subr.mxu0 0.0
    %1411 = vmatpush1.msra.mxu0 0.0
    %1412 = vmatprep.subr.mxu0 0.0
    %1413 = vmatpush1.msra.mxu0 0.0
    %1414 = vmatprep.subr.mxu0 0.0
    %1415 = vmatpush1.msra.mxu0 0.0
    %1416 = vmatprep.mubr.f32.mxu0 0.0
    %1417 = vmatmul.mubr.f32.gmra.mrb[0].mxu0 %v1350
    %v1418 = vpop.f32.mrb[0].mxu0
    %v1419 = vadd.f32 %v1348, %v1418
    %v1420 = vpop.f32.mrb[0].mxu0
    %1421 = vdwg.mxu0
    %v1422 = vld [vmem:[%s3] sm:$0xff]
    %v1423 = vld [vmem:[%s3 + $0x8] sm:$0xff]
    %v1424 = vld [vmem:[%s3 + $0x10] sm:$0xff]
    %v1425 = vld [vmem:[%s3 + $0x18] sm:$0xff]
    %v1426 = vld [vmem:[#allocation9] sm:$0x1]
    %v1427 = vsel %vm214, %v1330, 0
    %1429 = vmatprep.subr.mxu0 0.0
    %1430 = vmatpush1.msra.mxu0 %v1422
    %1431 = vmatprep.subr.mxu0 0.0
    %1432 = vmatpush1.msra.mxu0 %v1423
    %1433 = vmatprep.subr.mxu0 0.0
    %1434 = vmatpush1.msra.mxu0 %v1424
    %1435 = vmatprep.subr.mxu0 0.0
    %1436 = vmatpush1.msra.mxu0 %v1425
    %1437 = vmatprep.subr.mxu0 0.0
    %1438 = vmatpush1.msra.mxu0 0.0
    %1439 = vmatprep.subr.mxu0 0.0
    %1440 = vmatpush1.msra.mxu0 0.0
    %1441 = vmatprep.subr.mxu0 0.0
    %1442 = vmatpush1.msra.mxu0 0.0
    %1443 = vmatprep.subr.mxu0 0.0
    %1444 = vmatpush1.msra.mxu0 0.0
    %1445 = vmatprep.subr.mxu0 0.0
    %1446 = vmatpush1.msra.mxu0 0.0
    %1447 = vmatprep.subr.mxu0 0.0
    %1448 = vmatpush1.msra.mxu0 0.0
    %1449 = vmatprep.subr.mxu0 0.0
    %1450 = vmatpush1.msra.mxu0 0.0
    %1451 = vmatprep.subr.mxu0 0.0
    %1452 = vmatpush1.msra.mxu0 0.0
    %1453 = vmatprep.subr.mxu0 0.0
    %1454 = vmatpush1.msra.mxu0 0.0
    %1455 = vmatprep.subr.mxu0 0.0
    %1456 = vmatpush1.msra.mxu0 0.0
    %1457 = vmatprep.subr.mxu0 0.0
    %1458 = vmatpush1.msra.mxu0 0.0
    %1459 = vmatprep.subr.mxu0 0.0
    %1460 = vmatpush1.msra.mxu0 0.0
    %1461 = vmatprep.subr.mxu0 0.0
    %1462 = vmatpush1.msra.mxu0 0.0
    %1463 = vmatprep.subr.mxu0 0.0
    %1464 = vmatpush1.msra.mxu0 0.0
    %1465 = vmatprep.subr.mxu0 0.0
    %1466 = vmatpush1.msra.mxu0 0.0
    %1467 = vmatprep.subr.mxu0 0.0
    %1468 = vmatpush1.msra.mxu0 0.0
    %1469 = vmatprep.subr.mxu0 0.0
    %1470 = vmatpush1.msra.mxu0 0.0
    %1471 = vmatprep.subr.mxu0 0.0
    %1472 = vmatpush1.msra.mxu0 0.0
    %1473 = vmatprep.subr.mxu0 0.0
    %1474 = vmatpush1.msra.mxu0 0.0
    %1475 = vmatprep.subr.mxu0 0.0
    %1476 = vmatpush1.msra.mxu0 0.0
    %1477 = vmatprep.subr.mxu0 0.0
    %1478 = vmatpush1.msra.mxu0 0.0
    %1479 = vmatprep.subr.mxu0 0.0
    %1480 = vmatpush1.msra.mxu0 0.0
    %1481 = vmatprep.subr.mxu0 0.0
    %1482 = vmatpush1.msra.mxu0 0.0
    %1483 = vmatprep.subr.mxu0 0.0
    %1484 = vmatpush1.msra.mxu0 0.0
    %1485 = vmatprep.subr.mxu0 0.0
    %1486 = vmatpush1.msra.mxu0 0.0
    %1487 = vmatprep.subr.mxu0 0.0
    %1488 = vmatpush1.msra.mxu0 0.0
    %1489 = vmatprep.subr.mxu0 0.0
    %1490 = vmatpush1.msra.mxu0 0.0
    %1491 = vmatprep.subr.mxu0 0.0
    %1492 = vmatpush1.msra.mxu0 0.0
    %1493 = vmatprep.mubr.f32.mxu0 0.0
    %1494 = vmatmul.mubr.f32.gmra.mrb[0].mxu0 %v1427
    %v1495 = vpop.f32.mrb[0].mxu0
    %v1496 = vadd.f32 %v1426, %v1495
    %v1497 = vpop.f32.mrb[0].mxu0
    %1498 = vdwg.mxu0
    %v1499 = vadd.f32 %v1419, %v1496
    %v1500 = vxor.u32 %v1499, 2147483648
    %v1501 = vmul.f32 %v1500, 1.442695
    %v1502 = vpow.pop %v1501
    %v1503 = vadd.f32 %v1502, 1.0
    %v1504 = vrcp.pop %v1503
    %v1505 = vmul.f32 1.0, %v1504
    %1507 = vrot.lane.b32.xlu0 %v1496, 64
    %v1508 = vpop.permute.xlu0 %1507
    %v1510 = vmul.f32 %v1505, %v1508
    %1512 = vrot.lane.b32.xlu0 %v1510, 64
    %v1513 = vpop.permute.xlu0 %1512
    %v1515 = vadd.f32 %v1419, %v1513
    %v1516 = vtanh.pop %v1515
    %v1517 = vsub.f32 1.0, %v1505
    %1519 = vrot.lane.b32.xlu0 %v1516, 96
    %v1520 = vpop.permute.xlu0 %1519
    %v1522 = vmul.f32 %v1517, %v1520
    %v1523 = vmul.f32 %v1505, %v1146
    %v1524 = vadd.f32 %v1522, %v1523
    %v1525 = vld [vmem:[%s6] sm:$0xff]
    %v1526 = vld [vmem:[%s6 + $0x8] sm:$0xff]
    %v1527 = vld [vmem:[%s6 + $0x10] sm:$0xff]
    %v1528 = vld [vmem:[%s6 + $0x18] sm:$0xff]
    %v1529 = vld [vmem:[#allocation12] sm:$0x1]
    %v1531 = vsel %vm214, %v1343, 0
    %1533 = vmatprep.subr.mxu0 0.0
    %1534 = vmatpush1.msra.mxu0 %v1525
    %1535 = vmatprep.subr.mxu0 0.0
    %1536 = vmatpush1.msra.mxu0 %v1526
    %1537 = vmatprep.subr.mxu0 0.0
    %1538 = vmatpush1.msra.mxu0 %v1527
    %1539 = vmatprep.subr.mxu0 0.0
    %1540 = vmatpush1.msra.mxu0 %v1528
    %1541 = vmatprep.subr.mxu0 0.0
    %1542 = vmatpush1.msra.mxu0 0.0
    %1543 = vmatprep.subr.mxu0 0.0
    %1544 = vmatpush1.msra.mxu0 0.0
    %1545 = vmatprep.subr.mxu0 0.0
    %1546 = vmatpush1.msra.mxu0 0.0
    %1547 = vmatprep.subr.mxu0 0.0
    %1548 = vmatpush1.msra.mxu0 0.0
    %1549 = vmatprep.subr.mxu0 0.0
    %1550 = vmatpush1.msra.mxu0 0.0
    %1551 = vmatprep.subr.mxu0 0.0
    %1552 = vmatpush1.msra.mxu0 0.0
    %1553 = vmatprep.subr.mxu0 0.0
    %1554 = vmatpush1.msra.mxu0 0.0
    %1555 = vmatprep.subr.mxu0 0.0
    %1556 = vmatpush1.msra.mxu0 0.0
    %1557 = vmatprep.subr.mxu0 0.0
    %1558 = vmatpush1.msra.mxu0 0.0
    %1559 = vmatprep.subr.mxu0 0.0
    %1560 = vmatpush1.msra.mxu0 0.0
    %1561 = vmatprep.subr.mxu0 0.0
    %1562 = vmatpush1.msra.mxu0 0.0
    %1563 = vmatprep.subr.mxu0 0.0
    %1564 = vmatpush1.msra.mxu0 0.0
    %1565 = vmatprep.subr.mxu0 0.0
    %1566 = vmatpush1.msra.mxu0 0.0
    %1567 = vmatprep.subr.mxu0 0.0
    %1568 = vmatpush1.msra.mxu0 0.0
    %1569 = vmatprep.subr.mxu0 0.0
    %1570 = vmatpush1.msra.mxu0 0.0
    %1571 = vmatprep.subr.mxu0 0.0
    %1572 = vmatpush1.msra.mxu0 0.0
    %1573 = vmatprep.subr.mxu0 0.0
    %1574 = vmatpush1.msra.mxu0 0.0
    %1575 = vmatprep.subr.mxu0 0.0
    %1576 = vmatpush1.msra.mxu0 0.0
    %1577 = vmatprep.subr.mxu0 0.0
    %1578 = vmatpush1.msra.mxu0 0.0
    %1579 = vmatprep.subr.mxu0 0.0
    %1580 = vmatpush1.msra.mxu0 0.0
    %1581 = vmatprep.subr.mxu0 0.0
    %1582 = vmatpush1.msra.mxu0 0.0
    %1583 = vmatprep.subr.mxu0 0.0
    %1584 = vmatpush1.msra.mxu0 0.0
    %1585 = vmatprep.subr.mxu0 0.0
    %1586 = vmatpush1.msra.mxu0 0.0
    %1587 = vmatprep.subr.mxu0 0.0
    %1588 = vmatpush1.msra.mxu0 0.0
    %1589 = vmatprep.subr.mxu0 0.0
    %1590 = vmatpush1.msra.mxu0 0.0
    %1591 = vmatprep.subr.mxu0 0.0
    %1592 = vmatpush1.msra.mxu0 0.0
    %1593 = vmatprep.subr.mxu0 0.0
    %1594 = vmatpush1.msra.mxu0 0.0
    %1595 = vmatprep.subr.mxu0 0.0
    %1596 = vmatpush1.msra.mxu0 0.0
    %1597 = vmatprep.mubr.f32.mxu0 0.0
    %1598 = vmatmul.mubr.f32.gmra.mrb[0].mxu0 %v1531
    %v1599 = vpop.f32.mrb[0].mxu0
    %v1600 = vadd.f32 %v1529, %v1599
    %v1601 = vpop.f32.mrb[0].mxu0
    %1602 = vdwg.mxu0
    %v1603 = vld [vmem:[#allocation11] sm:$0xff]
    %v1604 = vld [vmem:[#allocation11 + $0x8] sm:$0xff]
    %v1605 = vld [vmem:[#allocation11 + $0x10] sm:$0xff]
    %v1606 = vld [vmem:[#allocation11 + $0x18] sm:$0xff]
    %v1607 = vld [vmem:[#allocation14] sm:$0x1]
    %v1608 = vsel %vm214, %v1335, 0
    %1610 = vmatprep.subr.mxu0 0.0
    %1611 = vmatpush1.msra.mxu0 %v1603
    %1612 = vmatprep.subr.mxu0 0.0
    %1613 = vmatpush1.msra.mxu0 %v1604
    %1614 = vmatprep.subr.mxu0 0.0
    %1615 = vmatpush1.msra.mxu0 %v1605
    %1616 = vmatprep.subr.mxu0 0.0
    %1617 = vmatpush1.msra.mxu0 %v1606
    %1618 = vmatprep.subr.mxu0 0.0
    %1619 = vmatpush1.msra.mxu0 0.0
    %1620 = vmatprep.subr.mxu0 0.0
    %1621 = vmatpush1.msra.mxu0 0.0
    %1622 = vmatprep.subr.mxu0 0.0
    %1623 = vmatpush1.msra.mxu0 0.0
    %1624 = vmatprep.subr.mxu0 0.0
    %1625 = vmatpush1.msra.mxu0 0.0
    %1626 = vmatprep.subr.mxu0 0.0
    %1627 = vmatpush1.msra.mxu0 0.0
    %1628 = vmatprep.subr.mxu0 0.0
    %1629 = vmatpush1.msra.mxu0 0.0
    %1630 = vmatprep.subr.mxu0 0.0
    %1631 = vmatpush1.msra.mxu0 0.0
    %1632 = vmatprep.subr.mxu0 0.0
    %1633 = vmatpush1.msra.mxu0 0.0
    %1634 = vmatprep.subr.mxu0 0.0
    %1635 = vmatpush1.msra.mxu0 0.0
    %1636 = vmatprep.subr.mxu0 0.0
    %1637 = vmatpush1.msra.mxu0 0.0
    %1638 = vmatprep.subr.mxu0 0.0
    %1639 = vmatpush1.msra.mxu0 0.0
    %1640 = vmatprep.subr.mxu0 0.0
    %1641 = vmatpush1.msra.mxu0 0.0
    %1642 = vmatprep.subr.mxu0 0.0
    %1643 = vmatpush1.msra.mxu0 0.0
    %1644 = vmatprep.subr.mxu0 0.0
    %1645 = vmatpush1.msra.mxu0 0.0
    %1646 = vmatprep.subr.mxu0 0.0
    %1647 = vmatpush1.msra.mxu0 0.0
    %1648 = vmatprep.subr.mxu0 0.0
    %1649 = vmatpush1.msra.mxu0 0.0
    %1650 = vmatprep.subr.mxu0 0.0
    %1651 = vmatpush1.msra.mxu0 0.0
    %1652 = vmatprep.subr.mxu0 0.0
    %1653 = vmatpush1.msra.mxu0 0.0
    %1654 = vmatprep.subr.mxu0 0.0
    %1655 = vmatpush1.msra.mxu0 0.0
    %1656 = vmatprep.subr.mxu0 0.0
    %1657 = vmatpush1.msra.mxu0 0.0
    %1658 = vmatprep.subr.mxu0 0.0
    %1659 = vmatpush1.msra.mxu0 0.0
    %1660 = vmatprep.subr.mxu0 0.0
    %1661 = vmatpush1.msra.mxu0 0.0
    %1662 = vmatprep.subr.mxu0 0.0
    %1663 = vmatpush1.msra.mxu0 0.0
    %1664 = vmatprep.subr.mxu0 0.0
    %1665 = vmatpush1.msra.mxu0 0.0
    %1666 = vmatprep.subr.mxu0 0.0
    %1667 = vmatpush1.msra.mxu0 0.0
    %1668 = vmatprep.subr.mxu0 0.0
    %1669 = vmatpush1.msra.mxu0 0.0
    %1670 = vmatprep.subr.mxu0 0.0
    %1671 = vmatpush1.msra.mxu0 0.0
    %1672 = vmatprep.subr.mxu0 0.0
    %1673 = vmatpush1.msra.mxu0 0.0
    %1674 = vmatprep.mubr.f32.mxu0 0.0
    %1675 = vmatmul.mubr.f32.gmra.mrb[0].mxu0 %v1608
    %v1676 = vpop.f32.mrb[0].mxu0
    %v1677 = vadd.f32 %v1607, %v1676
    %v1678 = vpop.f32.mrb[0].mxu0
    %1679 = vdwg.mxu0
    %v1680 = vadd.f32 %v1600, %v1677
    %v1681 = vxor.u32 %v1680, 2147483648
    %v1682 = vmul.f32 %v1681, 1.442695
    %v1683 = vpow.pop %v1682
    %v1684 = vadd.f32 %v1683, 1.0
    %v1685 = vrcp.pop %v1684
    %v1686 = vmul.f32 1.0, %v1685
    %1688 = vrot.lane.b32.xlu0 %v1677, 64
    %v1689 = vpop.permute.xlu0 %1688
    %v1691 = vmul.f32 %v1686, %v1689
    %1693 = vrot.lane.b32.xlu0 %v1691, 64
    %v1694 = vpop.permute.xlu0 %1693
    %v1696 = vadd.f32 %v1600, %v1694
    %v1697 = vtanh.pop %v1696
    %v1698 = vsub.f32 1.0, %v1686
    %1700 = vrot.lane.b32.xlu0 %v1697, 96
    %v1701 = vpop.permute.xlu0 %1700
    %v1703 = vmul.f32 %v1698, %v1701
    %v1704 = vmul.f32 %v1686, %v1327
    %v1705 = vadd.f32 %v1703, %v1704
    %1707 = vrot.lane.b32.xlu0 %v1524, 96
    %v1708 = vpop.permute.xlu0 %1707
    %1710 = vst.msk [vmem:[#allocation2 + $0x3] sm:$0x1] %vm575, %v1708
    %1712 = vrot.lane.b32.xlu0 %v1705, 96
    %v1713 = vpop.permute.xlu0 %1712
    %1715 = vst.msk [vmem:[#allocation3 + $0x4] sm:$0x1] %vm575, %v1713
    %s1716 = sld [smem:[#allocation5 + $0x4]]
    %s1717 = scalar_lea.vmem %s1, %s1716
    %v1718 = vld [vmem:[%s1717] sm:$0x1]
    %s1719 = sld [smem:[#allocation5 + $0x3]]
    %s1720 = scalar_lea.vmem %s1, %s1719
    %v1721 = vld [vmem:[%s1720] sm:$0x1]
    %v1722 = vld [vmem:[%s2] sm:$0xff]
    %v1723 = vld [vmem:[%s2 + $0x8] sm:$0xff]
    %v1724 = vld [vmem:[%s2 + $0x10] sm:$0xff]
    %v1725 = vld [vmem:[%s2 + $0x18] sm:$0xff]
    %v1726 = vld [vmem:[#allocation6] sm:$0x1]
    %v1728 = vsel %vm214, %v1718, 0
    %1730 = vmatprep.subr.mxu0 0.0
    %1731 = vmatpush1.msra.mxu0 %v1722
    %1732 = vmatprep.subr.mxu0 0.0
    %1733 = vmatpush1.msra.mxu0 %v1723
    %1734 = vmatprep.subr.mxu0 0.0
    %1735 = vmatpush1.msra.mxu0 %v1724
    %1736 = vmatprep.subr.mxu0 0.0
    %1737 = vmatpush1.msra.mxu0 %v1725
    %1738 = vmatprep.subr.mxu0 0.0
    %1739 = vmatpush1.msra.mxu0 0.0
    %1740 = vmatprep.subr.mxu0 0.0
    %1741 = vmatpush1.msra.mxu0 0.0
    %1742 = vmatprep.subr.mxu0 0.0
    %1743 = vmatpush1.msra.mxu0 0.0
    %1744 = vmatprep.subr.mxu0 0.0
    %1745 = vmatpush1.msra.mxu0 0.0
    %1746 = vmatprep.subr.mxu0 0.0
    %1747 = vmatpush1.msra.mxu0 0.0
    %1748 = vmatprep.subr.mxu0 0.0
    %1749 = vmatpush1.msra.mxu0 0.0
    %1750 = vmatprep.subr.mxu0 0.0
    %1751 = vmatpush1.msra.mxu0 0.0
    %1752 = vmatprep.subr.mxu0 0.0
    %1753 = vmatpush1.msra.mxu0 0.0
    %1754 = vmatprep.subr.mxu0 0.0
    %1755 = vmatpush1.msra.mxu0 0.0
    %1756 = vmatprep.subr.mxu0 0.0
    %1757 = vmatpush1.msra.mxu0 0.0
    %1758 = vmatprep.subr.mxu0 0.0
    %1759 = vmatpush1.msra.mxu0 0.0
    %1760 = vmatprep.subr.mxu0 0.0
    %1761 = vmatpush1.msra.mxu0 0.0
    %1762 = vmatprep.subr.mxu0 0.0
    %1763 = vmatpush1.msra.mxu0 0.0
    %1764 = vmatprep.subr.mxu0 0.0
    %1765 = vmatpush1.msra.mxu0 0.0
    %1766 = vmatprep.subr.mxu0 0.0
    %1767 = vmatpush1.msra.mxu0 0.0
    %1768 = vmatprep.subr.mxu0 0.0
    %1769 = vmatpush1.msra.mxu0 0.0
    %1770 = vmatprep.subr.mxu0 0.0
    %1771 = vmatpush1.msra.mxu0 0.0
    %1772 = vmatprep.subr.mxu0 0.0
    %1773 = vmatpush1.msra.mxu0 0.0
    %1774 = vmatprep.subr.mxu0 0.0
    %1775 = vmatpush1.msra.mxu0 0.0
    %1776 = vmatprep.subr.mxu0 0.0
    %1777 = vmatpush1.msra.mxu0 0.0
    %1778 = vmatprep.subr.mxu0 0.0
    %1779 = vmatpush1.msra.mxu0 0.0
    %1780 = vmatprep.subr.mxu0 0.0
    %1781 = vmatpush1.msra.mxu0 0.0
    %1782 = vmatprep.subr.mxu0 0.0
    %1783 = vmatpush1.msra.mxu0 0.0
    %1784 = vmatprep.subr.mxu0 0.0
    %1785 = vmatpush1.msra.mxu0 0.0
    %1786 = vmatprep.subr.mxu0 0.0
    %1787 = vmatpush1.msra.mxu0 0.0
    %1788 = vmatprep.subr.mxu0 0.0
    %1789 = vmatpush1.msra.mxu0 0.0
    %1790 = vmatprep.subr.mxu0 0.0
    %1791 = vmatpush1.msra.mxu0 0.0
    %1792 = vmatprep.subr.mxu0 0.0
    %1793 = vmatpush1.msra.mxu0 0.0
    %1794 = vmatprep.mubr.f32.mxu0 0.0
    %1795 = vmatmul.mubr.f32.gmra.mrb[0].mxu0 %v1728
    %v1796 = vpop.f32.mrb[0].mxu0
    %v1797 = vadd.f32 %v1726, %v1796
    %v1798 = vpop.f32.mrb[0].mxu0
    %1799 = vdwg.mxu0
    %v1800 = vld [vmem:[%s3] sm:$0xff]
    %v1801 = vld [vmem:[%s3 + $0x8] sm:$0xff]
    %v1802 = vld [vmem:[%s3 + $0x10] sm:$0xff]
    %v1803 = vld [vmem:[%s3 + $0x18] sm:$0xff]
    %v1804 = vld [vmem:[#allocation9] sm:$0x1]
    %v1805 = vsel %vm214, %v1708, 0
    %1807 = vmatprep.subr.mxu0 0.0
    %1808 = vmatpush1.msra.mxu0 %v1800
    %1809 = vmatprep.subr.mxu0 0.0
    %1810 = vmatpush1.msra.mxu0 %v1801
    %1811 = vmatprep.subr.mxu0 0.0
    %1812 = vmatpush1.msra.mxu0 %v1802
    %1813 = vmatprep.subr.mxu0 0.0
    %1814 = vmatpush1.msra.mxu0 %v1803
    %1815 = vmatprep.subr.mxu0 0.0
    %1816 = vmatpush1.msra.mxu0 0.0
    %1817 = vmatprep.subr.mxu0 0.0
    %1818 = vmatpush1.msra.mxu0 0.0
    %1819 = vmatprep.subr.mxu0 0.0
    %1820 = vmatpush1.msra.mxu0 0.0
    %1821 = vmatprep.subr.mxu0 0.0
    %1822 = vmatpush1.msra.mxu0 0.0
    %1823 = vmatprep.subr.mxu0 0.0
    %1824 = vmatpush1.msra.mxu0 0.0
    %1825 = vmatprep.subr.mxu0 0.0
    %1826 = vmatpush1.msra.mxu0 0.0
    %1827 = vmatprep.subr.mxu0 0.0
    %1828 = vmatpush1.msra.mxu0 0.0
    %1829 = vmatprep.subr.mxu0 0.0
    %1830 = vmatpush1.msra.mxu0 0.0
    %1831 = vmatprep.subr.mxu0 0.0
    %1832 = vmatpush1.msra.mxu0 0.0
    %1833 = vmatprep.subr.mxu0 0.0
    %1834 = vmatpush1.msra.mxu0 0.0
    %1835 = vmatprep.subr.mxu0 0.0
    %1836 = vmatpush1.msra.mxu0 0.0
    %1837 = vmatprep.subr.mxu0 0.0
    %1838 = vmatpush1.msra.mxu0 0.0
    %1839 = vmatprep.subr.mxu0 0.0
    %1840 = vmatpush1.msra.mxu0 0.0
    %1841 = vmatprep.subr.mxu0 0.0
    %1842 = vmatpush1.msra.mxu0 0.0
    %1843 = vmatprep.subr.mxu0 0.0
    %1844 = vmatpush1.msra.mxu0 0.0
    %1845 = vmatprep.subr.mxu0 0.0
    %1846 = vmatpush1.msra.mxu0 0.0
    %1847 = vmatprep.subr.mxu0 0.0
    %1848 = vmatpush1.msra.mxu0 0.0
    %1849 = vmatprep.subr.mxu0 0.0
    %1850 = vmatpush1.msra.mxu0 0.0
    %1851 = vmatprep.subr.mxu0 0.0
    %1852 = vmatpush1.msra.mxu0 0.0
    %1853 = vmatprep.subr.mxu0 0.0
    %1854 = vmatpush1.msra.mxu0 0.0
    %1855 = vmatprep.subr.mxu0 0.0
    %1856 = vmatpush1.msra.mxu0 0.0
    %1857 = vmatprep.subr.mxu0 0.0
    %1858 = vmatpush1.msra.mxu0 0.0
    %1859 = vmatprep.subr.mxu0 0.0
    %1860 = vmatpush1.msra.mxu0 0.0
    %1861 = vmatprep.subr.mxu0 0.0
    %1862 = vmatpush1.msra.mxu0 0.0
    %1863 = vmatprep.subr.mxu0 0.0
    %1864 = vmatpush1.msra.mxu0 0.0
    %1865 = vmatprep.subr.mxu0 0.0
    %1866 = vmatpush1.msra.mxu0 0.0
    %1867 = vmatprep.subr.mxu0 0.0
    %1868 = vmatpush1.msra.mxu0 0.0
    %1869 = vmatprep.subr.mxu0 0.0
    %1870 = vmatpush1.msra.mxu0 0.0
    %1871 = vmatprep.mubr.f32.mxu0 0.0
    %1872 = vmatmul.mubr.f32.gmra.mrb[0].mxu0 %v1805
    %v1873 = vpop.f32.mrb[0].mxu0
    %v1874 = vadd.f32 %v1804, %v1873
    %v1875 = vpop.f32.mrb[0].mxu0
    %1876 = vdwg.mxu0
    %v1877 = vadd.f32 %v1797, %v1874
    %v1878 = vxor.u32 %v1877, 2147483648
    %v1879 = vmul.f32 %v1878, 1.442695
    %v1880 = vpow.pop %v1879
    %v1881 = vadd.f32 %v1880, 1.0
    %v1882 = vrcp.pop %v1881
    %v1883 = vmul.f32 1.0, %v1882
    %1885 = vrot.lane.b32.xlu0 %v1874, 64
    %v1886 = vpop.permute.xlu0 %1885
    %v1888 = vmul.f32 %v1883, %v1886
    %1890 = vrot.lane.b32.xlu0 %v1888, 64
    %v1891 = vpop.permute.xlu0 %1890
    %v1893 = vadd.f32 %v1797, %v1891
    %v1894 = vtanh.pop %v1893
    %v1895 = vsub.f32 1.0, %v1883
    %1897 = vrot.lane.b32.xlu0 %v1894, 96
    %v1898 = vpop.permute.xlu0 %1897
    %v1900 = vmul.f32 %v1895, %v1898
    %v1901 = vmul.f32 %v1883, %v1524
    %v1902 = vadd.f32 %v1900, %v1901
    %v1903 = vld [vmem:[%s6] sm:$0xff]
    %v1904 = vld [vmem:[%s6 + $0x8] sm:$0xff]
    %v1905 = vld [vmem:[%s6 + $0x10] sm:$0xff]
    %v1906 = vld [vmem:[%s6 + $0x18] sm:$0xff]
    %v1907 = vld [vmem:[#allocation12] sm:$0x1]
    %v1909 = vsel %vm214, %v1721, 0
    %1911 = vmatprep.subr.mxu0 0.0
    %1912 = vmatpush1.msra.mxu0 %v1903
    %1913 = vmatprep.subr.mxu0 0.0
    %1914 = vmatpush1.msra.mxu0 %v1904
    %1915 = vmatprep.subr.mxu0 0.0
    %1916 = vmatpush1.msra.mxu0 %v1905
    %1917 = vmatprep.subr.mxu0 0.0
    %1918 = vmatpush1.msra.mxu0 %v1906
    %1919 = vmatprep.subr.mxu0 0.0
    %1920 = vmatpush1.msra.mxu0 0.0
    %1921 = vmatprep.subr.mxu0 0.0
    %1922 = vmatpush1.msra.mxu0 0.0
    %1923 = vmatprep.subr.mxu0 0.0
    %1924 = vmatpush1.msra.mxu0 0.0
    %1925 = vmatprep.subr.mxu0 0.0
    %1926 = vmatpush1.msra.mxu0 0.0
    %1927 = vmatprep.subr.mxu0 0.0
    %1928 = vmatpush1.msra.mxu0 0.0
    %1929 = vmatprep.subr.mxu0 0.0
    %1930 = vmatpush1.msra.mxu0 0.0
    %1931 = vmatprep.subr.mxu0 0.0
    %1932 = vmatpush1.msra.mxu0 0.0
    %1933 = vmatprep.subr.mxu0 0.0
    %1934 = vmatpush1.msra.mxu0 0.0
    %1935 = vmatprep.subr.mxu0 0.0
    %1936 = vmatpush1.msra.mxu0 0.0
    %1937 = vmatprep.subr.mxu0 0.0
    %1938 = vmatpush1.msra.mxu0 0.0
    %1939 = vmatprep.subr.mxu0 0.0
    %1940 = vmatpush1.msra.mxu0 0.0
    %1941 = vmatprep.subr.mxu0 0.0
    %1942 = vmatpush1.msra.mxu0 0.0
    %1943 = vmatprep.subr.mxu0 0.0
    %1944 = vmatpush1.msra.mxu0 0.0
    %1945 = vmatprep.subr.mxu0 0.0
    %1946 = vmatpush1.msra.mxu0 0.0
    %1947 = vmatprep.subr.mxu0 0.0
    %1948 = vmatpush1.msra.mxu0 0.0
    %1949 = vmatprep.subr.mxu0 0.0
    %1950 = vmatpush1.msra.mxu0 0.0
    %1951 = vmatprep.subr.mxu0 0.0
    %1952 = vmatpush1.msra.mxu0 0.0
    %1953 = vmatprep.subr.mxu0 0.0
    %1954 = vmatpush1.msra.mxu0 0.0
    %1955 = vmatprep.subr.mxu0 0.0
    %1956 = vmatpush1.msra.mxu0 0.0
    %1957 = vmatprep.subr.mxu0 0.0
    %1958 = vmatpush1.msra.mxu0 0.0
    %1959 = vmatprep.subr.mxu0 0.0
    %1960 = vmatpush1.msra.mxu0 0.0
    %1961 = vmatprep.subr.mxu0 0.0
    %1962 = vmatpush1.msra.mxu0 0.0
    %1963 = vmatprep.subr.mxu0 0.0
    %1964 = vmatpush1.msra.mxu0 0.0
    %1965 = vmatprep.subr.mxu0 0.0
    %1966 = vmatpush1.msra.mxu0 0.0
    %1967 = vmatprep.subr.mxu0 0.0
    %1968 = vmatpush1.msra.mxu0 0.0
    %1969 = vmatprep.subr.mxu0 0.0
    %1970 = vmatpush1.msra.mxu0 0.0
    %1971 = vmatprep.subr.mxu0 0.0
    %1972 = vmatpush1.msra.mxu0 0.0
    %1973 = vmatprep.subr.mxu0 0.0
    %1974 = vmatpush1.msra.mxu0 0.0
    %1975 = vmatprep.mubr.f32.mxu0 0.0
    %1976 = vmatmul.mubr.f32.gmra.mrb[0].mxu0 %v1909
    %v1977 = vpop.f32.mrb[0].mxu0
    %v1978 = vadd.f32 %v1907, %v1977
    %v1979 = vpop.f32.mrb[0].mxu0
    %1980 = vdwg.mxu0
    %v1981 = vld [vmem:[#allocation11] sm:$0xff]
    %v1982 = vld [vmem:[#allocation11 + $0x8] sm:$0xff]
    %v1983 = vld [vmem:[#allocation11 + $0x10] sm:$0xff]
    %v1984 = vld [vmem:[#allocation11 + $0x18] sm:$0xff]
    %v1985 = vld [vmem:[#allocation14] sm:$0x1]
    %v1986 = vsel %vm214, %v1713, 0
    %1988 = vmatprep.subr.mxu0 0.0
    %1989 = vmatpush1.msra.mxu0 %v1981
    %1990 = vmatprep.subr.mxu0 0.0
    %1991 = vmatpush1.msra.mxu0 %v1982
    %1992 = vmatprep.subr.mxu0 0.0
    %1993 = vmatpush1.msra.mxu0 %v1983
    %1994 = vmatprep.subr.mxu0 0.0
    %1995 = vmatpush1.msra.mxu0 %v1984
    %1996 = vmatprep.subr.mxu0 0.0
    %1997 = vmatpush1.msra.mxu0 0.0
    %1998 = vmatprep.subr.mxu0 0.0
    %1999 = vmatpush1.msra.mxu0 0.0
    %2000 = vmatprep.subr.mxu0 0.0
    %2001 = vmatpush1.msra.mxu0 0.0
    %2002 = vmatprep.subr.mxu0 0.0
    %2003 = vmatpush1.msra.mxu0 0.0
    %2004 = vmatprep.subr.mxu0 0.0
    %2005 = vmatpush1.msra.mxu0 0.0
    %2006 = vmatprep.subr.mxu0 0.0
    %2007 = vmatpush1.msra.mxu0 0.0
    %2008 = vmatprep.subr.mxu0 0.0
    %2009 = vmatpush1.msra.mxu0 0.0
    %2010 = vmatprep.subr.mxu0 0.0
    %2011 = vmatpush1.msra.mxu0 0.0
    %2012 = vmatprep.subr.mxu0 0.0
    %2013 = vmatpush1.msra.mxu0 0.0
    %2014 = vmatprep.subr.mxu0 0.0
    %2015 = vmatpush1.msra.mxu0 0.0
    %2016 = vmatprep.subr.mxu0 0.0
    %2017 = vmatpush1.msra.mxu0 0.0
    %2018 = vmatprep.subr.mxu0 0.0
    %2019 = vmatpush1.msra.mxu0 0.0
    %2020 = vmatprep.subr.mxu0 0.0
    %2021 = vmatpush1.msra.mxu0 0.0
    %2022 = vmatprep.subr.mxu0 0.0
    %2023 = vmatpush1.msra.mxu0 0.0
    %2024 = vmatprep.subr.mxu0 0.0
    %2025 = vmatpush1.msra.mxu0 0.0
    %2026 = vmatprep.subr.mxu0 0.0
    %2027 = vmatpush1.msra.mxu0 0.0
    %2028 = vmatprep.subr.mxu0 0.0
    %2029 = vmatpush1.msra.mxu0 0.0
    %2030 = vmatprep.subr.mxu0 0.0
    %2031 = vmatpush1.msra.mxu0 0.0
    %2032 = vmatprep.subr.mxu0 0.0
    %2033 = vmatpush1.msra.mxu0 0.0
    %2034 = vmatprep.subr.mxu0 0.0
    %2035 = vmatpush1.msra.mxu0 0.0
    %2036 = vmatprep.subr.mxu0 0.0
    %2037 = vmatpush1.msra.mxu0 0.0
    %2038 = vmatprep.subr.mxu0 0.0
    %2039 = vmatpush1.msra.mxu0 0.0
    %2040 = vmatprep.subr.mxu0 0.0
    %2041 = vmatpush1.msra.mxu0 0.0
    %2042 = vmatprep.subr.mxu0 0.0
    %2043 = vmatpush1.msra.mxu0 0.0
    %2044 = vmatprep.subr.mxu0 0.0
    %2045 = vmatpush1.msra.mxu0 0.0
    %2046 = vmatprep.subr.mxu0 0.0
    %2047 = vmatpush1.msra.mxu0 0.0
    %2048 = vmatprep.subr.mxu0 0.0
    %2049 = vmatpush1.msra.mxu0 0.0
    %2050 = vmatprep.subr.mxu0 0.0
    %2051 = vmatpush1.msra.mxu0 0.0
    %2052 = vmatprep.mubr.f32.mxu0 0.0
    %2053 = vmatmul.mubr.f32.gmra.mrb[0].mxu0 %v1986
    %v2054 = vpop.f32.mrb[0].mxu0
    %v2055 = vadd.f32 %v1985, %v2054
    %v2056 = vpop.f32.mrb[0].mxu0
    %2057 = vdwg.mxu0
    %v2058 = vadd.f32 %v1978, %v2055
    %v2059 = vxor.u32 %v2058, 2147483648
    %v2060 = vmul.f32 %v2059, 1.442695
    %v2061 = vpow.pop %v2060
    %v2062 = vadd.f32 %v2061, 1.0
    %v2063 = vrcp.pop %v2062
    %v2064 = vmul.f32 1.0, %v2063
    %2066 = vrot.lane.b32.xlu0 %v2055, 64
    %v2067 = vpop.permute.xlu0 %2066
    %v2069 = vmul.f32 %v2064, %v2067
    %2071 = vrot.lane.b32.xlu0 %v2069, 64
    %v2072 = vpop.permute.xlu0 %2071
    %v2074 = vadd.f32 %v1978, %v2072
    %v2075 = vtanh.pop %v2074
    %v2076 = vsub.f32 1.0, %v2064
    %2078 = vrot.lane.b32.xlu0 %v2075, 96
    %v2079 = vpop.permute.xlu0 %2078
    %v2081 = vmul.f32 %v2076, %v2079
    %v2082 = vmul.f32 %v2064, %v1705
    %v2083 = vadd.f32 %v2081, %v2082
    %2085 = vrot.lane.b32.xlu0 %v1902, 96
    %v2086 = vpop.permute.xlu0 %2085
    %2088 = vst.msk [vmem:[#allocation2 + $0x4] sm:$0x1] %vm575, %v2086
    %2090 = vrot.lane.b32.xlu0 %v2083, 96
    %v2091 = vpop.permute.xlu0 %2090
    %2093 = vst.msk [vmem:[#allocation3 + $0x3] sm:$0x1] %vm575, %v2091
    %s2094 = sld [smem:[#allocation5 + $0x5]]
    %s2095 = scalar_lea.vmem %s1, %s2094
    %v2096 = vld [vmem:[%s2095] sm:$0x1]
    %s2097 = sld [smem:[#allocation5 + $0x2]]
    %s2098 = scalar_lea.vmem %s1, %s2097
    %v2099 = vld [vmem:[%s2098] sm:$0x1]
    %v2100 = vld [vmem:[%s2] sm:$0xff]
    %v2101 = vld [vmem:[%s2 + $0x8] sm:$0xff]
    %v2102 = vld [vmem:[%s2 + $0x10] sm:$0xff]
    %v2103 = vld [vmem:[%s2 + $0x18] sm:$0xff]
    %v2104 = vld [vmem:[#allocation6] sm:$0x1]
    %v2106 = vsel %vm214, %v2096, 0
    %2108 = vmatprep.subr.mxu0 0.0
    %2109 = vmatpush1.msra.mxu0 %v2100
    %2110 = vmatprep.subr.mxu0 0.0
    %2111 = vmatpush1.msra.mxu0 %v2101
    %2112 = vmatprep.subr.mxu0 0.0
    %2113 = vmatpush1.msra.mxu0 %v2102
    %2114 = vmatprep.subr.mxu0 0.0
    %2115 = vmatpush1.msra.mxu0 %v2103
    %2116 = vmatprep.subr.mxu0 0.0
    %2117 = vmatpush1.msra.mxu0 0.0
    %2118 = vmatprep.subr.mxu0 0.0
    %2119 = vmatpush1.msra.mxu0 0.0
    %2120 = vmatprep.subr.mxu0 0.0
    %2121 = vmatpush1.msra.mxu0 0.0
    %2122 = vmatprep.subr.mxu0 0.0
    %2123 = vmatpush1.msra.mxu0 0.0
    %2124 = vmatprep.subr.mxu0 0.0
    %2125 = vmatpush1.msra.mxu0 0.0
    %2126 = vmatprep.subr.mxu0 0.0
    %2127 = vmatpush1.msra.mxu0 0.0
    %2128 = vmatprep.subr.mxu0 0.0
    %2129 = vmatpush1.msra.mxu0 0.0
    %2130 = vmatprep.subr.mxu0 0.0
    %2131 = vmatpush1.msra.mxu0 0.0
    %2132 = vmatprep.subr.mxu0 0.0
    %2133 = vmatpush1.msra.mxu0 0.0
    %2134 = vmatprep.subr.mxu0 0.0
    %2135 = vmatpush1.msra.mxu0 0.0
    %2136 = vmatprep.subr.mxu0 0.0
    %2137 = vmatpush1.msra.mxu0 0.0
    %2138 = vmatprep.subr.mxu0 0.0
    %2139 = vmatpush1.msra.mxu0 0.0
    %2140 = vmatprep.subr.mxu0 0.0
    %2141 = vmatpush1.msra.mxu0 0.0
    %2142 = vmatprep.subr.mxu0 0.0
    %2143 = vmatpush1.msra.mxu0 0.0
    %2144 = vmatprep.subr.mxu0 0.0
    %2145 = vmatpush1.msra.mxu0 0.0
    %2146 = vmatprep.subr.mxu0 0.0
    %2147 = vmatpush1.msra.mxu0 0.0
    %2148 = vmatprep.subr.mxu0 0.0
    %2149 = vmatpush1.msra.mxu0 0.0
    %2150 = vmatprep.subr.mxu0 0.0
    %2151 = vmatpush1.msra.mxu0 0.0
    %2152 = vmatprep.subr.mxu0 0.0
    %2153 = vmatpush1.msra.mxu0 0.0
    %2154 = vmatprep.subr.mxu0 0.0
    %2155 = vmatpush1.msra.mxu0 0.0
    %2156 = vmatprep.subr.mxu0 0.0
    %2157 = vmatpush1.msra.mxu0 0.0
    %2158 = vmatprep.subr.mxu0 0.0
    %2159 = vmatpush1.msra.mxu0 0.0
    %2160 = vmatprep.subr.mxu0 0.0
    %2161 = vmatpush1.msra.mxu0 0.0
    %2162 = vmatprep.subr.mxu0 0.0
    %2163 = vmatpush1.msra.mxu0 0.0
    %2164 = vmatprep.subr.mxu0 0.0
    %2165 = vmatpush1.msra.mxu0 0.0
    %2166 = vmatprep.subr.mxu0 0.0
    %2167 = vmatpush1.msra.mxu0 0.0
    %2168 = vmatprep.subr.mxu0 0.0
    %2169 = vmatpush1.msra.mxu0 0.0
    %2170 = vmatprep.subr.mxu0 0.0
    %2171 = vmatpush1.msra.mxu0 0.0
    %2172 = vmatprep.mubr.f32.mxu0 0.0
    %2173 = vmatmul.mubr.f32.gmra.mrb[0].mxu0 %v2106
    %v2174 = vpop.f32.mrb[0].mxu0
    %v2175 = vadd.f32 %v2104, %v2174
    %v2176 = vpop.f32.mrb[0].mxu0
    %2177 = vdwg.mxu0
    %v2178 = vld [vmem:[%s3] sm:$0xff]
    %v2179 = vld [vmem:[%s3 + $0x8] sm:$0xff]
    %v2180 = vld [vmem:[%s3 + $0x10] sm:$0xff]
    %v2181 = vld [vmem:[%s3 + $0x18] sm:$0xff]
    %v2182 = vld [vmem:[#allocation9] sm:$0x1]
    %v2183 = vsel %vm214, %v2086, 0
    %2185 = vmatprep.subr.mxu0 0.0
    %2186 = vmatpush1.msra.mxu0 %v2178
    %2187 = vmatprep.subr.mxu0 0.0
    %2188 = vmatpush1.msra.mxu0 %v2179
    %2189 = vmatprep.subr.mxu0 0.0
    %2190 = vmatpush1.msra.mxu0 %v2180
    %2191 = vmatprep.subr.mxu0 0.0
    %2192 = vmatpush1.msra.mxu0 %v2181
    %2193 = vmatprep.subr.mxu0 0.0
    %2194 = vmatpush1.msra.mxu0 0.0
    %2195 = vmatprep.subr.mxu0 0.0
    %2196 = vmatpush1.msra.mxu0 0.0
    %2197 = vmatprep.subr.mxu0 0.0
    %2198 = vmatpush1.msra.mxu0 0.0
    %2199 = vmatprep.subr.mxu0 0.0
    %2200 = vmatpush1.msra.mxu0 0.0
    %2201 = vmatprep.subr.mxu0 0.0
    %2202 = vmatpush1.msra.mxu0 0.0
    %2203 = vmatprep.subr.mxu0 0.0
    %2204 = vmatpush1.msra.mxu0 0.0
    %2205 = vmatprep.subr.mxu0 0.0
    %2206 = vmatpush1.msra.mxu0 0.0
    %2207 = vmatprep.subr.mxu0 0.0
    %2208 = vmatpush1.msra.mxu0 0.0
    %2209 = vmatprep.subr.mxu0 0.0
    %2210 = vmatpush1.msra.mxu0 0.0
    %2211 = vmatprep.subr.mxu0 0.0
    %2212 = vmatpush1.msra.mxu0 0.0
    %2213 = vmatprep.subr.mxu0 0.0
    %2214 = vmatpush1.msra.mxu0 0.0
    %2215 = vmatprep.subr.mxu0 0.0
    %2216 = vmatpush1.msra.mxu0 0.0
    %2217 = vmatprep.subr.mxu0 0.0
    %2218 = vmatpush1.msra.mxu0 0.0
    %2219 = vmatprep.subr.mxu0 0.0
    %2220 = vmatpush1.msra.mxu0 0.0
    %2221 = vmatprep.subr.mxu0 0.0
    %2222 = vmatpush1.msra.mxu0 0.0
    %2223 = vmatprep.subr.mxu0 0.0
    %2224 = vmatpush1.msra.mxu0 0.0
    %2225 = vmatprep.subr.mxu0 0.0
    %2226 = vmatpush1.msra.mxu0 0.0
    %2227 = vmatprep.subr.mxu0 0.0
    %2228 = vmatpush1.msra.mxu0 0.0
    %2229 = vmatprep.subr.mxu0 0.0
    %2230 = vmatpush1.msra.mxu0 0.0
    %2231 = vmatprep.subr.mxu0 0.0
    %2232 = vmatpush1.msra.mxu0 0.0
    %2233 = vmatprep.subr.mxu0 0.0
    %2234 = vmatpush1.msra.mxu0 0.0
    %2235 = vmatprep.subr.mxu0 0.0
    %2236 = vmatpush1.msra.mxu0 0.0
    %2237 = vmatprep.subr.mxu0 0.0
    %2238 = vmatpush1.msra.mxu0 0.0
    %2239 = vmatprep.subr.mxu0 0.0
    %2240 = vmatpush1.msra.mxu0 0.0
    %2241 = vmatprep.subr.mxu0 0.0
    %2242 = vmatpush1.msra.mxu0 0.0
    %2243 = vmatprep.subr.mxu0 0.0
    %2244 = vmatpush1.msra.mxu0 0.0
    %2245 = vmatprep.subr.mxu0 0.0
    %2246 = vmatpush1.msra.mxu0 0.0
    %2247 = vmatprep.subr.mxu0 0.0
    %2248 = vmatpush1.msra.mxu0 0.0
    %2249 = vmatprep.mubr.f32.mxu0 0.0
    %2250 = vmatmul.mubr.f32.gmra.mrb[0].mxu0 %v2183
    %v2251 = vpop.f32.mrb[0].mxu0
    %v2252 = vadd.f32 %v2182, %v2251
    %v2253 = vpop.f32.mrb[0].mxu0
    %2254 = vdwg.mxu0
    %v2255 = vadd.f32 %v2175, %v2252
    %v2256 = vxor.u32 %v2255, 2147483648
    %v2257 = vmul.f32 %v2256, 1.442695
    %v2258 = vpow.pop %v2257
    %v2259 = vadd.f32 %v2258, 1.0
    %v2260 = vrcp.pop %v2259
    %v2261 = vmul.f32 1.0, %v2260
    %2263 = vrot.lane.b32.xlu0 %v2252, 64
    %v2264 = vpop.permute.xlu0 %2263
    %v2266 = vmul.f32 %v2261, %v2264
    %2268 = vrot.lane.b32.xlu0 %v2266, 64
    %v2269 = vpop.permute.xlu0 %2268
    %v2271 = vadd.f32 %v2175, %v2269
    %v2272 = vtanh.pop %v2271
    %v2273 = vsub.f32 1.0, %v2261
    %2275 = vrot.lane.b32.xlu0 %v2272, 96
    %v2276 = vpop.permute.xlu0 %2275
    %v2278 = vmul.f32 %v2273, %v2276
    %v2279 = vmul.f32 %v2261, %v1902
    %v2280 = vadd.f32 %v2278, %v2279
    %v2281 = vld [vmem:[%s6] sm:$0xff]
    %v2282 = vld [vmem:[%s6 + $0x8] sm:$0xff]
    %v2283 = vld [vmem:[%s6 + $0x10] sm:$0xff]
    %v2284 = vld [vmem:[%s6 + $0x18] sm:$0xff]
    %v2285 = vld [vmem:[#allocation12] sm:$0x1]
    %v2287 = vsel %vm214, %v2099, 0
    %2289 = vmatprep.subr.mxu0 0.0
    %2290 = vmatpush1.msra.mxu0 %v2281
    %2291 = vmatprep.subr.mxu0 0.0
    %2292 = vmatpush1.msra.mxu0 %v2282
    %2293 = vmatprep.subr.mxu0 0.0
    %2294 = vmatpush1.msra.mxu0 %v2283
    %2295 = vmatprep.subr.mxu0 0.0
    %2296 = vmatpush1.msra.mxu0 %v2284
    %2297 = vmatprep.subr.mxu0 0.0
    %2298 = vmatpush1.msra.mxu0 0.0
    %2299 = vmatprep.subr.mxu0 0.0
    %2300 = vmatpush1.msra.mxu0 0.0
    %2301 = vmatprep.subr.mxu0 0.0
    %2302 = vmatpush1.msra.mxu0 0.0
    %2303 = vmatprep.subr.mxu0 0.0
    %2304 = vmatpush1.msra.mxu0 0.0
    %2305 = vmatprep.subr.mxu0 0.0
    %2306 = vmatpush1.msra.mxu0 0.0
    %2307 = vmatprep.subr.mxu0 0.0
    %2308 = vmatpush1.msra.mxu0 0.0
    %2309 = vmatprep.subr.mxu0 0.0
    %2310 = vmatpush1.msra.mxu0 0.0
    %2311 = vmatprep.subr.mxu0 0.0
    %2312 = vmatpush1.msra.mxu0 0.0
    %2313 = vmatprep.subr.mxu0 0.0
    %2314 = vmatpush1.msra.mxu0 0.0
    %2315 = vmatprep.subr.mxu0 0.0
    %2316 = vmatpush1.msra.mxu0 0.0
    %2317 = vmatprep.subr.mxu0 0.0
    %2318 = vmatpush1.msra.mxu0 0.0
    %2319 = vmatprep.subr.mxu0 0.0
    %2320 = vmatpush1.msra.mxu0 0.0
    %2321 = vmatprep.subr.mxu0 0.0
    %2322 = vmatpush1.msra.mxu0 0.0
    %2323 = vmatprep.subr.mxu0 0.0
    %2324 = vmatpush1.msra.mxu0 0.0
    %2325 = vmatprep.subr.mxu0 0.0
    %2326 = vmatpush1.msra.mxu0 0.0
    %2327 = vmatprep.subr.mxu0 0.0
    %2328 = vmatpush1.msra.mxu0 0.0
    %2329 = vmatprep.subr.mxu0 0.0
    %2330 = vmatpush1.msra.mxu0 0.0
    %2331 = vmatprep.subr.mxu0 0.0
    %2332 = vmatpush1.msra.mxu0 0.0
    %2333 = vmatprep.subr.mxu0 0.0
    %2334 = vmatpush1.msra.mxu0 0.0
    %2335 = vmatprep.subr.mxu0 0.0
    %2336 = vmatpush1.msra.mxu0 0.0
    %2337 = vmatprep.subr.mxu0 0.0
    %2338 = vmatpush1.msra.mxu0 0.0
    %2339 = vmatprep.subr.mxu0 0.0
    %2340 = vmatpush1.msra.mxu0 0.0
    %2341 = vmatprep.subr.mxu0 0.0
    %2342 = vmatpush1.msra.mxu0 0.0
    %2343 = vmatprep.subr.mxu0 0.0
    %2344 = vmatpush1.msra.mxu0 0.0
    %2345 = vmatprep.subr.mxu0 0.0
    %2346 = vmatpush1.msra.mxu0 0.0
    %2347 = vmatprep.subr.mxu0 0.0
    %2348 = vmatpush1.msra.mxu0 0.0
    %2349 = vmatprep.subr.mxu0 0.0
    %2350 = vmatpush1.msra.mxu0 0.0
    %2351 = vmatprep.subr.mxu0 0.0
    %2352 = vmatpush1.msra.mxu0 0.0
    %2353 = vmatprep.mubr.f32.mxu0 0.0
    %2354 = vmatmul.mubr.f32.gmra.mrb[0].mxu0 %v2287
    %v2355 = vpop.f32.mrb[0].mxu0
    %v2356 = vadd.f32 %v2285, %v2355
    %v2357 = vpop.f32.mrb[0].mxu0
    %2358 = vdwg.mxu0
    %v2359 = vld [vmem:[#allocation11] sm:$0xff]
    %v2360 = vld [vmem:[#allocation11 + $0x8] sm:$0xff]
    %v2361 = vld [vmem:[#allocation11 + $0x10] sm:$0xff]
    %v2362 = vld [vmem:[#allocation11 + $0x18] sm:$0xff]
    %v2363 = vld [vmem:[#allocation14] sm:$0x1]
    %v2364 = vsel %vm214, %v2091, 0
    %2366 = vmatprep.subr.mxu0 0.0
    %2367 = vmatpush1.msra.mxu0 %v2359
    %2368 = vmatprep.subr.mxu0 0.0
    %2369 = vmatpush1.msra.mxu0 %v2360
    %2370 = vmatprep.subr.mxu0 0.0
    %2371 = vmatpush1.msra.mxu0 %v2361
    %2372 = vmatprep.subr.mxu0 0.0
    %2373 = vmatpush1.msra.mxu0 %v2362
    %2374 = vmatprep.subr.mxu0 0.0
    %2375 = vmatpush1.msra.mxu0 0.0
    %2376 = vmatprep.subr.mxu0 0.0
    %2377 = vmatpush1.msra.mxu0 0.0
    %2378 = vmatprep.subr.mxu0 0.0
    %2379 = vmatpush1.msra.mxu0 0.0
    %2380 = vmatprep.subr.mxu0 0.0
    %2381 = vmatpush1.msra.mxu0 0.0
    %2382 = vmatprep.subr.mxu0 0.0
    %2383 = vmatpush1.msra.mxu0 0.0
    %2384 = vmatprep.subr.mxu0 0.0
    %2385 = vmatpush1.msra.mxu0 0.0
    %2386 = vmatprep.subr.mxu0 0.0
    %2387 = vmatpush1.msra.mxu0 0.0
    %2388 = vmatprep.subr.mxu0 0.0
    %2389 = vmatpush1.msra.mxu0 0.0
    %2390 = vmatprep.subr.mxu0 0.0
    %2391 = vmatpush1.msra.mxu0 0.0
    %2392 = vmatprep.subr.mxu0 0.0
    %2393 = vmatpush1.msra.mxu0 0.0
    %2394 = vmatprep.subr.mxu0 0.0
    %2395 = vmatpush1.msra.mxu0 0.0
    %2396 = vmatprep.subr.mxu0 0.0
    %2397 = vmatpush1.msra.mxu0 0.0
    %2398 = vmatprep.subr.mxu0 0.0
    %2399 = vmatpush1.msra.mxu0 0.0
    %2400 = vmatprep.subr.mxu0 0.0
    %2401 = vmatpush1.msra.mxu0 0.0
    %2402 = vmatprep.subr.mxu0 0.0
    %2403 = vmatpush1.msra.mxu0 0.0
    %2404 = vmatprep.subr.mxu0 0.0
    %2405 = vmatpush1.msra.mxu0 0.0
    %2406 = vmatprep.subr.mxu0 0.0
    %2407 = vmatpush1.msra.mxu0 0.0
    %2408 = vmatprep.subr.mxu0 0.0
    %2409 = vmatpush1.msra.mxu0 0.0
    %2410 = vmatprep.subr.mxu0 0.0
    %2411 = vmatpush1.msra.mxu0 0.0
    %2412 = vmatprep.subr.mxu0 0.0
    %2413 = vmatpush1.msra.mxu0 0.0
    %2414 = vmatprep.subr.mxu0 0.0
    %2415 = vmatpush1.msra.mxu0 0.0
    %2416 = vmatprep.subr.mxu0 0.0
    %2417 = vmatpush1.msra.mxu0 0.0
    %2418 = vmatprep.subr.mxu0 0.0
    %2419 = vmatpush1.msra.mxu0 0.0
    %2420 = vmatprep.subr.mxu0 0.0
    %2421 = vmatpush1.msra.mxu0 0.0
    %2422 = vmatprep.subr.mxu0 0.0
    %2423 = vmatpush1.msra.mxu0 0.0
    %2424 = vmatprep.subr.mxu0 0.0
    %2425 = vmatpush1.msra.mxu0 0.0
    %2426 = vmatprep.subr.mxu0 0.0
    %2427 = vmatpush1.msra.mxu0 0.0
    %2428 = vmatprep.subr.mxu0 0.0
    %2429 = vmatpush1.msra.mxu0 0.0
    %2430 = vmatprep.mubr.f32.mxu0 0.0
    %2431 = vmatmul.mubr.f32.gmra.mrb[0].mxu0 %v2364
    %v2432 = vpop.f32.mrb[0].mxu0
    %v2433 = vadd.f32 %v2363, %v2432
    %v2434 = vpop.f32.mrb[0].mxu0
    %2435 = vdwg.mxu0
    %v2436 = vadd.f32 %v2356, %v2433
    %v2437 = vxor.u32 %v2436, 2147483648
    %v2438 = vmul.f32 %v2437, 1.442695
    %v2439 = vpow.pop %v2438
    %v2440 = vadd.f32 %v2439, 1.0
    %v2441 = vrcp.pop %v2440
    %v2442 = vmul.f32 1.0, %v2441
    %2444 = vrot.lane.b32.xlu0 %v2433, 64
    %v2445 = vpop.permute.xlu0 %2444
    %v2447 = vmul.f32 %v2442, %v2445
    %2449 = vrot.lane.b32.xlu0 %v2447, 64
    %v2450 = vpop.permute.xlu0 %2449
    %v2452 = vadd.f32 %v2356, %v2450
    %v2453 = vtanh.pop %v2452
    %v2454 = vsub.f32 1.0, %v2442
    %2456 = vrot.lane.b32.xlu0 %v2453, 96
    %v2457 = vpop.permute.xlu0 %2456
    %v2459 = vmul.f32 %v2454, %v2457
    %v2460 = vmul.f32 %v2442, %v2083
    %v2461 = vadd.f32 %v2459, %v2460
    %2463 = vrot.lane.b32.xlu0 %v2280, 96
    %v2464 = vpop.permute.xlu0 %2463
    %2466 = vst.msk [vmem:[#allocation2 + $0x5] sm:$0x1] %vm575, %v2464
    %2468 = vrot.lane.b32.xlu0 %v2461, 96
    %v2469 = vpop.permute.xlu0 %2468
    %2471 = vst.msk [vmem:[#allocation3 + $0x2] sm:$0x1] %vm575, %v2469
    %s2472 = sld [smem:[#allocation5 + $0x6]]
    %s2473 = scalar_lea.vmem %s1, %s2472
    %v2474 = vld [vmem:[%s2473] sm:$0x1]
    %s2475 = sld [smem:[#allocation5 + $0x1]]
    %s2476 = scalar_lea.vmem %s1, %s2475
    %v2477 = vld [vmem:[%s2476] sm:$0x1]
    %v2478 = vld [vmem:[%s2] sm:$0xff]
    %v2479 = vld [vmem:[%s2 + $0x8] sm:$0xff]
    %v2480 = vld [vmem:[%s2 + $0x10] sm:$0xff]
    %v2481 = vld [vmem:[%s2 + $0x18] sm:$0xff]
    %v2482 = vld [vmem:[#allocation6] sm:$0x1]
    %v2484 = vsel %vm214, %v2474, 0
    %2486 = vmatprep.subr.mxu0 0.0
    %2487 = vmatpush1.msra.mxu0 %v2478
    %2488 = vmatprep.subr.mxu0 0.0
    %2489 = vmatpush1.msra.mxu0 %v2479
    %2490 = vmatprep.subr.mxu0 0.0
    %2491 = vmatpush1.msra.mxu0 %v2480
    %2492 = vmatprep.subr.mxu0 0.0
    %2493 = vmatpush1.msra.mxu0 %v2481
    %2494 = vmatprep.subr.mxu0 0.0
    %2495 = vmatpush1.msra.mxu0 0.0
    %2496 = vmatprep.subr.mxu0 0.0
    %2497 = vmatpush1.msra.mxu0 0.0
    %2498 = vmatprep.subr.mxu0 0.0
    %2499 = vmatpush1.msra.mxu0 0.0
    %2500 = vmatprep.subr.mxu0 0.0
    %2501 = vmatpush1.msra.mxu0 0.0
    %2502 = vmatprep.subr.mxu0 0.0
    %2503 = vmatpush1.msra.mxu0 0.0
    %2504 = vmatprep.subr.mxu0 0.0
    %2505 = vmatpush1.msra.mxu0 0.0
    %2506 = vmatprep.subr.mxu0 0.0
    %2507 = vmatpush1.msra.mxu0 0.0
    %2508 = vmatprep.subr.mxu0 0.0
    %2509 = vmatpush1.msra.mxu0 0.0
    %2510 = vmatprep.subr.mxu0 0.0
    %2511 = vmatpush1.msra.mxu0 0.0
    %2512 = vmatprep.subr.mxu0 0.0
    %2513 = vmatpush1.msra.mxu0 0.0
    %2514 = vmatprep.subr.mxu0 0.0
    %2515 = vmatpush1.msra.mxu0 0.0
    %2516 = vmatprep.subr.mxu0 0.0
    %2517 = vmatpush1.msra.mxu0 0.0
    %2518 = vmatprep.subr.mxu0 0.0
    %2519 = vmatpush1.msra.mxu0 0.0
    %2520 = vmatprep.subr.mxu0 0.0
    %2521 = vmatpush1.msra.mxu0 0.0
    %2522 = vmatprep.subr.mxu0 0.0
    %2523 = vmatpush1.msra.mxu0 0.0
    %2524 = vmatprep.subr.mxu0 0.0
    %2525 = vmatpush1.msra.mxu0 0.0
    %2526 = vmatprep.subr.mxu0 0.0
    %2527 = vmatpush1.msra.mxu0 0.0
    %2528 = vmatprep.subr.mxu0 0.0
    %2529 = vmatpush1.msra.mxu0 0.0
    %2530 = vmatprep.subr.mxu0 0.0
    %2531 = vmatpush1.msra.mxu0 0.0
    %2532 = vmatprep.subr.mxu0 0.0
    %2533 = vmatpush1.msra.mxu0 0.0
    %2534 = vmatprep.subr.mxu0 0.0
    %2535 = vmatpush1.msra.mxu0 0.0
    %2536 = vmatprep.subr.mxu0 0.0
    %2537 = vmatpush1.msra.mxu0 0.0
    %2538 = vmatprep.subr.mxu0 0.0
    %2539 = vmatpush1.msra.mxu0 0.0
    %2540 = vmatprep.subr.mxu0 0.0
    %2541 = vmatpush1.msra.mxu0 0.0
    %2542 = vmatprep.subr.mxu0 0.0
    %2543 = vmatpush1.msra.mxu0 0.0
    %2544 = vmatprep.subr.mxu0 0.0
    %2545 = vmatpush1.msra.mxu0 0.0
    %2546 = vmatprep.subr.mxu0 0.0
    %2547 = vmatpush1.msra.mxu0 0.0
    %2548 = vmatprep.subr.mxu0 0.0
    %2549 = vmatpush1.msra.mxu0 0.0
    %2550 = vmatprep.mubr.f32.mxu0 0.0
    %2551 = vmatmul.mubr.f32.gmra.mrb[0].mxu0 %v2484
    %v2552 = vpop.f32.mrb[0].mxu0
    %v2553 = vadd.f32 %v2482, %v2552
    %v2554 = vpop.f32.mrb[0].mxu0
    %2555 = vdwg.mxu0
    %v2556 = vld [vmem:[%s3] sm:$0xff]
    %v2557 = vld [vmem:[%s3 + $0x8] sm:$0xff]
    %v2558 = vld [vmem:[%s3 + $0x10] sm:$0xff]
    %v2559 = vld [vmem:[%s3 + $0x18] sm:$0xff]
    %v2560 = vld [vmem:[#allocation9] sm:$0x1]
    %v2561 = vsel %vm214, %v2464, 0
    %2563 = vmatprep.subr.mxu0 0.0
    %2564 = vmatpush1.msra.mxu0 %v2556
    %2565 = vmatprep.subr.mxu0 0.0
    %2566 = vmatpush1.msra.mxu0 %v2557
    %2567 = vmatprep.subr.mxu0 0.0
    %2568 = vmatpush1.msra.mxu0 %v2558
    %2569 = vmatprep.subr.mxu0 0.0
    %2570 = vmatpush1.msra.mxu0 %v2559
    %2571 = vmatprep.subr.mxu0 0.0
    %2572 = vmatpush1.msra.mxu0 0.0
    %2573 = vmatprep.subr.mxu0 0.0
    %2574 = vmatpush1.msra.mxu0 0.0
    %2575 = vmatprep.subr.mxu0 0.0
    %2576 = vmatpush1.msra.mxu0 0.0
    %2577 = vmatprep.subr.mxu0 0.0
    %2578 = vmatpush1.msra.mxu0 0.0
    %2579 = vmatprep.subr.mxu0 0.0
    %2580 = vmatpush1.msra.mxu0 0.0
    %2581 = vmatprep.subr.mxu0 0.0
    %2582 = vmatpush1.msra.mxu0 0.0
    %2583 = vmatprep.subr.mxu0 0.0
    %2584 = vmatpush1.msra.mxu0 0.0
    %2585 = vmatprep.subr.mxu0 0.0
    %2586 = vmatpush1.msra.mxu0 0.0
    %2587 = vmatprep.subr.mxu0 0.0
    %2588 = vmatpush1.msra.mxu0 0.0
    %2589 = vmatprep.subr.mxu0 0.0
    %2590 = vmatpush1.msra.mxu0 0.0
    %2591 = vmatprep.subr.mxu0 0.0
    %2592 = vmatpush1.msra.mxu0 0.0
    %2593 = vmatprep.subr.mxu0 0.0
    %2594 = vmatpush1.msra.mxu0 0.0
    %2595 = vmatprep.subr.mxu0 0.0
    %2596 = vmatpush1.msra.mxu0 0.0
    %2597 = vmatprep.subr.mxu0 0.0
    %2598 = vmatpush1.msra.mxu0 0.0
    %2599 = vmatprep.subr.mxu0 0.0
    %2600 = vmatpush1.msra.mxu0 0.0
    %2601 = vmatprep.subr.mxu0 0.0
    %2602 = vmatpush1.msra.mxu0 0.0
    %2603 = vmatprep.subr.mxu0 0.0
    %2604 = vmatpush1.msra.mxu0 0.0
    %2605 = vmatprep.subr.mxu0 0.0
    %2606 = vmatpush1.msra.mxu0 0.0
    %2607 = vmatprep.subr.mxu0 0.0
    %2608 = vmatpush1.msra.mxu0 0.0
    %2609 = vmatprep.subr.mxu0 0.0
    %2610 = vmatpush1.msra.mxu0 0.0
    %2611 = vmatprep.subr.mxu0 0.0
    %2612 = vmatpush1.msra.mxu0 0.0
    %2613 = vmatprep.subr.mxu0 0.0
    %2614 = vmatpush1.msra.mxu0 0.0
    %2615 = vmatprep.subr.mxu0 0.0
    %2616 = vmatpush1.msra.mxu0 0.0
    %2617 = vmatprep.subr.mxu0 0.0
    %2618 = vmatpush1.msra.mxu0 0.0
    %2619 = vmatprep.subr.mxu0 0.0
    %2620 = vmatpush1.msra.mxu0 0.0
    %2621 = vmatprep.subr.mxu0 0.0
    %2622 = vmatpush1.msra.mxu0 0.0
    %2623 = vmatprep.subr.mxu0 0.0
    %2624 = vmatpush1.msra.mxu0 0.0
    %2625 = vmatprep.subr.mxu0 0.0
    %2626 = vmatpush1.msra.mxu0 0.0
    %2627 = vmatprep.mubr.f32.mxu0 0.0
    %2628 = vmatmul.mubr.f32.gmra.mrb[0].mxu0 %v2561
    %v2629 = vpop.f32.mrb[0].mxu0
    %v2630 = vadd.f32 %v2560, %v2629
    %v2631 = vpop.f32.mrb[0].mxu0
    %2632 = vdwg.mxu0
    %v2633 = vadd.f32 %v2553, %v2630
    %v2634 = vxor.u32 %v2633, 2147483648
    %v2635 = vmul.f32 %v2634, 1.442695
    %v2636 = vpow.pop %v2635
    %v2637 = vadd.f32 %v2636, 1.0
    %v2638 = vrcp.pop %v2637
    %v2639 = vmul.f32 1.0, %v2638
    %2641 = vrot.lane.b32.xlu0 %v2630, 64
    %v2642 = vpop.permute.xlu0 %2641
    %v2644 = vmul.f32 %v2639, %v2642
    %2646 = vrot.lane.b32.xlu0 %v2644, 64
    %v2647 = vpop.permute.xlu0 %2646
    %v2649 = vadd.f32 %v2553, %v2647
    %v2650 = vtanh.pop %v2649
    %v2651 = vsub.f32 1.0, %v2639
    %2653 = vrot.lane.b32.xlu0 %v2650, 96
    %v2654 = vpop.permute.xlu0 %2653
    %v2656 = vmul.f32 %v2651, %v2654
    %v2657 = vmul.f32 %v2639, %v2280
    %v2658 = vadd.f32 %v2656, %v2657
    %v2659 = vld [vmem:[%s6] sm:$0xff]
    %v2660 = vld [vmem:[%s6 + $0x8] sm:$0xff]
    %v2661 = vld [vmem:[%s6 + $0x10] sm:$0xff]
    %v2662 = vld [vmem:[%s6 + $0x18] sm:$0xff]
    %v2663 = vld [vmem:[#allocation12] sm:$0x1]
    %v2665 = vsel %vm214, %v2477, 0
    %2667 = vmatprep.subr.mxu0 0.0
    %2668 = vmatpush1.msra.mxu0 %v2659
    %2669 = vmatprep.subr.mxu0 0.0
    %2670 = vmatpush1.msra.mxu0 %v2660
    %2671 = vmatprep.subr.mxu0 0.0
    %2672 = vmatpush1.msra.mxu0 %v2661
    %2673 = vmatprep.subr.mxu0 0.0
    %2674 = vmatpush1.msra.mxu0 %v2662
    %2675 = vmatprep.subr.mxu0 0.0
    %2676 = vmatpush1.msra.mxu0 0.0
    %2677 = vmatprep.subr.mxu0 0.0
    %2678 = vmatpush1.msra.mxu0 0.0
    %2679 = vmatprep.subr.mxu0 0.0
    %2680 = vmatpush1.msra.mxu0 0.0
    %2681 = vmatprep.subr.mxu0 0.0
    %2682 = vmatpush1.msra.mxu0 0.0
    %2683 = vmatprep.subr.mxu0 0.0
    %2684 = vmatpush1.msra.mxu0 0.0
    %2685 = vmatprep.subr.mxu0 0.0
    %2686 = vmatpush1.msra.mxu0 0.0
    %2687 = vmatprep.subr.mxu0 0.0
    %2688 = vmatpush1.msra.mxu0 0.0
    %2689 = vmatprep.subr.mxu0 0.0
    %2690 = vmatpush1.msra.mxu0 0.0
    %2691 = vmatprep.subr.mxu0 0.0
    %2692 = vmatpush1.msra.mxu0 0.0
    %2693 = vmatprep.subr.mxu0 0.0
    %2694 = vmatpush1.msra.mxu0 0.0
    %2695 = vmatprep.subr.mxu0 0.0
    %2696 = vmatpush1.msra.mxu0 0.0
    %2697 = vmatprep.subr.mxu0 0.0
    %2698 = vmatpush1.msra.mxu0 0.0
    %2699 = vmatprep.subr.mxu0 0.0
    %2700 = vmatpush1.msra.mxu0 0.0
    %2701 = vmatprep.subr.mxu0 0.0
    %2702 = vmatpush1.msra.mxu0 0.0
    %2703 = vmatprep.subr.mxu0 0.0
    %2704 = vmatpush1.msra.mxu0 0.0
    %2705 = vmatprep.subr.mxu0 0.0
    %2706 = vmatpush1.msra.mxu0 0.0
    %2707 = vmatprep.subr.mxu0 0.0
    %2708 = vmatpush1.msra.mxu0 0.0
    %2709 = vmatprep.subr.mxu0 0.0
    %2710 = vmatpush1.msra.mxu0 0.0
    %2711 = vmatprep.subr.mxu0 0.0
    %2712 = vmatpush1.msra.mxu0 0.0
    %2713 = vmatprep.subr.mxu0 0.0
    %2714 = vmatpush1.msra.mxu0 0.0
    %2715 = vmatprep.subr.mxu0 0.0
    %2716 = vmatpush1.msra.mxu0 0.0
    %2717 = vmatprep.subr.mxu0 0.0
    %2718 = vmatpush1.msra.mxu0 0.0
    %2719 = vmatprep.subr.mxu0 0.0
    %2720 = vmatpush1.msra.mxu0 0.0
    %2721 = vmatprep.subr.mxu0 0.0
    %2722 = vmatpush1.msra.mxu0 0.0
    %2723 = vmatprep.subr.mxu0 0.0
    %2724 = vmatpush1.msra.mxu0 0.0
    %2725 = vmatprep.subr.mxu0 0.0
    %2726 = vmatpush1.msra.mxu0 0.0
    %2727 = vmatprep.subr.mxu0 0.0
    %2728 = vmatpush1.msra.mxu0 0.0
    %2729 = vmatprep.subr.mxu0 0.0
    %2730 = vmatpush1.msra.mxu0 0.0
    %2731 = vmatprep.mubr.f32.mxu0 0.0
    %2732 = vmatmul.mubr.f32.gmra.mrb[0].mxu0 %v2665
    %v2733 = vpop.f32.mrb[0].mxu0
    %v2734 = vadd.f32 %v2663, %v2733
    %v2735 = vpop.f32.mrb[0].mxu0
    %2736 = vdwg.mxu0
    %v2737 = vld [vmem:[#allocation11] sm:$0xff]
    %v2738 = vld [vmem:[#allocation11 + $0x8] sm:$0xff]
    %v2739 = vld [vmem:[#allocation11 + $0x10] sm:$0xff]
    %v2740 = vld [vmem:[#allocation11 + $0x18] sm:$0xff]
    %v2741 = vld [vmem:[#allocation14] sm:$0x1]
    %v2742 = vsel %vm214, %v2469, 0
    %2744 = vmatprep.subr.mxu0 0.0
    %2745 = vmatpush1.msra.mxu0 %v2737
    %2746 = vmatprep.subr.mxu0 0.0
    %2747 = vmatpush1.msra.mxu0 %v2738
    %2748 = vmatprep.subr.mxu0 0.0
    %2749 = vmatpush1.msra.mxu0 %v2739
    %2750 = vmatprep.subr.mxu0 0.0
    %2751 = vmatpush1.msra.mxu0 %v2740
    %2752 = vmatprep.subr.mxu0 0.0
    %2753 = vmatpush1.msra.mxu0 0.0
    %2754 = vmatprep.subr.mxu0 0.0
    %2755 = vmatpush1.msra.mxu0 0.0
    %2756 = vmatprep.subr.mxu0 0.0
    %2757 = vmatpush1.msra.mxu0 0.0
    %2758 = vmatprep.subr.mxu0 0.0
    %2759 = vmatpush1.msra.mxu0 0.0
    %2760 = vmatprep.subr.mxu0 0.0
    %2761 = vmatpush1.msra.mxu0 0.0
    %2762 = vmatprep.subr.mxu0 0.0
    %2763 = vmatpush1.msra.mxu0 0.0
    %2764 = vmatprep.subr.mxu0 0.0
    %2765 = vmatpush1.msra.mxu0 0.0
    %2766 = vmatprep.subr.mxu0 0.0
    %2767 = vmatpush1.msra.mxu0 0.0
    %2768 = vmatprep.subr.mxu0 0.0
    %2769 = vmatpush1.msra.mxu0 0.0
    %2770 = vmatprep.subr.mxu0 0.0
    %2771 = vmatpush1.msra.mxu0 0.0
    %2772 = vmatprep.subr.mxu0 0.0
    %2773 = vmatpush1.msra.mxu0 0.0
    %2774 = vmatprep.subr.mxu0 0.0
    %2775 = vmatpush1.msra.mxu0 0.0
    %2776 = vmatprep.subr.mxu0 0.0
    %2777 = vmatpush1.msra.mxu0 0.0
    %2778 = vmatprep.subr.mxu0 0.0
    %2779 = vmatpush1.msra.mxu0 0.0
    %2780 = vmatprep.subr.mxu0 0.0
    %2781 = vmatpush1.msra.mxu0 0.0
    %2782 = vmatprep.subr.mxu0 0.0
    %2783 = vmatpush1.msra.mxu0 0.0
    %2784 = vmatprep.subr.mxu0 0.0
    %2785 = vmatpush1.msra.mxu0 0.0
    %2786 = vmatprep.subr.mxu0 0.0
    %2787 = vmatpush1.msra.mxu0 0.0
    %2788 = vmatprep.subr.mxu0 0.0
    %2789 = vmatpush1.msra.mxu0 0.0
    %2790 = vmatprep.subr.mxu0 0.0
    %2791 = vmatpush1.msra.mxu0 0.0
    %2792 = vmatprep.subr.mxu0 0.0
    %2793 = vmatpush1.msra.mxu0 0.0
    %2794 = vmatprep.subr.mxu0 0.0
    %2795 = vmatpush1.msra.mxu0 0.0
    %2796 = vmatprep.subr.mxu0 0.0
    %2797 = vmatpush1.msra.mxu0 0.0
    %2798 = vmatprep.subr.mxu0 0.0
    %2799 = vmatpush1.msra.mxu0 0.0
    %2800 = vmatprep.subr.mxu0 0.0
    %2801 = vmatpush1.msra.mxu0 0.0
    %2802 = vmatprep.subr.mxu0 0.0
    %2803 = vmatpush1.msra.mxu0 0.0
    %2804 = vmatprep.subr.mxu0 0.0
    %2805 = vmatpush1.msra.mxu0 0.0
    %2806 = vmatprep.subr.mxu0 0.0
    %2807 = vmatpush1.msra.mxu0 0.0
    %2808 = vmatprep.mubr.f32.mxu0 0.0
    %2809 = vmatmul.mubr.f32.gmra.mrb[0].mxu0 %v2742
    %v2810 = vpop.f32.mrb[0].mxu0
    %v2811 = vadd.f32 %v2741, %v2810
    %v2812 = vpop.f32.mrb[0].mxu0
    %2813 = vdwg.mxu0
    %v2814 = vadd.f32 %v2734, %v2811
    %v2815 = vxor.u32 %v2814, 2147483648
    %v2816 = vmul.f32 %v2815, 1.442695
    %v2817 = vpow.pop %v2816
    %v2818 = vadd.f32 %v2817, 1.0
    %v2819 = vrcp.pop %v2818
    %v2820 = vmul.f32 1.0, %v2819
    %2822 = vrot.lane.b32.xlu0 %v2811, 64
    %v2823 = vpop.permute.xlu0 %2822
    %v2825 = vmul.f32 %v2820, %v2823
    %2827 = vrot.lane.b32.xlu0 %v2825, 64
    %v2828 = vpop.permute.xlu0 %2827
    %v2830 = vadd.f32 %v2734, %v2828
    %v2831 = vtanh.pop %v2830
    %v2832 = vsub.f32 1.0, %v2820
    %2834 = vrot.lane.b32.xlu0 %v2831, 96
    %v2835 = vpop.permute.xlu0 %2834
    %v2837 = vmul.f32 %v2832, %v2835
    %v2838 = vmul.f32 %v2820, %v2461
    %v2839 = vadd.f32 %v2837, %v2838
    %2841 = vrot.lane.b32.xlu0 %v2658, 96
    %v2842 = vpop.permute.xlu0 %2841
    %2844 = vst.msk [vmem:[#allocation2 + $0x6] sm:$0x1] %vm575, %v2842
    %2846 = vrot.lane.b32.xlu0 %v2839, 96
    %v2847 = vpop.permute.xlu0 %2846
    %2849 = vst.msk [vmem:[#allocation3 + $0x1] sm:$0x1] %vm575, %v2847
    %s2850 = sld [smem:[#allocation5 + $0x7]]
    %s2851 = scalar_lea.vmem %s1, %s2850
    %v2852 = vld [vmem:[%s2851] sm:$0x1]
    %s2853 = sld [smem:[#allocation5]]
    %s2854 = scalar_lea.vmem %s1, %s2853
    %v2855 = vld [vmem:[%s2854] sm:$0x1]
    %v2856 = vld [vmem:[%s2] sm:$0xff]
    %v2857 = vld [vmem:[%s2 + $0x8] sm:$0xff]
    %v2858 = vld [vmem:[%s2 + $0x10] sm:$0xff]
    %v2859 = vld [vmem:[%s2 + $0x18] sm:$0xff]
    %v2860 = vld [vmem:[#allocation6] sm:$0x1]
    %v2862 = vsel %vm214, %v2852, 0
    %2864 = vmatprep.subr.mxu0 0.0
    %2865 = vmatpush1.msra.mxu0 %v2856
    %2866 = vmatprep.subr.mxu0 0.0
    %2867 = vmatpush1.msra.mxu0 %v2857
    %2868 = vmatprep.subr.mxu0 0.0
    %2869 = vmatpush1.msra.mxu0 %v2858
    %2870 = vmatprep.subr.mxu0 0.0
    %2871 = vmatpush1.msra.mxu0 %v2859
    %2872 = vmatprep.subr.mxu0 0.0
    %2873 = vmatpush1.msra.mxu0 0.0
    %2874 = vmatprep.subr.mxu0 0.0
    %2875 = vmatpush1.msra.mxu0 0.0
    %2876 = vmatprep.subr.mxu0 0.0
    %2877 = vmatpush1.msra.mxu0 0.0
    %2878 = vmatprep.subr.mxu0 0.0
    %2879 = vmatpush1.msra.mxu0 0.0
    %2880 = vmatprep.subr.mxu0 0.0
    %2881 = vmatpush1.msra.mxu0 0.0
    %2882 = vmatprep.subr.mxu0 0.0
    %2883 = vmatpush1.msra.mxu0 0.0
    %2884 = vmatprep.subr.mxu0 0.0
    %2885 = vmatpush1.msra.mxu0 0.0
    %2886 = vmatprep.subr.mxu0 0.0
    %2887 = vmatpush1.msra.mxu0 0.0
    %2888 = vmatprep.subr.mxu0 0.0
    %2889 = vmatpush1.msra.mxu0 0.0
    %2890 = vmatprep.subr.mxu0 0.0
    %2891 = vmatpush1.msra.mxu0 0.0
    %2892 = vmatprep.subr.mxu0 0.0
    %2893 = vmatpush1.msra.mxu0 0.0
    %2894 = vmatprep.subr.mxu0 0.0
    %2895 = vmatpush1.msra.mxu0 0.0
    %2896 = vmatprep.subr.mxu0 0.0
    %2897 = vmatpush1.msra.mxu0 0.0
    %2898 = vmatprep.subr.mxu0 0.0
    %2899 = vmatpush1.msra.mxu0 0.0
    %2900 = vmatprep.subr.mxu0 0.0
    %2901 = vmatpush1.msra.mxu0 0.0
    %2902 = vmatprep.subr.mxu0 0.0
    %2903 = vmatpush1.msra.mxu0 0.0
    %2904 = vmatprep.subr.mxu0 0.0
    %2905 = vmatpush1.msra.mxu0 0.0
    %2906 = vmatprep.subr.mxu0 0.0
    %2907 = vmatpush1.msra.mxu0 0.0
    %2908 = vmatprep.subr.mxu0 0.0
    %2909 = vmatpush1.msra.mxu0 0.0
    %2910 = vmatprep.subr.mxu0 0.0
    %2911 = vmatpush1.msra.mxu0 0.0
    %2912 = vmatprep.subr.mxu0 0.0
    %2913 = vmatpush1.msra.mxu0 0.0
    %2914 = vmatprep.subr.mxu0 0.0
    %2915 = vmatpush1.msra.mxu0 0.0
    %2916 = vmatprep.subr.mxu0 0.0
    %2917 = vmatpush1.msra.mxu0 0.0
    %2918 = vmatprep.subr.mxu0 0.0
    %2919 = vmatpush1.msra.mxu0 0.0
    %2920 = vmatprep.subr.mxu0 0.0
    %2921 = vmatpush1.msra.mxu0 0.0
    %2922 = vmatprep.subr.mxu0 0.0
    %2923 = vmatpush1.msra.mxu0 0.0
    %2924 = vmatprep.subr.mxu0 0.0
    %2925 = vmatpush1.msra.mxu0 0.0
    %2926 = vmatprep.subr.mxu0 0.0
    %2927 = vmatpush1.msra.mxu0 0.0
    %2928 = vmatprep.mubr.f32.mxu0 0.0
    %2929 = vmatmul.mubr.f32.gmra.mrb[0].mxu0 %v2862
    %v2930 = vpop.f32.mrb[0].mxu0
    %v2931 = vadd.f32 %v2860, %v2930
    %v2932 = vpop.f32.mrb[0].mxu0
    %2933 = vdwg.mxu0
    %v2934 = vld [vmem:[%s3] sm:$0xff]
    %v2935 = vld [vmem:[%s3 + $0x8] sm:$0xff]
    %v2936 = vld [vmem:[%s3 + $0x10] sm:$0xff]
    %v2937 = vld [vmem:[%s3 + $0x18] sm:$0xff]
    %v2938 = vld [vmem:[#allocation9] sm:$0x1]
    %v2939 = vsel %vm214, %v2842, 0
    %2941 = vmatprep.subr.mxu0 0.0
    %2942 = vmatpush1.msra.mxu0 %v2934
    %2943 = vmatprep.subr.mxu0 0.0
    %2944 = vmatpush1.msra.mxu0 %v2935
    %2945 = vmatprep.subr.mxu0 0.0
    %2946 = vmatpush1.msra.mxu0 %v2936
    %2947 = vmatprep.subr.mxu0 0.0
    %2948 = vmatpush1.msra.mxu0 %v2937
    %2949 = vmatprep.subr.mxu0 0.0
    %2950 = vmatpush1.msra.mxu0 0.0
    %2951 = vmatprep.subr.mxu0 0.0
    %2952 = vmatpush1.msra.mxu0 0.0
    %2953 = vmatprep.subr.mxu0 0.0
    %2954 = vmatpush1.msra.mxu0 0.0
    %2955 = vmatprep.subr.mxu0 0.0
    %2956 = vmatpush1.msra.mxu0 0.0
    %2957 = vmatprep.subr.mxu0 0.0
    %2958 = vmatpush1.msra.mxu0 0.0
    %2959 = vmatprep.subr.mxu0 0.0
    %2960 = vmatpush1.msra.mxu0 0.0
    %2961 = vmatprep.subr.mxu0 0.0
    %2962 = vmatpush1.msra.mxu0 0.0
    %2963 = vmatprep.subr.mxu0 0.0
    %2964 = vmatpush1.msra.mxu0 0.0
    %2965 = vmatprep.subr.mxu0 0.0
    %2966 = vmatpush1.msra.mxu0 0.0
    %2967 = vmatprep.subr.mxu0 0.0
    %2968 = vmatpush1.msra.mxu0 0.0
    %2969 = vmatprep.subr.mxu0 0.0
    %2970 = vmatpush1.msra.mxu0 0.0
    %2971 = vmatprep.subr.mxu0 0.0
    %2972 = vmatpush1.msra.mxu0 0.0
    %2973 = vmatprep.subr.mxu0 0.0
    %2974 = vmatpush1.msra.mxu0 0.0
    %2975 = vmatprep.subr.mxu0 0.0
    %2976 = vmatpush1.msra.mxu0 0.0
    %2977 = vmatprep.subr.mxu0 0.0
    %2978 = vmatpush1.msra.mxu0 0.0
    %2979 = vmatprep.subr.mxu0 0.0
    %2980 = vmatpush1.msra.mxu0 0.0
    %2981 = vmatprep.subr.mxu0 0.0
    %2982 = vmatpush1.msra.mxu0 0.0
    %2983 = vmatprep.subr.mxu0 0.0
    %2984 = vmatpush1.msra.mxu0 0.0
    %2985 = vmatprep.subr.mxu0 0.0
    %2986 = vmatpush1.msra.mxu0 0.0
    %2987 = vmatprep.subr.mxu0 0.0
    %2988 = vmatpush1.msra.mxu0 0.0
    %2989 = vmatprep.subr.mxu0 0.0
    %2990 = vmatpush1.msra.mxu0 0.0
    %2991 = vmatprep.subr.mxu0 0.0
    %2992 = vmatpush1.msra.mxu0 0.0
    %2993 = vmatprep.subr.mxu0 0.0
    %2994 = vmatpush1.msra.mxu0 0.0
    %2995 = vmatprep.subr.mxu0 0.0
    %2996 = vmatpush1.msra.mxu0 0.0
    %2997 = vmatprep.subr.mxu0 0.0
    %2998 = vmatpush1.msra.mxu0 0.0
    %2999 = vmatprep.subr.mxu0 0.0
    %3000 = vmatpush1.msra.mxu0 0.0
    %3001 = vmatprep.subr.mxu0 0.0
    %3002 = vmatpush1.msra.mxu0 0.0
    %3003 = vmatprep.subr.mxu0 0.0
    %3004 = vmatpush1.msra.mxu0 0.0
    %3005 = vmatprep.mubr.f32.mxu0 0.0
    %3006 = vmatmul.mubr.f32.gmra.mrb[0].mxu0 %v2939
    %v3007 = vpop.f32.mrb[0].mxu0
    %v3008 = vadd.f32 %v2938, %v3007
    %v3009 = vpop.f32.mrb[0].mxu0
    %3010 = vdwg.mxu0
    %v3011 = vadd.f32 %v2931, %v3008
    %v3012 = vxor.u32 %v3011, 2147483648
    %v3013 = vmul.f32 %v3012, 1.442695
    %v3014 = vpow.pop %v3013
    %v3015 = vadd.f32 %v3014, 1.0
    %v3016 = vrcp.pop %v3015
    %v3017 = vmul.f32 1.0, %v3016
    %3019 = vrot.lane.b32.xlu0 %v3008, 64
    %v3020 = vpop.permute.xlu0 %3019
    %v3022 = vmul.f32 %v3017, %v3020
    %3024 = vrot.lane.b32.xlu0 %v3022, 64
    %v3025 = vpop.permute.xlu0 %3024
    %v3027 = vadd.f32 %v2931, %v3025
    %v3028 = vtanh.pop %v3027
    %v3029 = vsub.f32 1.0, %v3017
    %3031 = vrot.lane.b32.xlu0 %v3028, 96
    %v3032 = vpop.permute.xlu0 %3031
    %v3034 = vmul.f32 %v3029, %v3032
    %v3035 = vmul.f32 %v3017, %v2658
    %v3036 = vadd.f32 %v3034, %v3035
    %v3037 = vld [vmem:[%s6] sm:$0xff]
    %v3038 = vld [vmem:[%s6 + $0x8] sm:$0xff]
    %v3039 = vld [vmem:[%s6 + $0x10] sm:$0xff]
    %v3040 = vld [vmem:[%s6 + $0x18] sm:$0xff]
    %v3041 = vld [vmem:[#allocation12] sm:$0x1]
    %v3043 = vsel %vm214, %v2855, 0
    %3045 = vmatprep.subr.mxu0 0.0
    %3046 = vmatpush1.msra.mxu0 %v3037
    %3047 = vmatprep.subr.mxu0 0.0
    %3048 = vmatpush1.msra.mxu0 %v3038
    %3049 = vmatprep.subr.mxu0 0.0
    %3050 = vmatpush1.msra.mxu0 %v3039
    %3051 = vmatprep.subr.mxu0 0.0
    %3052 = vmatpush1.msra.mxu0 %v3040
    %3053 = vmatprep.subr.mxu0 0.0
    %3054 = vmatpush1.msra.mxu0 0.0
    %3055 = vmatprep.subr.mxu0 0.0
    %3056 = vmatpush1.msra.mxu0 0.0
    %3057 = vmatprep.subr.mxu0 0.0
    %3058 = vmatpush1.msra.mxu0 0.0
    %3059 = vmatprep.subr.mxu0 0.0
    %3060 = vmatpush1.msra.mxu0 0.0
    %3061 = vmatprep.subr.mxu0 0.0
    %3062 = vmatpush1.msra.mxu0 0.0
    %3063 = vmatprep.subr.mxu0 0.0
    %3064 = vmatpush1.msra.mxu0 0.0
    %3065 = vmatprep.subr.mxu0 0.0
    %3066 = vmatpush1.msra.mxu0 0.0
    %3067 = vmatprep.subr.mxu0 0.0
    %3068 = vmatpush1.msra.mxu0 0.0
    %3069 = vmatprep.subr.mxu0 0.0
    %3070 = vmatpush1.msra.mxu0 0.0
    %3071 = vmatprep.subr.mxu0 0.0
    %3072 = vmatpush1.msra.mxu0 0.0
    %3073 = vmatprep.subr.mxu0 0.0
    %3074 = vmatpush1.msra.mxu0 0.0
    %3075 = vmatprep.subr.mxu0 0.0
    %3076 = vmatpush1.msra.mxu0 0.0
    %3077 = vmatprep.subr.mxu0 0.0
    %3078 = vmatpush1.msra.mxu0 0.0
    %3079 = vmatprep.subr.mxu0 0.0
    %3080 = vmatpush1.msra.mxu0 0.0
    %3081 = vmatprep.subr.mxu0 0.0
    %3082 = vmatpush1.msra.mxu0 0.0
    %3083 = vmatprep.subr.mxu0 0.0
    %3084 = vmatpush1.msra.mxu0 0.0
    %3085 = vmatprep.subr.mxu0 0.0
    %3086 = vmatpush1.msra.mxu0 0.0
    %3087 = vmatprep.subr.mxu0 0.0
    %3088 = vmatpush1.msra.mxu0 0.0
    %3089 = vmatprep.subr.mxu0 0.0
    %3090 = vmatpush1.msra.mxu0 0.0
    %3091 = vmatprep.subr.mxu0 0.0
    %3092 = vmatpush1.msra.mxu0 0.0
    %3093 = vmatprep.subr.mxu0 0.0
    %3094 = vmatpush1.msra.mxu0 0.0
    %3095 = vmatprep.subr.mxu0 0.0
    %3096 = vmatpush1.msra.mxu0 0.0
    %3097 = vmatprep.subr.mxu0 0.0
    %3098 = vmatpush1.msra.mxu0 0.0
    %3099 = vmatprep.subr.mxu0 0.0
    %3100 = vmatpush1.msra.mxu0 0.0
    %3101 = vmatprep.subr.mxu0 0.0
    %3102 = vmatpush1.msra.mxu0 0.0
    %3103 = vmatprep.subr.mxu0 0.0
    %3104 = vmatpush1.msra.mxu0 0.0
    %3105 = vmatprep.subr.mxu0 0.0
    %3106 = vmatpush1.msra.mxu0 0.0
    %3107 = vmatprep.subr.mxu0 0.0
    %3108 = vmatpush1.msra.mxu0 0.0
    %3109 = vmatprep.mubr.f32.mxu0 0.0
    %3110 = vmatmul.mubr.f32.gmra.mrb[0].mxu0 %v3043
    %v3111 = vpop.f32.mrb[0].mxu0
    %v3112 = vadd.f32 %v3041, %v3111
    %v3113 = vpop.f32.mrb[0].mxu0
    %3114 = vdwg.mxu0
    %v3115 = vld [vmem:[#allocation11] sm:$0xff]
    %v3116 = vld [vmem:[#allocation11 + $0x8] sm:$0xff]
    %v3117 = vld [vmem:[#allocation11 + $0x10] sm:$0xff]
    %v3118 = vld [vmem:[#allocation11 + $0x18] sm:$0xff]
    %v3119 = vld [vmem:[#allocation14] sm:$0x1]
    %v3120 = vsel %vm214, %v2847, 0
    %3122 = vmatprep.subr.mxu0 0.0
    %3123 = vmatpush1.msra.mxu0 %v3115
    %3124 = vmatprep.subr.mxu0 0.0
    %3125 = vmatpush1.msra.mxu0 %v3116
    %3126 = vmatprep.subr.mxu0 0.0
    %3127 = vmatpush1.msra.mxu0 %v3117
    %3128 = vmatprep.subr.mxu0 0.0
    %3129 = vmatpush1.msra.mxu0 %v3118
    %3130 = vmatprep.subr.mxu0 0.0
    %3131 = vmatpush1.msra.mxu0 0.0
    %3132 = vmatprep.subr.mxu0 0.0
    %3133 = vmatpush1.msra.mxu0 0.0
    %3134 = vmatprep.subr.mxu0 0.0
    %3135 = vmatpush1.msra.mxu0 0.0
    %3136 = vmatprep.subr.mxu0 0.0
    %3137 = vmatpush1.msra.mxu0 0.0
    %3138 = vmatprep.subr.mxu0 0.0
    %3139 = vmatpush1.msra.mxu0 0.0
    %3140 = vmatprep.subr.mxu0 0.0
    %3141 = vmatpush1.msra.mxu0 0.0
    %3142 = vmatprep.subr.mxu0 0.0
    %3143 = vmatpush1.msra.mxu0 0.0
    %3144 = vmatprep.subr.mxu0 0.0
    %3145 = vmatpush1.msra.mxu0 0.0
    %3146 = vmatprep.subr.mxu0 0.0
    %3147 = vmatpush1.msra.mxu0 0.0
    %3148 = vmatprep.subr.mxu0 0.0
    %3149 = vmatpush1.msra.mxu0 0.0
    %3150 = vmatprep.subr.mxu0 0.0
    %3151 = vmatpush1.msra.mxu0 0.0
    %3152 = vmatprep.subr.mxu0 0.0
    %3153 = vmatpush1.msra.mxu0 0.0
    %3154 = vmatprep.subr.mxu0 0.0
    %3155 = vmatpush1.msra.mxu0 0.0
    %3156 = vmatprep.subr.mxu0 0.0
    %3157 = vmatpush1.msra.mxu0 0.0
    %3158 = vmatprep.subr.mxu0 0.0
    %3159 = vmatpush1.msra.mxu0 0.0
    %3160 = vmatprep.subr.mxu0 0.0
    %3161 = vmatpush1.msra.mxu0 0.0
    %3162 = vmatprep.subr.mxu0 0.0
    %3163 = vmatpush1.msra.mxu0 0.0
    %3164 = vmatprep.subr.mxu0 0.0
    %3165 = vmatpush1.msra.mxu0 0.0
    %3166 = vmatprep.subr.mxu0 0.0
    %3167 = vmatpush1.msra.mxu0 0.0
    %3168 = vmatprep.subr.mxu0 0.0
    %3169 = vmatpush1.msra.mxu0 0.0
    %3170 = vmatprep.subr.mxu0 0.0
    %3171 = vmatpush1.msra.mxu0 0.0
    %3172 = vmatprep.subr.mxu0 0.0
    %3173 = vmatpush1.msra.mxu0 0.0
    %3174 = vmatprep.subr.mxu0 0.0
    %3175 = vmatpush1.msra.mxu0 0.0
    %3176 = vmatprep.subr.mxu0 0.0
    %3177 = vmatpush1.msra.mxu0 0.0
    %3178 = vmatprep.subr.mxu0 0.0
    %3179 = vmatpush1.msra.mxu0 0.0
    %3180 = vmatprep.subr.mxu0 0.0
    %3181 = vmatpush1.msra.mxu0 0.0
    %3182 = vmatprep.subr.mxu0 0.0
    %3183 = vmatpush1.msra.mxu0 0.0
    %3184 = vmatprep.subr.mxu0 0.0
    %3185 = vmatpush1.msra.mxu0 0.0
    %3186 = vmatprep.mubr.f32.mxu0 0.0
    %3187 = vmatmul.mubr.f32.gmra.mrb[0].mxu0 %v3120
    %v3188 = vpop.f32.mrb[0].mxu0
    %v3189 = vadd.f32 %v3119, %v3188
    %v3190 = vpop.f32.mrb[0].mxu0
    %3191 = vdwg.mxu0
    %v3192 = vadd.f32 %v3112, %v3189
    %v3193 = vxor.u32 %v3192, 2147483648
    %v3194 = vmul.f32 %v3193, 1.442695
    %v3195 = vpow.pop %v3194
    %v3196 = vadd.f32 %v3195, 1.0
    %v3197 = vrcp.pop %v3196
    %v3198 = vmul.f32 1.0, %v3197
    %3200 = vrot.lane.b32.xlu0 %v3189, 64
    %v3201 = vpop.permute.xlu0 %3200
    %v3203 = vmul.f32 %v3198, %v3201
    %3205 = vrot.lane.b32.xlu0 %v3203, 64
    %v3206 = vpop.permute.xlu0 %3205
    %v3208 = vadd.f32 %v3112, %v3206
    %v3209 = vtanh.pop %v3208
    %v3210 = vsub.f32 1.0, %v3198
    %3212 = vrot.lane.b32.xlu0 %v3209, 96
    %v3213 = vpop.permute.xlu0 %3212
    %v3215 = vmul.f32 %v3210, %v3213
    %v3216 = vmul.f32 %v3198, %v2839
    %v3217 = vadd.f32 %v3215, %v3216
    %3219 = vrot.lane.b32.xlu0 %v3036, 96
    %v3220 = vpop.permute.xlu0 %3219
    %3222 = vst.msk [vmem:[#allocation2 + $0x7] sm:$0x1] %vm575, %v3220
    %3224 = vrot.lane.b32.xlu0 %v3217, 96
    %v3225 = vpop.permute.xlu0 %3224
    %3227 = vst.msk [vmem:[#allocation3] sm:$0x1] %vm575, %v3225
    %v3228 = vld [vmem:[#allocation2] sm:$0xff]
    %v3229 = vld [vmem:[#allocation3] sm:$0xff]
    %v3230 = vadd.f32 %v3228, %v3229
    %v3231 = vlaneseq
    %v3232 = vand.u32 %v3231, 127
    %v3233 = vld [vmem:[%s1 + $0x1] sm:$0x1]
    %v3234 = vld [vmem:[%s10] sm:$0xff]
    %v3235 = vld [vmem:[%s10 + $0x8] sm:$0xff]
    %v3236 = vld [vmem:[%s10 + $0x10] sm:$0xff]
    %v3237 = vld [vmem:[%s10 + $0x18] sm:$0xff]
    %v3238 = vld [vmem:[#allocation17] sm:$0x1]
    %v3240 = vsel %vm214, %v3233, 0
    %3242 = vmatprep.subr.mxu0 0.0
    %3243 = vmatpush1.msra.mxu0 %v3234
    %3244 = vmatprep.subr.mxu0 0.0
    %3245 = vmatpush1.msra.mxu0 %v3235
    %3246 = vmatprep.subr.mxu0 0.0
    %3247 = vmatpush1.msra.mxu0 %v3236
    %3248 = vmatprep.subr.mxu0 0.0
    %3249 = vmatpush1.msra.mxu0 %v3237
    %3250 = vmatprep.subr.mxu0 0.0
    %3251 = vmatpush1.msra.mxu0 0.0
    %3252 = vmatprep.subr.mxu0 0.0
    %3253 = vmatpush1.msra.mxu0 0.0
    %3254 = vmatprep.subr.mxu0 0.0
    %3255 = vmatpush1.msra.mxu0 0.0
    %3256 = vmatprep.subr.mxu0 0.0
    %3257 = vmatpush1.msra.mxu0 0.0
    %3258 = vmatprep.subr.mxu0 0.0
    %3259 = vmatpush1.msra.mxu0 0.0
    %3260 = vmatprep.subr.mxu0 0.0
    %3261 = vmatpush1.msra.mxu0 0.0
    %3262 = vmatprep.subr.mxu0 0.0
    %3263 = vmatpush1.msra.mxu0 0.0
    %3264 = vmatprep.subr.mxu0 0.0
    %3265 = vmatpush1.msra.mxu0 0.0
    %3266 = vmatprep.subr.mxu0 0.0
    %3267 = vmatpush1.msra.mxu0 0.0
    %3268 = vmatprep.subr.mxu0 0.0
    %3269 = vmatpush1.msra.mxu0 0.0
    %3270 = vmatprep.subr.mxu0 0.0
    %3271 = vmatpush1.msra.mxu0 0.0
    %3272 = vmatprep.subr.mxu0 0.0
    %3273 = vmatpush1.msra.mxu0 0.0
    %3274 = vmatprep.subr.mxu0 0.0
    %3275 = vmatpush1.msra.mxu0 0.0
    %3276 = vmatprep.subr.mxu0 0.0
    %3277 = vmatpush1.msra.mxu0 0.0
    %3278 = vmatprep.subr.mxu0 0.0
    %3279 = vmatpush1.msra.mxu0 0.0
    %3280 = vmatprep.subr.mxu0 0.0
    %3281 = vmatpush1.msra.mxu0 0.0
    %3282 = vmatprep.subr.mxu0 0.0
    %3283 = vmatpush1.msra.mxu0 0.0
    %3284 = vmatprep.subr.mxu0 0.0
    %3285 = vmatpush1.msra.mxu0 0.0
    %3286 = vmatprep.subr.mxu0 0.0
    %3287 = vmatpush1.msra.mxu0 0.0
    %3288 = vmatprep.subr.mxu0 0.0
    %3289 = vmatpush1.msra.mxu0 0.0
    %3290 = vmatprep.subr.mxu0 0.0
    %3291 = vmatpush1.msra.mxu0 0.0
    %3292 = vmatprep.subr.mxu0 0.0
    %3293 = vmatpush1.msra.mxu0 0.0
    %3294 = vmatprep.subr.mxu0 0.0
    %3295 = vmatpush1.msra.mxu0 0.0
    %3296 = vmatprep.subr.mxu0 0.0
    %3297 = vmatpush1.msra.mxu0 0.0
    %3298 = vmatprep.subr.mxu0 0.0
    %3299 = vmatpush1.msra.mxu0 0.0
    %3300 = vmatprep.subr.mxu0 0.0
    %3301 = vmatpush1.msra.mxu0 0.0
    %3302 = vmatprep.subr.mxu0 0.0
    %3303 = vmatpush1.msra.mxu0 0.0
    %3304 = vmatprep.subr.mxu0 0.0
    %3305 = vmatpush1.msra.mxu0 0.0
    %3306 = vmatprep.mubr.f32.mxu0 0.0
    %3307 = vmatmul.mubr.f32.gmra.mrb[0].mxu0 %v3240
    %v3308 = vpop.f32.mrb[0].mxu0
    %v3309 = vadd.f32 %v3238, %v3308
    %v3310 = vpop.f32.mrb[0].mxu0
    %3311 = vdwg.mxu0
    %v3312 = vld [vmem:[#allocation15] sm:$0xff]
    %v3313 = vld [vmem:[#allocation15 + $0x8] sm:$0xff]
    %v3314 = vld [vmem:[#allocation15 + $0x10] sm:$0xff]
    %v3315 = vld [vmem:[#allocation15 + $0x18] sm:$0xff]
    %v3316 = vld [vmem:[#allocation18] sm:$0x1]
    %v3317 = vsel %vm214, %v3220, 0
    %3319 = vmatprep.subr.mxu0 0.0
    %3320 = vmatpush1.msra.mxu0 %v3312
    %3321 = vmatprep.subr.mxu0 0.0
    %3322 = vmatpush1.msra.mxu0 %v3313
    %3323 = vmatprep.subr.mxu0 0.0
    %3324 = vmatpush1.msra.mxu0 %v3314
    %3325 = vmatprep.subr.mxu0 0.0
    %3326 = vmatpush1.msra.mxu0 %v3315
    %3327 = vmatprep.subr.mxu0 0.0
    %3328 = vmatpush1.msra.mxu0 0.0
    %3329 = vmatprep.subr.mxu0 0.0
    %3330 = vmatpush1.msra.mxu0 0.0
    %3331 = vmatprep.subr.mxu0 0.0
    %3332 = vmatpush1.msra.mxu0 0.0
    %3333 = vmatprep.subr.mxu0 0.0
    %3334 = vmatpush1.msra.mxu0 0.0
    %3335 = vmatprep.subr.mxu0 0.0
    %3336 = vmatpush1.msra.mxu0 0.0
    %3337 = vmatprep.subr.mxu0 0.0
    %3338 = vmatpush1.msra.mxu0 0.0
    %3339 = vmatprep.subr.mxu0 0.0
    %3340 = vmatpush1.msra.mxu0 0.0
    %3341 = vmatprep.subr.mxu0 0.0
    %3342 = vmatpush1.msra.mxu0 0.0
    %3343 = vmatprep.subr.mxu0 0.0
    %3344 = vmatpush1.msra.mxu0 0.0
    %3345 = vmatprep.subr.mxu0 0.0
    %3346 = vmatpush1.msra.mxu0 0.0
    %3347 = vmatprep.subr.mxu0 0.0
    %3348 = vmatpush1.msra.mxu0 0.0
    %3349 = vmatprep.subr.mxu0 0.0
    %3350 = vmatpush1.msra.mxu0 0.0
    %3351 = vmatprep.subr.mxu0 0.0
    %3352 = vmatpush1.msra.mxu0 0.0
    %3353 = vmatprep.subr.mxu0 0.0
    %3354 = vmatpush1.msra.mxu0 0.0
    %3355 = vmatprep.subr.mxu0 0.0
    %3356 = vmatpush1.msra.mxu0 0.0
    %3357 = vmatprep.subr.mxu0 0.0
    %3358 = vmatpush1.msra.mxu0 0.0
    %3359 = vmatprep.subr.mxu0 0.0
    %3360 = vmatpush1.msra.mxu0 0.0
    %3361 = vmatprep.subr.mxu0 0.0
    %3362 = vmatpush1.msra.mxu0 0.0
    %3363 = vmatprep.subr.mxu0 0.0
    %3364 = vmatpush1.msra.mxu0 0.0
    %3365 = vmatprep.subr.mxu0 0.0
    %3366 = vmatpush1.msra.mxu0 0.0
    %3367 = vmatprep.subr.mxu0 0.0
    %3368 = vmatpush1.msra.mxu0 0.0
    %3369 = vmatprep.subr.mxu0 0.0
    %3370 = vmatpush1.msra.mxu0 0.0
    %3371 = vmatprep.subr.mxu0 0.0
    %3372 = vmatpush1.msra.mxu0 0.0
    %3373 = vmatprep.subr.mxu0 0.0
    %3374 = vmatpush1.msra.mxu0 0.0
    %3375 = vmatprep.subr.mxu0 0.0
    %3376 = vmatpush1.msra.mxu0 0.0
    %3377 = vmatprep.subr.mxu0 0.0
    %3378 = vmatpush1.msra.mxu0 0.0
    %3379 = vmatprep.subr.mxu0 0.0
    %3380 = vmatpush1.msra.mxu0 0.0
    %3381 = vmatprep.subr.mxu0 0.0
    %3382 = vmatpush1.msra.mxu0 0.0
    %3383 = vmatprep.mubr.f32.mxu0 0.0
    %3384 = vmatmul.mubr.f32.gmra.mrb[0].mxu0 %v3317
    %v3385 = vpop.f32.mrb[0].mxu0
    %v3386 = vadd.f32 %v3316, %v3385
    %v3387 = vpop.f32.mrb[0].mxu0
    %3388 = vdwg.mxu0
    %v3389 = vadd.f32 %v3309, %v3386
    %v3390 = vxor.u32 %v3389, 2147483648
    %v3391 = vmul.f32 %v3390, 1.442695
    %v3392 = vpow.pop %v3391
    %v3393 = vadd.f32 %v3392, 1.0
    %v3394 = vrcp.pop %v3393
    %v3395 = vmul.f32 1.0, %v3394
    %3397 = vrot.lane.b32.xlu0 %v3386, 64
    %v3398 = vpop.permute.xlu0 %3397
    %v3400 = vmul.f32 %v3395, %v3398
    %3402 = vrot.lane.b32.xlu0 %v3400, 64
    %v3403 = vpop.permute.xlu0 %3402
    %v3405 = vadd.f32 %v3309, %v3403
    %v3406 = vtanh.pop %v3405
    %v3407 = vsub.f32 1.0, %v3395
    %3409 = vrot.lane.b32.xlu0 %v3406, 96
    %v3410 = vpop.permute.xlu0 %3409
    %v3412 = vmul.f32 %v3407, %v3410
    %v3413 = vmul.f32 %v3395, %v3036
    %v3414 = vadd.f32 %v3412, %v3413
    %3416 = vrot.lane.b32.xlu0 %v3414, 96
    %v3417 = vpop.permute.xlu0 %3416
    %v3418 = vsel %vm214, %v3417, 0
    %v3421 = vsel %vm214, %v3230, 0
    %3423 = vmatprep.subr.mxu0 0.0
    %3424 = vmatpush1.xpose.msra.mxu0 %v3421
    %3425 = vmatprep.subr.mxu0 0.0
    %3426 = vmatpush1.xpose.msra.mxu0 0.0
    %3427 = vmatprep.subr.mxu0 0.0
    %3428 = vmatpush1.xpose.msra.mxu0 0.0
    %3429 = vmatprep.subr.mxu0 0.0
    %3430 = vmatpush1.xpose.msra.mxu0 0.0
    %3431 = vmatprep.subr.mxu0 0.0
    %3432 = vmatpush1.xpose.msra.mxu0 0.0
    %3433 = vmatprep.subr.mxu0 0.0
    %3434 = vmatpush1.xpose.msra.mxu0 0.0
    %3435 = vmatprep.subr.mxu0 0.0
    %3436 = vmatpush1.xpose.msra.mxu0 0.0
    %3437 = vmatprep.subr.mxu0 0.0
    %3438 = vmatpush1.xpose.msra.mxu0 0.0
    %3439 = vmatprep.subr.mxu0 0.0
    %3440 = vmatpush1.xpose.msra.mxu0 0.0
    %3441 = vmatprep.subr.mxu0 0.0
    %3442 = vmatpush1.xpose.msra.mxu0 0.0
    %3443 = vmatprep.subr.mxu0 0.0
    %3444 = vmatpush1.xpose.msra.mxu0 0.0
    %3445 = vmatprep.subr.mxu0 0.0
    %3446 = vmatpush1.xpose.msra.mxu0 0.0
    %3447 = vmatprep.subr.mxu0 0.0
    %3448 = vmatpush1.xpose.msra.mxu0 0.0
    %3449 = vmatprep.subr.mxu0 0.0
    %3450 = vmatpush1.xpose.msra.mxu0 0.0
    %3451 = vmatprep.subr.mxu0 0.0
    %3452 = vmatpush1.xpose.msra.mxu0 0.0
    %3453 = vmatprep.subr.mxu0 0.0
    %3454 = vmatpush1.xpose.msra.mxu0 0.0
    %3455 = vmatprep.subr.mxu0 0.0
    %3456 = vmatpush1.xpose.msra.mxu0 0.0
    %3457 = vmatprep.subr.mxu0 0.0
    %3458 = vmatpush1.xpose.msra.mxu0 0.0
    %3459 = vmatprep.subr.mxu0 0.0
    %3460 = vmatpush1.xpose.msra.mxu0 0.0
    %3461 = vmatprep.subr.mxu0 0.0
    %3462 = vmatpush1.xpose.msra.mxu0 0.0
    %3463 = vmatprep.subr.mxu0 0.0
    %3464 = vmatpush1.xpose.msra.mxu0 0.0
    %3465 = vmatprep.subr.mxu0 0.0
    %3466 = vmatpush1.xpose.msra.mxu0 0.0
    %3467 = vmatprep.subr.mxu0 0.0
    %3468 = vmatpush1.xpose.msra.mxu0 0.0
    %3469 = vmatprep.subr.mxu0 0.0
    %3470 = vmatpush1.xpose.msra.mxu0 0.0
    %3471 = vmatprep.subr.mxu0 0.0
    %3472 = vmatpush1.xpose.msra.mxu0 0.0
    %3473 = vmatprep.subr.mxu0 0.0
    %3474 = vmatpush1.xpose.msra.mxu0 0.0
    %3475 = vmatprep.subr.mxu0 0.0
    %3476 = vmatpush1.xpose.msra.mxu0 0.0
    %3477 = vmatprep.subr.mxu0 0.0
    %3478 = vmatpush1.xpose.msra.mxu0 0.0
    %3479 = vmatprep.subr.mxu0 0.0
    %3480 = vmatpush1.xpose.msra.mxu0 0.0
    %3481 = vmatprep.subr.mxu0 0.0
    %3482 = vmatpush1.xpose.msra.mxu0 0.0
    %3483 = vmatprep.subr.mxu0 0.0
    %3484 = vmatpush1.xpose.msra.mxu0 0.0
    %3485 = vmatprep.subr.mxu0 0.0
    %3486 = vmatpush1.xpose.msra.mxu0 0.0
    %3487 = vmatprep.mubr.f32.mxu0 0.0
    %3488 = vmatmul.mubr.f32.gmra.mrb[0].mxu0 %v3418
    %v3489 = vpop.f32.mrb[0].mxu0
    %v3490 = vadd.f32 0.0, %v3489
    %v3491 = vpop.f32.mrb[0].mxu0
    %3492 = vdwg.mxu0
    %vm3493 = vcmask 57344
    %v3494 = vsel %vm3493, %v3490, -inf
    %3495 = vmax.xlane.f32.xlu0 %v3494
    %v3496 = vpop.xlane.xlu0 %3495
    %v3497 = vsub.f32 %v3490, %v3496
    %v3498 = vmul.f32 %v3497, 1.442695
    %v3499 = vpow.pop %v3498
    %v3500 = vsel %vm3493, %v3499, 0.0
    %3501 = vadd.xlane.f32.xlu0 %v3500
    %v3502 = vpop.xlane.xlu0 %3501
    %v3503 = vrcp.pop %v3502
    %v3504 = vmul.f32 %v3499, %v3503
    %vm3505 = vcmask 64512
    %v3507 = vsel %vm3505, %v3504, 0
    %3509 = vmatprep.subr.mxu0 0.0
    %3510 = vmatpush1.msra.mxu0 %v3230
    %3511 = vmatprep.subr.mxu0 0.0
    %3512 = vmatpush1.msra.mxu0 0.0
    %3513 = vmatprep.subr.mxu0 0.0
    %3514 = vmatpush1.msra.mxu0 0.0
    %3515 = vmatprep.subr.mxu0 0.0
    %3516 = vmatpush1.msra.mxu0 0.0
    %3517 = vmatprep.subr.mxu0 0.0
    %3518 = vmatpush1.msra.mxu0 0.0
    %3519 = vmatprep.subr.mxu0 0.0
    %3520 = vmatpush1.msra.mxu0 0.0
    %3521 = vmatprep.subr.mxu0 0.0
    %3522 = vmatpush1.msra.mxu0 0.0
    %3523 = vmatprep.subr.mxu0 0.0
    %3524 = vmatpush1.msra.mxu0 0.0
    %3525 = vmatprep.subr.mxu0 0.0
    %3526 = vmatpush1.msra.mxu0 0.0
    %3527 = vmatprep.subr.mxu0 0.0
    %3528 = vmatpush1.msra.mxu0 0.0
    %3529 = vmatprep.subr.mxu0 0.0
    %3530 = vmatpush1.msra.mxu0 0.0
    %3531 = vmatprep.subr.mxu0 0.0
    %3532 = vmatpush1.msra.mxu0 0.0
    %3533 = vmatprep.subr.mxu0 0.0
    %3534 = vmatpush1.msra.mxu0 0.0
    %3535 = vmatprep.subr.mxu0 0.0
    %3536 = vmatpush1.msra.mxu0 0.0
    %3537 = vmatprep.subr.mxu0 0.0
    %3538 = vmatpush1.msra.mxu0 0.0
    %3539 = vmatprep.subr.mxu0 0.0
    %3540 = vmatpush1.msra.mxu0 0.0
    %3541 = vmatprep.subr.mxu0 0.0
    %3542 = vmatpush1.msra.mxu0 0.0
    %3543 = vmatprep.subr.mxu0 0.0
    %3544 = vmatpush1.msra.mxu0 0.0
    %3545 = vmatprep.subr.mxu0 0.0
    %3546 = vmatpush1.msra.mxu0 0.0
    %3547 = vmatprep.subr.mxu0 0.0
    %3548 = vmatpush1.msra.mxu0 0.0
    %3549 = vmatprep.subr.mxu0 0.0
    %3550 = vmatpush1.msra.mxu0 0.0
    %3551 = vmatprep.subr.mxu0 0.0
    %3552 = vmatpush1.msra.mxu0 0.0
    %3553 = vmatprep.subr.mxu0 0.0
    %3554 = vmatpush1.msra.mxu0 0.0
    %3555 = vmatprep.subr.mxu0 0.0
    %3556 = vmatpush1.msra.mxu0 0.0
    %3557 = vmatprep.subr.mxu0 0.0
    %3558 = vmatpush1.msra.mxu0 0.0
    %3559 = vmatprep.subr.mxu0 0.0
    %3560 = vmatpush1.msra.mxu0 0.0
    %3561 = vmatprep.subr.mxu0 0.0
    %3562 = vmatpush1.msra.mxu0 0.0
    %3563 = vmatprep.subr.mxu0 0.0
    %3564 = vmatpush1.msra.mxu0 0.0
    %3565 = vmatprep.subr.mxu0 0.0
    %3566 = vmatpush1.msra.mxu0 0.0
    %3567 = vmatprep.subr.mxu0 0.0
    %3568 = vmatpush1.msra.mxu0 0.0
    %3569 = vmatprep.subr.mxu0 0.0
    %3570 = vmatpush1.msra.mxu0 0.0
    %3571 = vmatprep.subr.mxu0 0.0
    %3572 = vmatpush1.msra.mxu0 0.0
    %3573 = vmatprep.mubr.f32.mxu0 0.0
    %3574 = vmatmul.mubr.f32.gmra.mrb[0].mxu0 %v3507
    %v3575 = vpop.f32.mrb[0].mxu0
    %v3576 = vadd.f32 0.0, %v3575
    %v3577 = vpop.f32.mrb[0].mxu0
    %3578 = vdwg.mxu0
    %v3579 = vld [vmem:[#allocation20] sm:$0xff]
    %v3580 = vld [vmem:[#allocation20 + $0x8] sm:$0xff]
    %v3581 = vld [vmem:[#allocation20 + $0x10] sm:$0xff]
    %v3582 = vld [vmem:[#allocation20 + $0x18] sm:$0xff]
    %v3583 = vld [vmem:[#allocation21] sm:$0xff]
    %v3584 = vld [vmem:[#allocation21 + $0x8] sm:$0xff]
    %v3585 = vld [vmem:[#allocation21 + $0x10] sm:$0xff]
    %v3586 = vld [vmem:[#allocation21 + $0x18] sm:$0xff]
    %v3588 = vsel %vm214, %v3576, 0
    %3590 = vmatprep.subr.mxu0 0.0
    %3591 = vmatpush1.msra.mxu0 %v3583
    %3592 = vmatprep.subr.mxu0 0.0
    %3593 = vmatpush1.msra.mxu0 %v3584
    %3594 = vmatprep.subr.mxu0 0.0
    %3595 = vmatpush1.msra.mxu0 %v3585
    %3596 = vmatprep.subr.mxu0 0.0
    %3597 = vmatpush1.msra.mxu0 %v3586
    %3598 = vmatprep.subr.mxu0 0.0
    %3599 = vmatpush1.msra.mxu0 0.0
    %3600 = vmatprep.subr.mxu0 0.0
    %3601 = vmatpush1.msra.mxu0 0.0
    %3602 = vmatprep.subr.mxu0 0.0
    %3603 = vmatpush1.msra.mxu0 0.0
    %3604 = vmatprep.subr.mxu0 0.0
    %3605 = vmatpush1.msra.mxu0 0.0
    %3606 = vmatprep.subr.mxu0 0.0
    %3607 = vmatpush1.msra.mxu0 0.0
    %3608 = vmatprep.subr.mxu0 0.0
    %3609 = vmatpush1.msra.mxu0 0.0
    %3610 = vmatprep.subr.mxu0 0.0
    %3611 = vmatpush1.msra.mxu0 0.0
    %3612 = vmatprep.subr.mxu0 0.0
    %3613 = vmatpush1.msra.mxu0 0.0
    %3614 = vmatprep.subr.mxu0 0.0
    %3615 = vmatpush1.msra.mxu0 0.0
    %3616 = vmatprep.subr.mxu0 0.0
    %3617 = vmatpush1.msra.mxu0 0.0
    %3618 = vmatprep.subr.mxu0 0.0
    %3619 = vmatpush1.msra.mxu0 0.0
    %3620 = vmatprep.subr.mxu0 0.0
    %3621 = vmatpush1.msra.mxu0 0.0
    %3622 = vmatprep.subr.mxu0 0.0
    %3623 = vmatpush1.msra.mxu0 0.0
    %3624 = vmatprep.subr.mxu0 0.0
    %3625 = vmatpush1.msra.mxu0 0.0
    %3626 = vmatprep.subr.mxu0 0.0
    %3627 = vmatpush1.msra.mxu0 0.0
    %3628 = vmatprep.subr.mxu0 0.0
    %3629 = vmatpush1.msra.mxu0 0.0
    %3630 = vmatprep.subr.mxu0 0.0
    %3631 = vmatpush1.msra.mxu0 0.0
    %3632 = vmatprep.subr.mxu0 0.0
    %3633 = vmatpush1.msra.mxu0 0.0
    %3634 = vmatprep.subr.mxu0 0.0
    %3635 = vmatpush1.msra.mxu0 0.0
    %3636 = vmatprep.subr.mxu0 0.0
    %3637 = vmatpush1.msra.mxu0 0.0
    %3638 = vmatprep.subr.mxu0 0.0
    %3639 = vmatpush1.msra.mxu0 0.0
    %3640 = vmatprep.subr.mxu0 0.0
    %3641 = vmatpush1.msra.mxu0 0.0
    %3642 = vmatprep.subr.mxu0 0.0
    %3643 = vmatpush1.msra.mxu0 0.0
    %3644 = vmatprep.subr.mxu0 0.0
    %3645 = vmatpush1.msra.mxu0 0.0
    %3646 = vmatprep.subr.mxu0 0.0
    %3647 = vmatpush1.msra.mxu0 0.0
    %3648 = vmatprep.subr.mxu0 0.0
    %3649 = vmatpush1.msra.mxu0 0.0
    %3650 = vmatprep.subr.mxu0 0.0
    %3651 = vmatpush1.msra.mxu0 0.0
    %3652 = vmatprep.subr.mxu0 0.0
    %3653 = vmatpush1.msra.mxu0 0.0
    %3654 = vmatprep.mubr.f32.mxu0 0.0
    %3655 = vmatmul.mubr.f32.gmra.mrb[0].mxu0 %v3588
    %v3656 = vpop.f32.mrb[0].mxu0
    %v3657 = vadd.f32 0.0, %v3656
    %v3658 = vpop.f32.mrb[0].mxu0
    %3659 = vdwg.mxu0
    %3660 = vmatprep.subr.mxu0 0.0
    %3661 = vmatpush1.msra.mxu0 %v3579
    %3662 = vmatprep.subr.mxu0 0.0
    %3663 = vmatpush1.msra.mxu0 %v3580
    %3664 = vmatprep.subr.mxu0 0.0
    %3665 = vmatpush1.msra.mxu0 %v3581
    %3666 = vmatprep.subr.mxu0 0.0
    %3667 = vmatpush1.msra.mxu0 %v3582
    %3668 = vmatprep.subr.mxu0 0.0
    %3669 = vmatpush1.msra.mxu0 0.0
    %3670 = vmatprep.subr.mxu0 0.0
    %3671 = vmatpush1.msra.mxu0 0.0
    %3672 = vmatprep.subr.mxu0 0.0
    %3673 = vmatpush1.msra.mxu0 0.0
    %3674 = vmatprep.subr.mxu0 0.0
    %3675 = vmatpush1.msra.mxu0 0.0
    %3676 = vmatprep.subr.mxu0 0.0
    %3677 = vmatpush1.msra.mxu0 0.0
    %3678 = vmatprep.subr.mxu0 0.0
    %3679 = vmatpush1.msra.mxu0 0.0
    %3680 = vmatprep.subr.mxu0 0.0
    %3681 = vmatpush1.msra.mxu0 0.0
    %3682 = vmatprep.subr.mxu0 0.0
    %3683 = vmatpush1.msra.mxu0 0.0
    %3684 = vmatprep.subr.mxu0 0.0
    %3685 = vmatpush1.msra.mxu0 0.0
    %3686 = vmatprep.subr.mxu0 0.0
    %3687 = vmatpush1.msra.mxu0 0.0
    %3688 = vmatprep.subr.mxu0 0.0
    %3689 = vmatpush1.msra.mxu0 0.0
    %3690 = vmatprep.subr.mxu0 0.0
    %3691 = vmatpush1.msra.mxu0 0.0
    %3692 = vmatprep.subr.mxu0 0.0
    %3693 = vmatpush1.msra.mxu0 0.0
    %3694 = vmatprep.subr.mxu0 0.0
    %3695 = vmatpush1.msra.mxu0 0.0
    %3696 = vmatprep.subr.mxu0 0.0
    %3697 = vmatpush1.msra.mxu0 0.0
    %3698 = vmatprep.subr.mxu0 0.0
    %3699 = vmatpush1.msra.mxu0 0.0
    %3700 = vmatprep.subr.mxu0 0.0
    %3701 = vmatpush1.msra.mxu0 0.0
    %3702 = vmatprep.subr.mxu0 0.0
    %3703 = vmatpush1.msra.mxu0 0.0
    %3704 = vmatprep.subr.mxu0 0.0
    %3705 = vmatpush1.msra.mxu0 0.0
    %3706 = vmatprep.subr.mxu0 0.0
    %3707 = vmatpush1.msra.mxu0 0.0
    %3708 = vmatprep.subr.mxu0 0.0
    %3709 = vmatpush1.msra.mxu0 0.0
    %3710 = vmatprep.subr.mxu0 0.0
    %3711 = vmatpush1.msra.mxu0 0.0
    %3712 = vmatprep.subr.mxu0 0.0
    %3713 = vmatpush1.msra.mxu0 0.0
    %3714 = vmatprep.subr.mxu0 0.0
    %3715 = vmatpush1.msra.mxu0 0.0
    %3716 = vmatprep.subr.mxu0 0.0
    %3717 = vmatpush1.msra.mxu0 0.0
    %3718 = vmatprep.subr.mxu0 0.0
    %3719 = vmatpush1.msra.mxu0 0.0
    %3720 = vmatprep.subr.mxu0 0.0
    %3721 = vmatpush1.msra.mxu0 0.0
    %3722 = vmatprep.subr.mxu0 0.0
    %3723 = vmatpush1.msra.mxu0 0.0
    %3724 = vmatprep.mubr.f32.mxu0 0.0
    %3725 = vmatmul.mubr.f32.gmra.mrb[0].mxu0 %v3418
    %v3726 = vpop.f32.mrb[0].mxu0
    %v3727 = vadd.f32 %v3657, %v3726
    %v3728 = vpop.f32.mrb[0].mxu0
    %3729 = vdwg.mxu0
    %v3730 = vld [vmem:[#allocation23] sm:$0x1]
    %v3731 = vadd.f32 %v3727, %v3730
    %v3732 = vtanh.pop %v3731
    %v3733 = vld [vmem:[%s17] sm:$0xff]
    %v3734 = vld [vmem:[%s17 + $0x8] sm:$0xff]
    %v3735 = vld [vmem:[%s17 + $0x10] sm:$0xff]
    %v3736 = vld [vmem:[%s17 + $0x18] sm:$0xff]
    %v3737 = vld [vmem:[%s18] sm:$0x1]
    %v3739 = vsel %vm214, %v3732, 0
    %3741 = vmatprep.subr.mxu0 0.0
    %3742 = vmatpush1.msra.mxu0 %v3733
    %3743 = vmatprep.subr.mxu0 0.0
    %3744 = vmatpush1.msra.mxu0 %v3734
    %3745 = vmatprep.subr.mxu0 0.0
    %3746 = vmatpush1.msra.mxu0 %v3735
    %3747 = vmatprep.subr.mxu0 0.0
    %3748 = vmatpush1.msra.mxu0 %v3736
    %3749 = vmatprep.subr.mxu0 0.0
    %3750 = vmatpush1.msra.mxu0 0.0
    %3751 = vmatprep.subr.mxu0 0.0
    %3752 = vmatpush1.msra.mxu0 0.0
    %3753 = vmatprep.subr.mxu0 0.0
    %3754 = vmatpush1.msra.mxu0 0.0
    %3755 = vmatprep.subr.mxu0 0.0
    %3756 = vmatpush1.msra.mxu0 0.0
    %3757 = vmatprep.subr.mxu0 0.0
    %3758 = vmatpush1.msra.mxu0 0.0
    %3759 = vmatprep.subr.mxu0 0.0
    %3760 = vmatpush1.msra.mxu0 0.0
    %3761 = vmatprep.subr.mxu0 0.0
    %3762 = vmatpush1.msra.mxu0 0.0
    %3763 = vmatprep.subr.mxu0 0.0
    %3764 = vmatpush1.msra.mxu0 0.0
    %3765 = vmatprep.subr.mxu0 0.0
    %3766 = vmatpush1.msra.mxu0 0.0
    %3767 = vmatprep.subr.mxu0 0.0
    %3768 = vmatpush1.msra.mxu0 0.0
    %3769 = vmatprep.subr.mxu0 0.0
    %3770 = vmatpush1.msra.mxu0 0.0
    %3771 = vmatprep.subr.mxu0 0.0
    %3772 = vmatpush1.msra.mxu0 0.0
    %3773 = vmatprep.subr.mxu0 0.0
    %3774 = vmatpush1.msra.mxu0 0.0
    %3775 = vmatprep.subr.mxu0 0.0
    %3776 = vmatpush1.msra.mxu0 0.0
    %3777 = vmatprep.subr.mxu0 0.0
    %3778 = vmatpush1.msra.mxu0 0.0
    %3779 = vmatprep.subr.mxu0 0.0
    %3780 = vmatpush1.msra.mxu0 0.0
    %3781 = vmatprep.subr.mxu0 0.0
    %3782 = vmatpush1.msra.mxu0 0.0
    %3783 = vmatprep.subr.mxu0 0.0
    %3784 = vmatpush1.msra.mxu0 0.0
    %3785 = vmatprep.subr.mxu0 0.0
    %3786 = vmatpush1.msra.mxu0 0.0
    %3787 = vmatprep.subr.mxu0 0.0
    %3788 = vmatpush1.msra.mxu0 0.0
    %3789 = vmatprep.subr.mxu0 0.0
    %3790 = vmatpush1.msra.mxu0 0.0
    %3791 = vmatprep.subr.mxu0 0.0
    %3792 = vmatpush1.msra.mxu0 0.0
    %3793 = vmatprep.subr.mxu0 0.0
    %3794 = vmatpush1.msra.mxu0 0.0
    %3795 = vmatprep.subr.mxu0 0.0
    %3796 = vmatpush1.msra.mxu0 0.0
    %3797 = vmatprep.subr.mxu0 0.0
    %3798 = vmatpush1.msra.mxu0 0.0
    %3799 = vmatprep.subr.mxu0 0.0
    %3800 = vmatpush1.msra.mxu0 0.0
    %3801 = vmatprep.subr.mxu0 0.0
    %3802 = vmatpush1.msra.mxu0 0.0
    %3803 = vmatprep.subr.mxu0 0.0
    %3804 = vmatpush1.msra.mxu0 0.0
    %3805 = vmatprep.mubr.f32.mxu0 0.0
    %3806 = vmatmul.mubr.f32.gmra.mrb[0].mxu0 %v3739
    %v3807 = vpop.f32.mrb[0].mxu0
    %v3808 = vadd.f32 %v3737, %v3807
    %v3809 = vpop.f32.mrb[0].mxu0
    %3810 = vdwg.mxu0
    %vm3811 = vcmask 516096
    %v3812 = vsel %vm3811, %v3808, -inf
    %3813 = vmax.xlane.f32.xlu0 %v3812
    %v3814 = vpop.xlane.xlu0 %3813
    %v3815 = vsub.f32 %v3808, %v3814
    %v3816 = vmul.f32 %v3815, 1.442695
    %v3817 = vpow.pop %v3816
    %v3818 = vsel %vm3811, %v3817, 0.0
    %3819 = vadd.xlane.f32.xlu0 %v3818
    %v3820 = vpop.xlane.xlu0 %3819
    %v3821 = vrcp.pop %v3820
    %vm3822 = vcmp.ge.f32.partialorder %v3808, %v3814
    %v3823 = vsel %vm3822, %v3232, 64
    %v3824 = vsel %vm3811, %v3823, 2147483647
    %v3825 = vand.u32 %v3824, 65535
    %v3826 = vshra.s32 %v3824, 16
    %v3827 = vcvt.s32.f32 %v3825
    %v3828 = vcvt.s32.f32 %v3826
    %3829 = vmin.xlane.f32.xlu0 %v3828
    %v3830 = vpop.xlane.xlu0 %3829
    %vm3831 = vcmp.eq.f32.partialorder %v3828, %v3830
    %v3832 = vsel %vm3831, %v3827, inf
    %3833 = vmin.xlane.f32.xlu0 %v3832
    %v3834 = vpop.xlane.xlu0 %3833
    %v3835 = vcvt.f32.s32 %v3834
    %v3836 = vcvt.f32.s32 %v3830
    %v3837 = vshll.u32 %v3836, 16
    %v3838 = vadd.s32 %v3837, %v3835
    %vm3839 = vcmp.eq.s32.totalorder %v3232, 0
    %v3840 = vsel %vm3839, %v3838, 0
    %v3841 = vsel %vm3839, %v3821, 0.0
    %vm3842 = vcmp.eq.s32.totalorder %v3232, %v3838
    %v3843 = vsel %vm3842, 1, 0
    %v3844 = vcvt.s32.f32 %v3843
    %v3845 = vld [vmem:[%s1] sm:$0xff]
    %v3846 = vld [vmem:[%s1 + $0x8] sm:$0xff]
    %v3847 = vld [vmem:[%s1 + $0x10] sm:$0xff]
    %v3848 = vld [vmem:[%s1 + $0x18] sm:$0xff]
    %v3849 = vld [vmem:[%s1 + $0x20] sm:$0xff]
    %v3850 = vld [vmem:[%s1 + $0x28] sm:$0xff]
    %v3851 = vld [vmem:[%s1 + $0x30] sm:$0xff]
    %v3852 = vld [vmem:[%s1 + $0x38] sm:$0xff]
    %vm3853 = vcmask 523264
    %v3855 = vsel %vm3853, %v3844, 0
    %3857 = vmatprep.subr.mxu0 0.0
    %3858 = vmatpush1.msra.mxu0 %v3845
    %3859 = vmatprep.subr.mxu0 0.0
    %3860 = vmatpush1.msra.mxu0 %v3846
    %3861 = vmatprep.subr.mxu0 0.0
    %3862 = vmatpush1.msra.mxu0 %v3847
    %3863 = vmatprep.subr.mxu0 0.0
    %3864 = vmatpush1.msra.mxu0 %v3848
    %3865 = vmatprep.subr.mxu0 0.0
    %3866 = vmatpush1.msra.mxu0 %v3849
    %3867 = vmatprep.subr.mxu0 0.0
    %3868 = vmatpush1.msra.mxu0 %v3850
    %3869 = vmatprep.subr.mxu0 0.0
    %3870 = vmatpush1.msra.mxu0 %v3851
    %3871 = vmatprep.subr.mxu0 0.0
    %3872 = vmatpush1.msra.mxu0 %v3852
    %3873 = vmatprep.subr.mxu0 0.0
    %3874 = vmatpush1.msra.mxu0 0.0
    %3875 = vmatprep.subr.mxu0 0.0
    %3876 = vmatpush1.msra.mxu0 0.0
    %3877 = vmatprep.subr.mxu0 0.0
    %3878 = vmatpush1.msra.mxu0 0.0
    %3879 = vmatprep.subr.mxu0 0.0
    %3880 = vmatpush1.msra.mxu0 0.0
    %3881 = vmatprep.subr.mxu0 0.0
    %3882 = vmatpush1.msra.mxu0 0.0
    %3883 = vmatprep.subr.mxu0 0.0
    %3884 = vmatpush1.msra.mxu0 0.0
    %3885 = vmatprep.subr.mxu0 0.0
    %3886 = vmatpush1.msra.mxu0 0.0
    %3887 = vmatprep.subr.mxu0 0.0
    %3888 = vmatpush1.msra.mxu0 0.0
    %3889 = vmatprep.subr.mxu0 0.0
    %3890 = vmatpush1.msra.mxu0 0.0
    %3891 = vmatprep.subr.mxu0 0.0
    %3892 = vmatpush1.msra.mxu0 0.0
    %3893 = vmatprep.subr.mxu0 0.0
    %3894 = vmatpush1.msra.mxu0 0.0
    %3895 = vmatprep.subr.mxu0 0.0
    %3896 = vmatpush1.msra.mxu0 0.0
    %3897 = vmatprep.subr.mxu0 0.0
    %3898 = vmatpush1.msra.mxu0 0.0
    %3899 = vmatprep.subr.mxu0 0.0
    %3900 = vmatpush1.msra.mxu0 0.0
    %3901 = vmatprep.subr.mxu0 0.0
    %3902 = vmatpush1.msra.mxu0 0.0
    %3903 = vmatprep.subr.mxu0 0.0
    %3904 = vmatpush1.msra.mxu0 0.0
    %3905 = vmatprep.subr.mxu0 0.0
    %3906 = vmatpush1.msra.mxu0 0.0
    %3907 = vmatprep.subr.mxu0 0.0
    %3908 = vmatpush1.msra.mxu0 0.0
    %3909 = vmatprep.subr.mxu0 0.0
    %3910 = vmatpush1.msra.mxu0 0.0
    %3911 = vmatprep.subr.mxu0 0.0
    %3912 = vmatpush1.msra.mxu0 0.0
    %3913 = vmatprep.subr.mxu0 0.0
    %3914 = vmatpush1.msra.mxu0 0.0
    %3915 = vmatprep.subr.mxu0 0.0
    %3916 = vmatpush1.msra.mxu0 0.0
    %3917 = vmatprep.subr.mxu0 0.0
    %3918 = vmatpush1.msra.mxu0 0.0
    %3919 = vmatprep.subr.mxu0 0.0
    %3920 = vmatpush1.msra.mxu0 0.0
    %3921 = vmatprep.mubr.f32.mxu0 0.0
    %3922 = vmatmul.mubr.f32.gmra.mrb[0].mxu0 %v3855
    %v3923 = vpop.f32.mrb[0].mxu0
    %v3924 = vadd.f32 0.0, %v3923
    %v3925 = vpop.f32.mrb[0].mxu0
    %3926 = vdwg.mxu0
    %v3928 = vsel %vm214, %v3924, 0
    %3930 = vmatprep.subr.mxu0 0.0
    %3931 = vmatpush1.msra.mxu0 %v3234
    %3932 = vmatprep.subr.mxu0 0.0
    %3933 = vmatpush1.msra.mxu0 %v3235
    %3934 = vmatprep.subr.mxu0 0.0
    %3935 = vmatpush1.msra.mxu0 %v3236
    %3936 = vmatprep.subr.mxu0 0.0
    %3937 = vmatpush1.msra.mxu0 %v3237
    %3938 = vmatprep.subr.mxu0 0.0
    %3939 = vmatpush1.msra.mxu0 0.0
    %3940 = vmatprep.subr.mxu0 0.0
    %3941 = vmatpush1.msra.mxu0 0.0
    %3942 = vmatprep.subr.mxu0 0.0
    %3943 = vmatpush1.msra.mxu0 0.0
    %3944 = vmatprep.subr.mxu0 0.0
    %3945 = vmatpush1.msra.mxu0 0.0
    %3946 = vmatprep.subr.mxu0 0.0
    %3947 = vmatpush1.msra.mxu0 0.0
    %3948 = vmatprep.subr.mxu0 0.0
    %3949 = vmatpush1.msra.mxu0 0.0
    %3950 = vmatprep.subr.mxu0 0.0
    %3951 = vmatpush1.msra.mxu0 0.0
    %3952 = vmatprep.subr.mxu0 0.0
    %3953 = vmatpush1.msra.mxu0 0.0
    %3954 = vmatprep.subr.mxu0 0.0
    %3955 = vmatpush1.msra.mxu0 0.0
    %3956 = vmatprep.subr.mxu0 0.0
    %3957 = vmatpush1.msra.mxu0 0.0
    %3958 = vmatprep.subr.mxu0 0.0
    %3959 = vmatpush1.msra.mxu0 0.0
    %3960 = vmatprep.subr.mxu0 0.0
    %3961 = vmatpush1.msra.mxu0 0.0
    %3962 = vmatprep.subr.mxu0 0.0
    %3963 = vmatpush1.msra.mxu0 0.0
    %3964 = vmatprep.subr.mxu0 0.0
    %3965 = vmatpush1.msra.mxu0 0.0
    %3966 = vmatprep.subr.mxu0 0.0
    %3967 = vmatpush1.msra.mxu0 0.0
    %3968 = vmatprep.subr.mxu0 0.0
    %3969 = vmatpush1.msra.mxu0 0.0
    %3970 = vmatprep.subr.mxu0 0.0
    %3971 = vmatpush1.msra.mxu0 0.0
    %3972 = vmatprep.subr.mxu0 0.0
    %3973 = vmatpush1.msra.mxu0 0.0
    %3974 = vmatprep.subr.mxu0 0.0
    %3975 = vmatpush1.msra.mxu0 0.0
    %3976 = vmatprep.subr.mxu0 0.0
    %3977 = vmatpush1.msra.mxu0 0.0
    %3978 = vmatprep.subr.mxu0 0.0
    %3979 = vmatpush1.msra.mxu0 0.0
    %3980 = vmatprep.subr.mxu0 0.0
    %3981 = vmatpush1.msra.mxu0 0.0
    %3982 = vmatprep.subr.mxu0 0.0
    %3983 = vmatpush1.msra.mxu0 0.0
    %3984 = vmatprep.subr.mxu0 0.0
    %3985 = vmatpush1.msra.mxu0 0.0
    %3986 = vmatprep.subr.mxu0 0.0
    %3987 = vmatpush1.msra.mxu0 0.0
    %3988 = vmatprep.subr.mxu0 0.0
    %3989 = vmatpush1.msra.mxu0 0.0
    %3990 = vmatprep.subr.mxu0 0.0
    %3991 = vmatpush1.msra.mxu0 0.0
    %3992 = vmatprep.subr.mxu0 0.0
    %3993 = vmatpush1.msra.mxu0 0.0
    %3994 = vmatprep.mubr.f32.mxu0 0.0
    %3995 = vmatmul.mubr.f32.gmra.mrb[0].mxu0 %v3928
    %v3996 = vpop.f32.mrb[0].mxu0
    %v3997 = vadd.f32 %v3238, %v3996
    %v3998 = vpop.f32.mrb[0].mxu0
    %3999 = vdwg.mxu0
    %4000 = vmatprep.subr.mxu0 0.0
    %4001 = vmatpush1.msra.mxu0 %v3312
    %4002 = vmatprep.subr.mxu0 0.0
    %4003 = vmatpush1.msra.mxu0 %v3313
    %4004 = vmatprep.subr.mxu0 0.0
    %4005 = vmatpush1.msra.mxu0 %v3314
    %4006 = vmatprep.subr.mxu0 0.0
    %4007 = vmatpush1.msra.mxu0 %v3315
    %4008 = vmatprep.subr.mxu0 0.0
    %4009 = vmatpush1.msra.mxu0 0.0
    %4010 = vmatprep.subr.mxu0 0.0
    %4011 = vmatpush1.msra.mxu0 0.0
    %4012 = vmatprep.subr.mxu0 0.0
    %4013 = vmatpush1.msra.mxu0 0.0
    %4014 = vmatprep.subr.mxu0 0.0
    %4015 = vmatpush1.msra.mxu0 0.0
    %4016 = vmatprep.subr.mxu0 0.0
    %4017 = vmatpush1.msra.mxu0 0.0
    %4018 = vmatprep.subr.mxu0 0.0
    %4019 = vmatpush1.msra.mxu0 0.0
    %4020 = vmatprep.subr.mxu0 0.0
    %4021 = vmatpush1.msra.mxu0 0.0
    %4022 = vmatprep.subr.mxu0 0.0
    %4023 = vmatpush1.msra.mxu0 0.0
    %4024 = vmatprep.subr.mxu0 0.0
    %4025 = vmatpush1.msra.mxu0 0.0
    %4026 = vmatprep.subr.mxu0 0.0
    %4027 = vmatpush1.msra.mxu0 0.0
    %4028 = vmatprep.subr.mxu0 0.0
    %4029 = vmatpush1.msra.mxu0 0.0
    %4030 = vmatprep.subr.mxu0 0.0
    %4031 = vmatpush1.msra.mxu0 0.0
    %4032 = vmatprep.subr.mxu0 0.0
    %4033 = vmatpush1.msra.mxu0 0.0
    %4034 = vmatprep.subr.mxu0 0.0
    %4035 = vmatpush1.msra.mxu0 0.0
    %4036 = vmatprep.subr.mxu0 0.0
    %4037 = vmatpush1.msra.mxu0 0.0
    %4038 = vmatprep.subr.mxu0 0.0
    %4039 = vmatpush1.msra.mxu0 0.0
    %4040 = vmatprep.subr.mxu0 0.0
    %4041 = vmatpush1.msra.mxu0 0.0
    %4042 = vmatprep.subr.mxu0 0.0
    %4043 = vmatpush1.msra.mxu0 0.0
    %4044 = vmatprep.subr.mxu0 0.0
    %4045 = vmatpush1.msra.mxu0 0.0
    %4046 = vmatprep.subr.mxu0 0.0
    %4047 = vmatpush1.msra.mxu0 0.0
    %4048 = vmatprep.subr.mxu0 0.0
    %4049 = vmatpush1.msra.mxu0 0.0
    %4050 = vmatprep.subr.mxu0 0.0
    %4051 = vmatpush1.msra.mxu0 0.0
    %4052 = vmatprep.subr.mxu0 0.0
    %4053 = vmatpush1.msra.mxu0 0.0
    %4054 = vmatprep.subr.mxu0 0.0
    %4055 = vmatpush1.msra.mxu0 0.0
    %4056 = vmatprep.subr.mxu0 0.0
    %4057 = vmatpush1.msra.mxu0 0.0
    %4058 = vmatprep.subr.mxu0 0.0
    %4059 = vmatpush1.msra.mxu0 0.0
    %4060 = vmatprep.subr.mxu0 0.0
    %4061 = vmatpush1.msra.mxu0 0.0
    %4062 = vmatprep.subr.mxu0 0.0
    %4063 = vmatpush1.msra.mxu0 0.0
    %4064 = vmatprep.mubr.f32.mxu0 0.0
    %4065 = vmatmul.mubr.f32.gmra.mrb[0].mxu0 %v3418
    %v4066 = vpop.f32.mrb[0].mxu0
    %v4067 = vadd.f32 %v3316, %v4066
    %v4068 = vpop.f32.mrb[0].mxu0
    %4069 = vdwg.mxu0
    %v4070 = vadd.f32 %v3997, %v4067
    %v4071 = vxor.u32 %v4070, 2147483648
    %v4072 = vmul.f32 %v4071, 1.442695
    %v4073 = vpow.pop %v4072
    %v4074 = vadd.f32 %v4073, 1.0
    %v4075 = vrcp.pop %v4074
    %v4076 = vmul.f32 1.0, %v4075
    %4078 = vrot.lane.b32.xlu0 %v4067, 64
    %v4079 = vpop.permute.xlu0 %4078
    %v4081 = vmul.f32 %v4076, %v4079
    %4083 = vrot.lane.b32.xlu0 %v4081, 64
    %v4084 = vpop.permute.xlu0 %4083
    %v4086 = vadd.f32 %v3997, %v4084
    %v4087 = vtanh.pop %v4086
    %v4088 = vsub.f32 1.0, %v4076
    %4090 = vrot.lane.b32.xlu0 %v4087, 96
    %v4091 = vpop.permute.xlu0 %4090
    %v4093 = vmul.f32 %v4088, %v4091
    %v4094 = vmul.f32 %v4076, %v3414
    %v4095 = vadd.f32 %v4093, %v4094
    %4097 = vrot.lane.b32.xlu0 %v4095, 96
    %v4098 = vpop.permute.xlu0 %4097
    %v4099 = vsel %vm214, %v4098, 0
    %4101 = vmatprep.subr.mxu0 0.0
    %4102 = vmatpush1.xpose.msra.mxu0 %v3421
    %4103 = vmatprep.subr.mxu0 0.0
    %4104 = vmatpush1.xpose.msra.mxu0 0.0
    %4105 = vmatprep.subr.mxu0 0.0
    %4106 = vmatpush1.xpose.msra.mxu0 0.0
    %4107 = vmatprep.subr.mxu0 0.0
    %4108 = vmatpush1.xpose.msra.mxu0 0.0
    %4109 = vmatprep.subr.mxu0 0.0
    %4110 = vmatpush1.xpose.msra.mxu0 0.0
    %4111 = vmatprep.subr.mxu0 0.0
    %4112 = vmatpush1.xpose.msra.mxu0 0.0
    %4113 = vmatprep.subr.mxu0 0.0
    %4114 = vmatpush1.xpose.msra.mxu0 0.0
    %4115 = vmatprep.subr.mxu0 0.0
    %4116 = vmatpush1.xpose.msra.mxu0 0.0
    %4117 = vmatprep.subr.mxu0 0.0
    %4118 = vmatpush1.xpose.msra.mxu0 0.0
    %4119 = vmatprep.subr.mxu0 0.0
    %4120 = vmatpush1.xpose.msra.mxu0 0.0
    %4121 = vmatprep.subr.mxu0 0.0
    %4122 = vmatpush1.xpose.msra.mxu0 0.0
    %4123 = vmatprep.subr.mxu0 0.0
    %4124 = vmatpush1.xpose.msra.mxu0 0.0
    %4125 = vmatprep.subr.mxu0 0.0
    %4126 = vmatpush1.xpose.msra.mxu0 0.0
    %4127 = vmatprep.subr.mxu0 0.0
    %4128 = vmatpush1.xpose.msra.mxu0 0.0
    %4129 = vmatprep.subr.mxu0 0.0
    %4130 = vmatpush1.xpose.msra.mxu0 0.0
    %4131 = vmatprep.subr.mxu0 0.0
    %4132 = vmatpush1.xpose.msra.mxu0 0.0
    %4133 = vmatprep.subr.mxu0 0.0
    %4134 = vmatpush1.xpose.msra.mxu0 0.0
    %4135 = vmatprep.subr.mxu0 0.0
    %4136 = vmatpush1.xpose.msra.mxu0 0.0
    %4137 = vmatprep.subr.mxu0 0.0
    %4138 = vmatpush1.xpose.msra.mxu0 0.0
    %4139 = vmatprep.subr.mxu0 0.0
    %4140 = vmatpush1.xpose.msra.mxu0 0.0
    %4141 = vmatprep.subr.mxu0 0.0
    %4142 = vmatpush1.xpose.msra.mxu0 0.0
    %4143 = vmatprep.subr.mxu0 0.0
    %4144 = vmatpush1.xpose.msra.mxu0 0.0
    %4145 = vmatprep.subr.mxu0 0.0
    %4146 = vmatpush1.xpose.msra.mxu0 0.0
    %4147 = vmatprep.subr.mxu0 0.0
    %4148 = vmatpush1.xpose.msra.mxu0 0.0
    %4149 = vmatprep.subr.mxu0 0.0
    %4150 = vmatpush1.xpose.msra.mxu0 0.0
    %4151 = vmatprep.subr.mxu0 0.0
    %4152 = vmatpush1.xpose.msra.mxu0 0.0
    %4153 = vmatprep.subr.mxu0 0.0
    %4154 = vmatpush1.xpose.msra.mxu0 0.0
    %4155 = vmatprep.subr.mxu0 0.0
    %4156 = vmatpush1.xpose.msra.mxu0 0.0
    %4157 = vmatprep.subr.mxu0 0.0
    %4158 = vmatpush1.xpose.msra.mxu0 0.0
    %4159 = vmatprep.subr.mxu0 0.0
    %4160 = vmatpush1.xpose.msra.mxu0 0.0
    %4161 = vmatprep.subr.mxu0 0.0
    %4162 = vmatpush1.xpose.msra.mxu0 0.0
    %4163 = vmatprep.subr.mxu0 0.0
    %4164 = vmatpush1.xpose.msra.mxu0 0.0
    %4165 = vmatprep.mubr.f32.mxu0 0.0
    %4166 = vmatmul.mubr.f32.gmra.mrb[0].mxu0 %v4099
    %v4167 = vpop.f32.mrb[0].mxu0
    %v4168 = vadd.f32 0.0, %v4167
    %v4169 = vpop.f32.mrb[0].mxu0
    %4170 = vdwg.mxu0
    %v4171 = vsel %vm3493, %v4168, -inf
    %4172 = vmax.xlane.f32.xlu0 %v4171
    %v4173 = vpop.xlane.xlu0 %4172
    %v4174 = vsub.f32 %v4168, %v4173
    %v4175 = vmul.f32 %v4174, 1.442695
    %v4176 = vpow.pop %v4175
    %v4177 = vsel %vm3493, %v4176, 0.0
    %4178 = vadd.xlane.f32.xlu0 %v4177
    %v4179 = vpop.xlane.xlu0 %4178
    %v4180 = vrcp.pop %v4179
    %v4181 = vmul.f32 %v4176, %v4180
    %v4183 = vsel %vm3505, %v4181, 0
    %4185 = vmatprep.subr.mxu0 0.0
    %4186 = vmatpush1.msra.mxu0 %v3230
    %4187 = vmatprep.subr.mxu0 0.0
    %4188 = vmatpush1.msra.mxu0 0.0
    %4189 = vmatprep.subr.mxu0 0.0
    %4190 = vmatpush1.msra.mxu0 0.0
    %4191 = vmatprep.subr.mxu0 0.0
    %4192 = vmatpush1.msra.mxu0 0.0
    %4193 = vmatprep.subr.mxu0 0.0
    %4194 = vmatpush1.msra.mxu0 0.0
    %4195 = vmatprep.subr.mxu0 0.0
    %4196 = vmatpush1.msra.mxu0 0.0
    %4197 = vmatprep.subr.mxu0 0.0
    %4198 = vmatpush1.msra.mxu0 0.0
    %4199 = vmatprep.subr.mxu0 0.0
    %4200 = vmatpush1.msra.mxu0 0.0
    %4201 = vmatprep.subr.mxu0 0.0
    %4202 = vmatpush1.msra.mxu0 0.0
    %4203 = vmatprep.subr.mxu0 0.0
    %4204 = vmatpush1.msra.mxu0 0.0
    %4205 = vmatprep.subr.mxu0 0.0
    %4206 = vmatpush1.msra.mxu0 0.0
    %4207 = vmatprep.subr.mxu0 0.0
    %4208 = vmatpush1.msra.mxu0 0.0
    %4209 = vmatprep.subr.mxu0 0.0
    %4210 = vmatpush1.msra.mxu0 0.0
    %4211 = vmatprep.subr.mxu0 0.0
    %4212 = vmatpush1.msra.mxu0 0.0
    %4213 = vmatprep.subr.mxu0 0.0
    %4214 = vmatpush1.msra.mxu0 0.0
    %4215 = vmatprep.subr.mxu0 0.0
    %4216 = vmatpush1.msra.mxu0 0.0
    %4217 = vmatprep.subr.mxu0 0.0
    %4218 = vmatpush1.msra.mxu0 0.0
    %4219 = vmatprep.subr.mxu0 0.0
    %4220 = vmatpush1.msra.mxu0 0.0
    %4221 = vmatprep.subr.mxu0 0.0
    %4222 = vmatpush1.msra.mxu0 0.0
    %4223 = vmatprep.subr.mxu0 0.0
    %4224 = vmatpush1.msra.mxu0 0.0
    %4225 = vmatprep.subr.mxu0 0.0
    %4226 = vmatpush1.msra.mxu0 0.0
    %4227 = vmatprep.subr.mxu0 0.0
    %4228 = vmatpush1.msra.mxu0 0.0
    %4229 = vmatprep.subr.mxu0 0.0
    %4230 = vmatpush1.msra.mxu0 0.0
    %4231 = vmatprep.subr.mxu0 0.0
    %4232 = vmatpush1.msra.mxu0 0.0
    %4233 = vmatprep.subr.mxu0 0.0
    %4234 = vmatpush1.msra.mxu0 0.0
    %4235 = vmatprep.subr.mxu0 0.0
    %4236 = vmatpush1.msra.mxu0 0.0
    %4237 = vmatprep.subr.mxu0 0.0
    %4238 = vmatpush1.msra.mxu0 0.0
    %4239 = vmatprep.subr.mxu0 0.0
    %4240 = vmatpush1.msra.mxu0 0.0
    %4241 = vmatprep.subr.mxu0 0.0
    %4242 = vmatpush1.msra.mxu0 0.0
    %4243 = vmatprep.subr.mxu0 0.0
    %4244 = vmatpush1.msra.mxu0 0.0
    %4245 = vmatprep.subr.mxu0 0.0
    %4246 = vmatpush1.msra.mxu0 0.0
    %4247 = vmatprep.subr.mxu0 0.0
    %4248 = vmatpush1.msra.mxu0 0.0
    %4249 = vmatprep.mubr.f32.mxu0 0.0
    %4250 = vmatmul.mubr.f32.gmra.mrb[0].mxu0 %v4183
    %v4251 = vpop.f32.mrb[0].mxu0
    %v4252 = vadd.f32 0.0, %v4251
    %v4253 = vpop.f32.mrb[0].mxu0
    %4254 = vdwg.mxu0
    %v4256 = vsel %vm214, %v4252, 0
    %4258 = vmatprep.subr.mxu0 0.0
    %4259 = vmatpush1.msra.mxu0 %v3583
    %4260 = vmatprep.subr.mxu0 0.0
    %4261 = vmatpush1.msra.mxu0 %v3584
    %4262 = vmatprep.subr.mxu0 0.0
    %4263 = vmatpush1.msra.mxu0 %v3585
    %4264 = vmatprep.subr.mxu0 0.0
    %4265 = vmatpush1.msra.mxu0 %v3586
    %4266 = vmatprep.subr.mxu0 0.0
    %4267 = vmatpush1.msra.mxu0 0.0
    %4268 = vmatprep.subr.mxu0 0.0
    %4269 = vmatpush1.msra.mxu0 0.0
    %4270 = vmatprep.subr.mxu0 0.0
    %4271 = vmatpush1.msra.mxu0 0.0
    %4272 = vmatprep.subr.mxu0 0.0
    %4273 = vmatpush1.msra.mxu0 0.0
    %4274 = vmatprep.subr.mxu0 0.0
    %4275 = vmatpush1.msra.mxu0 0.0
    %4276 = vmatprep.subr.mxu0 0.0
    %4277 = vmatpush1.msra.mxu0 0.0
    %4278 = vmatprep.subr.mxu0 0.0
    %4279 = vmatpush1.msra.mxu0 0.0
    %4280 = vmatprep.subr.mxu0 0.0
    %4281 = vmatpush1.msra.mxu0 0.0
    %4282 = vmatprep.subr.mxu0 0.0
    %4283 = vmatpush1.msra.mxu0 0.0
    %4284 = vmatprep.subr.mxu0 0.0
    %4285 = vmatpush1.msra.mxu0 0.0
    %4286 = vmatprep.subr.mxu0 0.0
    %4287 = vmatpush1.msra.mxu0 0.0
    %4288 = vmatprep.subr.mxu0 0.0
    %4289 = vmatpush1.msra.mxu0 0.0
    %4290 = vmatprep.subr.mxu0 0.0
    %4291 = vmatpush1.msra.mxu0 0.0
    %4292 = vmatprep.subr.mxu0 0.0
    %4293 = vmatpush1.msra.mxu0 0.0
    %4294 = vmatprep.subr.mxu0 0.0
    %4295 = vmatpush1.msra.mxu0 0.0
    %4296 = vmatprep.subr.mxu0 0.0
    %4297 = vmatpush1.msra.mxu0 0.0
    %4298 = vmatprep.subr.mxu0 0.0
    %4299 = vmatpush1.msra.mxu0 0.0
    %4300 = vmatprep.subr.mxu0 0.0
    %4301 = vmatpush1.msra.mxu0 0.0
    %4302 = vmatprep.subr.mxu0 0.0
    %4303 = vmatpush1.msra.mxu0 0.0
    %4304 = vmatprep.subr.mxu0 0.0
    %4305 = vmatpush1.msra.mxu0 0.0
    %4306 = vmatprep.subr.mxu0 0.0
    %4307 = vmatpush1.msra.mxu0 0.0
    %4308 = vmatprep.subr.mxu0 0.0
    %4309 = vmatpush1.msra.mxu0 0.0
    %4310 = vmatprep.subr.mxu0 0.0
    %4311 = vmatpush1.msra.mxu0 0.0
    %4312 = vmatprep.subr.mxu0 0.0
    %4313 = vmatpush1.msra.mxu0 0.0
    %4314 = vmatprep.subr.mxu0 0.0
    %4315 = vmatpush1.msra.mxu0 0.0
    %4316 = vmatprep.subr.mxu0 0.0
    %4317 = vmatpush1.msra.mxu0 0.0
    %4318 = vmatprep.subr.mxu0 0.0
    %4319 = vmatpush1.msra.mxu0 0.0
    %4320 = vmatprep.subr.mxu0 0.0
    %4321 = vmatpush1.msra.mxu0 0.0
    %4322 = vmatprep.mubr.f32.mxu0 0.0
    %4323 = vmatmul.mubr.f32.gmra.mrb[0].mxu0 %v4256
    %v4324 = vpop.f32.mrb[0].mxu0
    %v4325 = vadd.f32 0.0, %v4324
    %v4326 = vpop.f32.mrb[0].mxu0
    %4327 = vdwg.mxu0
    %4328 = vmatprep.subr.mxu0 0.0
    %4329 = vmatpush1.msra.mxu0 %v3579
    %4330 = vmatprep.subr.mxu0 0.0
    %4331 = vmatpush1.msra.mxu0 %v3580
    %4332 = vmatprep.subr.mxu0 0.0
    %4333 = vmatpush1.msra.mxu0 %v3581
    %4334 = vmatprep.subr.mxu0 0.0
    %4335 = vmatpush1.msra.mxu0 %v3582
    %4336 = vmatprep.subr.mxu0 0.0
    %4337 = vmatpush1.msra.mxu0 0.0
    %4338 = vmatprep.subr.mxu0 0.0
    %4339 = vmatpush1.msra.mxu0 0.0
    %4340 = vmatprep.subr.mxu0 0.0
    %4341 = vmatpush1.msra.mxu0 0.0
    %4342 = vmatprep.subr.mxu0 0.0
    %4343 = vmatpush1.msra.mxu0 0.0
    %4344 = vmatprep.subr.mxu0 0.0
    %4345 = vmatpush1.msra.mxu0 0.0
    %4346 = vmatprep.subr.mxu0 0.0
    %4347 = vmatpush1.msra.mxu0 0.0
    %4348 = vmatprep.subr.mxu0 0.0
    %4349 = vmatpush1.msra.mxu0 0.0
    %4350 = vmatprep.subr.mxu0 0.0
    %4351 = vmatpush1.msra.mxu0 0.0
    %4352 = vmatprep.subr.mxu0 0.0
    %4353 = vmatpush1.msra.mxu0 0.0
    %4354 = vmatprep.subr.mxu0 0.0
    %4355 = vmatpush1.msra.mxu0 0.0
    %4356 = vmatprep.subr.mxu0 0.0
    %4357 = vmatpush1.msra.mxu0 0.0
    %4358 = vmatprep.subr.mxu0 0.0
    %4359 = vmatpush1.msra.mxu0 0.0
    %4360 = vmatprep.subr.mxu0 0.0
    %4361 = vmatpush1.msra.mxu0 0.0
    %4362 = vmatprep.subr.mxu0 0.0
    %4363 = vmatpush1.msra.mxu0 0.0
    %4364 = vmatprep.subr.mxu0 0.0
    %4365 = vmatpush1.msra.mxu0 0.0
    %4366 = vmatprep.subr.mxu0 0.0
    %4367 = vmatpush1.msra.mxu0 0.0
    %4368 = vmatprep.subr.mxu0 0.0
    %4369 = vmatpush1.msra.mxu0 0.0
    %4370 = vmatprep.subr.mxu0 0.0
    %4371 = vmatpush1.msra.mxu0 0.0
    %4372 = vmatprep.subr.mxu0 0.0
    %4373 = vmatpush1.msra.mxu0 0.0
    %4374 = vmatprep.subr.mxu0 0.0
    %4375 = vmatpush1.msra.mxu0 0.0
    %4376 = vmatprep.subr.mxu0 0.0
    %4377 = vmatpush1.msra.mxu0 0.0
    %4378 = vmatprep.subr.mxu0 0.0
    %4379 = vmatpush1.msra.mxu0 0.0
    %4380 = vmatprep.subr.mxu0 0.0
    %4381 = vmatpush1.msra.mxu0 0.0
    %4382 = vmatprep.subr.mxu0 0.0
    %4383 = vmatpush1.msra.mxu0 0.0
    %4384 = vmatprep.subr.mxu0 0.0
    %4385 = vmatpush1.msra.mxu0 0.0
    %4386 = vmatprep.subr.mxu0 0.0
    %4387 = vmatpush1.msra.mxu0 0.0
    %4388 = vmatprep.subr.mxu0 0.0
    %4389 = vmatpush1.msra.mxu0 0.0
    %4390 = vmatprep.subr.mxu0 0.0
    %4391 = vmatpush1.msra.mxu0 0.0
    %4392 = vmatprep.mubr.f32.mxu0 0.0
    %4393 = vmatmul.mubr.f32.gmra.mrb[0].mxu0 %v4099
    %v4394 = vpop.f32.mrb[0].mxu0
    %v4395 = vadd.f32 %v4325, %v4394
    %v4396 = vpop.f32.mrb[0].mxu0
    %4397 = vdwg.mxu0
    %v4398 = vadd.f32 %v4395, %v3730
    %v4399 = vtanh.pop %v4398
    %v4401 = vsel %vm214, %v4399, 0
    %4403 = vmatprep.subr.mxu0 0.0
    %4404 = vmatpush1.msra.mxu0 %v3733
    %4405 = vmatprep.subr.mxu0 0.0
    %4406 = vmatpush1.msra.mxu0 %v3734
    %4407 = vmatprep.subr.mxu0 0.0
    %4408 = vmatpush1.msra.mxu0 %v3735
    %4409 = vmatprep.subr.mxu0 0.0
    %4410 = vmatpush1.msra.mxu0 %v3736
    %4411 = vmatprep.subr.mxu0 0.0
    %4412 = vmatpush1.msra.mxu0 0.0
    %4413 = vmatprep.subr.mxu0 0.0
    %4414 = vmatpush1.msra.mxu0 0.0
    %4415 = vmatprep.subr.mxu0 0.0
    %4416 = vmatpush1.msra.mxu0 0.0
    %4417 = vmatprep.subr.mxu0 0.0
    %4418 = vmatpush1.msra.mxu0 0.0
    %4419 = vmatprep.subr.mxu0 0.0
    %4420 = vmatpush1.msra.mxu0 0.0
    %4421 = vmatprep.subr.mxu0 0.0
    %4422 = vmatpush1.msra.mxu0 0.0
    %4423 = vmatprep.subr.mxu0 0.0
    %4424 = vmatpush1.msra.mxu0 0.0
    %4425 = vmatprep.subr.mxu0 0.0
    %4426 = vmatpush1.msra.mxu0 0.0
    %4427 = vmatprep.subr.mxu0 0.0
    %4428 = vmatpush1.msra.mxu0 0.0
    %4429 = vmatprep.subr.mxu0 0.0
    %4430 = vmatpush1.msra.mxu0 0.0
    %4431 = vmatprep.subr.mxu0 0.0
    %4432 = vmatpush1.msra.mxu0 0.0
    %4433 = vmatprep.subr.mxu0 0.0
    %4434 = vmatpush1.msra.mxu0 0.0
    %4435 = vmatprep.subr.mxu0 0.0
    %4436 = vmatpush1.msra.mxu0 0.0
    %4437 = vmatprep.subr.mxu0 0.0
    %4438 = vmatpush1.msra.mxu0 0.0
    %4439 = vmatprep.subr.mxu0 0.0
    %4440 = vmatpush1.msra.mxu0 0.0
    %4441 = vmatprep.subr.mxu0 0.0
    %4442 = vmatpush1.msra.mxu0 0.0
    %4443 = vmatprep.subr.mxu0 0.0
    %4444 = vmatpush1.msra.mxu0 0.0
    %4445 = vmatprep.subr.mxu0 0.0
    %4446 = vmatpush1.msra.mxu0 0.0
    %4447 = vmatprep.subr.mxu0 0.0
    %4448 = vmatpush1.msra.mxu0 0.0
    %4449 = vmatprep.subr.mxu0 0.0
    %4450 = vmatpush1.msra.mxu0 0.0
    %4451 = vmatprep.subr.mxu0 0.0
    %4452 = vmatpush1.msra.mxu0 0.0
    %4453 = vmatprep.subr.mxu0 0.0
    %4454 = vmatpush1.msra.mxu0 0.0
    %4455 = vmatprep.subr.mxu0 0.0
    %4456 = vmatpush1.msra.mxu0 0.0
    %4457 = vmatprep.subr.mxu0 0.0
    %4458 = vmatpush1.msra.mxu0 0.0
    %4459 = vmatprep.subr.mxu0 0.0
    %4460 = vmatpush1.msra.mxu0 0.0
    %4461 = vmatprep.subr.mxu0 0.0
    %4462 = vmatpush1.msra.mxu0 0.0
    %4463 = vmatprep.subr.mxu0 0.0
    %4464 = vmatpush1.msra.mxu0 0.0
    %4465 = vmatprep.subr.mxu0 0.0
    %4466 = vmatpush1.msra.mxu0 0.0
    %4467 = vmatprep.mubr.f32.mxu0 0.0
    %4468 = vmatmul.mubr.f32.gmra.mrb[0].mxu0 %v4401
    %v4469 = vpop.f32.mrb[0].mxu0
    %v4470 = vadd.f32 %v3737, %v4469
    %v4471 = vpop.f32.mrb[0].mxu0
    %4472 = vdwg.mxu0
    %v4473 = vsel %vm3811, %v4470, -inf
    %4474 = vmax.xlane.f32.xlu0 %v4473
    %v4475 = vpop.xlane.xlu0 %4474
    %v4476 = vsub.f32 %v4470, %v4475
    %v4477 = vmul.f32 %v4476, 1.442695
    %v4478 = vpow.pop %v4477
    %v4479 = vsel %vm3811, %v4478, 0.0
    %4480 = vadd.xlane.f32.xlu0 %v4479
    %v4481 = vpop.xlane.xlu0 %4480
    %v4482 = vrcp.pop %v4481
    %vm4483 = vcmp.ge.f32.partialorder %v4470, %v4475
    %v4484 = vsel %vm4483, %v3232, 64
    %v4485 = vsel %vm3811, %v4484, 2147483647
    %v4486 = vand.u32 %v4485, 65535
    %v4487 = vshra.s32 %v4485, 16
    %v4488 = vcvt.s32.f32 %v4486
    %v4489 = vcvt.s32.f32 %v4487
    %4490 = vmin.xlane.f32.xlu0 %v4489
    %v4491 = vpop.xlane.xlu0 %4490
    %vm4492 = vcmp.eq.f32.partialorder %v4489, %v4491
    %v4493 = vsel %vm4492, %v4488, inf
    %4494 = vmin.xlane.f32.xlu0 %v4493
    %v4495 = vpop.xlane.xlu0 %4494
    %v4496 = vcvt.f32.s32 %v4495
    %v4497 = vcvt.f32.s32 %v4491
    %v4498 = vshll.u32 %v4497, 16
    %v4499 = vadd.s32 %v4498, %v4496
    %vm4500 = vcmp.eq.s32.totalorder %v3232, 1
    %v4501 = vsel %vm4500, %v4499, %v3840
    %v4502 = vsel %vm4500, %v4482, %v3841
    %vm4503 = vcmp.eq.s32.totalorder %v3232, %v4499
    %v4504 = vsel %vm4503, 1, 0
    %v4505 = vcvt.s32.f32 %v4504
    %v4507 = vsel %vm3853, %v4505, 0
    %4509 = vmatprep.subr.mxu0 0.0
    %4510 = vmatpush1.msra.mxu0 %v3845
    %4511 = vmatprep.subr.mxu0 0.0
    %4512 = vmatpush1.msra.mxu0 %v3846
    %4513 = vmatprep.subr.mxu0 0.0
    %4514 = vmatpush1.msra.mxu0 %v3847
    %4515 = vmatprep.subr.mxu0 0.0
    %4516 = vmatpush1.msra.mxu0 %v3848
    %4517 = vmatprep.subr.mxu0 0.0
    %4518 = vmatpush1.msra.mxu0 %v3849
    %4519 = vmatprep.subr.mxu0 0.0
    %4520 = vmatpush1.msra.mxu0 %v3850
    %4521 = vmatprep.subr.mxu0 0.0
    %4522 = vmatpush1.msra.mxu0 %v3851
    %4523 = vmatprep.subr.mxu0 0.0
    %4524 = vmatpush1.msra.mxu0 %v3852
    %4525 = vmatprep.subr.mxu0 0.0
    %4526 = vmatpush1.msra.mxu0 0.0
    %4527 = vmatprep.subr.mxu0 0.0
    %4528 = vmatpush1.msra.mxu0 0.0
    %4529 = vmatprep.subr.mxu0 0.0
    %4530 = vmatpush1.msra.mxu0 0.0
    %4531 = vmatprep.subr.mxu0 0.0
    %4532 = vmatpush1.msra.mxu0 0.0
    %4533 = vmatprep.subr.mxu0 0.0
    %4534 = vmatpush1.msra.mxu0 0.0
    %4535 = vmatprep.subr.mxu0 0.0
    %4536 = vmatpush1.msra.mxu0 0.0
    %4537 = vmatprep.subr.mxu0 0.0
    %4538 = vmatpush1.msra.mxu0 0.0
    %4539 = vmatprep.subr.mxu0 0.0
    %4540 = vmatpush1.msra.mxu0 0.0
    %4541 = vmatprep.subr.mxu0 0.0
    %4542 = vmatpush1.msra.mxu0 0.0
    %4543 = vmatprep.subr.mxu0 0.0
    %4544 = vmatpush1.msra.mxu0 0.0
    %4545 = vmatprep.subr.mxu0 0.0
    %4546 = vmatpush1.msra.mxu0 0.0
    %4547 = vmatprep.subr.mxu0 0.0
    %4548 = vmatpush1.msra.mxu0 0.0
    %4549 = vmatprep.subr.mxu0 0.0
    %4550 = vmatpush1.msra.mxu0 0.0
    %4551 = vmatprep.subr.mxu0 0.0
    %4552 = vmatpush1.msra.mxu0 0.0
    %4553 = vmatprep.subr.mxu0 0.0
    %4554 = vmatpush1.msra.mxu0 0.0
    %4555 = vmatprep.subr.mxu0 0.0
    %4556 = vmatpush1.msra.mxu0 0.0
    %4557 = vmatprep.subr.mxu0 0.0
    %4558 = vmatpush1.msra.mxu0 0.0
    %4559 = vmatprep.subr.mxu0 0.0
    %4560 = vmatpush1.msra.mxu0 0.0
    %4561 = vmatprep.subr.mxu0 0.0
    %4562 = vmatpush1.msra.mxu0 0.0
    %4563 = vmatprep.subr.mxu0 0.0
    %4564 = vmatpush1.msra.mxu0 0.0
    %4565 = vmatprep.subr.mxu0 0.0
    %4566 = vmatpush1.msra.mxu0 0.0
    %4567 = vmatprep.subr.mxu0 0.0
    %4568 = vmatpush1.msra.mxu0 0.0
    %4569 = vmatprep.subr.mxu0 0.0
    %4570 = vmatpush1.msra.mxu0 0.0
    %4571 = vmatprep.subr.mxu0 0.0
    %4572 = vmatpush1.msra.mxu0 0.0
    %4573 = vmatprep.mubr.f32.mxu0 0.0
    %4574 = vmatmul.mubr.f32.gmra.mrb[0].mxu0 %v4507
    %v4575 = vpop.f32.mrb[0].mxu0
    %v4576 = vadd.f32 0.0, %v4575
    %v4577 = vpop.f32.mrb[0].mxu0
    %4578 = vdwg.mxu0
    %v4580 = vsel %vm214, %v4576, 0
    %4582 = vmatprep.subr.mxu0 0.0
    %4583 = vmatpush1.msra.mxu0 %v3234
    %4584 = vmatprep.subr.mxu0 0.0
    %4585 = vmatpush1.msra.mxu0 %v3235
    %4586 = vmatprep.subr.mxu0 0.0
    %4587 = vmatpush1.msra.mxu0 %v3236
    %4588 = vmatprep.subr.mxu0 0.0
    %4589 = vmatpush1.msra.mxu0 %v3237
    %4590 = vmatprep.subr.mxu0 0.0
    %4591 = vmatpush1.msra.mxu0 0.0
    %4592 = vmatprep.subr.mxu0 0.0
    %4593 = vmatpush1.msra.mxu0 0.0
    %4594 = vmatprep.subr.mxu0 0.0
    %4595 = vmatpush1.msra.mxu0 0.0
    %4596 = vmatprep.subr.mxu0 0.0
    %4597 = vmatpush1.msra.mxu0 0.0
    %4598 = vmatprep.subr.mxu0 0.0
    %4599 = vmatpush1.msra.mxu0 0.0
    %4600 = vmatprep.subr.mxu0 0.0
    %4601 = vmatpush1.msra.mxu0 0.0
    %4602 = vmatprep.subr.mxu0 0.0
    %4603 = vmatpush1.msra.mxu0 0.0
    %4604 = vmatprep.subr.mxu0 0.0
    %4605 = vmatpush1.msra.mxu0 0.0
    %4606 = vmatprep.subr.mxu0 0.0
    %4607 = vmatpush1.msra.mxu0 0.0
    %4608 = vmatprep.subr.mxu0 0.0
    %4609 = vmatpush1.msra.mxu0 0.0
    %4610 = vmatprep.subr.mxu0 0.0
    %4611 = vmatpush1.msra.mxu0 0.0
    %4612 = vmatprep.subr.mxu0 0.0
    %4613 = vmatpush1.msra.mxu0 0.0
    %4614 = vmatprep.subr.mxu0 0.0
    %4615 = vmatpush1.msra.mxu0 0.0
    %4616 = vmatprep.subr.mxu0 0.0
    %4617 = vmatpush1.msra.mxu0 0.0
    %4618 = vmatprep.subr.mxu0 0.0
    %4619 = vmatpush1.msra.mxu0 0.0
    %4620 = vmatprep.subr.mxu0 0.0
    %4621 = vmatpush1.msra.mxu0 0.0
    %4622 = vmatprep.subr.mxu0 0.0
    %4623 = vmatpush1.msra.mxu0 0.0
    %4624 = vmatprep.subr.mxu0 0.0
    %4625 = vmatpush1.msra.mxu0 0.0
    %4626 = vmatprep.subr.mxu0 0.0
    %4627 = vmatpush1.msra.mxu0 0.0
    %4628 = vmatprep.subr.mxu0 0.0
    %4629 = vmatpush1.msra.mxu0 0.0
    %4630 = vmatprep.subr.mxu0 0.0
    %4631 = vmatpush1.msra.mxu0 0.0
    %4632 = vmatprep.subr.mxu0 0.0
    %4633 = vmatpush1.msra.mxu0 0.0
    %4634 = vmatprep.subr.mxu0 0.0
    %4635 = vmatpush1.msra.mxu0 0.0
    %4636 = vmatprep.subr.mxu0 0.0
    %4637 = vmatpush1.msra.mxu0 0.0
    %4638 = vmatprep.subr.mxu0 0.0
    %4639 = vmatpush1.msra.mxu0 0.0
    %4640 = vmatprep.subr.mxu0 0.0
    %4641 = vmatpush1.msra.mxu0 0.0
    %4642 = vmatprep.subr.mxu0 0.0
    %4643 = vmatpush1.msra.mxu0 0.0
    %4644 = vmatprep.subr.mxu0 0.0
    %4645 = vmatpush1.msra.mxu0 0.0
    %4646 = vmatprep.mubr.f32.mxu0 0.0
    %4647 = vmatmul.mubr.f32.gmra.mrb[0].mxu0 %v4580
    %v4648 = vpop.f32.mrb[0].mxu0
    %v4649 = vadd.f32 %v3238, %v4648
    %v4650 = vpop.f32.mrb[0].mxu0
    %4651 = vdwg.mxu0
    %4652 = vmatprep.subr.mxu0 0.0
    %4653 = vmatpush1.msra.mxu0 %v3312
    %4654 = vmatprep.subr.mxu0 0.0
    %4655 = vmatpush1.msra.mxu0 %v3313
    %4656 = vmatprep.subr.mxu0 0.0
    %4657 = vmatpush1.msra.mxu0 %v3314
    %4658 = vmatprep.subr.mxu0 0.0
    %4659 = vmatpush1.msra.mxu0 %v3315
    %4660 = vmatprep.subr.mxu0 0.0
    %4661 = vmatpush1.msra.mxu0 0.0
    %4662 = vmatprep.subr.mxu0 0.0
    %4663 = vmatpush1.msra.mxu0 0.0
    %4664 = vmatprep.subr.mxu0 0.0
    %4665 = vmatpush1.msra.mxu0 0.0
    %4666 = vmatprep.subr.mxu0 0.0
    %4667 = vmatpush1.msra.mxu0 0.0
    %4668 = vmatprep.subr.mxu0 0.0
    %4669 = vmatpush1.msra.mxu0 0.0
    %4670 = vmatprep.subr.mxu0 0.0
    %4671 = vmatpush1.msra.mxu0 0.0
    %4672 = vmatprep.subr.mxu0 0.0
    %4673 = vmatpush1.msra.mxu0 0.0
    %4674 = vmatprep.subr.mxu0 0.0
    %4675 = vmatpush1.msra.mxu0 0.0
    %4676 = vmatprep.subr.mxu0 0.0
    %4677 = vmatpush1.msra.mxu0 0.0
    %4678 = vmatprep.subr.mxu0 0.0
    %4679 = vmatpush1.msra.mxu0 0.0
    %4680 = vmatprep.subr.mxu0 0.0
    %4681 = vmatpush1.msra.mxu0 0.0
    %4682 = vmatprep.subr.mxu0 0.0
    %4683 = vmatpush1.msra.mxu0 0.0
    %4684 = vmatprep.subr.mxu0 0.0
    %4685 = vmatpush1.msra.mxu0 0.0
    %4686 = vmatprep.subr.mxu0 0.0
    %4687 = vmatpush1.msra.mxu0 0.0
    %4688 = vmatprep.subr.mxu0 0.0
    %4689 = vmatpush1.msra.mxu0 0.0
    %4690 = vmatprep.subr.mxu0 0.0
    %4691 = vmatpush1.msra.mxu0 0.0
    %4692 = vmatprep.subr.mxu0 0.0
    %4693 = vmatpush1.msra.mxu0 0.0
    %4694 = vmatprep.subr.mxu0 0.0
    %4695 = vmatpush1.msra.mxu0 0.0
    %4696 = vmatprep.subr.mxu0 0.0
    %4697 = vmatpush1.msra.mxu0 0.0
    %4698 = vmatprep.subr.mxu0 0.0
    %4699 = vmatpush1.msra.mxu0 0.0
    %4700 = vmatprep.subr.mxu0 0.0
    %4701 = vmatpush1.msra.mxu0 0.0
    %4702 = vmatprep.subr.mxu0 0.0
    %4703 = vmatpush1.msra.mxu0 0.0
    %4704 = vmatprep.subr.mxu0 0.0
    %4705 = vmatpush1.msra.mxu0 0.0
    %4706 = vmatprep.subr.mxu0 0.0
    %4707 = vmatpush1.msra.mxu0 0.0
    %4708 = vmatprep.subr.mxu0 0.0
    %4709 = vmatpush1.msra.mxu0 0.0
    %4710 = vmatprep.subr.mxu0 0.0
    %4711 = vmatpush1.msra.mxu0 0.0
    %4712 = vmatprep.subr.mxu0 0.0
    %4713 = vmatpush1.msra.mxu0 0.0
    %4714 = vmatprep.subr.mxu0 0.0
    %4715 = vmatpush1.msra.mxu0 0.0
    %4716 = vmatprep.mubr.f32.mxu0 0.0
    %4717 = vmatmul.mubr.f32.gmra.mrb[0].mxu0 %v4099
    %v4718 = vpop.f32.mrb[0].mxu0
    %v4719 = vadd.f32 %v3316, %v4718
    %v4720 = vpop.f32.mrb[0].mxu0
    %4721 = vdwg.mxu0
    %v4722 = vadd.f32 %v4649, %v4719
    %v4723 = vxor.u32 %v4722, 2147483648
    %v4724 = vmul.f32 %v4723, 1.442695
    %v4725 = vpow.pop %v4724
    %v4726 = vadd.f32 %v4725, 1.0
    %v4727 = vrcp.pop %v4726
    %v4728 = vmul.f32 1.0, %v4727
    %4730 = vrot.lane.b32.xlu0 %v4719, 64
    %v4731 = vpop.permute.xlu0 %4730
    %v4733 = vmul.f32 %v4728, %v4731
    %4735 = vrot.lane.b32.xlu0 %v4733, 64
    %v4736 = vpop.permute.xlu0 %4735
    %v4738 = vadd.f32 %v4649, %v4736
    %v4739 = vtanh.pop %v4738
    %v4740 = vsub.f32 1.0, %v4728
    %4742 = vrot.lane.b32.xlu0 %v4739, 96
    %v4743 = vpop.permute.xlu0 %4742
    %v4745 = vmul.f32 %v4740, %v4743
    %v4746 = vmul.f32 %v4728, %v4095
    %v4747 = vadd.f32 %v4745, %v4746
    %4749 = vrot.lane.b32.xlu0 %v4747, 96
    %v4750 = vpop.permute.xlu0 %4749
    %v4751 = vsel %vm214, %v4750, 0
    %4753 = vmatprep.subr.mxu0 0.0
    %4754 = vmatpush1.xpose.msra.mxu0 %v3421
    %4755 = vmatprep.subr.mxu0 0.0
    %4756 = vmatpush1.xpose.msra.mxu0 0.0
    %4757 = vmatprep.subr.mxu0 0.0
    %4758 = vmatpush1.xpose.msra.mxu0 0.0
    %4759 = vmatprep.subr.mxu0 0.0
    %4760 = vmatpush1.xpose.msra.mxu0 0.0
    %4761 = vmatprep.subr.mxu0 0.0
    %4762 = vmatpush1.xpose.msra.mxu0 0.0
    %4763 = vmatprep.subr.mxu0 0.0
    %4764 = vmatpush1.xpose.msra.mxu0 0.0
    %4765 = vmatprep.subr.mxu0 0.0
    %4766 = vmatpush1.xpose.msra.mxu0 0.0
    %4767 = vmatprep.subr.mxu0 0.0
    %4768 = vmatpush1.xpose.msra.mxu0 0.0
    %4769 = vmatprep.subr.mxu0 0.0
    %4770 = vmatpush1.xpose.msra.mxu0 0.0
    %4771 = vmatprep.subr.mxu0 0.0
    %4772 = vmatpush1.xpose.msra.mxu0 0.0
    %4773 = vmatprep.subr.mxu0 0.0
    %4774 = vmatpush1.xpose.msra.mxu0 0.0
    %4775 = vmatprep.subr.mxu0 0.0
    %4776 = vmatpush1.xpose.msra.mxu0 0.0
    %4777 = vmatprep.subr.mxu0 0.0
    %4778 = vmatpush1.xpose.msra.mxu0 0.0
    %4779 = vmatprep.subr.mxu0 0.0
    %4780 = vmatpush1.xpose.msra.mxu0 0.0
    %4781 = vmatprep.subr.mxu0 0.0
    %4782 = vmatpush1.xpose.msra.mxu0 0.0
    %4783 = vmatprep.subr.mxu0 0.0
    %4784 = vmatpush1.xpose.msra.mxu0 0.0
    %4785 = vmatprep.subr.mxu0 0.0
    %4786 = vmatpush1.xpose.msra.mxu0 0.0
    %4787 = vmatprep.subr.mxu0 0.0
    %4788 = vmatpush1.xpose.msra.mxu0 0.0
    %4789 = vmatprep.subr.mxu0 0.0
    %4790 = vmatpush1.xpose.msra.mxu0 0.0
    %4791 = vmatprep.subr.mxu0 0.0
    %4792 = vmatpush1.xpose.msra.mxu0 0.0
    %4793 = vmatprep.subr.mxu0 0.0
    %4794 = vmatpush1.xpose.msra.mxu0 0.0
    %4795 = vmatprep.subr.mxu0 0.0
    %4796 = vmatpush1.xpose.msra.mxu0 0.0
    %4797 = vmatprep.subr.mxu0 0.0
    %4798 = vmatpush1.xpose.msra.mxu0 0.0
    %4799 = vmatprep.subr.mxu0 0.0
    %4800 = vmatpush1.xpose.msra.mxu0 0.0
    %4801 = vmatprep.subr.mxu0 0.0
    %4802 = vmatpush1.xpose.msra.mxu0 0.0
    %4803 = vmatprep.subr.mxu0 0.0
    %4804 = vmatpush1.xpose.msra.mxu0 0.0
    %4805 = vmatprep.subr.mxu0 0.0
    %4806 = vmatpush1.xpose.msra.mxu0 0.0
    %4807 = vmatprep.subr.mxu0 0.0
    %4808 = vmatpush1.xpose.msra.mxu0 0.0
    %4809 = vmatprep.subr.mxu0 0.0
    %4810 = vmatpush1.xpose.msra.mxu0 0.0
    %4811 = vmatprep.subr.mxu0 0.0
    %4812 = vmatpush1.xpose.msra.mxu0 0.0
    %4813 = vmatprep.subr.mxu0 0.0
    %4814 = vmatpush1.xpose.msra.mxu0 0.0
    %4815 = vmatprep.subr.mxu0 0.0
    %4816 = vmatpush1.xpose.msra.mxu0 0.0
    %4817 = vmatprep.mubr.f32.mxu0 0.0
    %4818 = vmatmul.mubr.f32.gmra.mrb[0].mxu0 %v4751
    %v4819 = vpop.f32.mrb[0].mxu0
    %v4820 = vadd.f32 0.0, %v4819
    %v4821 = vpop.f32.mrb[0].mxu0
    %4822 = vdwg.mxu0
    %v4823 = vsel %vm3493, %v4820, -inf
    %4824 = vmax.xlane.f32.xlu0 %v4823
    %v4825 = vpop.xlane.xlu0 %4824
    %v4826 = vsub.f32 %v4820, %v4825
    %v4827 = vmul.f32 %v4826, 1.442695
    %v4828 = vpow.pop %v4827
    %v4829 = vsel %vm3493, %v4828, 0.0
    %4830 = vadd.xlane.f32.xlu0 %v4829
    %v4831 = vpop.xlane.xlu0 %4830
    %v4832 = vrcp.pop %v4831
    %v4833 = vmul.f32 %v4828, %v4832
    %v4835 = vsel %vm3505, %v4833, 0
    %4837 = vmatprep.subr.mxu0 0.0
    %4838 = vmatpush1.msra.mxu0 %v3230
    %4839 = vmatprep.subr.mxu0 0.0
    %4840 = vmatpush1.msra.mxu0 0.0
    %4841 = vmatprep.subr.mxu0 0.0
    %4842 = vmatpush1.msra.mxu0 0.0
    %4843 = vmatprep.subr.mxu0 0.0
    %4844 = vmatpush1.msra.mxu0 0.0
    %4845 = vmatprep.subr.mxu0 0.0
    %4846 = vmatpush1.msra.mxu0 0.0
    %4847 = vmatprep.subr.mxu0 0.0
    %4848 = vmatpush1.msra.mxu0 0.0
    %4849 = vmatprep.subr.mxu0 0.0
    %4850 = vmatpush1.msra.mxu0 0.0
    %4851 = vmatprep.subr.mxu0 0.0
    %4852 = vmatpush1.msra.mxu0 0.0
    %4853 = vmatprep.subr.mxu0 0.0
    %4854 = vmatpush1.msra.mxu0 0.0
    %4855 = vmatprep.subr.mxu0 0.0
    %4856 = vmatpush1.msra.mxu0 0.0
    %4857 = vmatprep.subr.mxu0 0.0
    %4858 = vmatpush1.msra.mxu0 0.0
    %4859 = vmatprep.subr.mxu0 0.0
    %4860 = vmatpush1.msra.mxu0 0.0
    %4861 = vmatprep.subr.mxu0 0.0
    %4862 = vmatpush1.msra.mxu0 0.0
    %4863 = vmatprep.subr.mxu0 0.0
    %4864 = vmatpush1.msra.mxu0 0.0
    %4865 = vmatprep.subr.mxu0 0.0
    %4866 = vmatpush1.msra.mxu0 0.0
    %4867 = vmatprep.subr.mxu0 0.0
    %4868 = vmatpush1.msra.mxu0 0.0
    %4869 = vmatprep.subr.mxu0 0.0
    %4870 = vmatpush1.msra.mxu0 0.0
    %4871 = vmatprep.subr.mxu0 0.0
    %4872 = vmatpush1.msra.mxu0 0.0
    %4873 = vmatprep.subr.mxu0 0.0
    %4874 = vmatpush1.msra.mxu0 0.0
    %4875 = vmatprep.subr.mxu0 0.0
    %4876 = vmatpush1.msra.mxu0 0.0
    %4877 = vmatprep.subr.mxu0 0.0
    %4878 = vmatpush1.msra.mxu0 0.0
    %4879 = vmatprep.subr.mxu0 0.0
    %4880 = vmatpush1.msra.mxu0 0.0
    %4881 = vmatprep.subr.mxu0 0.0
    %4882 = vmatpush1.msra.mxu0 0.0
    %4883 = vmatprep.subr.mxu0 0.0
    %4884 = vmatpush1.msra.mxu0 0.0
    %4885 = vmatprep.subr.mxu0 0.0
    %4886 = vmatpush1.msra.mxu0 0.0
    %4887 = vmatprep.subr.mxu0 0.0
    %4888 = vmatpush1.msra.mxu0 0.0
    %4889 = vmatprep.subr.mxu0 0.0
    %4890 = vmatpush1.msra.mxu0 0.0
    %4891 = vmatprep.subr.mxu0 0.0
    %4892 = vmatpush1.msra.mxu0 0.0
    %4893 = vmatprep.subr.mxu0 0.0
    %4894 = vmatpush1.msra.mxu0 0.0
    %4895 = vmatprep.subr.mxu0 0.0
    %4896 = vmatpush1.msra.mxu0 0.0
    %4897 = vmatprep.subr.mxu0 0.0
    %4898 = vmatpush1.msra.mxu0 0.0
    %4899 = vmatprep.subr.mxu0 0.0
    %4900 = vmatpush1.msra.mxu0 0.0
    %4901 = vmatprep.mubr.f32.mxu0 0.0
    %4902 = vmatmul.mubr.f32.gmra.mrb[0].mxu0 %v4835
    %v4903 = vpop.f32.mrb[0].mxu0
    %v4904 = vadd.f32 0.0, %v4903
    %v4905 = vpop.f32.mrb[0].mxu0
    %4906 = vdwg.mxu0
    %v4908 = vsel %vm214, %v4904, 0
    %4910 = vmatprep.subr.mxu0 0.0
    %4911 = vmatpush1.msra.mxu0 %v3583
    %4912 = vmatprep.subr.mxu0 0.0
    %4913 = vmatpush1.msra.mxu0 %v3584
    %4914 = vmatprep.subr.mxu0 0.0
    %4915 = vmatpush1.msra.mxu0 %v3585
    %4916 = vmatprep.subr.mxu0 0.0
    %4917 = vmatpush1.msra.mxu0 %v3586
    %4918 = vmatprep.subr.mxu0 0.0
    %4919 = vmatpush1.msra.mxu0 0.0
    %4920 = vmatprep.subr.mxu0 0.0
    %4921 = vmatpush1.msra.mxu0 0.0
    %4922 = vmatprep.subr.mxu0 0.0
    %4923 = vmatpush1.msra.mxu0 0.0
    %4924 = vmatprep.subr.mxu0 0.0
    %4925 = vmatpush1.msra.mxu0 0.0
    %4926 = vmatprep.subr.mxu0 0.0
    %4927 = vmatpush1.msra.mxu0 0.0
    %4928 = vmatprep.subr.mxu0 0.0
    %4929 = vmatpush1.msra.mxu0 0.0
    %4930 = vmatprep.subr.mxu0 0.0
    %4931 = vmatpush1.msra.mxu0 0.0
    %4932 = vmatprep.subr.mxu0 0.0
    %4933 = vmatpush1.msra.mxu0 0.0
    %4934 = vmatprep.subr.mxu0 0.0
    %4935 = vmatpush1.msra.mxu0 0.0
    %4936 = vmatprep.subr.mxu0 0.0
    %4937 = vmatpush1.msra.mxu0 0.0
    %4938 = vmatprep.subr.mxu0 0.0
    %4939 = vmatpush1.msra.mxu0 0.0
    %4940 = vmatprep.subr.mxu0 0.0
    %4941 = vmatpush1.msra.mxu0 0.0
    %4942 = vmatprep.subr.mxu0 0.0
    %4943 = vmatpush1.msra.mxu0 0.0
    %4944 = vmatprep.subr.mxu0 0.0
    %4945 = vmatpush1.msra.mxu0 0.0
    %4946 = vmatprep.subr.mxu0 0.0
    %4947 = vmatpush1.msra.mxu0 0.0
    %4948 = vmatprep.subr.mxu0 0.0
    %4949 = vmatpush1.msra.mxu0 0.0
    %4950 = vmatprep.subr.mxu0 0.0
    %4951 = vmatpush1.msra.mxu0 0.0
    %4952 = vmatprep.subr.mxu0 0.0
    %4953 = vmatpush1.msra.mxu0 0.0
    %4954 = vmatprep.subr.mxu0 0.0
    %4955 = vmatpush1.msra.mxu0 0.0
    %4956 = vmatprep.subr.mxu0 0.0
    %4957 = vmatpush1.msra.mxu0 0.0
    %4958 = vmatprep.subr.mxu0 0.0
    %4959 = vmatpush1.msra.mxu0 0.0
    %4960 = vmatprep.subr.mxu0 0.0
    %4961 = vmatpush1.msra.mxu0 0.0
    %4962 = vmatprep.subr.mxu0 0.0
    %4963 = vmatpush1.msra.mxu0 0.0
    %4964 = vmatprep.subr.mxu0 0.0
    %4965 = vmatpush1.msra.mxu0 0.0
    %4966 = vmatprep.subr.mxu0 0.0
    %4967 = vmatpush1.msra.mxu0 0.0
    %4968 = vmatprep.subr.mxu0 0.0
    %4969 = vmatpush1.msra.mxu0 0.0
    %4970 = vmatprep.subr.mxu0 0.0
    %4971 = vmatpush1.msra.mxu0 0.0
    %4972 = vmatprep.subr.mxu0 0.0
    %4973 = vmatpush1.msra.mxu0 0.0
    %4974 = vmatprep.mubr.f32.mxu0 0.0
    %4975 = vmatmul.mubr.f32.gmra.mrb[0].mxu0 %v4908
    %v4976 = vpop.f32.mrb[0].mxu0
    %v4977 = vadd.f32 0.0, %v4976
    %v4978 = vpop.f32.mrb[0].mxu0
    %4979 = vdwg.mxu0
    %4980 = vmatprep.subr.mxu0 0.0
    %4981 = vmatpush1.msra.mxu0 %v3579
    %4982 = vmatprep.subr.mxu0 0.0
    %4983 = vmatpush1.msra.mxu0 %v3580
    %4984 = vmatprep.subr.mxu0 0.0
    %4985 = vmatpush1.msra.mxu0 %v3581
    %4986 = vmatprep.subr.mxu0 0.0
    %4987 = vmatpush1.msra.mxu0 %v3582
    %4988 = vmatprep.subr.mxu0 0.0
    %4989 = vmatpush1.msra.mxu0 0.0
    %4990 = vmatprep.subr.mxu0 0.0
    %4991 = vmatpush1.msra.mxu0 0.0
    %4992 = vmatprep.subr.mxu0 0.0
    %4993 = vmatpush1.msra.mxu0 0.0
    %4994 = vmatprep.subr.mxu0 0.0
    %4995 = vmatpush1.msra.mxu0 0.0
    %4996 = vmatprep.subr.mxu0 0.0
    %4997 = vmatpush1.msra.mxu0 0.0
    %4998 = vmatprep.subr.mxu0 0.0
    %4999 = vmatpush1.msra.mxu0 0.0
    %5000 = vmatprep.subr.mxu0 0.0
    %5001 = vmatpush1.msra.mxu0 0.0
    %5002 = vmatprep.subr.mxu0 0.0
    %5003 = vmatpush1.msra.mxu0 0.0
    %5004 = vmatprep.subr.mxu0 0.0
    %5005 = vmatpush1.msra.mxu0 0.0
    %5006 = vmatprep.subr.mxu0 0.0
    %5007 = vmatpush1.msra.mxu0 0.0
    %5008 = vmatprep.subr.mxu0 0.0
    %5009 = vmatpush1.msra.mxu0 0.0
    %5010 = vmatprep.subr.mxu0 0.0
    %5011 = vmatpush1.msra.mxu0 0.0
    %5012 = vmatprep.subr.mxu0 0.0
    %5013 = vmatpush1.msra.mxu0 0.0
    %5014 = vmatprep.subr.mxu0 0.0
    %5015 = vmatpush1.msra.mxu0 0.0
    %5016 = vmatprep.subr.mxu0 0.0
    %5017 = vmatpush1.msra.mxu0 0.0
    %5018 = vmatprep.subr.mxu0 0.0
    %5019 = vmatpush1.msra.mxu0 0.0
    %5020 = vmatprep.subr.mxu0 0.0
    %5021 = vmatpush1.msra.mxu0 0.0
    %5022 = vmatprep.subr.mxu0 0.0
    %5023 = vmatpush1.msra.mxu0 0.0
    %5024 = vmatprep.subr.mxu0 0.0
    %5025 = vmatpush1.msra.mxu0 0.0
    %5026 = vmatprep.subr.mxu0 0.0
    %5027 = vmatpush1.msra.mxu0 0.0
    %5028 = vmatprep.subr.mxu0 0.0
    %5029 = vmatpush1.msra.mxu0 0.0
    %5030 = vmatprep.subr.mxu0 0.0
    %5031 = vmatpush1.msra.mxu0 0.0
    %5032 = vmatprep.subr.mxu0 0.0
    %5033 = vmatpush1.msra.mxu0 0.0
    %5034 = vmatprep.subr.mxu0 0.0
    %5035 = vmatpush1.msra.mxu0 0.0
    %5036 = vmatprep.subr.mxu0 0.0
    %5037 = vmatpush1.msra.mxu0 0.0
    %5038 = vmatprep.subr.mxu0 0.0
    %5039 = vmatpush1.msra.mxu0 0.0
    %5040 = vmatprep.subr.mxu0 0.0
    %5041 = vmatpush1.msra.mxu0 0.0
    %5042 = vmatprep.subr.mxu0 0.0
    %5043 = vmatpush1.msra.mxu0 0.0
    %5044 = vmatprep.mubr.f32.mxu0 0.0
    %5045 = vmatmul.mubr.f32.gmra.mrb[0].mxu0 %v4751
    %v5046 = vpop.f32.mrb[0].mxu0
    %v5047 = vadd.f32 %v4977, %v5046
    %v5048 = vpop.f32.mrb[0].mxu0
    %5049 = vdwg.mxu0
    %v5050 = vadd.f32 %v5047, %v3730
    %v5051 = vtanh.pop %v5050
    %v5053 = vsel %vm214, %v5051, 0
    %5055 = vmatprep.subr.mxu0 0.0
    %5056 = vmatpush1.msra.mxu0 %v3733
    %5057 = vmatprep.subr.mxu0 0.0
    %5058 = vmatpush1.msra.mxu0 %v3734
    %5059 = vmatprep.subr.mxu0 0.0
    %5060 = vmatpush1.msra.mxu0 %v3735
    %5061 = vmatprep.subr.mxu0 0.0
    %5062 = vmatpush1.msra.mxu0 %v3736
    %5063 = vmatprep.subr.mxu0 0.0
    %5064 = vmatpush1.msra.mxu0 0.0
    %5065 = vmatprep.subr.mxu0 0.0
    %5066 = vmatpush1.msra.mxu0 0.0
    %5067 = vmatprep.subr.mxu0 0.0
    %5068 = vmatpush1.msra.mxu0 0.0
    %5069 = vmatprep.subr.mxu0 0.0
    %5070 = vmatpush1.msra.mxu0 0.0
    %5071 = vmatprep.subr.mxu0 0.0
    %5072 = vmatpush1.msra.mxu0 0.0
    %5073 = vmatprep.subr.mxu0 0.0
    %5074 = vmatpush1.msra.mxu0 0.0
    %5075 = vmatprep.subr.mxu0 0.0
    %5076 = vmatpush1.msra.mxu0 0.0
    %5077 = vmatprep.subr.mxu0 0.0
    %5078 = vmatpush1.msra.mxu0 0.0
    %5079 = vmatprep.subr.mxu0 0.0
    %5080 = vmatpush1.msra.mxu0 0.0
    %5081 = vmatprep.subr.mxu0 0.0
    %5082 = vmatpush1.msra.mxu0 0.0
    %5083 = vmatprep.subr.mxu0 0.0
    %5084 = vmatpush1.msra.mxu0 0.0
    %5085 = vmatprep.subr.mxu0 0.0
    %5086 = vmatpush1.msra.mxu0 0.0
    %5087 = vmatprep.subr.mxu0 0.0
    %5088 = vmatpush1.msra.mxu0 0.0
    %5089 = vmatprep.subr.mxu0 0.0
    %5090 = vmatpush1.msra.mxu0 0.0
    %5091 = vmatprep.subr.mxu0 0.0
    %5092 = vmatpush1.msra.mxu0 0.0
    %5093 = vmatprep.subr.mxu0 0.0
    %5094 = vmatpush1.msra.mxu0 0.0
    %5095 = vmatprep.subr.mxu0 0.0
    %5096 = vmatpush1.msra.mxu0 0.0
    %5097 = vmatprep.subr.mxu0 0.0
    %5098 = vmatpush1.msra.mxu0 0.0
    %5099 = vmatprep.subr.mxu0 0.0
    %5100 = vmatpush1.msra.mxu0 0.0
    %5101 = vmatprep.subr.mxu0 0.0
    %5102 = vmatpush1.msra.mxu0 0.0
    %5103 = vmatprep.subr.mxu0 0.0
    %5104 = vmatpush1.msra.mxu0 0.0
    %5105 = vmatprep.subr.mxu0 0.0
    %5106 = vmatpush1.msra.mxu0 0.0
    %5107 = vmatprep.subr.mxu0 0.0
    %5108 = vmatpush1.msra.mxu0 0.0
    %5109 = vmatprep.subr.mxu0 0.0
    %5110 = vmatpush1.msra.mxu0 0.0
    %5111 = vmatprep.subr.mxu0 0.0
    %5112 = vmatpush1.msra.mxu0 0.0
    %5113 = vmatprep.subr.mxu0 0.0
    %5114 = vmatpush1.msra.mxu0 0.0
    %5115 = vmatprep.subr.mxu0 0.0
    %5116 = vmatpush1.msra.mxu0 0.0
    %5117 = vmatprep.subr.mxu0 0.0
    %5118 = vmatpush1.msra.mxu0 0.0
    %5119 = vmatprep.mubr.f32.mxu0 0.0
    %5120 = vmatmul.mubr.f32.gmra.mrb[0].mxu0 %v5053
    %v5121 = vpop.f32.mrb[0].mxu0
    %v5122 = vadd.f32 %v3737, %v5121
    %v5123 = vpop.f32.mrb[0].mxu0
    %5124 = vdwg.mxu0
    %v5125 = vsel %vm3811, %v5122, -inf
    %5126 = vmax.xlane.f32.xlu0 %v5125
    %v5127 = vpop.xlane.xlu0 %5126
    %v5128 = vsub.f32 %v5122, %v5127
    %v5129 = vmul.f32 %v5128, 1.442695
    %v5130 = vpow.pop %v5129
    %v5131 = vsel %vm3811, %v5130, 0.0
    %5132 = vadd.xlane.f32.xlu0 %v5131
    %v5133 = vpop.xlane.xlu0 %5132
    %v5134 = vrcp.pop %v5133
    %vm5135 = vcmp.ge.f32.partialorder %v5122, %v5127
    %v5136 = vsel %vm5135, %v3232, 64
    %v5137 = vsel %vm3811, %v5136, 2147483647
    %v5138 = vand.u32 %v5137, 65535
    %v5139 = vshra.s32 %v5137, 16
    %v5140 = vcvt.s32.f32 %v5138
    %v5141 = vcvt.s32.f32 %v5139
    %5142 = vmin.xlane.f32.xlu0 %v5141
    %v5143 = vpop.xlane.xlu0 %5142
    %vm5144 = vcmp.eq.f32.partialorder %v5141, %v5143
    %v5145 = vsel %vm5144, %v5140, inf
    %5146 = vmin.xlane.f32.xlu0 %v5145
    %v5147 = vpop.xlane.xlu0 %5146
    %v5148 = vcvt.f32.s32 %v5147
    %v5149 = vcvt.f32.s32 %v5143
    %v5150 = vshll.u32 %v5149, 16
    %v5151 = vadd.s32 %v5150, %v5148
    %vm5152 = vcmp.eq.s32.totalorder %v3232, 2
    %v5153 = vsel %vm5152, %v5151, %v4501
    %v5154 = vsel %vm5152, %v5134, %v4502
    %vm5155 = vcmp.eq.s32.totalorder %v3232, %v5151
    %v5156 = vsel %vm5155, 1, 0
    %v5157 = vcvt.s32.f32 %v5156
    %v5159 = vsel %vm3853, %v5157, 0
    %5161 = vmatprep.subr.mxu0 0.0
    %5162 = vmatpush1.msra.mxu0 %v3845
    %5163 = vmatprep.subr.mxu0 0.0
    %5164 = vmatpush1.msra.mxu0 %v3846
    %5165 = vmatprep.subr.mxu0 0.0
    %5166 = vmatpush1.msra.mxu0 %v3847
    %5167 = vmatprep.subr.mxu0 0.0
    %5168 = vmatpush1.msra.mxu0 %v3848
    %5169 = vmatprep.subr.mxu0 0.0
    %5170 = vmatpush1.msra.mxu0 %v3849
    %5171 = vmatprep.subr.mxu0 0.0
    %5172 = vmatpush1.msra.mxu0 %v3850
    %5173 = vmatprep.subr.mxu0 0.0
    %5174 = vmatpush1.msra.mxu0 %v3851
    %5175 = vmatprep.subr.mxu0 0.0
    %5176 = vmatpush1.msra.mxu0 %v3852
    %5177 = vmatprep.subr.mxu0 0.0
    %5178 = vmatpush1.msra.mxu0 0.0
    %5179 = vmatprep.subr.mxu0 0.0
    %5180 = vmatpush1.msra.mxu0 0.0
    %5181 = vmatprep.subr.mxu0 0.0
    %5182 = vmatpush1.msra.mxu0 0.0
    %5183 = vmatprep.subr.mxu0 0.0
    %5184 = vmatpush1.msra.mxu0 0.0
    %5185 = vmatprep.subr.mxu0 0.0
    %5186 = vmatpush1.msra.mxu0 0.0
    %5187 = vmatprep.subr.mxu0 0.0
    %5188 = vmatpush1.msra.mxu0 0.0
    %5189 = vmatprep.subr.mxu0 0.0
    %5190 = vmatpush1.msra.mxu0 0.0
    %5191 = vmatprep.subr.mxu0 0.0
    %5192 = vmatpush1.msra.mxu0 0.0
    %5193 = vmatprep.subr.mxu0 0.0
    %5194 = vmatpush1.msra.mxu0 0.0
    %5195 = vmatprep.subr.mxu0 0.0
    %5196 = vmatpush1.msra.mxu0 0.0
    %5197 = vmatprep.subr.mxu0 0.0
    %5198 = vmatpush1.msra.mxu0 0.0
    %5199 = vmatprep.subr.mxu0 0.0
    %5200 = vmatpush1.msra.mxu0 0.0
    %5201 = vmatprep.subr.mxu0 0.0
    %5202 = vmatpush1.msra.mxu0 0.0
    %5203 = vmatprep.subr.mxu0 0.0
    %5204 = vmatpush1.msra.mxu0 0.0
    %5205 = vmatprep.subr.mxu0 0.0
    %5206 = vmatpush1.msra.mxu0 0.0
    %5207 = vmatprep.subr.mxu0 0.0
    %5208 = vmatpush1.msra.mxu0 0.0
    %5209 = vmatprep.subr.mxu0 0.0
    %5210 = vmatpush1.msra.mxu0 0.0
    %5211 = vmatprep.subr.mxu0 0.0
    %5212 = vmatpush1.msra.mxu0 0.0
    %5213 = vmatprep.subr.mxu0 0.0
    %5214 = vmatpush1.msra.mxu0 0.0
    %5215 = vmatprep.subr.mxu0 0.0
    %5216 = vmatpush1.msra.mxu0 0.0
    %5217 = vmatprep.subr.mxu0 0.0
    %5218 = vmatpush1.msra.mxu0 0.0
    %5219 = vmatprep.subr.mxu0 0.0
    %5220 = vmatpush1.msra.mxu0 0.0
    %5221 = vmatprep.subr.mxu0 0.0
    %5222 = vmatpush1.msra.mxu0 0.0
    %5223 = vmatprep.subr.mxu0 0.0
    %5224 = vmatpush1.msra.mxu0 0.0
    %5225 = vmatprep.mubr.f32.mxu0 0.0
    %5226 = vmatmul.mubr.f32.gmra.mrb[0].mxu0 %v5159
    %v5227 = vpop.f32.mrb[0].mxu0
    %v5228 = vadd.f32 0.0, %v5227
    %v5229 = vpop.f32.mrb[0].mxu0
    %5230 = vdwg.mxu0
    %v5232 = vsel %vm214, %v5228, 0
    %5234 = vmatprep.subr.mxu0 0.0
    %5235 = vmatpush1.msra.mxu0 %v3234
    %5236 = vmatprep.subr.mxu0 0.0
    %5237 = vmatpush1.msra.mxu0 %v3235
    %5238 = vmatprep.subr.mxu0 0.0
    %5239 = vmatpush1.msra.mxu0 %v3236
    %5240 = vmatprep.subr.mxu0 0.0
    %5241 = vmatpush1.msra.mxu0 %v3237
    %5242 = vmatprep.subr.mxu0 0.0
    %5243 = vmatpush1.msra.mxu0 0.0
    %5244 = vmatprep.subr.mxu0 0.0
    %5245 = vmatpush1.msra.mxu0 0.0
    %5246 = vmatprep.subr.mxu0 0.0
    %5247 = vmatpush1.msra.mxu0 0.0
    %5248 = vmatprep.subr.mxu0 0.0
    %5249 = vmatpush1.msra.mxu0 0.0
    %5250 = vmatprep.subr.mxu0 0.0
    %5251 = vmatpush1.msra.mxu0 0.0
    %5252 = vmatprep.subr.mxu0 0.0
    %5253 = vmatpush1.msra.mxu0 0.0
    %5254 = vmatprep.subr.mxu0 0.0
    %5255 = vmatpush1.msra.mxu0 0.0
    %5256 = vmatprep.subr.mxu0 0.0
    %5257 = vmatpush1.msra.mxu0 0.0
    %5258 = vmatprep.subr.mxu0 0.0
    %5259 = vmatpush1.msra.mxu0 0.0
    %5260 = vmatprep.subr.mxu0 0.0
    %5261 = vmatpush1.msra.mxu0 0.0
    %5262 = vmatprep.subr.mxu0 0.0
    %5263 = vmatpush1.msra.mxu0 0.0
    %5264 = vmatprep.subr.mxu0 0.0
    %5265 = vmatpush1.msra.mxu0 0.0
    %5266 = vmatprep.subr.mxu0 0.0
    %5267 = vmatpush1.msra.mxu0 0.0
    %5268 = vmatprep.subr.mxu0 0.0
    %5269 = vmatpush1.msra.mxu0 0.0
    %5270 = vmatprep.subr.mxu0 0.0
    %5271 = vmatpush1.msra.mxu0 0.0
    %5272 = vmatprep.subr.mxu0 0.0
    %5273 = vmatpush1.msra.mxu0 0.0
    %5274 = vmatprep.subr.mxu0 0.0
    %5275 = vmatpush1.msra.mxu0 0.0
    %5276 = vmatprep.subr.mxu0 0.0
    %5277 = vmatpush1.msra.mxu0 0.0
    %5278 = vmatprep.subr.mxu0 0.0
    %5279 = vmatpush1.msra.mxu0 0.0
    %5280 = vmatprep.subr.mxu0 0.0
    %5281 = vmatpush1.msra.mxu0 0.0
    %5282 = vmatprep.subr.mxu0 0.0
    %5283 = vmatpush1.msra.mxu0 0.0
    %5284 = vmatprep.subr.mxu0 0.0
    %5285 = vmatpush1.msra.mxu0 0.0
    %5286 = vmatprep.subr.mxu0 0.0
    %5287 = vmatpush1.msra.mxu0 0.0
    %5288 = vmatprep.subr.mxu0 0.0
    %5289 = vmatpush1.msra.mxu0 0.0
    %5290 = vmatprep.subr.mxu0 0.0
    %5291 = vmatpush1.msra.mxu0 0.0
    %5292 = vmatprep.subr.mxu0 0.0
    %5293 = vmatpush1.msra.mxu0 0.0
    %5294 = vmatprep.subr.mxu0 0.0
    %5295 = vmatpush1.msra.mxu0 0.0
    %5296 = vmatprep.subr.mxu0 0.0
    %5297 = vmatpush1.msra.mxu0 0.0
    %5298 = vmatprep.mubr.f32.mxu0 0.0
    %5299 = vmatmul.mubr.f32.gmra.mrb[0].mxu0 %v5232
    %v5300 = vpop.f32.mrb[0].mxu0
    %v5301 = vadd.f32 %v3238, %v5300
    %v5302 = vpop.f32.mrb[0].mxu0
    %5303 = vdwg.mxu0
    %5304 = vmatprep.subr.mxu0 0.0
    %5305 = vmatpush1.msra.mxu0 %v3312
    %5306 = vmatprep.subr.mxu0 0.0
    %5307 = vmatpush1.msra.mxu0 %v3313
    %5308 = vmatprep.subr.mxu0 0.0
    %5309 = vmatpush1.msra.mxu0 %v3314
    %5310 = vmatprep.subr.mxu0 0.0
    %5311 = vmatpush1.msra.mxu0 %v3315
    %5312 = vmatprep.subr.mxu0 0.0
    %5313 = vmatpush1.msra.mxu0 0.0
    %5314 = vmatprep.subr.mxu0 0.0
    %5315 = vmatpush1.msra.mxu0 0.0
    %5316 = vmatprep.subr.mxu0 0.0
    %5317 = vmatpush1.msra.mxu0 0.0
    %5318 = vmatprep.subr.mxu0 0.0
    %5319 = vmatpush1.msra.mxu0 0.0
    %5320 = vmatprep.subr.mxu0 0.0
    %5321 = vmatpush1.msra.mxu0 0.0
    %5322 = vmatprep.subr.mxu0 0.0
    %5323 = vmatpush1.msra.mxu0 0.0
    %5324 = vmatprep.subr.mxu0 0.0
    %5325 = vmatpush1.msra.mxu0 0.0
    %5326 = vmatprep.subr.mxu0 0.0
    %5327 = vmatpush1.msra.mxu0 0.0
    %5328 = vmatprep.subr.mxu0 0.0
    %5329 = vmatpush1.msra.mxu0 0.0
    %5330 = vmatprep.subr.mxu0 0.0
    %5331 = vmatpush1.msra.mxu0 0.0
    %5332 = vmatprep.subr.mxu0 0.0
    %5333 = vmatpush1.msra.mxu0 0.0
    %5334 = vmatprep.subr.mxu0 0.0
    %5335 = vmatpush1.msra.mxu0 0.0
    %5336 = vmatprep.subr.mxu0 0.0
    %5337 = vmatpush1.msra.mxu0 0.0
    %5338 = vmatprep.subr.mxu0 0.0
    %5339 = vmatpush1.msra.mxu0 0.0
    %5340 = vmatprep.subr.mxu0 0.0
    %5341 = vmatpush1.msra.mxu0 0.0
    %5342 = vmatprep.subr.mxu0 0.0
    %5343 = vmatpush1.msra.mxu0 0.0
    %5344 = vmatprep.subr.mxu0 0.0
    %5345 = vmatpush1.msra.mxu0 0.0
    %5346 = vmatprep.subr.mxu0 0.0
    %5347 = vmatpush1.msra.mxu0 0.0
    %5348 = vmatprep.subr.mxu0 0.0
    %5349 = vmatpush1.msra.mxu0 0.0
    %5350 = vmatprep.subr.mxu0 0.0
    %5351 = vmatpush1.msra.mxu0 0.0
    %5352 = vmatprep.subr.mxu0 0.0
    %5353 = vmatpush1.msra.mxu0 0.0
    %5354 = vmatprep.subr.mxu0 0.0
    %5355 = vmatpush1.msra.mxu0 0.0
    %5356 = vmatprep.subr.mxu0 0.0
    %5357 = vmatpush1.msra.mxu0 0.0
    %5358 = vmatprep.subr.mxu0 0.0
    %5359 = vmatpush1.msra.mxu0 0.0
    %5360 = vmatprep.subr.mxu0 0.0
    %5361 = vmatpush1.msra.mxu0 0.0
    %5362 = vmatprep.subr.mxu0 0.0
    %5363 = vmatpush1.msra.mxu0 0.0
    %5364 = vmatprep.subr.mxu0 0.0
    %5365 = vmatpush1.msra.mxu0 0.0
    %5366 = vmatprep.subr.mxu0 0.0
    %5367 = vmatpush1.msra.mxu0 0.0
    %5368 = vmatprep.mubr.f32.mxu0 0.0
    %5369 = vmatmul.mubr.f32.gmra.mrb[0].mxu0 %v4751
    %v5370 = vpop.f32.mrb[0].mxu0
    %v5371 = vadd.f32 %v3316, %v5370
    %v5372 = vpop.f32.mrb[0].mxu0
    %5373 = vdwg.mxu0
    %v5374 = vadd.f32 %v5301, %v5371
    %v5375 = vxor.u32 %v5374, 2147483648
    %v5376 = vmul.f32 %v5375, 1.442695
    %v5377 = vpow.pop %v5376
    %v5378 = vadd.f32 %v5377, 1.0
    %v5379 = vrcp.pop %v5378
    %v5380 = vmul.f32 1.0, %v5379
    %5382 = vrot.lane.b32.xlu0 %v5371, 64
    %v5383 = vpop.permute.xlu0 %5382
    %v5385 = vmul.f32 %v5380, %v5383
    %5387 = vrot.lane.b32.xlu0 %v5385, 64
    %v5388 = vpop.permute.xlu0 %5387
    %v5390 = vadd.f32 %v5301, %v5388
    %v5391 = vtanh.pop %v5390
    %v5392 = vsub.f32 1.0, %v5380
    %5394 = vrot.lane.b32.xlu0 %v5391, 96
    %v5395 = vpop.permute.xlu0 %5394
    %v5397 = vmul.f32 %v5392, %v5395
    %v5398 = vmul.f32 %v5380, %v4747
    %v5399 = vadd.f32 %v5397, %v5398
    %5401 = vrot.lane.b32.xlu0 %v5399, 96
    %v5402 = vpop.permute.xlu0 %5401
    %v5403 = vsel %vm214, %v5402, 0
    %5405 = vmatprep.subr.mxu0 0.0
    %5406 = vmatpush1.xpose.msra.mxu0 %v3421
    %5407 = vmatprep.subr.mxu0 0.0
    %5408 = vmatpush1.xpose.msra.mxu0 0.0
    %5409 = vmatprep.subr.mxu0 0.0
    %5410 = vmatpush1.xpose.msra.mxu0 0.0
    %5411 = vmatprep.subr.mxu0 0.0
    %5412 = vmatpush1.xpose.msra.mxu0 0.0
    %5413 = vmatprep.subr.mxu0 0.0
    %5414 = vmatpush1.xpose.msra.mxu0 0.0
    %5415 = vmatprep.subr.mxu0 0.0
    %5416 = vmatpush1.xpose.msra.mxu0 0.0
    %5417 = vmatprep.subr.mxu0 0.0
    %5418 = vmatpush1.xpose.msra.mxu0 0.0
    %5419 = vmatprep.subr.mxu0 0.0
    %5420 = vmatpush1.xpose.msra.mxu0 0.0
    %5421 = vmatprep.subr.mxu0 0.0
    %5422 = vmatpush1.xpose.msra.mxu0 0.0
    %5423 = vmatprep.subr.mxu0 0.0
    %5424 = vmatpush1.xpose.msra.mxu0 0.0
    %5425 = vmatprep.subr.mxu0 0.0
    %5426 = vmatpush1.xpose.msra.mxu0 0.0
    %5427 = vmatprep.subr.mxu0 0.0
    %5428 = vmatpush1.xpose.msra.mxu0 0.0
    %5429 = vmatprep.subr.mxu0 0.0
    %5430 = vmatpush1.xpose.msra.mxu0 0.0
    %5431 = vmatprep.subr.mxu0 0.0
    %5432 = vmatpush1.xpose.msra.mxu0 0.0
    %5433 = vmatprep.subr.mxu0 0.0
    %5434 = vmatpush1.xpose.msra.mxu0 0.0
    %5435 = vmatprep.subr.mxu0 0.0
    %5436 = vmatpush1.xpose.msra.mxu0 0.0
    %5437 = vmatprep.subr.mxu0 0.0
    %5438 = vmatpush1.xpose.msra.mxu0 0.0
    %5439 = vmatprep.subr.mxu0 0.0
    %5440 = vmatpush1.xpose.msra.mxu0 0.0
    %5441 = vmatprep.subr.mxu0 0.0
    %5442 = vmatpush1.xpose.msra.mxu0 0.0
    %5443 = vmatprep.subr.mxu0 0.0
    %5444 = vmatpush1.xpose.msra.mxu0 0.0
    %5445 = vmatprep.subr.mxu0 0.0
    %5446 = vmatpush1.xpose.msra.mxu0 0.0
    %5447 = vmatprep.subr.mxu0 0.0
    %5448 = vmatpush1.xpose.msra.mxu0 0.0
    %5449 = vmatprep.subr.mxu0 0.0
    %5450 = vmatpush1.xpose.msra.mxu0 0.0
    %5451 = vmatprep.subr.mxu0 0.0
    %5452 = vmatpush1.xpose.msra.mxu0 0.0
    %5453 = vmatprep.subr.mxu0 0.0
    %5454 = vmatpush1.xpose.msra.mxu0 0.0
    %5455 = vmatprep.subr.mxu0 0.0
    %5456 = vmatpush1.xpose.msra.mxu0 0.0
    %5457 = vmatprep.subr.mxu0 0.0
    %5458 = vmatpush1.xpose.msra.mxu0 0.0
    %5459 = vmatprep.subr.mxu0 0.0
    %5460 = vmatpush1.xpose.msra.mxu0 0.0
    %5461 = vmatprep.subr.mxu0 0.0
    %5462 = vmatpush1.xpose.msra.mxu0 0.0
    %5463 = vmatprep.subr.mxu0 0.0
    %5464 = vmatpush1.xpose.msra.mxu0 0.0
    %5465 = vmatprep.subr.mxu0 0.0
    %5466 = vmatpush1.xpose.msra.mxu0 0.0
    %5467 = vmatprep.subr.mxu0 0.0
    %5468 = vmatpush1.xpose.msra.mxu0 0.0
    %5469 = vmatprep.mubr.f32.mxu0 0.0
    %5470 = vmatmul.mubr.f32.gmra.mrb[0].mxu0 %v5403
    %v5471 = vpop.f32.mrb[0].mxu0
    %v5472 = vadd.f32 0.0, %v5471
    %v5473 = vpop.f32.mrb[0].mxu0
    %5474 = vdwg.mxu0
    %v5475 = vsel %vm3493, %v5472, -inf
    %5476 = vmax.xlane.f32.xlu0 %v5475
    %v5477 = vpop.xlane.xlu0 %5476
    %v5478 = vsub.f32 %v5472, %v5477
    %v5479 = vmul.f32 %v5478, 1.442695
    %v5480 = vpow.pop %v5479
    %v5481 = vsel %vm3493, %v5480, 0.0
    %5482 = vadd.xlane.f32.xlu0 %v5481
    %v5483 = vpop.xlane.xlu0 %5482
    %v5484 = vrcp.pop %v5483
    %v5485 = vmul.f32 %v5480, %v5484
    %v5487 = vsel %vm3505, %v5485, 0
    %5489 = vmatprep.subr.mxu0 0.0
    %5490 = vmatpush1.msra.mxu0 %v3230
    %5491 = vmatprep.subr.mxu0 0.0
    %5492 = vmatpush1.msra.mxu0 0.0
    %5493 = vmatprep.subr.mxu0 0.0
    %5494 = vmatpush1.msra.mxu0 0.0
    %5495 = vmatprep.subr.mxu0 0.0
    %5496 = vmatpush1.msra.mxu0 0.0
    %5497 = vmatprep.subr.mxu0 0.0
    %5498 = vmatpush1.msra.mxu0 0.0
    %5499 = vmatprep.subr.mxu0 0.0
    %5500 = vmatpush1.msra.mxu0 0.0
    %5501 = vmatprep.subr.mxu0 0.0
    %5502 = vmatpush1.msra.mxu0 0.0
    %5503 = vmatprep.subr.mxu0 0.0
    %5504 = vmatpush1.msra.mxu0 0.0
    %5505 = vmatprep.subr.mxu0 0.0
    %5506 = vmatpush1.msra.mxu0 0.0
    %5507 = vmatprep.subr.mxu0 0.0
    %5508 = vmatpush1.msra.mxu0 0.0
    %5509 = vmatprep.subr.mxu0 0.0
    %5510 = vmatpush1.msra.mxu0 0.0
    %5511 = vmatprep.subr.mxu0 0.0
    %5512 = vmatpush1.msra.mxu0 0.0
    %5513 = vmatprep.subr.mxu0 0.0
    %5514 = vmatpush1.msra.mxu0 0.0
    %5515 = vmatprep.subr.mxu0 0.0
    %5516 = vmatpush1.msra.mxu0 0.0
    %5517 = vmatprep.subr.mxu0 0.0
    %5518 = vmatpush1.msra.mxu0 0.0
    %5519 = vmatprep.subr.mxu0 0.0
    %5520 = vmatpush1.msra.mxu0 0.0
    %5521 = vmatprep.subr.mxu0 0.0
    %5522 = vmatpush1.msra.mxu0 0.0
    %5523 = vmatprep.subr.mxu0 0.0
    %5524 = vmatpush1.msra.mxu0 0.0
    %5525 = vmatprep.subr.mxu0 0.0
    %5526 = vmatpush1.msra.mxu0 0.0
    %5527 = vmatprep.subr.mxu0 0.0
    %5528 = vmatpush1.msra.mxu0 0.0
    %5529 = vmatprep.subr.mxu0 0.0
    %5530 = vmatpush1.msra.mxu0 0.0
    %5531 = vmatprep.subr.mxu0 0.0
    %5532 = vmatpush1.msra.mxu0 0.0
    %5533 = vmatprep.subr.mxu0 0.0
    %5534 = vmatpush1.msra.mxu0 0.0
    %5535 = vmatprep.subr.mxu0 0.0
    %5536 = vmatpush1.msra.mxu0 0.0
    %5537 = vmatprep.subr.mxu0 0.0
    %5538 = vmatpush1.msra.mxu0 0.0
    %5539 = vmatprep.subr.mxu0 0.0
    %5540 = vmatpush1.msra.mxu0 0.0
    %5541 = vmatprep.subr.mxu0 0.0
    %5542 = vmatpush1.msra.mxu0 0.0
    %5543 = vmatprep.subr.mxu0 0.0
    %5544 = vmatpush1.msra.mxu0 0.0
    %5545 = vmatprep.subr.mxu0 0.0
    %5546 = vmatpush1.msra.mxu0 0.0
    %5547 = vmatprep.subr.mxu0 0.0
    %5548 = vmatpush1.msra.mxu0 0.0
    %5549 = vmatprep.subr.mxu0 0.0
    %5550 = vmatpush1.msra.mxu0 0.0
    %5551 = vmatprep.subr.mxu0 0.0
    %5552 = vmatpush1.msra.mxu0 0.0
    %5553 = vmatprep.mubr.f32.mxu0 0.0
    %5554 = vmatmul.mubr.f32.gmra.mrb[0].mxu0 %v5487
    %v5555 = vpop.f32.mrb[0].mxu0
    %v5556 = vadd.f32 0.0, %v5555
    %v5557 = vpop.f32.mrb[0].mxu0
    %5558 = vdwg.mxu0
    %v5560 = vsel %vm214, %v5556, 0
    %5562 = vmatprep.subr.mxu0 0.0
    %5563 = vmatpush1.msra.mxu0 %v3583
    %5564 = vmatprep.subr.mxu0 0.0
    %5565 = vmatpush1.msra.mxu0 %v3584
    %5566 = vmatprep.subr.mxu0 0.0
    %5567 = vmatpush1.msra.mxu0 %v3585
    %5568 = vmatprep.subr.mxu0 0.0
    %5569 = vmatpush1.msra.mxu0 %v3586
    %5570 = vmatprep.subr.mxu0 0.0
    %5571 = vmatpush1.msra.mxu0 0.0
    %5572 = vmatprep.subr.mxu0 0.0
    %5573 = vmatpush1.msra.mxu0 0.0
    %5574 = vmatprep.subr.mxu0 0.0
    %5575 = vmatpush1.msra.mxu0 0.0
    %5576 = vmatprep.subr.mxu0 0.0
    %5577 = vmatpush1.msra.mxu0 0.0
    %5578 = vmatprep.subr.mxu0 0.0
    %5579 = vmatpush1.msra.mxu0 0.0
    %5580 = vmatprep.subr.mxu0 0.0
    %5581 = vmatpush1.msra.mxu0 0.0
    %5582 = vmatprep.subr.mxu0 0.0
    %5583 = vmatpush1.msra.mxu0 0.0
    %5584 = vmatprep.subr.mxu0 0.0
    %5585 = vmatpush1.msra.mxu0 0.0
    %5586 = vmatprep.subr.mxu0 0.0
    %5587 = vmatpush1.msra.mxu0 0.0
    %5588 = vmatprep.subr.mxu0 0.0
    %5589 = vmatpush1.msra.mxu0 0.0
    %5590 = vmatprep.subr.mxu0 0.0
    %5591 = vmatpush1.msra.mxu0 0.0
    %5592 = vmatprep.subr.mxu0 0.0
    %5593 = vmatpush1.msra.mxu0 0.0
    %5594 = vmatprep.subr.mxu0 0.0
    %5595 = vmatpush1.msra.mxu0 0.0
    %5596 = vmatprep.subr.mxu0 0.0
    %5597 = vmatpush1.msra.mxu0 0.0
    %5598 = vmatprep.subr.mxu0 0.0
    %5599 = vmatpush1.msra.mxu0 0.0
    %5600 = vmatprep.subr.mxu0 0.0
    %5601 = vmatpush1.msra.mxu0 0.0
    %5602 = vmatprep.subr.mxu0 0.0
    %5603 = vmatpush1.msra.mxu0 0.0
    %5604 = vmatprep.subr.mxu0 0.0
    %5605 = vmatpush1.msra.mxu0 0.0
    %5606 = vmatprep.subr.mxu0 0.0
    %5607 = vmatpush1.msra.mxu0 0.0
    %5608 = vmatprep.subr.mxu0 0.0
    %5609 = vmatpush1.msra.mxu0 0.0
    %5610 = vmatprep.subr.mxu0 0.0
    %5611 = vmatpush1.msra.mxu0 0.0
    %5612 = vmatprep.subr.mxu0 0.0
    %5613 = vmatpush1.msra.mxu0 0.0
    %5614 = vmatprep.subr.mxu0 0.0
    %5615 = vmatpush1.msra.mxu0 0.0
    %5616 = vmatprep.subr.mxu0 0.0
    %5617 = vmatpush1.msra.mxu0 0.0
    %5618 = vmatprep.subr.mxu0 0.0
    %5619 = vmatpush1.msra.mxu0 0.0
    %5620 = vmatprep.subr.mxu0 0.0
    %5621 = vmatpush1.msra.mxu0 0.0
    %5622 = vmatprep.subr.mxu0 0.0
    %5623 = vmatpush1.msra.mxu0 0.0
    %5624 = vmatprep.subr.mxu0 0.0
    %5625 = vmatpush1.msra.mxu0 0.0
    %5626 = vmatprep.mubr.f32.mxu0 0.0
    %5627 = vmatmul.mubr.f32.gmra.mrb[0].mxu0 %v5560
    %v5628 = vpop.f32.mrb[0].mxu0
    %v5629 = vadd.f32 0.0, %v5628
    %v5630 = vpop.f32.mrb[0].mxu0
    %5631 = vdwg.mxu0
    %5632 = vmatprep.subr.mxu0 0.0
    %5633 = vmatpush1.msra.mxu0 %v3579
    %5634 = vmatprep.subr.mxu0 0.0
    %5635 = vmatpush1.msra.mxu0 %v3580
    %5636 = vmatprep.subr.mxu0 0.0
    %5637 = vmatpush1.msra.mxu0 %v3581
    %5638 = vmatprep.subr.mxu0 0.0
    %5639 = vmatpush1.msra.mxu0 %v3582
    %5640 = vmatprep.subr.mxu0 0.0
    %5641 = vmatpush1.msra.mxu0 0.0
    %5642 = vmatprep.subr.mxu0 0.0
    %5643 = vmatpush1.msra.mxu0 0.0
    %5644 = vmatprep.subr.mxu0 0.0
    %5645 = vmatpush1.msra.mxu0 0.0
    %5646 = vmatprep.subr.mxu0 0.0
    %5647 = vmatpush1.msra.mxu0 0.0
    %5648 = vmatprep.subr.mxu0 0.0
    %5649 = vmatpush1.msra.mxu0 0.0
    %5650 = vmatprep.subr.mxu0 0.0
    %5651 = vmatpush1.msra.mxu0 0.0
    %5652 = vmatprep.subr.mxu0 0.0
    %5653 = vmatpush1.msra.mxu0 0.0
    %5654 = vmatprep.subr.mxu0 0.0
    %5655 = vmatpush1.msra.mxu0 0.0
    %5656 = vmatprep.subr.mxu0 0.0
    %5657 = vmatpush1.msra.mxu0 0.0
    %5658 = vmatprep.subr.mxu0 0.0
    %5659 = vmatpush1.msra.mxu0 0.0
    %5660 = vmatprep.subr.mxu0 0.0
    %5661 = vmatpush1.msra.mxu0 0.0
    %5662 = vmatprep.subr.mxu0 0.0
    %5663 = vmatpush1.msra.mxu0 0.0
    %5664 = vmatprep.subr.mxu0 0.0
    %5665 = vmatpush1.msra.mxu0 0.0
    %5666 = vmatprep.subr.mxu0 0.0
    %5667 = vmatpush1.msra.mxu0 0.0
    %5668 = vmatprep.subr.mxu0 0.0
    %5669 = vmatpush1.msra.mxu0 0.0
    %5670 = vmatprep.subr.mxu0 0.0
    %5671 = vmatpush1.msra.mxu0 0.0
    %5672 = vmatprep.subr.mxu0 0.0
    %5673 = vmatpush1.msra.mxu0 0.0
    %5674 = vmatprep.subr.mxu0 0.0
    %5675 = vmatpush1.msra.mxu0 0.0
    %5676 = vmatprep.subr.mxu0 0.0
    %5677 = vmatpush1.msra.mxu0 0.0
    %5678 = vmatprep.subr.mxu0 0.0
    %5679 = vmatpush1.msra.mxu0 0.0
    %5680 = vmatprep.subr.mxu0 0.0
    %5681 = vmatpush1.msra.mxu0 0.0
    %5682 = vmatprep.subr.mxu0 0.0
    %5683 = vmatpush1.msra.mxu0 0.0
    %5684 = vmatprep.subr.mxu0 0.0
    %5685 = vmatpush1.msra.mxu0 0.0
    %5686 = vmatprep.subr.mxu0 0.0
    %5687 = vmatpush1.msra.mxu0 0.0
    %5688 = vmatprep.subr.mxu0 0.0
    %5689 = vmatpush1.msra.mxu0 0.0
    %5690 = vmatprep.subr.mxu0 0.0
    %5691 = vmatpush1.msra.mxu0 0.0
    %5692 = vmatprep.subr.mxu0 0.0
    %5693 = vmatpush1.msra.mxu0 0.0
    %5694 = vmatprep.subr.mxu0 0.0
    %5695 = vmatpush1.msra.mxu0 0.0
    %5696 = vmatprep.mubr.f32.mxu0 0.0
    %5697 = vmatmul.mubr.f32.gmra.mrb[0].mxu0 %v5403
    %v5698 = vpop.f32.mrb[0].mxu0
    %v5699 = vadd.f32 %v5629, %v5698
    %v5700 = vpop.f32.mrb[0].mxu0
    %5701 = vdwg.mxu0
    %v5702 = vadd.f32 %v5699, %v3730
    %v5703 = vtanh.pop %v5702
    %v5705 = vsel %vm214, %v5703, 0
    %5707 = vmatprep.subr.mxu0 0.0
    %5708 = vmatpush1.msra.mxu0 %v3733
    %5709 = vmatprep.subr.mxu0 0.0
    %5710 = vmatpush1.msra.mxu0 %v3734
    %5711 = vmatprep.subr.mxu0 0.0
    %5712 = vmatpush1.msra.mxu0 %v3735
    %5713 = vmatprep.subr.mxu0 0.0
    %5714 = vmatpush1.msra.mxu0 %v3736
    %5715 = vmatprep.subr.mxu0 0.0
    %5716 = vmatpush1.msra.mxu0 0.0
    %5717 = vmatprep.subr.mxu0 0.0
    %5718 = vmatpush1.msra.mxu0 0.0
    %5719 = vmatprep.subr.mxu0 0.0
    %5720 = vmatpush1.msra.mxu0 0.0
    %5721 = vmatprep.subr.mxu0 0.0
    %5722 = vmatpush1.msra.mxu0 0.0
    %5723 = vmatprep.subr.mxu0 0.0
    %5724 = vmatpush1.msra.mxu0 0.0
    %5725 = vmatprep.subr.mxu0 0.0
    %5726 = vmatpush1.msra.mxu0 0.0
    %5727 = vmatprep.subr.mxu0 0.0
    %5728 = vmatpush1.msra.mxu0 0.0
    %5729 = vmatprep.subr.mxu0 0.0
    %5730 = vmatpush1.msra.mxu0 0.0
    %5731 = vmatprep.subr.mxu0 0.0
    %5732 = vmatpush1.msra.mxu0 0.0
    %5733 = vmatprep.subr.mxu0 0.0
    %5734 = vmatpush1.msra.mxu0 0.0
    %5735 = vmatprep.subr.mxu0 0.0
    %5736 = vmatpush1.msra.mxu0 0.0
    %5737 = vmatprep.subr.mxu0 0.0
    %5738 = vmatpush1.msra.mxu0 0.0
    %5739 = vmatprep.subr.mxu0 0.0
    %5740 = vmatpush1.msra.mxu0 0.0
    %5741 = vmatprep.subr.mxu0 0.0
    %5742 = vmatpush1.msra.mxu0 0.0
    %5743 = vmatprep.subr.mxu0 0.0
    %5744 = vmatpush1.msra.mxu0 0.0
    %5745 = vmatprep.subr.mxu0 0.0
    %5746 = vmatpush1.msra.mxu0 0.0
    %5747 = vmatprep.subr.mxu0 0.0
    %5748 = vmatpush1.msra.mxu0 0.0
    %5749 = vmatprep.subr.mxu0 0.0
    %5750 = vmatpush1.msra.mxu0 0.0
    %5751 = vmatprep.subr.mxu0 0.0
    %5752 = vmatpush1.msra.mxu0 0.0
    %5753 = vmatprep.subr.mxu0 0.0
    %5754 = vmatpush1.msra.mxu0 0.0
    %5755 = vmatprep.subr.mxu0 0.0
    %5756 = vmatpush1.msra.mxu0 0.0
    %5757 = vmatprep.subr.mxu0 0.0
    %5758 = vmatpush1.msra.mxu0 0.0
    %5759 = vmatprep.subr.mxu0 0.0
    %5760 = vmatpush1.msra.mxu0 0.0
    %5761 = vmatprep.subr.mxu0 0.0
    %5762 = vmatpush1.msra.mxu0 0.0
    %5763 = vmatprep.subr.mxu0 0.0
    %5764 = vmatpush1.msra.mxu0 0.0
    %5765 = vmatprep.subr.mxu0 0.0
    %5766 = vmatpush1.msra.mxu0 0.0
    %5767 = vmatprep.subr.mxu0 0.0
    %5768 = vmatpush1.msra.mxu0 0.0
    %5769 = vmatprep.subr.mxu0 0.0
    %5770 = vmatpush1.msra.mxu0 0.0
    %5771 = vmatprep.mubr.f32.mxu0 0.0
    %5772 = vmatmul.mubr.f32.gmra.mrb[0].mxu0 %v5705
    %v5773 = vpop.f32.mrb[0].mxu0
    %v5774 = vadd.f32 %v3737, %v5773
    %v5775 = vpop.f32.mrb[0].mxu0
    %5776 = vdwg.mxu0
    %v5777 = vsel %vm3811, %v5774, -inf
    %5778 = vmax.xlane.f32.xlu0 %v5777
    %v5779 = vpop.xlane.xlu0 %5778
    %v5780 = vsub.f32 %v5774, %v5779
    %v5781 = vmul.f32 %v5780, 1.442695
    %v5782 = vpow.pop %v5781
    %v5783 = vsel %vm3811, %v5782, 0.0
    %5784 = vadd.xlane.f32.xlu0 %v5783
    %v5785 = vpop.xlane.xlu0 %5784
    %v5786 = vrcp.pop %v5785
    %vm5787 = vcmp.ge.f32.partialorder %v5774, %v5779
    %v5788 = vsel %vm5787, %v3232, 64
    %v5789 = vsel %vm3811, %v5788, 2147483647
    %v5790 = vand.u32 %v5789, 65535
    %v5791 = vshra.s32 %v5789, 16
    %v5792 = vcvt.s32.f32 %v5790
    %v5793 = vcvt.s32.f32 %v5791
    %5794 = vmin.xlane.f32.xlu0 %v5793
    %v5795 = vpop.xlane.xlu0 %5794
    %vm5796 = vcmp.eq.f32.partialorder %v5793, %v5795
    %v5797 = vsel %vm5796, %v5792, inf
    %5798 = vmin.xlane.f32.xlu0 %v5797
    %v5799 = vpop.xlane.xlu0 %5798
    %v5800 = vcvt.f32.s32 %v5799
    %v5801 = vcvt.f32.s32 %v5795
    %v5802 = vshll.u32 %v5801, 16
    %v5803 = vadd.s32 %v5802, %v5800
    %vm5804 = vcmp.eq.s32.totalorder %v3232, 3
    %v5805 = vsel %vm5804, %v5803, %v5153
    %v5806 = vsel %vm5804, %v5786, %v5154
    %vm5807 = vcmp.eq.s32.totalorder %v3232, %v5803
    %v5808 = vsel %vm5807, 1, 0
    %v5809 = vcvt.s32.f32 %v5808
    %v5811 = vsel %vm3853, %v5809, 0
    %5813 = vmatprep.subr.mxu0 0.0
    %5814 = vmatpush1.msra.mxu0 %v3845
    %5815 = vmatprep.subr.mxu0 0.0
    %5816 = vmatpush1.msra.mxu0 %v3846
    %5817 = vmatprep.subr.mxu0 0.0
    %5818 = vmatpush1.msra.mxu0 %v3847
    %5819 = vmatprep.subr.mxu0 0.0
    %5820 = vmatpush1.msra.mxu0 %v3848
    %5821 = vmatprep.subr.mxu0 0.0
    %5822 = vmatpush1.msra.mxu0 %v3849
    %5823 = vmatprep.subr.mxu0 0.0
    %5824 = vmatpush1.msra.mxu0 %v3850
    %5825 = vmatprep.subr.mxu0 0.0
    %5826 = vmatpush1.msra.mxu0 %v3851
    %5827 = vmatprep.subr.mxu0 0.0
    %5828 = vmatpush1.msra.mxu0 %v3852
    %5829 = vmatprep.subr.mxu0 0.0
    %5830 = vmatpush1.msra.mxu0 0.0
    %5831 = vmatprep.subr.mxu0 0.0
    %5832 = vmatpush1.msra.mxu0 0.0
    %5833 = vmatprep.subr.mxu0 0.0
    %5834 = vmatpush1.msra.mxu0 0.0
    %5835 = vmatprep.subr.mxu0 0.0
    %5836 = vmatpush1.msra.mxu0 0.0
    %5837 = vmatprep.subr.mxu0 0.0
    %5838 = vmatpush1.msra.mxu0 0.0
    %5839 = vmatprep.subr.mxu0 0.0
    %5840 = vmatpush1.msra.mxu0 0.0
    %5841 = vmatprep.subr.mxu0 0.0
    %5842 = vmatpush1.msra.mxu0 0.0
    %5843 = vmatprep.subr.mxu0 0.0
    %5844 = vmatpush1.msra.mxu0 0.0
    %5845 = vmatprep.subr.mxu0 0.0
    %5846 = vmatpush1.msra.mxu0 0.0
    %5847 = vmatprep.subr.mxu0 0.0
    %5848 = vmatpush1.msra.mxu0 0.0
    %5849 = vmatprep.subr.mxu0 0.0
    %5850 = vmatpush1.msra.mxu0 0.0
    %5851 = vmatprep.subr.mxu0 0.0
    %5852 = vmatpush1.msra.mxu0 0.0
    %5853 = vmatprep.subr.mxu0 0.0
    %5854 = vmatpush1.msra.mxu0 0.0
    %5855 = vmatprep.subr.mxu0 0.0
    %5856 = vmatpush1.msra.mxu0 0.0
    %5857 = vmatprep.subr.mxu0 0.0
    %5858 = vmatpush1.msra.mxu0 0.0
    %5859 = vmatprep.subr.mxu0 0.0
    %5860 = vmatpush1.msra.mxu0 0.0
    %5861 = vmatprep.subr.mxu0 0.0
    %5862 = vmatpush1.msra.mxu0 0.0
    %5863 = vmatprep.subr.mxu0 0.0
    %5864 = vmatpush1.msra.mxu0 0.0
    %5865 = vmatprep.subr.mxu0 0.0
    %5866 = vmatpush1.msra.mxu0 0.0
    %5867 = vmatprep.subr.mxu0 0.0
    %5868 = vmatpush1.msra.mxu0 0.0
    %5869 = vmatprep.subr.mxu0 0.0
    %5870 = vmatpush1.msra.mxu0 0.0
    %5871 = vmatprep.subr.mxu0 0.0
    %5872 = vmatpush1.msra.mxu0 0.0
    %5873 = vmatprep.subr.mxu0 0.0
    %5874 = vmatpush1.msra.mxu0 0.0
    %5875 = vmatprep.subr.mxu0 0.0
    %5876 = vmatpush1.msra.mxu0 0.0
    %5877 = vmatprep.mubr.f32.mxu0 0.0
    %5878 = vmatmul.mubr.f32.gmra.mrb[0].mxu0 %v5811
    %v5879 = vpop.f32.mrb[0].mxu0
    %v5880 = vadd.f32 0.0, %v5879
    %v5881 = vpop.f32.mrb[0].mxu0
    %5882 = vdwg.mxu0
    %v5884 = vsel %vm214, %v5880, 0
    %5886 = vmatprep.subr.mxu0 0.0
    %5887 = vmatpush1.msra.mxu0 %v3234
    %5888 = vmatprep.subr.mxu0 0.0
    %5889 = vmatpush1.msra.mxu0 %v3235
    %5890 = vmatprep.subr.mxu0 0.0
    %5891 = vmatpush1.msra.mxu0 %v3236
    %5892 = vmatprep.subr.mxu0 0.0
    %5893 = vmatpush1.msra.mxu0 %v3237
    %5894 = vmatprep.subr.mxu0 0.0
    %5895 = vmatpush1.msra.mxu0 0.0
    %5896 = vmatprep.subr.mxu0 0.0
    %5897 = vmatpush1.msra.mxu0 0.0
    %5898 = vmatprep.subr.mxu0 0.0
    %5899 = vmatpush1.msra.mxu0 0.0
    %5900 = vmatprep.subr.mxu0 0.0
    %5901 = vmatpush1.msra.mxu0 0.0
    %5902 = vmatprep.subr.mxu0 0.0
    %5903 = vmatpush1.msra.mxu0 0.0
    %5904 = vmatprep.subr.mxu0 0.0
    %5905 = vmatpush1.msra.mxu0 0.0
    %5906 = vmatprep.subr.mxu0 0.0
    %5907 = vmatpush1.msra.mxu0 0.0
    %5908 = vmatprep.subr.mxu0 0.0
    %5909 = vmatpush1.msra.mxu0 0.0
    %5910 = vmatprep.subr.mxu0 0.0
    %5911 = vmatpush1.msra.mxu0 0.0
    %5912 = vmatprep.subr.mxu0 0.0
    %5913 = vmatpush1.msra.mxu0 0.0
    %5914 = vmatprep.subr.mxu0 0.0
    %5915 = vmatpush1.msra.mxu0 0.0
    %5916 = vmatprep.subr.mxu0 0.0
    %5917 = vmatpush1.msra.mxu0 0.0
    %5918 = vmatprep.subr.mxu0 0.0
    %5919 = vmatpush1.msra.mxu0 0.0
    %5920 = vmatprep.subr.mxu0 0.0
    %5921 = vmatpush1.msra.mxu0 0.0
    %5922 = vmatprep.subr.mxu0 0.0
    %5923 = vmatpush1.msra.mxu0 0.0
    %5924 = vmatprep.subr.mxu0 0.0
    %5925 = vmatpush1.msra.mxu0 0.0
    %5926 = vmatprep.subr.mxu0 0.0
    %5927 = vmatpush1.msra.mxu0 0.0
    %5928 = vmatprep.subr.mxu0 0.0
    %5929 = vmatpush1.msra.mxu0 0.0
    %5930 = vmatprep.subr.mxu0 0.0
    %5931 = vmatpush1.msra.mxu0 0.0
    %5932 = vmatprep.subr.mxu0 0.0
    %5933 = vmatpush1.msra.mxu0 0.0
    %5934 = vmatprep.subr.mxu0 0.0
    %5935 = vmatpush1.msra.mxu0 0.0
    %5936 = vmatprep.subr.mxu0 0.0
    %5937 = vmatpush1.msra.mxu0 0.0
    %5938 = vmatprep.subr.mxu0 0.0
    %5939 = vmatpush1.msra.mxu0 0.0
    %5940 = vmatprep.subr.mxu0 0.0
    %5941 = vmatpush1.msra.mxu0 0.0
    %5942 = vmatprep.subr.mxu0 0.0
    %5943 = vmatpush1.msra.mxu0 0.0
    %5944 = vmatprep.subr.mxu0 0.0
    %5945 = vmatpush1.msra.mxu0 0.0
    %5946 = vmatprep.subr.mxu0 0.0
    %5947 = vmatpush1.msra.mxu0 0.0
    %5948 = vmatprep.subr.mxu0 0.0
    %5949 = vmatpush1.msra.mxu0 0.0
    %5950 = vmatprep.mubr.f32.mxu0 0.0
    %5951 = vmatmul.mubr.f32.gmra.mrb[0].mxu0 %v5884
    %v5952 = vpop.f32.mrb[0].mxu0
    %v5953 = vadd.f32 %v3238, %v5952
    %v5954 = vpop.f32.mrb[0].mxu0
    %5955 = vdwg.mxu0
    %5956 = vmatprep.subr.mxu0 0.0
    %5957 = vmatpush1.msra.mxu0 %v3312
    %5958 = vmatprep.subr.mxu0 0.0
    %5959 = vmatpush1.msra.mxu0 %v3313
    %5960 = vmatprep.subr.mxu0 0.0
    %5961 = vmatpush1.msra.mxu0 %v3314
    %5962 = vmatprep.subr.mxu0 0.0
    %5963 = vmatpush1.msra.mxu0 %v3315
    %5964 = vmatprep.subr.mxu0 0.0
    %5965 = vmatpush1.msra.mxu0 0.0
    %5966 = vmatprep.subr.mxu0 0.0
    %5967 = vmatpush1.msra.mxu0 0.0
    %5968 = vmatprep.subr.mxu0 0.0
    %5969 = vmatpush1.msra.mxu0 0.0
    %5970 = vmatprep.subr.mxu0 0.0
    %5971 = vmatpush1.msra.mxu0 0.0
    %5972 = vmatprep.subr.mxu0 0.0
    %5973 = vmatpush1.msra.mxu0 0.0
    %5974 = vmatprep.subr.mxu0 0.0
    %5975 = vmatpush1.msra.mxu0 0.0
    %5976 = vmatprep.subr.mxu0 0.0
    %5977 = vmatpush1.msra.mxu0 0.0
    %5978 = vmatprep.subr.mxu0 0.0
    %5979 = vmatpush1.msra.mxu0 0.0
    %5980 = vmatprep.subr.mxu0 0.0
    %5981 = vmatpush1.msra.mxu0 0.0
    %5982 = vmatprep.subr.mxu0 0.0
    %5983 = vmatpush1.msra.mxu0 0.0
    %5984 = vmatprep.subr.mxu0 0.0
    %5985 = vmatpush1.msra.mxu0 0.0
    %5986 = vmatprep.subr.mxu0 0.0
    %5987 = vmatpush1.msra.mxu0 0.0
    %5988 = vmatprep.subr.mxu0 0.0
    %5989 = vmatpush1.msra.mxu0 0.0
    %5990 = vmatprep.subr.mxu0 0.0
    %5991 = vmatpush1.msra.mxu0 0.0
    %5992 = vmatprep.subr.mxu0 0.0
    %5993 = vmatpush1.msra.mxu0 0.0
    %5994 = vmatprep.subr.mxu0 0.0
    %5995 = vmatpush1.msra.mxu0 0.0
    %5996 = vmatprep.subr.mxu0 0.0
    %5997 = vmatpush1.msra.mxu0 0.0
    %5998 = vmatprep.subr.mxu0 0.0
    %5999 = vmatpush1.msra.mxu0 0.0
    %6000 = vmatprep.subr.mxu0 0.0
    %6001 = vmatpush1.msra.mxu0 0.0
    %6002 = vmatprep.subr.mxu0 0.0
    %6003 = vmatpush1.msra.mxu0 0.0
    %6004 = vmatprep.subr.mxu0 0.0
    %6005 = vmatpush1.msra.mxu0 0.0
    %6006 = vmatprep.subr.mxu0 0.0
    %6007 = vmatpush1.msra.mxu0 0.0
    %6008 = vmatprep.subr.mxu0 0.0
    %6009 = vmatpush1.msra.mxu0 0.0
    %6010 = vmatprep.subr.mxu0 0.0
    %6011 = vmatpush1.msra.mxu0 0.0
    %6012 = vmatprep.subr.mxu0 0.0
    %6013 = vmatpush1.msra.mxu0 0.0
    %6014 = vmatprep.subr.mxu0 0.0
    %6015 = vmatpush1.msra.mxu0 0.0
    %6016 = vmatprep.subr.mxu0 0.0
    %6017 = vmatpush1.msra.mxu0 0.0
    %6018 = vmatprep.subr.mxu0 0.0
    %6019 = vmatpush1.msra.mxu0 0.0
    %6020 = vmatprep.mubr.f32.mxu0 0.0
    %6021 = vmatmul.mubr.f32.gmra.mrb[0].mxu0 %v5403
    %v6022 = vpop.f32.mrb[0].mxu0
    %v6023 = vadd.f32 %v3316, %v6022
    %v6024 = vpop.f32.mrb[0].mxu0
    %6025 = vdwg.mxu0
    %v6026 = vadd.f32 %v5953, %v6023
    %v6027 = vxor.u32 %v6026, 2147483648
    %v6028 = vmul.f32 %v6027, 1.442695
    %v6029 = vpow.pop %v6028
    %v6030 = vadd.f32 %v6029, 1.0
    %v6031 = vrcp.pop %v6030
    %v6032 = vmul.f32 1.0, %v6031
    %6034 = vrot.lane.b32.xlu0 %v6023, 64
    %v6035 = vpop.permute.xlu0 %6034
    %v6037 = vmul.f32 %v6032, %v6035
    %6039 = vrot.lane.b32.xlu0 %v6037, 64
    %v6040 = vpop.permute.xlu0 %6039
    %v6042 = vadd.f32 %v5953, %v6040
    %v6043 = vtanh.pop %v6042
    %v6044 = vsub.f32 1.0, %v6032
    %6046 = vrot.lane.b32.xlu0 %v6043, 96
    %v6047 = vpop.permute.xlu0 %6046
    %v6049 = vmul.f32 %v6044, %v6047
    %v6050 = vmul.f32 %v6032, %v5399
    %v6051 = vadd.f32 %v6049, %v6050
    %6053 = vrot.lane.b32.xlu0 %v6051, 96
    %v6054 = vpop.permute.xlu0 %6053
    %v6055 = vsel %vm214, %v6054, 0
    %6057 = vmatprep.subr.mxu0 0.0
    %6058 = vmatpush1.xpose.msra.mxu0 %v3421
    %6059 = vmatprep.subr.mxu0 0.0
    %6060 = vmatpush1.xpose.msra.mxu0 0.0
    %6061 = vmatprep.subr.mxu0 0.0
    %6062 = vmatpush1.xpose.msra.mxu0 0.0
    %6063 = vmatprep.subr.mxu0 0.0
    %6064 = vmatpush1.xpose.msra.mxu0 0.0
    %6065 = vmatprep.subr.mxu0 0.0
    %6066 = vmatpush1.xpose.msra.mxu0 0.0
    %6067 = vmatprep.subr.mxu0 0.0
    %6068 = vmatpush1.xpose.msra.mxu0 0.0
    %6069 = vmatprep.subr.mxu0 0.0
    %6070 = vmatpush1.xpose.msra.mxu0 0.0
    %6071 = vmatprep.subr.mxu0 0.0
    %6072 = vmatpush1.xpose.msra.mxu0 0.0
    %6073 = vmatprep.subr.mxu0 0.0
    %6074 = vmatpush1.xpose.msra.mxu0 0.0
    %6075 = vmatprep.subr.mxu0 0.0
    %6076 = vmatpush1.xpose.msra.mxu0 0.0
    %6077 = vmatprep.subr.mxu0 0.0
    %6078 = vmatpush1.xpose.msra.mxu0 0.0
    %6079 = vmatprep.subr.mxu0 0.0
    %6080 = vmatpush1.xpose.msra.mxu0 0.0
    %6081 = vmatprep.subr.mxu0 0.0
    %6082 = vmatpush1.xpose.msra.mxu0 0.0
    %6083 = vmatprep.subr.mxu0 0.0
    %6084 = vmatpush1.xpose.msra.mxu0 0.0
    %6085 = vmatprep.subr.mxu0 0.0
    %6086 = vmatpush1.xpose.msra.mxu0 0.0
    %6087 = vmatprep.subr.mxu0 0.0
    %6088 = vmatpush1.xpose.msra.mxu0 0.0
    %6089 = vmatprep.subr.mxu0 0.0
    %6090 = vmatpush1.xpose.msra.mxu0 0.0
    %6091 = vmatprep.subr.mxu0 0.0
    %6092 = vmatpush1.xpose.msra.mxu0 0.0
    %6093 = vmatprep.subr.mxu0 0.0
    %6094 = vmatpush1.xpose.msra.mxu0 0.0
    %6095 = vmatprep.subr.mxu0 0.0
    %6096 = vmatpush1.xpose.msra.mxu0 0.0
    %6097 = vmatprep.subr.mxu0 0.0
    %6098 = vmatpush1.xpose.msra.mxu0 0.0
    %6099 = vmatprep.subr.mxu0 0.0
    %6100 = vmatpush1.xpose.msra.mxu0 0.0
    %6101 = vmatprep.subr.mxu0 0.0
    %6102 = vmatpush1.xpose.msra.mxu0 0.0
    %6103 = vmatprep.subr.mxu0 0.0
    %6104 = vmatpush1.xpose.msra.mxu0 0.0
    %6105 = vmatprep.subr.mxu0 0.0
    %6106 = vmatpush1.xpose.msra.mxu0 0.0
    %6107 = vmatprep.subr.mxu0 0.0
    %6108 = vmatpush1.xpose.msra.mxu0 0.0
    %6109 = vmatprep.subr.mxu0 0.0
    %6110 = vmatpush1.xpose.msra.mxu0 0.0
    %6111 = vmatprep.subr.mxu0 0.0
    %6112 = vmatpush1.xpose.msra.mxu0 0.0
    %6113 = vmatprep.subr.mxu0 0.0
    %6114 = vmatpush1.xpose.msra.mxu0 0.0
    %6115 = vmatprep.subr.mxu0 0.0
    %6116 = vmatpush1.xpose.msra.mxu0 0.0
    %6117 = vmatprep.subr.mxu0 0.0
    %6118 = vmatpush1.xpose.msra.mxu0 0.0
    %6119 = vmatprep.subr.mxu0 0.0
    %6120 = vmatpush1.xpose.msra.mxu0 0.0
    %6121 = vmatprep.mubr.f32.mxu0 0.0
    %6122 = vmatmul.mubr.f32.gmra.mrb[0].mxu0 %v6055
    %v6123 = vpop.f32.mrb[0].mxu0
    %v6124 = vadd.f32 0.0, %v6123
    %v6125 = vpop.f32.mrb[0].mxu0
    %6126 = vdwg.mxu0
    %v6127 = vsel %vm3493, %v6124, -inf
    %6128 = vmax.xlane.f32.xlu0 %v6127
    %v6129 = vpop.xlane.xlu0 %6128
    %v6130 = vsub.f32 %v6124, %v6129
    %v6131 = vmul.f32 %v6130, 1.442695
    %v6132 = vpow.pop %v6131
    %v6133 = vsel %vm3493, %v6132, 0.0
    %6134 = vadd.xlane.f32.xlu0 %v6133
    %v6135 = vpop.xlane.xlu0 %6134
    %v6136 = vrcp.pop %v6135
    %v6137 = vmul.f32 %v6132, %v6136
    %v6139 = vsel %vm3505, %v6137, 0
    %6141 = vmatprep.subr.mxu0 0.0
    %6142 = vmatpush1.msra.mxu0 %v3230
    %6143 = vmatprep.subr.mxu0 0.0
    %6144 = vmatpush1.msra.mxu0 0.0
    %6145 = vmatprep.subr.mxu0 0.0
    %6146 = vmatpush1.msra.mxu0 0.0
    %6147 = vmatprep.subr.mxu0 0.0
    %6148 = vmatpush1.msra.mxu0 0.0
    %6149 = vmatprep.subr.mxu0 0.0
    %6150 = vmatpush1.msra.mxu0 0.0
    %6151 = vmatprep.subr.mxu0 0.0
    %6152 = vmatpush1.msra.mxu0 0.0
    %6153 = vmatprep.subr.mxu0 0.0
    %6154 = vmatpush1.msra.mxu0 0.0
    %6155 = vmatprep.subr.mxu0 0.0
    %6156 = vmatpush1.msra.mxu0 0.0
    %6157 = vmatprep.subr.mxu0 0.0
    %6158 = vmatpush1.msra.mxu0 0.0
    %6159 = vmatprep.subr.mxu0 0.0
    %6160 = vmatpush1.msra.mxu0 0.0
    %6161 = vmatprep.subr.mxu0 0.0
    %6162 = vmatpush1.msra.mxu0 0.0
    %6163 = vmatprep.subr.mxu0 0.0
    %6164 = vmatpush1.msra.mxu0 0.0
    %6165 = vmatprep.subr.mxu0 0.0
    %6166 = vmatpush1.msra.mxu0 0.0
    %6167 = vmatprep.subr.mxu0 0.0
    %6168 = vmatpush1.msra.mxu0 0.0
    %6169 = vmatprep.subr.mxu0 0.0
    %6170 = vmatpush1.msra.mxu0 0.0
    %6171 = vmatprep.subr.mxu0 0.0
    %6172 = vmatpush1.msra.mxu0 0.0
    %6173 = vmatprep.subr.mxu0 0.0
    %6174 = vmatpush1.msra.mxu0 0.0
    %6175 = vmatprep.subr.mxu0 0.0
    %6176 = vmatpush1.msra.mxu0 0.0
    %6177 = vmatprep.subr.mxu0 0.0
    %6178 = vmatpush1.msra.mxu0 0.0
    %6179 = vmatprep.subr.mxu0 0.0
    %6180 = vmatpush1.msra.mxu0 0.0
    %6181 = vmatprep.subr.mxu0 0.0
    %6182 = vmatpush1.msra.mxu0 0.0
    %6183 = vmatprep.subr.mxu0 0.0
    %6184 = vmatpush1.msra.mxu0 0.0
    %6185 = vmatprep.subr.mxu0 0.0
    %6186 = vmatpush1.msra.mxu0 0.0
    %6187 = vmatprep.subr.mxu0 0.0
    %6188 = vmatpush1.msra.mxu0 0.0
    %6189 = vmatprep.subr.mxu0 0.0
    %6190 = vmatpush1.msra.mxu0 0.0
    %6191 = vmatprep.subr.mxu0 0.0
    %6192 = vmatpush1.msra.mxu0 0.0
    %6193 = vmatprep.subr.mxu0 0.0
    %6194 = vmatpush1.msra.mxu0 0.0
    %6195 = vmatprep.subr.mxu0 0.0
    %6196 = vmatpush1.msra.mxu0 0.0
    %6197 = vmatprep.subr.mxu0 0.0
    %6198 = vmatpush1.msra.mxu0 0.0
    %6199 = vmatprep.subr.mxu0 0.0
    %6200 = vmatpush1.msra.mxu0 0.0
    %6201 = vmatprep.subr.mxu0 0.0
    %6202 = vmatpush1.msra.mxu0 0.0
    %6203 = vmatprep.subr.mxu0 0.0
    %6204 = vmatpush1.msra.mxu0 0.0
    %6205 = vmatprep.mubr.f32.mxu0 0.0
    %6206 = vmatmul.mubr.f32.gmra.mrb[0].mxu0 %v6139
    %v6207 = vpop.f32.mrb[0].mxu0
    %v6208 = vadd.f32 0.0, %v6207
    %v6209 = vpop.f32.mrb[0].mxu0
    %6210 = vdwg.mxu0
    %v6212 = vsel %vm214, %v6208, 0
    %6214 = vmatprep.subr.mxu0 0.0
    %6215 = vmatpush1.msra.mxu0 %v3583
    %6216 = vmatprep.subr.mxu0 0.0
    %6217 = vmatpush1.msra.mxu0 %v3584
    %6218 = vmatprep.subr.mxu0 0.0
    %6219 = vmatpush1.msra.mxu0 %v3585
    %6220 = vmatprep.subr.mxu0 0.0
    %6221 = vmatpush1.msra.mxu0 %v3586
    %6222 = vmatprep.subr.mxu0 0.0
    %6223 = vmatpush1.msra.mxu0 0.0
    %6224 = vmatprep.subr.mxu0 0.0
    %6225 = vmatpush1.msra.mxu0 0.0
    %6226 = vmatprep.subr.mxu0 0.0
    %6227 = vmatpush1.msra.mxu0 0.0
    %6228 = vmatprep.subr.mxu0 0.0
    %6229 = vmatpush1.msra.mxu0 0.0
    %6230 = vmatprep.subr.mxu0 0.0
    %6231 = vmatpush1.msra.mxu0 0.0
    %6232 = vmatprep.subr.mxu0 0.0
    %6233 = vmatpush1.msra.mxu0 0.0
    %6234 = vmatprep.subr.mxu0 0.0
    %6235 = vmatpush1.msra.mxu0 0.0
    %6236 = vmatprep.subr.mxu0 0.0
    %6237 = vmatpush1.msra.mxu0 0.0
    %6238 = vmatprep.subr.mxu0 0.0
    %6239 = vmatpush1.msra.mxu0 0.0
    %6240 = vmatprep.subr.mxu0 0.0
    %6241 = vmatpush1.msra.mxu0 0.0
    %6242 = vmatprep.subr.mxu0 0.0
    %6243 = vmatpush1.msra.mxu0 0.0
    %6244 = vmatprep.subr.mxu0 0.0
    %6245 = vmatpush1.msra.mxu0 0.0
    %6246 = vmatprep.subr.mxu0 0.0
    %6247 = vmatpush1.msra.mxu0 0.0
    %6248 = vmatprep.subr.mxu0 0.0
    %6249 = vmatpush1.msra.mxu0 0.0
    %6250 = vmatprep.subr.mxu0 0.0
    %6251 = vmatpush1.msra.mxu0 0.0
    %6252 = vmatprep.subr.mxu0 0.0
    %6253 = vmatpush1.msra.mxu0 0.0
    %6254 = vmatprep.subr.mxu0 0.0
    %6255 = vmatpush1.msra.mxu0 0.0
    %6256 = vmatprep.subr.mxu0 0.0
    %6257 = vmatpush1.msra.mxu0 0.0
    %6258 = vmatprep.subr.mxu0 0.0
    %6259 = vmatpush1.msra.mxu0 0.0
    %6260 = vmatprep.subr.mxu0 0.0
    %6261 = vmatpush1.msra.mxu0 0.0
    %6262 = vmatprep.subr.mxu0 0.0
    %6263 = vmatpush1.msra.mxu0 0.0
    %6264 = vmatprep.subr.mxu0 0.0
    %6265 = vmatpush1.msra.mxu0 0.0
    %6266 = vmatprep.subr.mxu0 0.0
    %6267 = vmatpush1.msra.mxu0 0.0
    %6268 = vmatprep.subr.mxu0 0.0
    %6269 = vmatpush1.msra.mxu0 0.0
    %6270 = vmatprep.subr.mxu0 0.0
    %6271 = vmatpush1.msra.mxu0 0.0
    %6272 = vmatprep.subr.mxu0 0.0
    %6273 = vmatpush1.msra.mxu0 0.0
    %6274 = vmatprep.subr.mxu0 0.0
    %6275 = vmatpush1.msra.mxu0 0.0
    %6276 = vmatprep.subr.mxu0 0.0
    %6277 = vmatpush1.msra.mxu0 0.0
    %6278 = vmatprep.mubr.f32.mxu0 0.0
    %6279 = vmatmul.mubr.f32.gmra.mrb[0].mxu0 %v6212
    %v6280 = vpop.f32.mrb[0].mxu0
    %v6281 = vadd.f32 0.0, %v6280
    %v6282 = vpop.f32.mrb[0].mxu0
    %6283 = vdwg.mxu0
    %6284 = vmatprep.subr.mxu0 0.0
    %6285 = vmatpush1.msra.mxu0 %v3579
    %6286 = vmatprep.subr.mxu0 0.0
    %6287 = vmatpush1.msra.mxu0 %v3580
    %6288 = vmatprep.subr.mxu0 0.0
    %6289 = vmatpush1.msra.mxu0 %v3581
    %6290 = vmatprep.subr.mxu0 0.0
    %6291 = vmatpush1.msra.mxu0 %v3582
    %6292 = vmatprep.subr.mxu0 0.0
    %6293 = vmatpush1.msra.mxu0 0.0
    %6294 = vmatprep.subr.mxu0 0.0
    %6295 = vmatpush1.msra.mxu0 0.0
    %6296 = vmatprep.subr.mxu0 0.0
    %6297 = vmatpush1.msra.mxu0 0.0
    %6298 = vmatprep.subr.mxu0 0.0
    %6299 = vmatpush1.msra.mxu0 0.0
    %6300 = vmatprep.subr.mxu0 0.0
    %6301 = vmatpush1.msra.mxu0 0.0
    %6302 = vmatprep.subr.mxu0 0.0
    %6303 = vmatpush1.msra.mxu0 0.0
    %6304 = vmatprep.subr.mxu0 0.0
    %6305 = vmatpush1.msra.mxu0 0.0
    %6306 = vmatprep.subr.mxu0 0.0
    %6307 = vmatpush1.msra.mxu0 0.0
    %6308 = vmatprep.subr.mxu0 0.0
    %6309 = vmatpush1.msra.mxu0 0.0
    %6310 = vmatprep.subr.mxu0 0.0
    %6311 = vmatpush1.msra.mxu0 0.0
    %6312 = vmatprep.subr.mxu0 0.0
    %6313 = vmatpush1.msra.mxu0 0.0
    %6314 = vmatprep.subr.mxu0 0.0
    %6315 = vmatpush1.msra.mxu0 0.0
    %6316 = vmatprep.subr.mxu0 0.0
    %6317 = vmatpush1.msra.mxu0 0.0
    %6318 = vmatprep.subr.mxu0 0.0
    %6319 = vmatpush1.msra.mxu0 0.0
    %6320 = vmatprep.subr.mxu0 0.0
    %6321 = vmatpush1.msra.mxu0 0.0
    %6322 = vmatprep.subr.mxu0 0.0
    %6323 = vmatpush1.msra.mxu0 0.0
    %6324 = vmatprep.subr.mxu0 0.0
    %6325 = vmatpush1.msra.mxu0 0.0
    %6326 = vmatprep.subr.mxu0 0.0
    %6327 = vmatpush1.msra.mxu0 0.0
    %6328 = vmatprep.subr.mxu0 0.0
    %6329 = vmatpush1.msra.mxu0 0.0
    %6330 = vmatprep.subr.mxu0 0.0
    %6331 = vmatpush1.msra.mxu0 0.0
    %6332 = vmatprep.subr.mxu0 0.0
    %6333 = vmatpush1.msra.mxu0 0.0
    %6334 = vmatprep.subr.mxu0 0.0
    %6335 = vmatpush1.msra.mxu0 0.0
    %6336 = vmatprep.subr.mxu0 0.0
    %6337 = vmatpush1.msra.mxu0 0.0
    %6338 = vmatprep.subr.mxu0 0.0
    %6339 = vmatpush1.msra.mxu0 0.0
    %6340 = vmatprep.subr.mxu0 0.0
    %6341 = vmatpush1.msra.mxu0 0.0
    %6342 = vmatprep.subr.mxu0 0.0
    %6343 = vmatpush1.msra.mxu0 0.0
    %6344 = vmatprep.subr.mxu0 0.0
    %6345 = vmatpush1.msra.mxu0 0.0
    %6346 = vmatprep.subr.mxu0 0.0
    %6347 = vmatpush1.msra.mxu0 0.0
    %6348 = vmatprep.mubr.f32.mxu0 0.0
    %6349 = vmatmul.mubr.f32.gmra.mrb[0].mxu0 %v6055
    %v6350 = vpop.f32.mrb[0].mxu0
    %v6351 = vadd.f32 %v6281, %v6350
    %v6352 = vpop.f32.mrb[0].mxu0
    %6353 = vdwg.mxu0
    %v6354 = vadd.f32 %v6351, %v3730
    %v6355 = vtanh.pop %v6354
    %v6357 = vsel %vm214, %v6355, 0
    %6359 = vmatprep.subr.mxu0 0.0
    %6360 = vmatpush1.msra.mxu0 %v3733
    %6361 = vmatprep.subr.mxu0 0.0
    %6362 = vmatpush1.msra.mxu0 %v3734
    %6363 = vmatprep.subr.mxu0 0.0
    %6364 = vmatpush1.msra.mxu0 %v3735
    %6365 = vmatprep.subr.mxu0 0.0
    %6366 = vmatpush1.msra.mxu0 %v3736
    %6367 = vmatprep.subr.mxu0 0.0
    %6368 = vmatpush1.msra.mxu0 0.0
    %6369 = vmatprep.subr.mxu0 0.0
    %6370 = vmatpush1.msra.mxu0 0.0
    %6371 = vmatprep.subr.mxu0 0.0
    %6372 = vmatpush1.msra.mxu0 0.0
    %6373 = vmatprep.subr.mxu0 0.0
    %6374 = vmatpush1.msra.mxu0 0.0
    %6375 = vmatprep.subr.mxu0 0.0
    %6376 = vmatpush1.msra.mxu0 0.0
    %6377 = vmatprep.subr.mxu0 0.0
    %6378 = vmatpush1.msra.mxu0 0.0
    %6379 = vmatprep.subr.mxu0 0.0
    %6380 = vmatpush1.msra.mxu0 0.0
    %6381 = vmatprep.subr.mxu0 0.0
    %6382 = vmatpush1.msra.mxu0 0.0
    %6383 = vmatprep.subr.mxu0 0.0
    %6384 = vmatpush1.msra.mxu0 0.0
    %6385 = vmatprep.subr.mxu0 0.0
    %6386 = vmatpush1.msra.mxu0 0.0
    %6387 = vmatprep.subr.mxu0 0.0
    %6388 = vmatpush1.msra.mxu0 0.0
    %6389 = vmatprep.subr.mxu0 0.0
    %6390 = vmatpush1.msra.mxu0 0.0
    %6391 = vmatprep.subr.mxu0 0.0
    %6392 = vmatpush1.msra.mxu0 0.0
    %6393 = vmatprep.subr.mxu0 0.0
    %6394 = vmatpush1.msra.mxu0 0.0
    %6395 = vmatprep.subr.mxu0 0.0
    %6396 = vmatpush1.msra.mxu0 0.0
    %6397 = vmatprep.subr.mxu0 0.0
    %6398 = vmatpush1.msra.mxu0 0.0
    %6399 = vmatprep.subr.mxu0 0.0
    %6400 = vmatpush1.msra.mxu0 0.0
    %6401 = vmatprep.subr.mxu0 0.0
    %6402 = vmatpush1.msra.mxu0 0.0
    %6403 = vmatprep.subr.mxu0 0.0
    %6404 = vmatpush1.msra.mxu0 0.0
    %6405 = vmatprep.subr.mxu0 0.0
    %6406 = vmatpush1.msra.mxu0 0.0
    %6407 = vmatprep.subr.mxu0 0.0
    %6408 = vmatpush1.msra.mxu0 0.0
    %6409 = vmatprep.subr.mxu0 0.0
    %6410 = vmatpush1.msra.mxu0 0.0
    %6411 = vmatprep.subr.mxu0 0.0
    %6412 = vmatpush1.msra.mxu0 0.0
    %6413 = vmatprep.subr.mxu0 0.0
    %6414 = vmatpush1.msra.mxu0 0.0
    %6415 = vmatprep.subr.mxu0 0.0
    %6416 = vmatpush1.msra.mxu0 0.0
    %6417 = vmatprep.subr.mxu0 0.0
    %6418 = vmatpush1.msra.mxu0 0.0
    %6419 = vmatprep.subr.mxu0 0.0
    %6420 = vmatpush1.msra.mxu0 0.0
    %6421 = vmatprep.subr.mxu0 0.0
    %6422 = vmatpush1.msra.mxu0 0.0
    %6423 = vmatprep.mubr.f32.mxu0 0.0
    %6424 = vmatmul.mubr.f32.gmra.mrb[0].mxu0 %v6357
    %v6425 = vpop.f32.mrb[0].mxu0
    %v6426 = vadd.f32 %v3737, %v6425
    %v6427 = vpop.f32.mrb[0].mxu0
    %6428 = vdwg.mxu0
    %v6429 = vsel %vm3811, %v6426, -inf
    %6430 = vmax.xlane.f32.xlu0 %v6429
    %v6431 = vpop.xlane.xlu0 %6430
    %v6432 = vsub.f32 %v6426, %v6431
    %v6433 = vmul.f32 %v6432, 1.442695
    %v6434 = vpow.pop %v6433
    %v6435 = vsel %vm3811, %v6434, 0.0
    %6436 = vadd.xlane.f32.xlu0 %v6435
    %v6437 = vpop.xlane.xlu0 %6436
    %v6438 = vrcp.pop %v6437
    %vm6439 = vcmp.ge.f32.partialorder %v6426, %v6431
    %v6440 = vsel %vm6439, %v3232, 64
    %v6441 = vsel %vm3811, %v6440, 2147483647
    %v6442 = vand.u32 %v6441, 65535
    %v6443 = vshra.s32 %v6441, 16
    %v6444 = vcvt.s32.f32 %v6442
    %v6445 = vcvt.s32.f32 %v6443
    %6446 = vmin.xlane.f32.xlu0 %v6445
    %v6447 = vpop.xlane.xlu0 %6446
    %vm6448 = vcmp.eq.f32.partialorder %v6445, %v6447
    %v6449 = vsel %vm6448, %v6444, inf
    %6450 = vmin.xlane.f32.xlu0 %v6449
    %v6451 = vpop.xlane.xlu0 %6450
    %v6452 = vcvt.f32.s32 %v6451
    %v6453 = vcvt.f32.s32 %v6447
    %v6454 = vshll.u32 %v6453, 16
    %v6455 = vadd.s32 %v6454, %v6452
    %vm6456 = vcmp.eq.s32.totalorder %v3232, 4
    %v6457 = vsel %vm6456, %v6455, %v5805
    %v6458 = vsel %vm6456, %v6438, %v5806
    %vm6459 = vcmp.eq.s32.totalorder %v3232, %v6455
    %v6460 = vsel %vm6459, 1, 0
    %v6461 = vcvt.s32.f32 %v6460
    %v6463 = vsel %vm3853, %v6461, 0
    %6465 = vmatprep.subr.mxu0 0.0
    %6466 = vmatpush1.msra.mxu0 %v3845
    %6467 = vmatprep.subr.mxu0 0.0
    %6468 = vmatpush1.msra.mxu0 %v3846
    %6469 = vmatprep.subr.mxu0 0.0
    %6470 = vmatpush1.msra.mxu0 %v3847
    %6471 = vmatprep.subr.mxu0 0.0
    %6472 = vmatpush1.msra.mxu0 %v3848
    %6473 = vmatprep.subr.mxu0 0.0
    %6474 = vmatpush1.msra.mxu0 %v3849
    %6475 = vmatprep.subr.mxu0 0.0
    %6476 = vmatpush1.msra.mxu0 %v3850
    %6477 = vmatprep.subr.mxu0 0.0
    %6478 = vmatpush1.msra.mxu0 %v3851
    %6479 = vmatprep.subr.mxu0 0.0
    %6480 = vmatpush1.msra.mxu0 %v3852
    %6481 = vmatprep.subr.mxu0 0.0
    %6482 = vmatpush1.msra.mxu0 0.0
    %6483 = vmatprep.subr.mxu0 0.0
    %6484 = vmatpush1.msra.mxu0 0.0
    %6485 = vmatprep.subr.mxu0 0.0
    %6486 = vmatpush1.msra.mxu0 0.0
    %6487 = vmatprep.subr.mxu0 0.0
    %6488 = vmatpush1.msra.mxu0 0.0
    %6489 = vmatprep.subr.mxu0 0.0
    %6490 = vmatpush1.msra.mxu0 0.0
    %6491 = vmatprep.subr.mxu0 0.0
    %6492 = vmatpush1.msra.mxu0 0.0
    %6493 = vmatprep.subr.mxu0 0.0
    %6494 = vmatpush1.msra.mxu0 0.0
    %6495 = vmatprep.subr.mxu0 0.0
    %6496 = vmatpush1.msra.mxu0 0.0
    %6497 = vmatprep.subr.mxu0 0.0
    %6498 = vmatpush1.msra.mxu0 0.0
    %6499 = vmatprep.subr.mxu0 0.0
    %6500 = vmatpush1.msra.mxu0 0.0
    %6501 = vmatprep.subr.mxu0 0.0
    %6502 = vmatpush1.msra.mxu0 0.0
    %6503 = vmatprep.subr.mxu0 0.0
    %6504 = vmatpush1.msra.mxu0 0.0
    %6505 = vmatprep.subr.mxu0 0.0
    %6506 = vmatpush1.msra.mxu0 0.0
    %6507 = vmatprep.subr.mxu0 0.0
    %6508 = vmatpush1.msra.mxu0 0.0
    %6509 = vmatprep.subr.mxu0 0.0
    %6510 = vmatpush1.msra.mxu0 0.0
    %6511 = vmatprep.subr.mxu0 0.0
    %6512 = vmatpush1.msra.mxu0 0.0
    %6513 = vmatprep.subr.mxu0 0.0
    %6514 = vmatpush1.msra.mxu0 0.0
    %6515 = vmatprep.subr.mxu0 0.0
    %6516 = vmatpush1.msra.mxu0 0.0
    %6517 = vmatprep.subr.mxu0 0.0
    %6518 = vmatpush1.msra.mxu0 0.0
    %6519 = vmatprep.subr.mxu0 0.0
    %6520 = vmatpush1.msra.mxu0 0.0
    %6521 = vmatprep.subr.mxu0 0.0
    %6522 = vmatpush1.msra.mxu0 0.0
    %6523 = vmatprep.subr.mxu0 0.0
    %6524 = vmatpush1.msra.mxu0 0.0
    %6525 = vmatprep.subr.mxu0 0.0
    %6526 = vmatpush1.msra.mxu0 0.0
    %6527 = vmatprep.subr.mxu0 0.0
    %6528 = vmatpush1.msra.mxu0 0.0
    %6529 = vmatprep.mubr.f32.mxu0 0.0
    %6530 = vmatmul.mubr.f32.gmra.mrb[0].mxu0 %v6463
    %v6531 = vpop.f32.mrb[0].mxu0
    %v6532 = vadd.f32 0.0, %v6531
    %v6533 = vpop.f32.mrb[0].mxu0
    %6534 = vdwg.mxu0
    %v6536 = vsel %vm214, %v6532, 0
    %6538 = vmatprep.subr.mxu0 0.0
    %6539 = vmatpush1.msra.mxu0 %v3234
    %6540 = vmatprep.subr.mxu0 0.0
    %6541 = vmatpush1.msra.mxu0 %v3235
    %6542 = vmatprep.subr.mxu0 0.0
    %6543 = vmatpush1.msra.mxu0 %v3236
    %6544 = vmatprep.subr.mxu0 0.0
    %6545 = vmatpush1.msra.mxu0 %v3237
    %6546 = vmatprep.subr.mxu0 0.0
    %6547 = vmatpush1.msra.mxu0 0.0
    %6548 = vmatprep.subr.mxu0 0.0
    %6549 = vmatpush1.msra.mxu0 0.0
    %6550 = vmatprep.subr.mxu0 0.0
    %6551 = vmatpush1.msra.mxu0 0.0
    %6552 = vmatprep.subr.mxu0 0.0
    %6553 = vmatpush1.msra.mxu0 0.0
    %6554 = vmatprep.subr.mxu0 0.0
    %6555 = vmatpush1.msra.mxu0 0.0
    %6556 = vmatprep.subr.mxu0 0.0
    %6557 = vmatpush1.msra.mxu0 0.0
    %6558 = vmatprep.subr.mxu0 0.0
    %6559 = vmatpush1.msra.mxu0 0.0
    %6560 = vmatprep.subr.mxu0 0.0
    %6561 = vmatpush1.msra.mxu0 0.0
    %6562 = vmatprep.subr.mxu0 0.0
    %6563 = vmatpush1.msra.mxu0 0.0
    %6564 = vmatprep.subr.mxu0 0.0
    %6565 = vmatpush1.msra.mxu0 0.0
    %6566 = vmatprep.subr.mxu0 0.0
    %6567 = vmatpush1.msra.mxu0 0.0
    %6568 = vmatprep.subr.mxu0 0.0
    %6569 = vmatpush1.msra.mxu0 0.0
    %6570 = vmatprep.subr.mxu0 0.0
    %6571 = vmatpush1.msra.mxu0 0.0
    %6572 = vmatprep.subr.mxu0 0.0
    %6573 = vmatpush1.msra.mxu0 0.0
    %6574 = vmatprep.subr.mxu0 0.0
    %6575 = vmatpush1.msra.mxu0 0.0
    %6576 = vmatprep.subr.mxu0 0.0
    %6577 = vmatpush1.msra.mxu0 0.0
    %6578 = vmatprep.subr.mxu0 0.0
    %6579 = vmatpush1.msra.mxu0 0.0
    %6580 = vmatprep.subr.mxu0 0.0
    %6581 = vmatpush1.msra.mxu0 0.0
    %6582 = vmatprep.subr.mxu0 0.0
    %6583 = vmatpush1.msra.mxu0 0.0
    %6584 = vmatprep.subr.mxu0 0.0
    %6585 = vmatpush1.msra.mxu0 0.0
    %6586 = vmatprep.subr.mxu0 0.0
    %6587 = vmatpush1.msra.mxu0 0.0
    %6588 = vmatprep.subr.mxu0 0.0
    %6589 = vmatpush1.msra.mxu0 0.0
    %6590 = vmatprep.subr.mxu0 0.0
    %6591 = vmatpush1.msra.mxu0 0.0
    %6592 = vmatprep.subr.mxu0 0.0
    %6593 = vmatpush1.msra.mxu0 0.0
    %6594 = vmatprep.subr.mxu0 0.0
    %6595 = vmatpush1.msra.mxu0 0.0
    %6596 = vmatprep.subr.mxu0 0.0
    %6597 = vmatpush1.msra.mxu0 0.0
    %6598 = vmatprep.subr.mxu0 0.0
    %6599 = vmatpush1.msra.mxu0 0.0
    %6600 = vmatprep.subr.mxu0 0.0
    %6601 = vmatpush1.msra.mxu0 0.0
    %6602 = vmatprep.mubr.f32.mxu0 0.0
    %6603 = vmatmul.mubr.f32.gmra.mrb[0].mxu0 %v6536
    %v6604 = vpop.f32.mrb[0].mxu0
    %v6605 = vadd.f32 %v3238, %v6604
    %v6606 = vpop.f32.mrb[0].mxu0
    %6607 = vdwg.mxu0
    %6608 = vmatprep.subr.mxu0 0.0
    %6609 = vmatpush1.msra.mxu0 %v3312
    %6610 = vmatprep.subr.mxu0 0.0
    %6611 = vmatpush1.msra.mxu0 %v3313
    %6612 = vmatprep.subr.mxu0 0.0
    %6613 = vmatpush1.msra.mxu0 %v3314
    %6614 = vmatprep.subr.mxu0 0.0
    %6615 = vmatpush1.msra.mxu0 %v3315
    %6616 = vmatprep.subr.mxu0 0.0
    %6617 = vmatpush1.msra.mxu0 0.0
    %6618 = vmatprep.subr.mxu0 0.0
    %6619 = vmatpush1.msra.mxu0 0.0
    %6620 = vmatprep.subr.mxu0 0.0
    %6621 = vmatpush1.msra.mxu0 0.0
    %6622 = vmatprep.subr.mxu0 0.0
    %6623 = vmatpush1.msra.mxu0 0.0
    %6624 = vmatprep.subr.mxu0 0.0
    %6625 = vmatpush1.msra.mxu0 0.0
    %6626 = vmatprep.subr.mxu0 0.0
    %6627 = vmatpush1.msra.mxu0 0.0
    %6628 = vmatprep.subr.mxu0 0.0
    %6629 = vmatpush1.msra.mxu0 0.0
    %6630 = vmatprep.subr.mxu0 0.0
    %6631 = vmatpush1.msra.mxu0 0.0
    %6632 = vmatprep.subr.mxu0 0.0
    %6633 = vmatpush1.msra.mxu0 0.0
    %6634 = vmatprep.subr.mxu0 0.0
    %6635 = vmatpush1.msra.mxu0 0.0
    %6636 = vmatprep.subr.mxu0 0.0
    %6637 = vmatpush1.msra.mxu0 0.0
    %6638 = vmatprep.subr.mxu0 0.0
    %6639 = vmatpush1.msra.mxu0 0.0
    %6640 = vmatprep.subr.mxu0 0.0
    %6641 = vmatpush1.msra.mxu0 0.0
    %6642 = vmatprep.subr.mxu0 0.0
    %6643 = vmatpush1.msra.mxu0 0.0
    %6644 = vmatprep.subr.mxu0 0.0
    %6645 = vmatpush1.msra.mxu0 0.0
    %6646 = vmatprep.subr.mxu0 0.0
    %6647 = vmatpush1.msra.mxu0 0.0
    %6648 = vmatprep.subr.mxu0 0.0
    %6649 = vmatpush1.msra.mxu0 0.0
    %6650 = vmatprep.subr.mxu0 0.0
    %6651 = vmatpush1.msra.mxu0 0.0
    %6652 = vmatprep.subr.mxu0 0.0
    %6653 = vmatpush1.msra.mxu0 0.0
    %6654 = vmatprep.subr.mxu0 0.0
    %6655 = vmatpush1.msra.mxu0 0.0
    %6656 = vmatprep.subr.mxu0 0.0
    %6657 = vmatpush1.msra.mxu0 0.0
    %6658 = vmatprep.subr.mxu0 0.0
    %6659 = vmatpush1.msra.mxu0 0.0
    %6660 = vmatprep.subr.mxu0 0.0
    %6661 = vmatpush1.msra.mxu0 0.0
    %6662 = vmatprep.subr.mxu0 0.0
    %6663 = vmatpush1.msra.mxu0 0.0
    %6664 = vmatprep.subr.mxu0 0.0
    %6665 = vmatpush1.msra.mxu0 0.0
    %6666 = vmatprep.subr.mxu0 0.0
    %6667 = vmatpush1.msra.mxu0 0.0
    %6668 = vmatprep.subr.mxu0 0.0
    %6669 = vmatpush1.msra.mxu0 0.0
    %6670 = vmatprep.subr.mxu0 0.0
    %6671 = vmatpush1.msra.mxu0 0.0
    %6672 = vmatprep.mubr.f32.mxu0 0.0
    %6673 = vmatmul.mubr.f32.gmra.mrb[0].mxu0 %v6055
    %v6674 = vpop.f32.mrb[0].mxu0
    %v6675 = vadd.f32 %v3316, %v6674
    %v6676 = vpop.f32.mrb[0].mxu0
    %6677 = vdwg.mxu0
    %v6678 = vadd.f32 %v6605, %v6675
    %v6679 = vxor.u32 %v6678, 2147483648
    %v6680 = vmul.f32 %v6679, 1.442695
    %v6681 = vpow.pop %v6680
    %v6682 = vadd.f32 %v6681, 1.0
    %v6683 = vrcp.pop %v6682
    %v6684 = vmul.f32 1.0, %v6683
    %6686 = vrot.lane.b32.xlu0 %v6675, 64
    %v6687 = vpop.permute.xlu0 %6686
    %v6689 = vmul.f32 %v6684, %v6687
    %6691 = vrot.lane.b32.xlu0 %v6689, 64
    %v6692 = vpop.permute.xlu0 %6691
    %v6694 = vadd.f32 %v6605, %v6692
    %v6695 = vtanh.pop %v6694
    %v6696 = vsub.f32 1.0, %v6684
    %6698 = vrot.lane.b32.xlu0 %v6695, 96
    %v6699 = vpop.permute.xlu0 %6698
    %v6701 = vmul.f32 %v6696, %v6699
    %v6702 = vmul.f32 %v6684, %v6051
    %v6703 = vadd.f32 %v6701, %v6702
    %6705 = vrot.lane.b32.xlu0 %v6703, 96
    %v6706 = vpop.permute.xlu0 %6705
    %v6707 = vsel %vm214, %v6706, 0
    %6709 = vmatprep.subr.mxu0 0.0
    %6710 = vmatpush1.xpose.msra.mxu0 %v3421
    %6711 = vmatprep.subr.mxu0 0.0
    %6712 = vmatpush1.xpose.msra.mxu0 0.0
    %6713 = vmatprep.subr.mxu0 0.0
    %6714 = vmatpush1.xpose.msra.mxu0 0.0
    %6715 = vmatprep.subr.mxu0 0.0
    %6716 = vmatpush1.xpose.msra.mxu0 0.0
    %6717 = vmatprep.subr.mxu0 0.0
    %6718 = vmatpush1.xpose.msra.mxu0 0.0
    %6719 = vmatprep.subr.mxu0 0.0
    %6720 = vmatpush1.xpose.msra.mxu0 0.0
    %6721 = vmatprep.subr.mxu0 0.0
    %6722 = vmatpush1.xpose.msra.mxu0 0.0
    %6723 = vmatprep.subr.mxu0 0.0
    %6724 = vmatpush1.xpose.msra.mxu0 0.0
    %6725 = vmatprep.subr.mxu0 0.0
    %6726 = vmatpush1.xpose.msra.mxu0 0.0
    %6727 = vmatprep.subr.mxu0 0.0
    %6728 = vmatpush1.xpose.msra.mxu0 0.0
    %6729 = vmatprep.subr.mxu0 0.0
    %6730 = vmatpush1.xpose.msra.mxu0 0.0
    %6731 = vmatprep.subr.mxu0 0.0
    %6732 = vmatpush1.xpose.msra.mxu0 0.0
    %6733 = vmatprep.subr.mxu0 0.0
    %6734 = vmatpush1.xpose.msra.mxu0 0.0
    %6735 = vmatprep.subr.mxu0 0.0
    %6736 = vmatpush1.xpose.msra.mxu0 0.0
    %6737 = vmatprep.subr.mxu0 0.0
    %6738 = vmatpush1.xpose.msra.mxu0 0.0
    %6739 = vmatprep.subr.mxu0 0.0
    %6740 = vmatpush1.xpose.msra.mxu0 0.0
    %6741 = vmatprep.subr.mxu0 0.0
    %6742 = vmatpush1.xpose.msra.mxu0 0.0
    %6743 = vmatprep.subr.mxu0 0.0
    %6744 = vmatpush1.xpose.msra.mxu0 0.0
    %6745 = vmatprep.subr.mxu0 0.0
    %6746 = vmatpush1.xpose.msra.mxu0 0.0
    %6747 = vmatprep.subr.mxu0 0.0
    %6748 = vmatpush1.xpose.msra.mxu0 0.0
    %6749 = vmatprep.subr.mxu0 0.0
    %6750 = vmatpush1.xpose.msra.mxu0 0.0
    %6751 = vmatprep.subr.mxu0 0.0
    %6752 = vmatpush1.xpose.msra.mxu0 0.0
    %6753 = vmatprep.subr.mxu0 0.0
    %6754 = vmatpush1.xpose.msra.mxu0 0.0
    %6755 = vmatprep.subr.mxu0 0.0
    %6756 = vmatpush1.xpose.msra.mxu0 0.0
    %6757 = vmatprep.subr.mxu0 0.0
    %6758 = vmatpush1.xpose.msra.mxu0 0.0
    %6759 = vmatprep.subr.mxu0 0.0
    %6760 = vmatpush1.xpose.msra.mxu0 0.0
    %6761 = vmatprep.subr.mxu0 0.0
    %6762 = vmatpush1.xpose.msra.mxu0 0.0
    %6763 = vmatprep.subr.mxu0 0.0
    %6764 = vmatpush1.xpose.msra.mxu0 0.0
    %6765 = vmatprep.subr.mxu0 0.0
    %6766 = vmatpush1.xpose.msra.mxu0 0.0
    %6767 = vmatprep.subr.mxu0 0.0
    %6768 = vmatpush1.xpose.msra.mxu0 0.0
    %6769 = vmatprep.subr.mxu0 0.0
    %6770 = vmatpush1.xpose.msra.mxu0 0.0
    %6771 = vmatprep.subr.mxu0 0.0
    %6772 = vmatpush1.xpose.msra.mxu0 0.0
    %6773 = vmatprep.mubr.f32.mxu0 0.0
    %6774 = vmatmul.mubr.f32.gmra.mrb[0].mxu0 %v6707
    %v6775 = vpop.f32.mrb[0].mxu0
    %v6776 = vadd.f32 0.0, %v6775
    %v6777 = vpop.f32.mrb[0].mxu0
    %6778 = vdwg.mxu0
    %v6779 = vsel %vm3493, %v6776, -inf
    %6780 = vmax.xlane.f32.xlu0 %v6779
    %v6781 = vpop.xlane.xlu0 %6780
    %v6782 = vsub.f32 %v6776, %v6781
    %v6783 = vmul.f32 %v6782, 1.442695
    %v6784 = vpow.pop %v6783
    %v6785 = vsel %vm3493, %v6784, 0.0
    %6786 = vadd.xlane.f32.xlu0 %v6785
    %v6787 = vpop.xlane.xlu0 %6786
    %v6788 = vrcp.pop %v6787
    %v6789 = vmul.f32 %v6784, %v6788
    %v6791 = vsel %vm3505, %v6789, 0
    %6793 = vmatprep.subr.mxu0 0.0
    %6794 = vmatpush1.msra.mxu0 %v3230
    %6795 = vmatprep.subr.mxu0 0.0
    %6796 = vmatpush1.msra.mxu0 0.0
    %6797 = vmatprep.subr.mxu0 0.0
    %6798 = vmatpush1.msra.mxu0 0.0
    %6799 = vmatprep.subr.mxu0 0.0
    %6800 = vmatpush1.msra.mxu0 0.0
    %6801 = vmatprep.subr.mxu0 0.0
    %6802 = vmatpush1.msra.mxu0 0.0
    %6803 = vmatprep.subr.mxu0 0.0
    %6804 = vmatpush1.msra.mxu0 0.0
    %6805 = vmatprep.subr.mxu0 0.0
    %6806 = vmatpush1.msra.mxu0 0.0
    %6807 = vmatprep.subr.mxu0 0.0
    %6808 = vmatpush1.msra.mxu0 0.0
    %6809 = vmatprep.subr.mxu0 0.0
    %6810 = vmatpush1.msra.mxu0 0.0
    %6811 = vmatprep.subr.mxu0 0.0
    %6812 = vmatpush1.msra.mxu0 0.0
    %6813 = vmatprep.subr.mxu0 0.0
    %6814 = vmatpush1.msra.mxu0 0.0
    %6815 = vmatprep.subr.mxu0 0.0
    %6816 = vmatpush1.msra.mxu0 0.0
    %6817 = vmatprep.subr.mxu0 0.0
    %6818 = vmatpush1.msra.mxu0 0.0
    %6819 = vmatprep.subr.mxu0 0.0
    %6820 = vmatpush1.msra.mxu0 0.0
    %6821 = vmatprep.subr.mxu0 0.0
    %6822 = vmatpush1.msra.mxu0 0.0
    %6823 = vmatprep.subr.mxu0 0.0
    %6824 = vmatpush1.msra.mxu0 0.0
    %6825 = vmatprep.subr.mxu0 0.0
    %6826 = vmatpush1.msra.mxu0 0.0
    %6827 = vmatprep.subr.mxu0 0.0
    %6828 = vmatpush1.msra.mxu0 0.0
    %6829 = vmatprep.subr.mxu0 0.0
    %6830 = vmatpush1.msra.mxu0 0.0
    %6831 = vmatprep.subr.mxu0 0.0
    %6832 = vmatpush1.msra.mxu0 0.0
    %6833 = vmatprep.subr.mxu0 0.0
    %6834 = vmatpush1.msra.mxu0 0.0
    %6835 = vmatprep.subr.mxu0 0.0
    %6836 = vmatpush1.msra.mxu0 0.0
    %6837 = vmatprep.subr.mxu0 0.0
    %6838 = vmatpush1.msra.mxu0 0.0
    %6839 = vmatprep.subr.mxu0 0.0
    %6840 = vmatpush1.msra.mxu0 0.0
    %6841 = vmatprep.subr.mxu0 0.0
    %6842 = vmatpush1.msra.mxu0 0.0
    %6843 = vmatprep.subr.mxu0 0.0
    %6844 = vmatpush1.msra.mxu0 0.0
    %6845 = vmatprep.subr.mxu0 0.0
    %6846 = vmatpush1.msra.mxu0 0.0
    %6847 = vmatprep.subr.mxu0 0.0
    %6848 = vmatpush1.msra.mxu0 0.0
    %6849 = vmatprep.subr.mxu0 0.0
    %6850 = vmatpush1.msra.mxu0 0.0
    %6851 = vmatprep.subr.mxu0 0.0
    %6852 = vmatpush1.msra.mxu0 0.0
    %6853 = vmatprep.subr.mxu0 0.0
    %6854 = vmatpush1.msra.mxu0 0.0
    %6855 = vmatprep.subr.mxu0 0.0
    %6856 = vmatpush1.msra.mxu0 0.0
    %6857 = vmatprep.mubr.f32.mxu0 0.0
    %6858 = vmatmul.mubr.f32.gmra.mrb[0].mxu0 %v6791
    %v6859 = vpop.f32.mrb[0].mxu0
    %v6860 = vadd.f32 0.0, %v6859
    %v6861 = vpop.f32.mrb[0].mxu0
    %6862 = vdwg.mxu0
    %v6864 = vsel %vm214, %v6860, 0
    %6866 = vmatprep.subr.mxu0 0.0
    %6867 = vmatpush1.msra.mxu0 %v3583
    %6868 = vmatprep.subr.mxu0 0.0
    %6869 = vmatpush1.msra.mxu0 %v3584
    %6870 = vmatprep.subr.mxu0 0.0
    %6871 = vmatpush1.msra.mxu0 %v3585
    %6872 = vmatprep.subr.mxu0 0.0
    %6873 = vmatpush1.msra.mxu0 %v3586
    %6874 = vmatprep.subr.mxu0 0.0
    %6875 = vmatpush1.msra.mxu0 0.0
    %6876 = vmatprep.subr.mxu0 0.0
    %6877 = vmatpush1.msra.mxu0 0.0
    %6878 = vmatprep.subr.mxu0 0.0
    %6879 = vmatpush1.msra.mxu0 0.0
    %6880 = vmatprep.subr.mxu0 0.0
    %6881 = vmatpush1.msra.mxu0 0.0
    %6882 = vmatprep.subr.mxu0 0.0
    %6883 = vmatpush1.msra.mxu0 0.0
    %6884 = vmatprep.subr.mxu0 0.0
    %6885 = vmatpush1.msra.mxu0 0.0
    %6886 = vmatprep.subr.mxu0 0.0
    %6887 = vmatpush1.msra.mxu0 0.0
    %6888 = vmatprep.subr.mxu0 0.0
    %6889 = vmatpush1.msra.mxu0 0.0
    %6890 = vmatprep.subr.mxu0 0.0
    %6891 = vmatpush1.msra.mxu0 0.0
    %6892 = vmatprep.subr.mxu0 0.0
    %6893 = vmatpush1.msra.mxu0 0.0
    %6894 = vmatprep.subr.mxu0 0.0
    %6895 = vmatpush1.msra.mxu0 0.0
    %6896 = vmatprep.subr.mxu0 0.0
    %6897 = vmatpush1.msra.mxu0 0.0
    %6898 = vmatprep.subr.mxu0 0.0
    %6899 = vmatpush1.msra.mxu0 0.0
    %6900 = vmatprep.subr.mxu0 0.0
    %6901 = vmatpush1.msra.mxu0 0.0
    %6902 = vmatprep.subr.mxu0 0.0
    %6903 = vmatpush1.msra.mxu0 0.0
    %6904 = vmatprep.subr.mxu0 0.0
    %6905 = vmatpush1.msra.mxu0 0.0
    %6906 = vmatprep.subr.mxu0 0.0
    %6907 = vmatpush1.msra.mxu0 0.0
    %6908 = vmatprep.subr.mxu0 0.0
    %6909 = vmatpush1.msra.mxu0 0.0
    %6910 = vmatprep.subr.mxu0 0.0
    %6911 = vmatpush1.msra.mxu0 0.0
    %6912 = vmatprep.subr.mxu0 0.0
    %6913 = vmatpush1.msra.mxu0 0.0
    %6914 = vmatprep.subr.mxu0 0.0
    %6915 = vmatpush1.msra.mxu0 0.0
    %6916 = vmatprep.subr.mxu0 0.0
    %6917 = vmatpush1.msra.mxu0 0.0
    %6918 = vmatprep.subr.mxu0 0.0
    %6919 = vmatpush1.msra.mxu0 0.0
    %6920 = vmatprep.subr.mxu0 0.0
    %6921 = vmatpush1.msra.mxu0 0.0
    %6922 = vmatprep.subr.mxu0 0.0
    %6923 = vmatpush1.msra.mxu0 0.0
    %6924 = vmatprep.subr.mxu0 0.0
    %6925 = vmatpush1.msra.mxu0 0.0
    %6926 = vmatprep.subr.mxu0 0.0
    %6927 = vmatpush1.msra.mxu0 0.0
    %6928 = vmatprep.subr.mxu0 0.0
    %6929 = vmatpush1.msra.mxu0 0.0
    %6930 = vmatprep.mubr.f32.mxu0 0.0
    %6931 = vmatmul.mubr.f32.gmra.mrb[0].mxu0 %v6864
    %v6932 = vpop.f32.mrb[0].mxu0
    %v6933 = vadd.f32 0.0, %v6932
    %v6934 = vpop.f32.mrb[0].mxu0
    %6935 = vdwg.mxu0
    %6936 = vmatprep.subr.mxu0 0.0
    %6937 = vmatpush1.msra.mxu0 %v3579
    %6938 = vmatprep.subr.mxu0 0.0
    %6939 = vmatpush1.msra.mxu0 %v3580
    %6940 = vmatprep.subr.mxu0 0.0
    %6941 = vmatpush1.msra.mxu0 %v3581
    %6942 = vmatprep.subr.mxu0 0.0
    %6943 = vmatpush1.msra.mxu0 %v3582
    %6944 = vmatprep.subr.mxu0 0.0
    %6945 = vmatpush1.msra.mxu0 0.0
    %6946 = vmatprep.subr.mxu0 0.0
    %6947 = vmatpush1.msra.mxu0 0.0
    %6948 = vmatprep.subr.mxu0 0.0
    %6949 = vmatpush1.msra.mxu0 0.0
    %6950 = vmatprep.subr.mxu0 0.0
    %6951 = vmatpush1.msra.mxu0 0.0
    %6952 = vmatprep.subr.mxu0 0.0
    %6953 = vmatpush1.msra.mxu0 0.0
    %6954 = vmatprep.subr.mxu0 0.0
    %6955 = vmatpush1.msra.mxu0 0.0
    %6956 = vmatprep.subr.mxu0 0.0
    %6957 = vmatpush1.msra.mxu0 0.0
    %6958 = vmatprep.subr.mxu0 0.0
    %6959 = vmatpush1.msra.mxu0 0.0
    %6960 = vmatprep.subr.mxu0 0.0
    %6961 = vmatpush1.msra.mxu0 0.0
    %6962 = vmatprep.subr.mxu0 0.0
    %6963 = vmatpush1.msra.mxu0 0.0
    %6964 = vmatprep.subr.mxu0 0.0
    %6965 = vmatpush1.msra.mxu0 0.0
    %6966 = vmatprep.subr.mxu0 0.0
    %6967 = vmatpush1.msra.mxu0 0.0
    %6968 = vmatprep.subr.mxu0 0.0
    %6969 = vmatpush1.msra.mxu0 0.0
    %6970 = vmatprep.subr.mxu0 0.0
    %6971 = vmatpush1.msra.mxu0 0.0
    %6972 = vmatprep.subr.mxu0 0.0
    %6973 = vmatpush1.msra.mxu0 0.0
    %6974 = vmatprep.subr.mxu0 0.0
    %6975 = vmatpush1.msra.mxu0 0.0
    %6976 = vmatprep.subr.mxu0 0.0
    %6977 = vmatpush1.msra.mxu0 0.0
    %6978 = vmatprep.subr.mxu0 0.0
    %6979 = vmatpush1.msra.mxu0 0.0
    %6980 = vmatprep.subr.mxu0 0.0
    %6981 = vmatpush1.msra.mxu0 0.0
    %6982 = vmatprep.subr.mxu0 0.0
    %6983 = vmatpush1.msra.mxu0 0.0
    %6984 = vmatprep.subr.mxu0 0.0
    %6985 = vmatpush1.msra.mxu0 0.0
    %6986 = vmatprep.subr.mxu0 0.0
    %6987 = vmatpush1.msra.mxu0 0.0
    %6988 = vmatprep.subr.mxu0 0.0
    %6989 = vmatpush1.msra.mxu0 0.0
    %6990 = vmatprep.subr.mxu0 0.0
    %6991 = vmatpush1.msra.mxu0 0.0
    %6992 = vmatprep.subr.mxu0 0.0
    %6993 = vmatpush1.msra.mxu0 0.0
    %6994 = vmatprep.subr.mxu0 0.0
    %6995 = vmatpush1.msra.mxu0 0.0
    %6996 = vmatprep.subr.mxu0 0.0
    %6997 = vmatpush1.msra.mxu0 0.0
    %6998 = vmatprep.subr.mxu0 0.0
    %6999 = vmatpush1.msra.mxu0 0.0
    %7000 = vmatprep.mubr.f32.mxu0 0.0
    %7001 = vmatmul.mubr.f32.gmra.mrb[0].mxu0 %v6707
    %v7002 = vpop.f32.mrb[0].mxu0
    %v7003 = vadd.f32 %v6933, %v7002
    %v7004 = vpop.f32.mrb[0].mxu0
    %7005 = vdwg.mxu0
    %v7006 = vadd.f32 %v7003, %v3730
    %v7007 = vtanh.pop %v7006
    %v7009 = vsel %vm214, %v7007, 0
    %7011 = vmatprep.subr.mxu0 0.0
    %7012 = vmatpush1.msra.mxu0 %v3733
    %7013 = vmatprep.subr.mxu0 0.0
    %7014 = vmatpush1.msra.mxu0 %v3734
    %7015 = vmatprep.subr.mxu0 0.0
    %7016 = vmatpush1.msra.mxu0 %v3735
    %7017 = vmatprep.subr.mxu0 0.0
    %7018 = vmatpush1.msra.mxu0 %v3736
    %7019 = vmatprep.subr.mxu0 0.0
    %7020 = vmatpush1.msra.mxu0 0.0
    %7021 = vmatprep.subr.mxu0 0.0
    %7022 = vmatpush1.msra.mxu0 0.0
    %7023 = vmatprep.subr.mxu0 0.0
    %7024 = vmatpush1.msra.mxu0 0.0
    %7025 = vmatprep.subr.mxu0 0.0
    %7026 = vmatpush1.msra.mxu0 0.0
    %7027 = vmatprep.subr.mxu0 0.0
    %7028 = vmatpush1.msra.mxu0 0.0
    %7029 = vmatprep.subr.mxu0 0.0
    %7030 = vmatpush1.msra.mxu0 0.0
    %7031 = vmatprep.subr.mxu0 0.0
    %7032 = vmatpush1.msra.mxu0 0.0
    %7033 = vmatprep.subr.mxu0 0.0
    %7034 = vmatpush1.msra.mxu0 0.0
    %7035 = vmatprep.subr.mxu0 0.0
    %7036 = vmatpush1.msra.mxu0 0.0
    %7037 = vmatprep.subr.mxu0 0.0
    %7038 = vmatpush1.msra.mxu0 0.0
    %7039 = vmatprep.subr.mxu0 0.0
    %7040 = vmatpush1.msra.mxu0 0.0
    %7041 = vmatprep.subr.mxu0 0.0
    %7042 = vmatpush1.msra.mxu0 0.0
    %7043 = vmatprep.subr.mxu0 0.0
    %7044 = vmatpush1.msra.mxu0 0.0
    %7045 = vmatprep.subr.mxu0 0.0
    %7046 = vmatpush1.msra.mxu0 0.0
    %7047 = vmatprep.subr.mxu0 0.0
    %7048 = vmatpush1.msra.mxu0 0.0
    %7049 = vmatprep.subr.mxu0 0.0
    %7050 = vmatpush1.msra.mxu0 0.0
    %7051 = vmatprep.subr.mxu0 0.0
    %7052 = vmatpush1.msra.mxu0 0.0
    %7053 = vmatprep.subr.mxu0 0.0
    %7054 = vmatpush1.msra.mxu0 0.0
    %7055 = vmatprep.subr.mxu0 0.0
    %7056 = vmatpush1.msra.mxu0 0.0
    %7057 = vmatprep.subr.mxu0 0.0
    %7058 = vmatpush1.msra.mxu0 0.0
    %7059 = vmatprep.subr.mxu0 0.0
    %7060 = vmatpush1.msra.mxu0 0.0
    %7061 = vmatprep.subr.mxu0 0.0
    %7062 = vmatpush1.msra.mxu0 0.0
    %7063 = vmatprep.subr.mxu0 0.0
    %7064 = vmatpush1.msra.mxu0 0.0
    %7065 = vmatprep.subr.mxu0 0.0
    %7066 = vmatpush1.msra.mxu0 0.0
    %7067 = vmatprep.subr.mxu0 0.0
    %7068 = vmatpush1.msra.mxu0 0.0
    %7069 = vmatprep.subr.mxu0 0.0
    %7070 = vmatpush1.msra.mxu0 0.0
    %7071 = vmatprep.subr.mxu0 0.0
    %7072 = vmatpush1.msra.mxu0 0.0
    %7073 = vmatprep.subr.mxu0 0.0
    %7074 = vmatpush1.msra.mxu0 0.0
    %7075 = vmatprep.mubr.f32.mxu0 0.0
    %7076 = vmatmul.mubr.f32.gmra.mrb[0].mxu0 %v7009
    %v7077 = vpop.f32.mrb[0].mxu0
    %v7078 = vadd.f32 %v3737, %v7077
    %v7079 = vpop.f32.mrb[0].mxu0
    %7080 = vdwg.mxu0
    %v7081 = vsel %vm3811, %v7078, -inf
    %7082 = vmax.xlane.f32.xlu0 %v7081
    %v7083 = vpop.xlane.xlu0 %7082
    %v7084 = vsub.f32 %v7078, %v7083
    %v7085 = vmul.f32 %v7084, 1.442695
    %v7086 = vpow.pop %v7085
    %v7087 = vsel %vm3811, %v7086, 0.0
    %7088 = vadd.xlane.f32.xlu0 %v7087
    %v7089 = vpop.xlane.xlu0 %7088
    %v7090 = vrcp.pop %v7089
    %vm7091 = vcmp.ge.f32.partialorder %v7078, %v7083
    %v7092 = vsel %vm7091, %v3232, 64
    %v7093 = vsel %vm3811, %v7092, 2147483647
    %v7094 = vand.u32 %v7093, 65535
    %v7095 = vshra.s32 %v7093, 16
    %v7096 = vcvt.s32.f32 %v7094
    %v7097 = vcvt.s32.f32 %v7095
    %7098 = vmin.xlane.f32.xlu0 %v7097
    %v7099 = vpop.xlane.xlu0 %7098
    %vm7100 = vcmp.eq.f32.partialorder %v7097, %v7099
    %v7101 = vsel %vm7100, %v7096, inf
    %7102 = vmin.xlane.f32.xlu0 %v7101
    %v7103 = vpop.xlane.xlu0 %7102
    %v7104 = vcvt.f32.s32 %v7103
    %v7105 = vcvt.f32.s32 %v7099
    %v7106 = vshll.u32 %v7105, 16
    %v7107 = vadd.s32 %v7106, %v7104
    %vm7108 = vcmp.eq.s32.totalorder %v3232, 5
    %v7109 = vsel %vm7108, %v7107, %v6457
    %v7110 = vsel %vm7108, %v7090, %v6458
    %vm7111 = vcmp.eq.s32.totalorder %v3232, %v7107
    %v7112 = vsel %vm7111, 1, 0
    %v7113 = vcvt.s32.f32 %v7112
    %v7115 = vsel %vm3853, %v7113, 0
    %7117 = vmatprep.subr.mxu0 0.0
    %7118 = vmatpush1.msra.mxu0 %v3845
    %7119 = vmatprep.subr.mxu0 0.0
    %7120 = vmatpush1.msra.mxu0 %v3846
    %7121 = vmatprep.subr.mxu0 0.0
    %7122 = vmatpush1.msra.mxu0 %v3847
    %7123 = vmatprep.subr.mxu0 0.0
    %7124 = vmatpush1.msra.mxu0 %v3848
    %7125 = vmatprep.subr.mxu0 0.0
    %7126 = vmatpush1.msra.mxu0 %v3849
    %7127 = vmatprep.subr.mxu0 0.0
    %7128 = vmatpush1.msra.mxu0 %v3850
    %7129 = vmatprep.subr.mxu0 0.0
    %7130 = vmatpush1.msra.mxu0 %v3851
    %7131 = vmatprep.subr.mxu0 0.0
    %7132 = vmatpush1.msra.mxu0 %v3852
    %7133 = vmatprep.subr.mxu0 0.0
    %7134 = vmatpush1.msra.mxu0 0.0
    %7135 = vmatprep.subr.mxu0 0.0
    %7136 = vmatpush1.msra.mxu0 0.0
    %7137 = vmatprep.subr.mxu0 0.0
    %7138 = vmatpush1.msra.mxu0 0.0
    %7139 = vmatprep.subr.mxu0 0.0
    %7140 = vmatpush1.msra.mxu0 0.0
    %7141 = vmatprep.subr.mxu0 0.0
    %7142 = vmatpush1.msra.mxu0 0.0
    %7143 = vmatprep.subr.mxu0 0.0
    %7144 = vmatpush1.msra.mxu0 0.0
    %7145 = vmatprep.subr.mxu0 0.0
    %7146 = vmatpush1.msra.mxu0 0.0
    %7147 = vmatprep.subr.mxu0 0.0
    %7148 = vmatpush1.msra.mxu0 0.0
    %7149 = vmatprep.subr.mxu0 0.0
    %7150 = vmatpush1.msra.mxu0 0.0
    %7151 = vmatprep.subr.mxu0 0.0
    %7152 = vmatpush1.msra.mxu0 0.0
    %7153 = vmatprep.subr.mxu0 0.0
    %7154 = vmatpush1.msra.mxu0 0.0
    %7155 = vmatprep.subr.mxu0 0.0
    %7156 = vmatpush1.msra.mxu0 0.0
    %7157 = vmatprep.subr.mxu0 0.0
    %7158 = vmatpush1.msra.mxu0 0.0
    %7159 = vmatprep.subr.mxu0 0.0
    %7160 = vmatpush1.msra.mxu0 0.0
    %7161 = vmatprep.subr.mxu0 0.0
    %7162 = vmatpush1.msra.mxu0 0.0
    %7163 = vmatprep.subr.mxu0 0.0
    %7164 = vmatpush1.msra.mxu0 0.0
    %7165 = vmatprep.subr.mxu0 0.0
    %7166 = vmatpush1.msra.mxu0 0.0
    %7167 = vmatprep.subr.mxu0 0.0
    %7168 = vmatpush1.msra.mxu0 0.0
    %7169 = vmatprep.subr.mxu0 0.0
    %7170 = vmatpush1.msra.mxu0 0.0
    %7171 = vmatprep.subr.mxu0 0.0
    %7172 = vmatpush1.msra.mxu0 0.0
    %7173 = vmatprep.subr.mxu0 0.0
    %7174 = vmatpush1.msra.mxu0 0.0
    %7175 = vmatprep.subr.mxu0 0.0
    %7176 = vmatpush1.msra.mxu0 0.0
    %7177 = vmatprep.subr.mxu0 0.0
    %7178 = vmatpush1.msra.mxu0 0.0
    %7179 = vmatprep.subr.mxu0 0.0
    %7180 = vmatpush1.msra.mxu0 0.0
    %7181 = vmatprep.mubr.f32.mxu0 0.0
    %7182 = vmatmul.mubr.f32.gmra.mrb[0].mxu0 %v7115
    %v7183 = vpop.f32.mrb[0].mxu0
    %v7184 = vadd.f32 0.0, %v7183
    %v7185 = vpop.f32.mrb[0].mxu0
    %7186 = vdwg.mxu0
    %v7188 = vsel %vm214, %v7184, 0
    %7190 = vmatprep.subr.mxu0 0.0
    %7191 = vmatpush1.msra.mxu0 %v3234
    %7192 = vmatprep.subr.mxu0 0.0
    %7193 = vmatpush1.msra.mxu0 %v3235
    %7194 = vmatprep.subr.mxu0 0.0
    %7195 = vmatpush1.msra.mxu0 %v3236
    %7196 = vmatprep.subr.mxu0 0.0
    %7197 = vmatpush1.msra.mxu0 %v3237
    %7198 = vmatprep.subr.mxu0 0.0
    %7199 = vmatpush1.msra.mxu0 0.0
    %7200 = vmatprep.subr.mxu0 0.0
    %7201 = vmatpush1.msra.mxu0 0.0
    %7202 = vmatprep.subr.mxu0 0.0
    %7203 = vmatpush1.msra.mxu0 0.0
    %7204 = vmatprep.subr.mxu0 0.0
    %7205 = vmatpush1.msra.mxu0 0.0
    %7206 = vmatprep.subr.mxu0 0.0
    %7207 = vmatpush1.msra.mxu0 0.0
    %7208 = vmatprep.subr.mxu0 0.0
    %7209 = vmatpush1.msra.mxu0 0.0
    %7210 = vmatprep.subr.mxu0 0.0
    %7211 = vmatpush1.msra.mxu0 0.0
    %7212 = vmatprep.subr.mxu0 0.0
    %7213 = vmatpush1.msra.mxu0 0.0
    %7214 = vmatprep.subr.mxu0 0.0
    %7215 = vmatpush1.msra.mxu0 0.0
    %7216 = vmatprep.subr.mxu0 0.0
    %7217 = vmatpush1.msra.mxu0 0.0
    %7218 = vmatprep.subr.mxu0 0.0
    %7219 = vmatpush1.msra.mxu0 0.0
    %7220 = vmatprep.subr.mxu0 0.0
    %7221 = vmatpush1.msra.mxu0 0.0
    %7222 = vmatprep.subr.mxu0 0.0
    %7223 = vmatpush1.msra.mxu0 0.0
    %7224 = vmatprep.subr.mxu0 0.0
    %7225 = vmatpush1.msra.mxu0 0.0
    %7226 = vmatprep.subr.mxu0 0.0
    %7227 = vmatpush1.msra.mxu0 0.0
    %7228 = vmatprep.subr.mxu0 0.0
    %7229 = vmatpush1.msra.mxu0 0.0
    %7230 = vmatprep.subr.mxu0 0.0
    %7231 = vmatpush1.msra.mxu0 0.0
    %7232 = vmatprep.subr.mxu0 0.0
    %7233 = vmatpush1.msra.mxu0 0.0
    %7234 = vmatprep.subr.mxu0 0.0
    %7235 = vmatpush1.msra.mxu0 0.0
    %7236 = vmatprep.subr.mxu0 0.0
    %7237 = vmatpush1.msra.mxu0 0.0
    %7238 = vmatprep.subr.mxu0 0.0
    %7239 = vmatpush1.msra.mxu0 0.0
    %7240 = vmatprep.subr.mxu0 0.0
    %7241 = vmatpush1.msra.mxu0 0.0
    %7242 = vmatprep.subr.mxu0 0.0
    %7243 = vmatpush1.msra.mxu0 0.0
    %7244 = vmatprep.subr.mxu0 0.0
    %7245 = vmatpush1.msra.mxu0 0.0
    %7246 = vmatprep.subr.mxu0 0.0
    %7247 = vmatpush1.msra.mxu0 0.0
    %7248 = vmatprep.subr.mxu0 0.0
    %7249 = vmatpush1.msra.mxu0 0.0
    %7250 = vmatprep.subr.mxu0 0.0
    %7251 = vmatpush1.msra.mxu0 0.0
    %7252 = vmatprep.subr.mxu0 0.0
    %7253 = vmatpush1.msra.mxu0 0.0
    %7254 = vmatprep.mubr.f32.mxu0 0.0
    %7255 = vmatmul.mubr.f32.gmra.mrb[0].mxu0 %v7188
    %v7256 = vpop.f32.mrb[0].mxu0
    %v7257 = vadd.f32 %v3238, %v7256
    %v7258 = vpop.f32.mrb[0].mxu0
    %7259 = vdwg.mxu0
    %7260 = vmatprep.subr.mxu0 0.0
    %7261 = vmatpush1.msra.mxu0 %v3312
    %7262 = vmatprep.subr.mxu0 0.0
    %7263 = vmatpush1.msra.mxu0 %v3313
    %7264 = vmatprep.subr.mxu0 0.0
    %7265 = vmatpush1.msra.mxu0 %v3314
    %7266 = vmatprep.subr.mxu0 0.0
    %7267 = vmatpush1.msra.mxu0 %v3315
    %7268 = vmatprep.subr.mxu0 0.0
    %7269 = vmatpush1.msra.mxu0 0.0
    %7270 = vmatprep.subr.mxu0 0.0
    %7271 = vmatpush1.msra.mxu0 0.0
    %7272 = vmatprep.subr.mxu0 0.0
    %7273 = vmatpush1.msra.mxu0 0.0
    %7274 = vmatprep.subr.mxu0 0.0
    %7275 = vmatpush1.msra.mxu0 0.0
    %7276 = vmatprep.subr.mxu0 0.0
    %7277 = vmatpush1.msra.mxu0 0.0
    %7278 = vmatprep.subr.mxu0 0.0
    %7279 = vmatpush1.msra.mxu0 0.0
    %7280 = vmatprep.subr.mxu0 0.0
    %7281 = vmatpush1.msra.mxu0 0.0
    %7282 = vmatprep.subr.mxu0 0.0
    %7283 = vmatpush1.msra.mxu0 0.0
    %7284 = vmatprep.subr.mxu0 0.0
    %7285 = vmatpush1.msra.mxu0 0.0
    %7286 = vmatprep.subr.mxu0 0.0
    %7287 = vmatpush1.msra.mxu0 0.0
    %7288 = vmatprep.subr.mxu0 0.0
    %7289 = vmatpush1.msra.mxu0 0.0
    %7290 = vmatprep.subr.mxu0 0.0
    %7291 = vmatpush1.msra.mxu0 0.0
    %7292 = vmatprep.subr.mxu0 0.0
    %7293 = vmatpush1.msra.mxu0 0.0
    %7294 = vmatprep.subr.mxu0 0.0
    %7295 = vmatpush1.msra.mxu0 0.0
    %7296 = vmatprep.subr.mxu0 0.0
    %7297 = vmatpush1.msra.mxu0 0.0
    %7298 = vmatprep.subr.mxu0 0.0
    %7299 = vmatpush1.msra.mxu0 0.0
    %7300 = vmatprep.subr.mxu0 0.0
    %7301 = vmatpush1.msra.mxu0 0.0
    %7302 = vmatprep.subr.mxu0 0.0
    %7303 = vmatpush1.msra.mxu0 0.0
    %7304 = vmatprep.subr.mxu0 0.0
    %7305 = vmatpush1.msra.mxu0 0.0
    %7306 = vmatprep.subr.mxu0 0.0
    %7307 = vmatpush1.msra.mxu0 0.0
    %7308 = vmatprep.subr.mxu0 0.0
    %7309 = vmatpush1.msra.mxu0 0.0
    %7310 = vmatprep.subr.mxu0 0.0
    %7311 = vmatpush1.msra.mxu0 0.0
    %7312 = vmatprep.subr.mxu0 0.0
    %7313 = vmatpush1.msra.mxu0 0.0
    %7314 = vmatprep.subr.mxu0 0.0
    %7315 = vmatpush1.msra.mxu0 0.0
    %7316 = vmatprep.subr.mxu0 0.0
    %7317 = vmatpush1.msra.mxu0 0.0
    %7318 = vmatprep.subr.mxu0 0.0
    %7319 = vmatpush1.msra.mxu0 0.0
    %7320 = vmatprep.subr.mxu0 0.0
    %7321 = vmatpush1.msra.mxu0 0.0
    %7322 = vmatprep.subr.mxu0 0.0
    %7323 = vmatpush1.msra.mxu0 0.0
    %7324 = vmatprep.mubr.f32.mxu0 0.0
    %7325 = vmatmul.mubr.f32.gmra.mrb[0].mxu0 %v6707
    %v7326 = vpop.f32.mrb[0].mxu0
    %v7327 = vadd.f32 %v3316, %v7326
    %v7328 = vpop.f32.mrb[0].mxu0
    %7329 = vdwg.mxu0
    %v7330 = vadd.f32 %v7257, %v7327
    %v7331 = vxor.u32 %v7330, 2147483648
    %v7332 = vmul.f32 %v7331, 1.442695
    %v7333 = vpow.pop %v7332
    %v7334 = vadd.f32 %v7333, 1.0
    %v7335 = vrcp.pop %v7334
    %v7336 = vmul.f32 1.0, %v7335
    %7338 = vrot.lane.b32.xlu0 %v7327, 64
    %v7339 = vpop.permute.xlu0 %7338
    %v7341 = vmul.f32 %v7336, %v7339
    %7343 = vrot.lane.b32.xlu0 %v7341, 64
    %v7344 = vpop.permute.xlu0 %7343
    %v7346 = vadd.f32 %v7257, %v7344
    %v7347 = vtanh.pop %v7346
    %v7348 = vsub.f32 1.0, %v7336
    %7350 = vrot.lane.b32.xlu0 %v7347, 96
    %v7351 = vpop.permute.xlu0 %7350
    %v7353 = vmul.f32 %v7348, %v7351
    %v7354 = vmul.f32 %v7336, %v6703
    %v7355 = vadd.f32 %v7353, %v7354
    %7357 = vrot.lane.b32.xlu0 %v7355, 96
    %v7358 = vpop.permute.xlu0 %7357
    %v7359 = vsel %vm214, %v7358, 0
    %7361 = vmatprep.subr.mxu0 0.0
    %7362 = vmatpush1.xpose.msra.mxu0 %v3421
    %7363 = vmatprep.subr.mxu0 0.0
    %7364 = vmatpush1.xpose.msra.mxu0 0.0
    %7365 = vmatprep.subr.mxu0 0.0
    %7366 = vmatpush1.xpose.msra.mxu0 0.0
    %7367 = vmatprep.subr.mxu0 0.0
    %7368 = vmatpush1.xpose.msra.mxu0 0.0
    %7369 = vmatprep.subr.mxu0 0.0
    %7370 = vmatpush1.xpose.msra.mxu0 0.0
    %7371 = vmatprep.subr.mxu0 0.0
    %7372 = vmatpush1.xpose.msra.mxu0 0.0
    %7373 = vmatprep.subr.mxu0 0.0
    %7374 = vmatpush1.xpose.msra.mxu0 0.0
    %7375 = vmatprep.subr.mxu0 0.0
    %7376 = vmatpush1.xpose.msra.mxu0 0.0
    %7377 = vmatprep.subr.mxu0 0.0
    %7378 = vmatpush1.xpose.msra.mxu0 0.0
    %7379 = vmatprep.subr.mxu0 0.0
    %7380 = vmatpush1.xpose.msra.mxu0 0.0
    %7381 = vmatprep.subr.mxu0 0.0
    %7382 = vmatpush1.xpose.msra.mxu0 0.0
    %7383 = vmatprep.subr.mxu0 0.0
    %7384 = vmatpush1.xpose.msra.mxu0 0.0
    %7385 = vmatprep.subr.mxu0 0.0
    %7386 = vmatpush1.xpose.msra.mxu0 0.0
    %7387 = vmatprep.subr.mxu0 0.0
    %7388 = vmatpush1.xpose.msra.mxu0 0.0
    %7389 = vmatprep.subr.mxu0 0.0
    %7390 = vmatpush1.xpose.msra.mxu0 0.0
    %7391 = vmatprep.subr.mxu0 0.0
    %7392 = vmatpush1.xpose.msra.mxu0 0.0
    %7393 = vmatprep.subr.mxu0 0.0
    %7394 = vmatpush1.xpose.msra.mxu0 0.0
    %7395 = vmatprep.subr.mxu0 0.0
    %7396 = vmatpush1.xpose.msra.mxu0 0.0
    %7397 = vmatprep.subr.mxu0 0.0
    %7398 = vmatpush1.xpose.msra.mxu0 0.0
    %7399 = vmatprep.subr.mxu0 0.0
    %7400 = vmatpush1.xpose.msra.mxu0 0.0
    %7401 = vmatprep.subr.mxu0 0.0
    %7402 = vmatpush1.xpose.msra.mxu0 0.0
    %7403 = vmatprep.subr.mxu0 0.0
    %7404 = vmatpush1.xpose.msra.mxu0 0.0
    %7405 = vmatprep.subr.mxu0 0.0
    %7406 = vmatpush1.xpose.msra.mxu0 0.0
    %7407 = vmatprep.subr.mxu0 0.0
    %7408 = vmatpush1.xpose.msra.mxu0 0.0
    %7409 = vmatprep.subr.mxu0 0.0
    %7410 = vmatpush1.xpose.msra.mxu0 0.0
    %7411 = vmatprep.subr.mxu0 0.0
    %7412 = vmatpush1.xpose.msra.mxu0 0.0
    %7413 = vmatprep.subr.mxu0 0.0
    %7414 = vmatpush1.xpose.msra.mxu0 0.0
    %7415 = vmatprep.subr.mxu0 0.0
    %7416 = vmatpush1.xpose.msra.mxu0 0.0
    %7417 = vmatprep.subr.mxu0 0.0
    %7418 = vmatpush1.xpose.msra.mxu0 0.0
    %7419 = vmatprep.subr.mxu0 0.0
    %7420 = vmatpush1.xpose.msra.mxu0 0.0
    %7421 = vmatprep.subr.mxu0 0.0
    %7422 = vmatpush1.xpose.msra.mxu0 0.0
    %7423 = vmatprep.subr.mxu0 0.0
    %7424 = vmatpush1.xpose.msra.mxu0 0.0
    %7425 = vmatprep.mubr.f32.mxu0 0.0
    %7426 = vmatmul.mubr.f32.gmra.mrb[0].mxu0 %v7359
    %v7427 = vpop.f32.mrb[0].mxu0
    %v7428 = vadd.f32 0.0, %v7427
    %v7429 = vpop.f32.mrb[0].mxu0
    %7430 = vdwg.mxu0
    %v7431 = vsel %vm3493, %v7428, -inf
    %7432 = vmax.xlane.f32.xlu0 %v7431
    %v7433 = vpop.xlane.xlu0 %7432
    %v7434 = vsub.f32 %v7428, %v7433
    %v7435 = vmul.f32 %v7434, 1.442695
    %v7436 = vpow.pop %v7435
    %v7437 = vsel %vm3493, %v7436, 0.0
    %7438 = vadd.xlane.f32.xlu0 %v7437
    %v7439 = vpop.xlane.xlu0 %7438
    %v7440 = vrcp.pop %v7439
    %v7441 = vmul.f32 %v7436, %v7440
    %v7443 = vsel %vm3505, %v7441, 0
    %7445 = vmatprep.subr.mxu0 0.0
    %7446 = vmatpush1.msra.mxu0 %v3230
    %7447 = vmatprep.subr.mxu0 0.0
    %7448 = vmatpush1.msra.mxu0 0.0
    %7449 = vmatprep.subr.mxu0 0.0
    %7450 = vmatpush1.msra.mxu0 0.0
    %7451 = vmatprep.subr.mxu0 0.0
    %7452 = vmatpush1.msra.mxu0 0.0
    %7453 = vmatprep.subr.mxu0 0.0
    %7454 = vmatpush1.msra.mxu0 0.0
    %7455 = vmatprep.subr.mxu0 0.0
    %7456 = vmatpush1.msra.mxu0 0.0
    %7457 = vmatprep.subr.mxu0 0.0
    %7458 = vmatpush1.msra.mxu0 0.0
    %7459 = vmatprep.subr.mxu0 0.0
    %7460 = vmatpush1.msra.mxu0 0.0
    %7461 = vmatprep.subr.mxu0 0.0
    %7462 = vmatpush1.msra.mxu0 0.0
    %7463 = vmatprep.subr.mxu0 0.0
    %7464 = vmatpush1.msra.mxu0 0.0
    %7465 = vmatprep.subr.mxu0 0.0
    %7466 = vmatpush1.msra.mxu0 0.0
    %7467 = vmatprep.subr.mxu0 0.0
    %7468 = vmatpush1.msra.mxu0 0.0
    %7469 = vmatprep.subr.mxu0 0.0
    %7470 = vmatpush1.msra.mxu0 0.0
    %7471 = vmatprep.subr.mxu0 0.0
    %7472 = vmatpush1.msra.mxu0 0.0
    %7473 = vmatprep.subr.mxu0 0.0
    %7474 = vmatpush1.msra.mxu0 0.0
    %7475 = vmatprep.subr.mxu0 0.0
    %7476 = vmatpush1.msra.mxu0 0.0
    %7477 = vmatprep.subr.mxu0 0.0
    %7478 = vmatpush1.msra.mxu0 0.0
    %7479 = vmatprep.subr.mxu0 0.0
    %7480 = vmatpush1.msra.mxu0 0.0
    %7481 = vmatprep.subr.mxu0 0.0
    %7482 = vmatpush1.msra.mxu0 0.0
    %7483 = vmatprep.subr.mxu0 0.0
    %7484 = vmatpush1.msra.mxu0 0.0
    %7485 = vmatprep.subr.mxu0 0.0
    %7486 = vmatpush1.msra.mxu0 0.0
    %7487 = vmatprep.subr.mxu0 0.0
    %7488 = vmatpush1.msra.mxu0 0.0
    %7489 = vmatprep.subr.mxu0 0.0
    %7490 = vmatpush1.msra.mxu0 0.0
    %7491 = vmatprep.subr.mxu0 0.0
    %7492 = vmatpush1.msra.mxu0 0.0
    %7493 = vmatprep.subr.mxu0 0.0
    %7494 = vmatpush1.msra.mxu0 0.0
    %7495 = vmatprep.subr.mxu0 0.0
    %7496 = vmatpush1.msra.mxu0 0.0
    %7497 = vmatprep.subr.mxu0 0.0
    %7498 = vmatpush1.msra.mxu0 0.0
    %7499 = vmatprep.subr.mxu0 0.0
    %7500 = vmatpush1.msra.mxu0 0.0
    %7501 = vmatprep.subr.mxu0 0.0
    %7502 = vmatpush1.msra.mxu0 0.0
    %7503 = vmatprep.subr.mxu0 0.0
    %7504 = vmatpush1.msra.mxu0 0.0
    %7505 = vmatprep.subr.mxu0 0.0
    %7506 = vmatpush1.msra.mxu0 0.0
    %7507 = vmatprep.subr.mxu0 0.0
    %7508 = vmatpush1.msra.mxu0 0.0
    %7509 = vmatprep.mubr.f32.mxu0 0.0
    %7510 = vmatmul.mubr.f32.gmra.mrb[0].mxu0 %v7443
    %v7511 = vpop.f32.mrb[0].mxu0
    %v7512 = vadd.f32 0.0, %v7511
    %v7513 = vpop.f32.mrb[0].mxu0
    %7514 = vdwg.mxu0
    %v7516 = vsel %vm214, %v7512, 0
    %7518 = vmatprep.subr.mxu0 0.0
    %7519 = vmatpush1.msra.mxu0 %v3583
    %7520 = vmatprep.subr.mxu0 0.0
    %7521 = vmatpush1.msra.mxu0 %v3584
    %7522 = vmatprep.subr.mxu0 0.0
    %7523 = vmatpush1.msra.mxu0 %v3585
    %7524 = vmatprep.subr.mxu0 0.0
    %7525 = vmatpush1.msra.mxu0 %v3586
    %7526 = vmatprep.subr.mxu0 0.0
    %7527 = vmatpush1.msra.mxu0 0.0
    %7528 = vmatprep.subr.mxu0 0.0
    %7529 = vmatpush1.msra.mxu0 0.0
    %7530 = vmatprep.subr.mxu0 0.0
    %7531 = vmatpush1.msra.mxu0 0.0
    %7532 = vmatprep.subr.mxu0 0.0
    %7533 = vmatpush1.msra.mxu0 0.0
    %7534 = vmatprep.subr.mxu0 0.0
    %7535 = vmatpush1.msra.mxu0 0.0
    %7536 = vmatprep.subr.mxu0 0.0
    %7537 = vmatpush1.msra.mxu0 0.0
    %7538 = vmatprep.subr.mxu0 0.0
    %7539 = vmatpush1.msra.mxu0 0.0
    %7540 = vmatprep.subr.mxu0 0.0
    %7541 = vmatpush1.msra.mxu0 0.0
    %7542 = vmatprep.subr.mxu0 0.0
    %7543 = vmatpush1.msra.mxu0 0.0
    %7544 = vmatprep.subr.mxu0 0.0
    %7545 = vmatpush1.msra.mxu0 0.0
    %7546 = vmatprep.subr.mxu0 0.0
    %7547 = vmatpush1.msra.mxu0 0.0
    %7548 = vmatprep.subr.mxu0 0.0
    %7549 = vmatpush1.msra.mxu0 0.0
    %7550 = vmatprep.subr.mxu0 0.0
    %7551 = vmatpush1.msra.mxu0 0.0
    %7552 = vmatprep.subr.mxu0 0.0
    %7553 = vmatpush1.msra.mxu0 0.0
    %7554 = vmatprep.subr.mxu0 0.0
    %7555 = vmatpush1.msra.mxu0 0.0
    %7556 = vmatprep.subr.mxu0 0.0
    %7557 = vmatpush1.msra.mxu0 0.0
    %7558 = vmatprep.subr.mxu0 0.0
    %7559 = vmatpush1.msra.mxu0 0.0
    %7560 = vmatprep.subr.mxu0 0.0
    %7561 = vmatpush1.msra.mxu0 0.0
    %7562 = vmatprep.subr.mxu0 0.0
    %7563 = vmatpush1.msra.mxu0 0.0
    %7564 = vmatprep.subr.mxu0 0.0
    %7565 = vmatpush1.msra.mxu0 0.0
    %7566 = vmatprep.subr.mxu0 0.0
    %7567 = vmatpush1.msra.mxu0 0.0
    %7568 = vmatprep.subr.mxu0 0.0
    %7569 = vmatpush1.msra.mxu0 0.0
    %7570 = vmatprep.subr.mxu0 0.0
    %7571 = vmatpush1.msra.mxu0 0.0
    %7572 = vmatprep.subr.mxu0 0.0
    %7573 = vmatpush1.msra.mxu0 0.0
    %7574 = vmatprep.subr.mxu0 0.0
    %7575 = vmatpush1.msra.mxu0 0.0
    %7576 = vmatprep.subr.mxu0 0.0
    %7577 = vmatpush1.msra.mxu0 0.0
    %7578 = vmatprep.subr.mxu0 0.0
    %7579 = vmatpush1.msra.mxu0 0.0
    %7580 = vmatprep.subr.mxu0 0.0
    %7581 = vmatpush1.msra.mxu0 0.0
    %7582 = vmatprep.mubr.f32.mxu0 0.0
    %7583 = vmatmul.mubr.f32.gmra.mrb[0].mxu0 %v7516
    %v7584 = vpop.f32.mrb[0].mxu0
    %v7585 = vadd.f32 0.0, %v7584
    %v7586 = vpop.f32.mrb[0].mxu0
    %7587 = vdwg.mxu0
    %7588 = vmatprep.subr.mxu0 0.0
    %7589 = vmatpush1.msra.mxu0 %v3579
    %7590 = vmatprep.subr.mxu0 0.0
    %7591 = vmatpush1.msra.mxu0 %v3580
    %7592 = vmatprep.subr.mxu0 0.0
    %7593 = vmatpush1.msra.mxu0 %v3581
    %7594 = vmatprep.subr.mxu0 0.0
    %7595 = vmatpush1.msra.mxu0 %v3582
    %7596 = vmatprep.subr.mxu0 0.0
    %7597 = vmatpush1.msra.mxu0 0.0
    %7598 = vmatprep.subr.mxu0 0.0
    %7599 = vmatpush1.msra.mxu0 0.0
    %7600 = vmatprep.subr.mxu0 0.0
    %7601 = vmatpush1.msra.mxu0 0.0
    %7602 = vmatprep.subr.mxu0 0.0
    %7603 = vmatpush1.msra.mxu0 0.0
    %7604 = vmatprep.subr.mxu0 0.0
    %7605 = vmatpush1.msra.mxu0 0.0
    %7606 = vmatprep.subr.mxu0 0.0
    %7607 = vmatpush1.msra.mxu0 0.0
    %7608 = vmatprep.subr.mxu0 0.0
    %7609 = vmatpush1.msra.mxu0 0.0
    %7610 = vmatprep.subr.mxu0 0.0
    %7611 = vmatpush1.msra.mxu0 0.0
    %7612 = vmatprep.subr.mxu0 0.0
    %7613 = vmatpush1.msra.mxu0 0.0
    %7614 = vmatprep.subr.mxu0 0.0
    %7615 = vmatpush1.msra.mxu0 0.0
    %7616 = vmatprep.subr.mxu0 0.0
    %7617 = vmatpush1.msra.mxu0 0.0
    %7618 = vmatprep.subr.mxu0 0.0
    %7619 = vmatpush1.msra.mxu0 0.0
    %7620 = vmatprep.subr.mxu0 0.0
    %7621 = vmatpush1.msra.mxu0 0.0
    %7622 = vmatprep.subr.mxu0 0.0
    %7623 = vmatpush1.msra.mxu0 0.0
    %7624 = vmatprep.subr.mxu0 0.0
    %7625 = vmatpush1.msra.mxu0 0.0
    %7626 = vmatprep.subr.mxu0 0.0
    %7627 = vmatpush1.msra.mxu0 0.0
    %7628 = vmatprep.subr.mxu0 0.0
    %7629 = vmatpush1.msra.mxu0 0.0
    %7630 = vmatprep.subr.mxu0 0.0
    %7631 = vmatpush1.msra.mxu0 0.0
    %7632 = vmatprep.subr.mxu0 0.0
    %7633 = vmatpush1.msra.mxu0 0.0
    %7634 = vmatprep.subr.mxu0 0.0
    %7635 = vmatpush1.msra.mxu0 0.0
    %7636 = vmatprep.subr.mxu0 0.0
    %7637 = vmatpush1.msra.mxu0 0.0
    %7638 = vmatprep.subr.mxu0 0.0
    %7639 = vmatpush1.msra.mxu0 0.0
    %7640 = vmatprep.subr.mxu0 0.0
    %7641 = vmatpush1.msra.mxu0 0.0
    %7642 = vmatprep.subr.mxu0 0.0
    %7643 = vmatpush1.msra.mxu0 0.0
    %7644 = vmatprep.subr.mxu0 0.0
    %7645 = vmatpush1.msra.mxu0 0.0
    %7646 = vmatprep.subr.mxu0 0.0
    %7647 = vmatpush1.msra.mxu0 0.0
    %7648 = vmatprep.subr.mxu0 0.0
    %7649 = vmatpush1.msra.mxu0 0.0
    %7650 = vmatprep.subr.mxu0 0.0
    %7651 = vmatpush1.msra.mxu0 0.0
    %7652 = vmatprep.mubr.f32.mxu0 0.0
    %7653 = vmatmul.mubr.f32.gmra.mrb[0].mxu0 %v7359
    %v7654 = vpop.f32.mrb[0].mxu0
    %v7655 = vadd.f32 %v7585, %v7654
    %v7656 = vpop.f32.mrb[0].mxu0
    %7657 = vdwg.mxu0
    %v7658 = vadd.f32 %v7655, %v3730
    %v7659 = vtanh.pop %v7658
    %v7661 = vsel %vm214, %v7659, 0
    %7663 = vmatprep.subr.mxu0 0.0
    %7664 = vmatpush1.msra.mxu0 %v3733
    %7665 = vmatprep.subr.mxu0 0.0
    %7666 = vmatpush1.msra.mxu0 %v3734
    %7667 = vmatprep.subr.mxu0 0.0
    %7668 = vmatpush1.msra.mxu0 %v3735
    %7669 = vmatprep.subr.mxu0 0.0
    %7670 = vmatpush1.msra.mxu0 %v3736
    %7671 = vmatprep.subr.mxu0 0.0
    %7672 = vmatpush1.msra.mxu0 0.0
    %7673 = vmatprep.subr.mxu0 0.0
    %7674 = vmatpush1.msra.mxu0 0.0
    %7675 = vmatprep.subr.mxu0 0.0
    %7676 = vmatpush1.msra.mxu0 0.0
    %7677 = vmatprep.subr.mxu0 0.0
    %7678 = vmatpush1.msra.mxu0 0.0
    %7679 = vmatprep.subr.mxu0 0.0
    %7680 = vmatpush1.msra.mxu0 0.0
    %7681 = vmatprep.subr.mxu0 0.0
    %7682 = vmatpush1.msra.mxu0 0.0
    %7683 = vmatprep.subr.mxu0 0.0
    %7684 = vmatpush1.msra.mxu0 0.0
    %7685 = vmatprep.subr.mxu0 0.0
    %7686 = vmatpush1.msra.mxu0 0.0
    %7687 = vmatprep.subr.mxu0 0.0
    %7688 = vmatpush1.msra.mxu0 0.0
    %7689 = vmatprep.subr.mxu0 0.0
    %7690 = vmatpush1.msra.mxu0 0.0
    %7691 = vmatprep.subr.mxu0 0.0
    %7692 = vmatpush1.msra.mxu0 0.0
    %7693 = vmatprep.subr.mxu0 0.0
    %7694 = vmatpush1.msra.mxu0 0.0
    %7695 = vmatprep.subr.mxu0 0.0
    %7696 = vmatpush1.msra.mxu0 0.0
    %7697 = vmatprep.subr.mxu0 0.0
    %7698 = vmatpush1.msra.mxu0 0.0
    %7699 = vmatprep.subr.mxu0 0.0
    %7700 = vmatpush1.msra.mxu0 0.0
    %7701 = vmatprep.subr.mxu0 0.0
    %7702 = vmatpush1.msra.mxu0 0.0
    %7703 = vmatprep.subr.mxu0 0.0
    %7704 = vmatpush1.msra.mxu0 0.0
    %7705 = vmatprep.subr.mxu0 0.0
    %7706 = vmatpush1.msra.mxu0 0.0
    %7707 = vmatprep.subr.mxu0 0.0
    %7708 = vmatpush1.msra.mxu0 0.0
    %7709 = vmatprep.subr.mxu0 0.0
    %7710 = vmatpush1.msra.mxu0 0.0
    %7711 = vmatprep.subr.mxu0 0.0
    %7712 = vmatpush1.msra.mxu0 0.0
    %7713 = vmatprep.subr.mxu0 0.0
    %7714 = vmatpush1.msra.mxu0 0.0
    %7715 = vmatprep.subr.mxu0 0.0
    %7716 = vmatpush1.msra.mxu0 0.0
    %7717 = vmatprep.subr.mxu0 0.0
    %7718 = vmatpush1.msra.mxu0 0.0
    %7719 = vmatprep.subr.mxu0 0.0
    %7720 = vmatpush1.msra.mxu0 0.0
    %7721 = vmatprep.subr.mxu0 0.0
    %7722 = vmatpush1.msra.mxu0 0.0
    %7723 = vmatprep.subr.mxu0 0.0
    %7724 = vmatpush1.msra.mxu0 0.0
    %7725 = vmatprep.subr.mxu0 0.0
    %7726 = vmatpush1.msra.mxu0 0.0
    %7727 = vmatprep.mubr.f32.mxu0 0.0
    %7728 = vmatmul.mubr.f32.gmra.mrb[0].mxu0 %v7661
    %v7729 = vpop.f32.mrb[0].mxu0
    %v7730 = vadd.f32 %v3737, %v7729
    %v7731 = vpop.f32.mrb[0].mxu0
    %7732 = vdwg.mxu0
    %v7733 = vsel %vm3811, %v7730, -inf
    %7734 = vmax.xlane.f32.xlu0 %v7733
    %v7735 = vpop.xlane.xlu0 %7734
    %v7736 = vsub.f32 %v7730, %v7735
    %v7737 = vmul.f32 %v7736, 1.442695
    %v7738 = vpow.pop %v7737
    %v7739 = vsel %vm3811, %v7738, 0.0
    %7740 = vadd.xlane.f32.xlu0 %v7739
    %v7741 = vpop.xlane.xlu0 %7740
    %v7742 = vrcp.pop %v7741
    %vm7743 = vcmp.ge.f32.partialorder %v7730, %v7735
    %v7744 = vsel %vm7743, %v3232, 64
    %v7745 = vsel %vm3811, %v7744, 2147483647
    %v7746 = vand.u32 %v7745, 65535
    %v7747 = vshra.s32 %v7745, 16
    %v7748 = vcvt.s32.f32 %v7746
    %v7749 = vcvt.s32.f32 %v7747
    %7750 = vmin.xlane.f32.xlu0 %v7749
    %v7751 = vpop.xlane.xlu0 %7750
    %vm7752 = vcmp.eq.f32.partialorder %v7749, %v7751
    %v7753 = vsel %vm7752, %v7748, inf
    %7754 = vmin.xlane.f32.xlu0 %v7753
    %v7755 = vpop.xlane.xlu0 %7754
    %v7756 = vcvt.f32.s32 %v7755
    %v7757 = vcvt.f32.s32 %v7751
    %v7758 = vshll.u32 %v7757, 16
    %v7759 = vadd.s32 %v7758, %v7756
    %vm7760 = vcmp.eq.s32.totalorder %v3232, 6
    %v7761 = vsel %vm7760, %v7759, %v7109
    %v7762 = vsel %vm7760, %v7742, %v7110
    %vm7763 = vcmp.eq.s32.totalorder %v3232, %v7759
    %v7764 = vsel %vm7763, 1, 0
    %v7765 = vcvt.s32.f32 %v7764
    %v7767 = vsel %vm3853, %v7765, 0
    %7769 = vmatprep.subr.mxu0 0.0
    %7770 = vmatpush1.msra.mxu0 %v3845
    %7771 = vmatprep.subr.mxu0 0.0
    %7772 = vmatpush1.msra.mxu0 %v3846
    %7773 = vmatprep.subr.mxu0 0.0
    %7774 = vmatpush1.msra.mxu0 %v3847
    %7775 = vmatprep.subr.mxu0 0.0
    %7776 = vmatpush1.msra.mxu0 %v3848
    %7777 = vmatprep.subr.mxu0 0.0
    %7778 = vmatpush1.msra.mxu0 %v3849
    %7779 = vmatprep.subr.mxu0 0.0
    %7780 = vmatpush1.msra.mxu0 %v3850
    %7781 = vmatprep.subr.mxu0 0.0
    %7782 = vmatpush1.msra.mxu0 %v3851
    %7783 = vmatprep.subr.mxu0 0.0
    %7784 = vmatpush1.msra.mxu0 %v3852
    %7785 = vmatprep.subr.mxu0 0.0
    %7786 = vmatpush1.msra.mxu0 0.0
    %7787 = vmatprep.subr.mxu0 0.0
    %7788 = vmatpush1.msra.mxu0 0.0
    %7789 = vmatprep.subr.mxu0 0.0
    %7790 = vmatpush1.msra.mxu0 0.0
    %7791 = vmatprep.subr.mxu0 0.0
    %7792 = vmatpush1.msra.mxu0 0.0
    %7793 = vmatprep.subr.mxu0 0.0
    %7794 = vmatpush1.msra.mxu0 0.0
    %7795 = vmatprep.subr.mxu0 0.0
    %7796 = vmatpush1.msra.mxu0 0.0
    %7797 = vmatprep.subr.mxu0 0.0
    %7798 = vmatpush1.msra.mxu0 0.0
    %7799 = vmatprep.subr.mxu0 0.0
    %7800 = vmatpush1.msra.mxu0 0.0
    %7801 = vmatprep.subr.mxu0 0.0
    %7802 = vmatpush1.msra.mxu0 0.0
    %7803 = vmatprep.subr.mxu0 0.0
    %7804 = vmatpush1.msra.mxu0 0.0
    %7805 = vmatprep.subr.mxu0 0.0
    %7806 = vmatpush1.msra.mxu0 0.0
    %7807 = vmatprep.subr.mxu0 0.0
    %7808 = vmatpush1.msra.mxu0 0.0
    %7809 = vmatprep.subr.mxu0 0.0
    %7810 = vmatpush1.msra.mxu0 0.0
    %7811 = vmatprep.subr.mxu0 0.0
    %7812 = vmatpush1.msra.mxu0 0.0
    %7813 = vmatprep.subr.mxu0 0.0
    %7814 = vmatpush1.msra.mxu0 0.0
    %7815 = vmatprep.subr.mxu0 0.0
    %7816 = vmatpush1.msra.mxu0 0.0
    %7817 = vmatprep.subr.mxu0 0.0
    %7818 = vmatpush1.msra.mxu0 0.0
    %7819 = vmatprep.subr.mxu0 0.0
    %7820 = vmatpush1.msra.mxu0 0.0
    %7821 = vmatprep.subr.mxu0 0.0
    %7822 = vmatpush1.msra.mxu0 0.0
    %7823 = vmatprep.subr.mxu0 0.0
    %7824 = vmatpush1.msra.mxu0 0.0
    %7825 = vmatprep.subr.mxu0 0.0
    %7826 = vmatpush1.msra.mxu0 0.0
    %7827 = vmatprep.subr.mxu0 0.0
    %7828 = vmatpush1.msra.mxu0 0.0
    %7829 = vmatprep.subr.mxu0 0.0
    %7830 = vmatpush1.msra.mxu0 0.0
    %7831 = vmatprep.subr.mxu0 0.0
    %7832 = vmatpush1.msra.mxu0 0.0
    %7833 = vmatprep.mubr.f32.mxu0 0.0
    %7834 = vmatmul.mubr.f32.gmra.mrb[0].mxu0 %v7767
    %v7835 = vpop.f32.mrb[0].mxu0
    %v7836 = vadd.f32 0.0, %v7835
    %v7837 = vpop.f32.mrb[0].mxu0
    %7838 = vdwg.mxu0
    %v7840 = vsel %vm214, %v7836, 0
    %7842 = vmatprep.subr.mxu0 0.0
    %7843 = vmatpush1.msra.mxu0 %v3234
    %7844 = vmatprep.subr.mxu0 0.0
    %7845 = vmatpush1.msra.mxu0 %v3235
    %7846 = vmatprep.subr.mxu0 0.0
    %7847 = vmatpush1.msra.mxu0 %v3236
    %7848 = vmatprep.subr.mxu0 0.0
    %7849 = vmatpush1.msra.mxu0 %v3237
    %7850 = vmatprep.subr.mxu0 0.0
    %7851 = vmatpush1.msra.mxu0 0.0
    %7852 = vmatprep.subr.mxu0 0.0
    %7853 = vmatpush1.msra.mxu0 0.0
    %7854 = vmatprep.subr.mxu0 0.0
    %7855 = vmatpush1.msra.mxu0 0.0
    %7856 = vmatprep.subr.mxu0 0.0
    %7857 = vmatpush1.msra.mxu0 0.0
    %7858 = vmatprep.subr.mxu0 0.0
    %7859 = vmatpush1.msra.mxu0 0.0
    %7860 = vmatprep.subr.mxu0 0.0
    %7861 = vmatpush1.msra.mxu0 0.0
    %7862 = vmatprep.subr.mxu0 0.0
    %7863 = vmatpush1.msra.mxu0 0.0
    %7864 = vmatprep.subr.mxu0 0.0
    %7865 = vmatpush1.msra.mxu0 0.0
    %7866 = vmatprep.subr.mxu0 0.0
    %7867 = vmatpush1.msra.mxu0 0.0
    %7868 = vmatprep.subr.mxu0 0.0
    %7869 = vmatpush1.msra.mxu0 0.0
    %7870 = vmatprep.subr.mxu0 0.0
    %7871 = vmatpush1.msra.mxu0 0.0
    %7872 = vmatprep.subr.mxu0 0.0
    %7873 = vmatpush1.msra.mxu0 0.0
    %7874 = vmatprep.subr.mxu0 0.0
    %7875 = vmatpush1.msra.mxu0 0.0
    %7876 = vmatprep.subr.mxu0 0.0
    %7877 = vmatpush1.msra.mxu0 0.0
    %7878 = vmatprep.subr.mxu0 0.0
    %7879 = vmatpush1.msra.mxu0 0.0
    %7880 = vmatprep.subr.mxu0 0.0
    %7881 = vmatpush1.msra.mxu0 0.0
    %7882 = vmatprep.subr.mxu0 0.0
    %7883 = vmatpush1.msra.mxu0 0.0
    %7884 = vmatprep.subr.mxu0 0.0
    %7885 = vmatpush1.msra.mxu0 0.0
    %7886 = vmatprep.subr.mxu0 0.0
    %7887 = vmatpush1.msra.mxu0 0.0
    %7888 = vmatprep.subr.mxu0 0.0
    %7889 = vmatpush1.msra.mxu0 0.0
    %7890 = vmatprep.subr.mxu0 0.0
    %7891 = vmatpush1.msra.mxu0 0.0
    %7892 = vmatprep.subr.mxu0 0.0
    %7893 = vmatpush1.msra.mxu0 0.0
    %7894 = vmatprep.subr.mxu0 0.0
    %7895 = vmatpush1.msra.mxu0 0.0
    %7896 = vmatprep.subr.mxu0 0.0
    %7897 = vmatpush1.msra.mxu0 0.0
    %7898 = vmatprep.subr.mxu0 0.0
    %7899 = vmatpush1.msra.mxu0 0.0
    %7900 = vmatprep.subr.mxu0 0.0
    %7901 = vmatpush1.msra.mxu0 0.0
    %7902 = vmatprep.subr.mxu0 0.0
    %7903 = vmatpush1.msra.mxu0 0.0
    %7904 = vmatprep.subr.mxu0 0.0
    %7905 = vmatpush1.msra.mxu0 0.0
    %7906 = vmatprep.mubr.f32.mxu0 0.0
    %7907 = vmatmul.mubr.f32.gmra.mrb[0].mxu0 %v7840
    %v7908 = vpop.f32.mrb[0].mxu0
    %v7909 = vadd.f32 %v3238, %v7908
    %v7910 = vpop.f32.mrb[0].mxu0
    %7911 = vdwg.mxu0
    %7912 = vmatprep.subr.mxu0 0.0
    %7913 = vmatpush1.msra.mxu0 %v3312
    %7914 = vmatprep.subr.mxu0 0.0
    %7915 = vmatpush1.msra.mxu0 %v3313
    %7916 = vmatprep.subr.mxu0 0.0
    %7917 = vmatpush1.msra.mxu0 %v3314
    %7918 = vmatprep.subr.mxu0 0.0
    %7919 = vmatpush1.msra.mxu0 %v3315
    %7920 = vmatprep.subr.mxu0 0.0
    %7921 = vmatpush1.msra.mxu0 0.0
    %7922 = vmatprep.subr.mxu0 0.0
    %7923 = vmatpush1.msra.mxu0 0.0
    %7924 = vmatprep.subr.mxu0 0.0
    %7925 = vmatpush1.msra.mxu0 0.0
    %7926 = vmatprep.subr.mxu0 0.0
    %7927 = vmatpush1.msra.mxu0 0.0
    %7928 = vmatprep.subr.mxu0 0.0
    %7929 = vmatpush1.msra.mxu0 0.0
    %7930 = vmatprep.subr.mxu0 0.0
    %7931 = vmatpush1.msra.mxu0 0.0
    %7932 = vmatprep.subr.mxu0 0.0
    %7933 = vmatpush1.msra.mxu0 0.0
    %7934 = vmatprep.subr.mxu0 0.0
    %7935 = vmatpush1.msra.mxu0 0.0
    %7936 = vmatprep.subr.mxu0 0.0
    %7937 = vmatpush1.msra.mxu0 0.0
    %7938 = vmatprep.subr.mxu0 0.0
    %7939 = vmatpush1.msra.mxu0 0.0
    %7940 = vmatprep.subr.mxu0 0.0
    %7941 = vmatpush1.msra.mxu0 0.0
    %7942 = vmatprep.subr.mxu0 0.0
    %7943 = vmatpush1.msra.mxu0 0.0
    %7944 = vmatprep.subr.mxu0 0.0
    %7945 = vmatpush1.msra.mxu0 0.0
    %7946 = vmatprep.subr.mxu0 0.0
    %7947 = vmatpush1.msra.mxu0 0.0
    %7948 = vmatprep.subr.mxu0 0.0
    %7949 = vmatpush1.msra.mxu0 0.0
    %7950 = vmatprep.subr.mxu0 0.0
    %7951 = vmatpush1.msra.mxu0 0.0
    %7952 = vmatprep.subr.mxu0 0.0
    %7953 = vmatpush1.msra.mxu0 0.0
    %7954 = vmatprep.subr.mxu0 0.0
    %7955 = vmatpush1.msra.mxu0 0.0
    %7956 = vmatprep.subr.mxu0 0.0
    %7957 = vmatpush1.msra.mxu0 0.0
    %7958 = vmatprep.subr.mxu0 0.0
    %7959 = vmatpush1.msra.mxu0 0.0
    %7960 = vmatprep.subr.mxu0 0.0
    %7961 = vmatpush1.msra.mxu0 0.0
    %7962 = vmatprep.subr.mxu0 0.0
    %7963 = vmatpush1.msra.mxu0 0.0
    %7964 = vmatprep.subr.mxu0 0.0
    %7965 = vmatpush1.msra.mxu0 0.0
    %7966 = vmatprep.subr.mxu0 0.0
    %7967 = vmatpush1.msra.mxu0 0.0
    %7968 = vmatprep.subr.mxu0 0.0
    %7969 = vmatpush1.msra.mxu0 0.0
    %7970 = vmatprep.subr.mxu0 0.0
    %7971 = vmatpush1.msra.mxu0 0.0
    %7972 = vmatprep.subr.mxu0 0.0
    %7973 = vmatpush1.msra.mxu0 0.0
    %7974 = vmatprep.subr.mxu0 0.0
    %7975 = vmatpush1.msra.mxu0 0.0
    %7976 = vmatprep.mubr.f32.mxu0 0.0
    %7977 = vmatmul.mubr.f32.gmra.mrb[0].mxu0 %v7359
    %v7978 = vpop.f32.mrb[0].mxu0
    %v7979 = vadd.f32 %v3316, %v7978
    %v7980 = vpop.f32.mrb[0].mxu0
    %7981 = vdwg.mxu0
    %v7982 = vadd.f32 %v7909, %v7979
    %v7983 = vxor.u32 %v7982, 2147483648
    %v7984 = vmul.f32 %v7983, 1.442695
    %v7985 = vpow.pop %v7984
    %v7986 = vadd.f32 %v7985, 1.0
    %v7987 = vrcp.pop %v7986
    %v7988 = vmul.f32 1.0, %v7987
    %7990 = vrot.lane.b32.xlu0 %v7979, 64
    %v7991 = vpop.permute.xlu0 %7990
    %v7993 = vmul.f32 %v7988, %v7991
    %7995 = vrot.lane.b32.xlu0 %v7993, 64
    %v7996 = vpop.permute.xlu0 %7995
    %v7998 = vadd.f32 %v7909, %v7996
    %v7999 = vtanh.pop %v7998
    %v8000 = vsub.f32 1.0, %v7988
    %8002 = vrot.lane.b32.xlu0 %v7999, 96
    %v8003 = vpop.permute.xlu0 %8002
    %v8005 = vmul.f32 %v8000, %v8003
    %v8006 = vmul.f32 %v7988, %v7355
    %v8007 = vadd.f32 %v8005, %v8006
    %8009 = vrot.lane.b32.xlu0 %v8007, 96
    %v8010 = vpop.permute.xlu0 %8009
    %v8011 = vsel %vm214, %v8010, 0
    %8013 = vmatprep.subr.mxu0 0.0
    %8014 = vmatpush1.xpose.msra.mxu0 %v3421
    %8015 = vmatprep.subr.mxu0 0.0
    %8016 = vmatpush1.xpose.msra.mxu0 0.0
    %8017 = vmatprep.subr.mxu0 0.0
    %8018 = vmatpush1.xpose.msra.mxu0 0.0
    %8019 = vmatprep.subr.mxu0 0.0
    %8020 = vmatpush1.xpose.msra.mxu0 0.0
    %8021 = vmatprep.subr.mxu0 0.0
    %8022 = vmatpush1.xpose.msra.mxu0 0.0
    %8023 = vmatprep.subr.mxu0 0.0
    %8024 = vmatpush1.xpose.msra.mxu0 0.0
    %8025 = vmatprep.subr.mxu0 0.0
    %8026 = vmatpush1.xpose.msra.mxu0 0.0
    %8027 = vmatprep.subr.mxu0 0.0
    %8028 = vmatpush1.xpose.msra.mxu0 0.0
    %8029 = vmatprep.subr.mxu0 0.0
    %8030 = vmatpush1.xpose.msra.mxu0 0.0
    %8031 = vmatprep.subr.mxu0 0.0
    %8032 = vmatpush1.xpose.msra.mxu0 0.0
    %8033 = vmatprep.subr.mxu0 0.0
    %8034 = vmatpush1.xpose.msra.mxu0 0.0
    %8035 = vmatprep.subr.mxu0 0.0
    %8036 = vmatpush1.xpose.msra.mxu0 0.0
    %8037 = vmatprep.subr.mxu0 0.0
    %8038 = vmatpush1.xpose.msra.mxu0 0.0
    %8039 = vmatprep.subr.mxu0 0.0
    %8040 = vmatpush1.xpose.msra.mxu0 0.0
    %8041 = vmatprep.subr.mxu0 0.0
    %8042 = vmatpush1.xpose.msra.mxu0 0.0
    %8043 = vmatprep.subr.mxu0 0.0
    %8044 = vmatpush1.xpose.msra.mxu0 0.0
    %8045 = vmatprep.subr.mxu0 0.0
    %8046 = vmatpush1.xpose.msra.mxu0 0.0
    %8047 = vmatprep.subr.mxu0 0.0
    %8048 = vmatpush1.xpose.msra.mxu0 0.0
    %8049 = vmatprep.subr.mxu0 0.0
    %8050 = vmatpush1.xpose.msra.mxu0 0.0
    %8051 = vmatprep.subr.mxu0 0.0
    %8052 = vmatpush1.xpose.msra.mxu0 0.0
    %8053 = vmatprep.subr.mxu0 0.0
    %8054 = vmatpush1.xpose.msra.mxu0 0.0
    %8055 = vmatprep.subr.mxu0 0.0
    %8056 = vmatpush1.xpose.msra.mxu0 0.0
    %8057 = vmatprep.subr.mxu0 0.0
    %8058 = vmatpush1.xpose.msra.mxu0 0.0
    %8059 = vmatprep.subr.mxu0 0.0
    %8060 = vmatpush1.xpose.msra.mxu0 0.0
    %8061 = vmatprep.subr.mxu0 0.0
    %8062 = vmatpush1.xpose.msra.mxu0 0.0
    %8063 = vmatprep.subr.mxu0 0.0
    %8064 = vmatpush1.xpose.msra.mxu0 0.0
    %8065 = vmatprep.subr.mxu0 0.0
    %8066 = vmatpush1.xpose.msra.mxu0 0.0
    %8067 = vmatprep.subr.mxu0 0.0
    %8068 = vmatpush1.xpose.msra.mxu0 0.0
    %8069 = vmatprep.subr.mxu0 0.0
    %8070 = vmatpush1.xpose.msra.mxu0 0.0
    %8071 = vmatprep.subr.mxu0 0.0
    %8072 = vmatpush1.xpose.msra.mxu0 0.0
    %8073 = vmatprep.subr.mxu0 0.0
    %8074 = vmatpush1.xpose.msra.mxu0 0.0
    %8075 = vmatprep.subr.mxu0 0.0
    %8076 = vmatpush1.xpose.msra.mxu0 0.0
    %8077 = vmatprep.mubr.f32.mxu0 0.0
    %8078 = vmatmul.mubr.f32.gmra.mrb[0].mxu0 %v8011
    %v8079 = vpop.f32.mrb[0].mxu0
    %v8080 = vadd.f32 0.0, %v8079
    %v8081 = vpop.f32.mrb[0].mxu0
    %8082 = vdwg.mxu0
    %v8083 = vsel %vm3493, %v8080, -inf
    %8084 = vmax.xlane.f32.xlu0 %v8083
    %v8085 = vpop.xlane.xlu0 %8084
    %v8086 = vsub.f32 %v8080, %v8085
    %v8087 = vmul.f32 %v8086, 1.442695
    %v8088 = vpow.pop %v8087
    %v8089 = vsel %vm3493, %v8088, 0.0
    %8090 = vadd.xlane.f32.xlu0 %v8089
    %v8091 = vpop.xlane.xlu0 %8090
    %v8092 = vrcp.pop %v8091
    %v8093 = vmul.f32 %v8088, %v8092
    %v8095 = vsel %vm3505, %v8093, 0
    %8097 = vmatprep.subr.mxu0 0.0
    %8098 = vmatpush1.msra.mxu0 %v3230
    %8099 = vmatprep.subr.mxu0 0.0
    %8100 = vmatpush1.msra.mxu0 0.0
    %8101 = vmatprep.subr.mxu0 0.0
    %8102 = vmatpush1.msra.mxu0 0.0
    %8103 = vmatprep.subr.mxu0 0.0
    %8104 = vmatpush1.msra.mxu0 0.0
    %8105 = vmatprep.subr.mxu0 0.0
    %8106 = vmatpush1.msra.mxu0 0.0
    %8107 = vmatprep.subr.mxu0 0.0
    %8108 = vmatpush1.msra.mxu0 0.0
    %8109 = vmatprep.subr.mxu0 0.0
    %8110 = vmatpush1.msra.mxu0 0.0
    %8111 = vmatprep.subr.mxu0 0.0
    %8112 = vmatpush1.msra.mxu0 0.0
    %8113 = vmatprep.subr.mxu0 0.0
    %8114 = vmatpush1.msra.mxu0 0.0
    %8115 = vmatprep.subr.mxu0 0.0
    %8116 = vmatpush1.msra.mxu0 0.0
    %8117 = vmatprep.subr.mxu0 0.0
    %8118 = vmatpush1.msra.mxu0 0.0
    %8119 = vmatprep.subr.mxu0 0.0
    %8120 = vmatpush1.msra.mxu0 0.0
    %8121 = vmatprep.subr.mxu0 0.0
    %8122 = vmatpush1.msra.mxu0 0.0
    %8123 = vmatprep.subr.mxu0 0.0
    %8124 = vmatpush1.msra.mxu0 0.0
    %8125 = vmatprep.subr.mxu0 0.0
    %8126 = vmatpush1.msra.mxu0 0.0
    %8127 = vmatprep.subr.mxu0 0.0
    %8128 = vmatpush1.msra.mxu0 0.0
    %8129 = vmatprep.subr.mxu0 0.0
    %8130 = vmatpush1.msra.mxu0 0.0
    %8131 = vmatprep.subr.mxu0 0.0
    %8132 = vmatpush1.msra.mxu0 0.0
    %8133 = vmatprep.subr.mxu0 0.0
    %8134 = vmatpush1.msra.mxu0 0.0
    %8135 = vmatprep.subr.mxu0 0.0
    %8136 = vmatpush1.msra.mxu0 0.0
    %8137 = vmatprep.subr.mxu0 0.0
    %8138 = vmatpush1.msra.mxu0 0.0
    %8139 = vmatprep.subr.mxu0 0.0
    %8140 = vmatpush1.msra.mxu0 0.0
    %8141 = vmatprep.subr.mxu0 0.0
    %8142 = vmatpush1.msra.mxu0 0.0
    %8143 = vmatprep.subr.mxu0 0.0
    %8144 = vmatpush1.msra.mxu0 0.0
    %8145 = vmatprep.subr.mxu0 0.0
    %8146 = vmatpush1.msra.mxu0 0.0
    %8147 = vmatprep.subr.mxu0 0.0
    %8148 = vmatpush1.msra.mxu0 0.0
    %8149 = vmatprep.subr.mxu0 0.0
    %8150 = vmatpush1.msra.mxu0 0.0
    %8151 = vmatprep.subr.mxu0 0.0
    %8152 = vmatpush1.msra.mxu0 0.0
    %8153 = vmatprep.subr.mxu0 0.0
    %8154 = vmatpush1.msra.mxu0 0.0
    %8155 = vmatprep.subr.mxu0 0.0
    %8156 = vmatpush1.msra.mxu0 0.0
    %8157 = vmatprep.subr.mxu0 0.0
    %8158 = vmatpush1.msra.mxu0 0.0
    %8159 = vmatprep.subr.mxu0 0.0
    %8160 = vmatpush1.msra.mxu0 0.0
    %8161 = vmatprep.mubr.f32.mxu0 0.0
    %8162 = vmatmul.mubr.f32.gmra.mrb[0].mxu0 %v8095
    %v8163 = vpop.f32.mrb[0].mxu0
    %v8164 = vadd.f32 0.0, %v8163
    %v8165 = vpop.f32.mrb[0].mxu0
    %8166 = vdwg.mxu0
    %v8168 = vsel %vm214, %v8164, 0
    %8170 = vmatprep.subr.mxu0 0.0
    %8171 = vmatpush1.msra.mxu0 %v3583
    %8172 = vmatprep.subr.mxu0 0.0
    %8173 = vmatpush1.msra.mxu0 %v3584
    %8174 = vmatprep.subr.mxu0 0.0
    %8175 = vmatpush1.msra.mxu0 %v3585
    %8176 = vmatprep.subr.mxu0 0.0
    %8177 = vmatpush1.msra.mxu0 %v3586
    %8178 = vmatprep.subr.mxu0 0.0
    %8179 = vmatpush1.msra.mxu0 0.0
    %8180 = vmatprep.subr.mxu0 0.0
    %8181 = vmatpush1.msra.mxu0 0.0
    %8182 = vmatprep.subr.mxu0 0.0
    %8183 = vmatpush1.msra.mxu0 0.0
    %8184 = vmatprep.subr.mxu0 0.0
    %8185 = vmatpush1.msra.mxu0 0.0
    %8186 = vmatprep.subr.mxu0 0.0
    %8187 = vmatpush1.msra.mxu0 0.0
    %8188 = vmatprep.subr.mxu0 0.0
    %8189 = vmatpush1.msra.mxu0 0.0
    %8190 = vmatprep.subr.mxu0 0.0
    %8191 = vmatpush1.msra.mxu0 0.0
    %8192 = vmatprep.subr.mxu0 0.0
    %8193 = vmatpush1.msra.mxu0 0.0
    %8194 = vmatprep.subr.mxu0 0.0
    %8195 = vmatpush1.msra.mxu0 0.0
    %8196 = vmatprep.subr.mxu0 0.0
    %8197 = vmatpush1.msra.mxu0 0.0
    %8198 = vmatprep.subr.mxu0 0.0
    %8199 = vmatpush1.msra.mxu0 0.0
    %8200 = vmatprep.subr.mxu0 0.0
    %8201 = vmatpush1.msra.mxu0 0.0
    %8202 = vmatprep.subr.mxu0 0.0
    %8203 = vmatpush1.msra.mxu0 0.0
    %8204 = vmatprep.subr.mxu0 0.0
    %8205 = vmatpush1.msra.mxu0 0.0
    %8206 = vmatprep.subr.mxu0 0.0
    %8207 = vmatpush1.msra.mxu0 0.0
    %8208 = vmatprep.subr.mxu0 0.0
    %8209 = vmatpush1.msra.mxu0 0.0
    %8210 = vmatprep.subr.mxu0 0.0
    %8211 = vmatpush1.msra.mxu0 0.0
    %8212 = vmatprep.subr.mxu0 0.0
    %8213 = vmatpush1.msra.mxu0 0.0
    %8214 = vmatprep.subr.mxu0 0.0
    %8215 = vmatpush1.msra.mxu0 0.0
    %8216 = vmatprep.subr.mxu0 0.0
    %8217 = vmatpush1.msra.mxu0 0.0
    %8218 = vmatprep.subr.mxu0 0.0
    %8219 = vmatpush1.msra.mxu0 0.0
    %8220 = vmatprep.subr.mxu0 0.0
    %8221 = vmatpush1.msra.mxu0 0.0
    %8222 = vmatprep.subr.mxu0 0.0
    %8223 = vmatpush1.msra.mxu0 0.0
    %8224 = vmatprep.subr.mxu0 0.0
    %8225 = vmatpush1.msra.mxu0 0.0
    %8226 = vmatprep.subr.mxu0 0.0
    %8227 = vmatpush1.msra.mxu0 0.0
    %8228 = vmatprep.subr.mxu0 0.0
    %8229 = vmatpush1.msra.mxu0 0.0
    %8230 = vmatprep.subr.mxu0 0.0
    %8231 = vmatpush1.msra.mxu0 0.0
    %8232 = vmatprep.subr.mxu0 0.0
    %8233 = vmatpush1.msra.mxu0 0.0
    %8234 = vmatprep.mubr.f32.mxu0 0.0
    %8235 = vmatmul.mubr.f32.gmra.mrb[0].mxu0 %v8168
    %v8236 = vpop.f32.mrb[0].mxu0
    %v8237 = vadd.f32 0.0, %v8236
    %v8238 = vpop.f32.mrb[0].mxu0
    %8239 = vdwg.mxu0
    %8240 = vmatprep.subr.mxu0 0.0
    %8241 = vmatpush1.msra.mxu0 %v3579
    %8242 = vmatprep.subr.mxu0 0.0
    %8243 = vmatpush1.msra.mxu0 %v3580
    %8244 = vmatprep.subr.mxu0 0.0
    %8245 = vmatpush1.msra.mxu0 %v3581
    %8246 = vmatprep.subr.mxu0 0.0
    %8247 = vmatpush1.msra.mxu0 %v3582
    %8248 = vmatprep.subr.mxu0 0.0
    %8249 = vmatpush1.msra.mxu0 0.0
    %8250 = vmatprep.subr.mxu0 0.0
    %8251 = vmatpush1.msra.mxu0 0.0
    %8252 = vmatprep.subr.mxu0 0.0
    %8253 = vmatpush1.msra.mxu0 0.0
    %8254 = vmatprep.subr.mxu0 0.0
    %8255 = vmatpush1.msra.mxu0 0.0
    %8256 = vmatprep.subr.mxu0 0.0
    %8257 = vmatpush1.msra.mxu0 0.0
    %8258 = vmatprep.subr.mxu0 0.0
    %8259 = vmatpush1.msra.mxu0 0.0
    %8260 = vmatprep.subr.mxu0 0.0
    %8261 = vmatpush1.msra.mxu0 0.0
    %8262 = vmatprep.subr.mxu0 0.0
    %8263 = vmatpush1.msra.mxu0 0.0
    %8264 = vmatprep.subr.mxu0 0.0
    %8265 = vmatpush1.msra.mxu0 0.0
    %8266 = vmatprep.subr.mxu0 0.0
    %8267 = vmatpush1.msra.mxu0 0.0
    %8268 = vmatprep.subr.mxu0 0.0
    %8269 = vmatpush1.msra.mxu0 0.0
    %8270 = vmatprep.subr.mxu0 0.0
    %8271 = vmatpush1.msra.mxu0 0.0
    %8272 = vmatprep.subr.mxu0 0.0
    %8273 = vmatpush1.msra.mxu0 0.0
    %8274 = vmatprep.subr.mxu0 0.0
    %8275 = vmatpush1.msra.mxu0 0.0
    %8276 = vmatprep.subr.mxu0 0.0
    %8277 = vmatpush1.msra.mxu0 0.0
    %8278 = vmatprep.subr.mxu0 0.0
    %8279 = vmatpush1.msra.mxu0 0.0
    %8280 = vmatprep.subr.mxu0 0.0
    %8281 = vmatpush1.msra.mxu0 0.0
    %8282 = vmatprep.subr.mxu0 0.0
    %8283 = vmatpush1.msra.mxu0 0.0
    %8284 = vmatprep.subr.mxu0 0.0
    %8285 = vmatpush1.msra.mxu0 0.0
    %8286 = vmatprep.subr.mxu0 0.0
    %8287 = vmatpush1.msra.mxu0 0.0
    %8288 = vmatprep.subr.mxu0 0.0
    %8289 = vmatpush1.msra.mxu0 0.0
    %8290 = vmatprep.subr.mxu0 0.0
    %8291 = vmatpush1.msra.mxu0 0.0
    %8292 = vmatprep.subr.mxu0 0.0
    %8293 = vmatpush1.msra.mxu0 0.0
    %8294 = vmatprep.subr.mxu0 0.0
    %8295 = vmatpush1.msra.mxu0 0.0
    %8296 = vmatprep.subr.mxu0 0.0
    %8297 = vmatpush1.msra.mxu0 0.0
    %8298 = vmatprep.subr.mxu0 0.0
    %8299 = vmatpush1.msra.mxu0 0.0
    %8300 = vmatprep.subr.mxu0 0.0
    %8301 = vmatpush1.msra.mxu0 0.0
    %8302 = vmatprep.subr.mxu0 0.0
    %8303 = vmatpush1.msra.mxu0 0.0
    %8304 = vmatprep.mubr.f32.mxu0 0.0
    %8305 = vmatmul.mubr.f32.gmra.mrb[0].mxu0 %v8011
    %v8306 = vpop.f32.mrb[0].mxu0
    %v8307 = vadd.f32 %v8237, %v8306
    %v8308 = vpop.f32.mrb[0].mxu0
    %8309 = vdwg.mxu0
    %v8310 = vadd.f32 %v8307, %v3730
    %v8311 = vtanh.pop %v8310
    %v8313 = vsel %vm214, %v8311, 0
    %8315 = vmatprep.subr.mxu0 0.0
    %8316 = vmatpush1.msra.mxu0 %v3733
    %8317 = vmatprep.subr.mxu0 0.0
    %8318 = vmatpush1.msra.mxu0 %v3734
    %8319 = vmatprep.subr.mxu0 0.0
    %8320 = vmatpush1.msra.mxu0 %v3735
    %8321 = vmatprep.subr.mxu0 0.0
    %8322 = vmatpush1.msra.mxu0 %v3736
    %8323 = vmatprep.subr.mxu0 0.0
    %8324 = vmatpush1.msra.mxu0 0.0
    %8325 = vmatprep.subr.mxu0 0.0
    %8326 = vmatpush1.msra.mxu0 0.0
    %8327 = vmatprep.subr.mxu0 0.0
    %8328 = vmatpush1.msra.mxu0 0.0
    %8329 = vmatprep.subr.mxu0 0.0
    %8330 = vmatpush1.msra.mxu0 0.0
    %8331 = vmatprep.subr.mxu0 0.0
    %8332 = vmatpush1.msra.mxu0 0.0
    %8333 = vmatprep.subr.mxu0 0.0
    %8334 = vmatpush1.msra.mxu0 0.0
    %8335 = vmatprep.subr.mxu0 0.0
    %8336 = vmatpush1.msra.mxu0 0.0
    %8337 = vmatprep.subr.mxu0 0.0
    %8338 = vmatpush1.msra.mxu0 0.0
    %8339 = vmatprep.subr.mxu0 0.0
    %8340 = vmatpush1.msra.mxu0 0.0
    %8341 = vmatprep.subr.mxu0 0.0
    %8342 = vmatpush1.msra.mxu0 0.0
    %8343 = vmatprep.subr.mxu0 0.0
    %8344 = vmatpush1.msra.mxu0 0.0
    %8345 = vmatprep.subr.mxu0 0.0
    %8346 = vmatpush1.msra.mxu0 0.0
    %8347 = vmatprep.subr.mxu0 0.0
    %8348 = vmatpush1.msra.mxu0 0.0
    %8349 = vmatprep.subr.mxu0 0.0
    %8350 = vmatpush1.msra.mxu0 0.0
    %8351 = vmatprep.subr.mxu0 0.0
    %8352 = vmatpush1.msra.mxu0 0.0
    %8353 = vmatprep.subr.mxu0 0.0
    %8354 = vmatpush1.msra.mxu0 0.0
    %8355 = vmatprep.subr.mxu0 0.0
    %8356 = vmatpush1.msra.mxu0 0.0
    %8357 = vmatprep.subr.mxu0 0.0
    %8358 = vmatpush1.msra.mxu0 0.0
    %8359 = vmatprep.subr.mxu0 0.0
    %8360 = vmatpush1.msra.mxu0 0.0
    %8361 = vmatprep.subr.mxu0 0.0
    %8362 = vmatpush1.msra.mxu0 0.0
    %8363 = vmatprep.subr.mxu0 0.0
    %8364 = vmatpush1.msra.mxu0 0.0
    %8365 = vmatprep.subr.mxu0 0.0
    %8366 = vmatpush1.msra.mxu0 0.0
    %8367 = vmatprep.subr.mxu0 0.0
    %8368 = vmatpush1.msra.mxu0 0.0
    %8369 = vmatprep.subr.mxu0 0.0
    %8370 = vmatpush1.msra.mxu0 0.0
    %8371 = vmatprep.subr.mxu0 0.0
    %8372 = vmatpush1.msra.mxu0 0.0
    %8373 = vmatprep.subr.mxu0 0.0
    %8374 = vmatpush1.msra.mxu0 0.0
    %8375 = vmatprep.subr.mxu0 0.0
    %8376 = vmatpush1.msra.mxu0 0.0
    %8377 = vmatprep.subr.mxu0 0.0
    %8378 = vmatpush1.msra.mxu0 0.0
    %8379 = vmatprep.mubr.f32.mxu0 0.0
    %8380 = vmatmul.mubr.f32.gmra.mrb[0].mxu0 %v8313
    %v8381 = vpop.f32.mrb[0].mxu0
    %v8382 = vadd.f32 %v3737, %v8381
    %v8383 = vpop.f32.mrb[0].mxu0
    %8384 = vdwg.mxu0
    %v8385 = vsel %vm3811, %v8382, -inf
    %8386 = vmax.xlane.f32.xlu0 %v8385
    %v8387 = vpop.xlane.xlu0 %8386
    %v8388 = vsub.f32 %v8382, %v8387
    %v8389 = vmul.f32 %v8388, 1.442695
    %v8390 = vpow.pop %v8389
    %v8391 = vsel %vm3811, %v8390, 0.0
    %8392 = vadd.xlane.f32.xlu0 %v8391
    %v8393 = vpop.xlane.xlu0 %8392
    %v8394 = vrcp.pop %v8393
    %vm8395 = vcmp.ge.f32.partialorder %v8382, %v8387
    %v8396 = vsel %vm8395, %v3232, 64
    %v8397 = vsel %vm3811, %v8396, 2147483647
    %v8398 = vand.u32 %v8397, 65535
    %v8399 = vshra.s32 %v8397, 16
    %v8400 = vcvt.s32.f32 %v8398
    %v8401 = vcvt.s32.f32 %v8399
    %8402 = vmin.xlane.f32.xlu0 %v8401
    %v8403 = vpop.xlane.xlu0 %8402
    %vm8404 = vcmp.eq.f32.partialorder %v8401, %v8403
    %v8405 = vsel %vm8404, %v8400, inf
    %8406 = vmin.xlane.f32.xlu0 %v8405
    %v8407 = vpop.xlane.xlu0 %8406
    %v8408 = vcvt.f32.s32 %v8407
    %v8409 = vcvt.f32.s32 %v8403
    %v8410 = vshll.u32 %v8409, 16
    %v8411 = vadd.s32 %v8410, %v8408
    %vm8412 = vcmp.eq.s32.totalorder %v3232, 7
    %v8413 = vsel %vm8412, %v8411, %v7761
    %v8414 = vsel %vm8412, %v8394, %v7762
    %8415 = vst [vmem:[#allocation24] sm:$0x1] %v8413
    %8416 = vst [vmem:[#allocation25] sm:$0x1] %v8414
    // Predicated region
    $region118: #{tpu_custom_call.1} parent=1 // pred_check
      _
    $region119: #{tpu_custom_call.1} parent=1 // pred_check_branch
      %8418 = sbr.rel (0) target = $region121
    $region120: #{tpu_custom_call.1} parent=1 // pred_region
      %s8420 = ssub.s32 16, 16
      %8421 = vsyncadd [#allocation8], %s8420
      %s8423 = sshll.u32 [#allocation24], 4
      %s8424 = int_to_ptr.vmem [resolvable:$true] %s8423
      %8426 = dma.vmem_to_hbm [thread:$0]  %s8424, 16, %s19, [#allocation8]
    $region121: #{tpu_custom_call.1} parent=1 // pred_fallthru
      _
    // Predicated region
    $region122: #{tpu_custom_call.1} parent=1 // pred_check
      _
    $region123: #{tpu_custom_call.1} parent=1 // pred_check_branch
      %8428 = sbr.rel (0) target = $region125
    $region124: #{tpu_custom_call.1} parent=1 // pred_region
      %s8430 = ssub.s32 16, 16
      %8431 = vsyncadd [#allocation26], %s8430
      %s8433 = sshll.u32 [#allocation25], 4
      %s8434 = int_to_ptr.vmem [resolvable:$true] %s8433
      %8436 = dma.vmem_to_hbm [thread:$0]  %s8434, 16, %s20, [#allocation26]
    $region125: #{tpu_custom_call.1} parent=1 // pred_fallthru
      _
    // Predicated region
    $region126: #{tpu_custom_call.1} parent=1 // pred_check
      _
    $region127: #{tpu_custom_call.1} parent=1 // pred_check_branch
      %8438 = sbr.rel (0) target = $region129
    $region128: #{tpu_custom_call.1} parent=1 // pred_region
      %8439 = dma.done [#allocation8], 16
    $region129: #{tpu_custom_call.1} parent=1 // pred_fallthru
      _
    // Predicated region
    $region130: #{tpu_custom_call.1} parent=1 // pred_check
      _
    $region131: #{tpu_custom_call.1} parent=1 // pred_check_branch
      %8441 = sbr.rel (0) target = $region133
    $region132: #{tpu_custom_call.1} parent=1 // pred_region
      %8442 = dma.done [#allocation26], 16
    $region133: #{tpu_custom_call.1} parent=1 // pred_fallthru
      _
    %8443 = vsyncpa [#allocation7], 1
    %8444 = vsyncpa [#allocation10], 1
    %8445 = vsyncpa [#allocation13], 1
    %8446 = vsyncpa [#allocation16], 1
    %8447 = vsyncpa [#allocation19], 1
    %8448 = vsyncpa [#allocation22], 1
    %8449 = vsyncpa [#allocation8], 1
    %8450 = vsyncpa [#allocation26], 1

</llo_original>
